<compile_context>
chip_gen: v5e
topology: v5e:2x2
jax: 0.10.0
libtpu: 0.0.40
codegen_flags: <defaults>
</compile_context>

<pallas_src>
import math
import functools

import jax
import jax.numpy as jnp
from jax.experimental import pallas as pl
from jax.experimental.pallas import tpu as pltpu


def _layernorm(v, gamma, beta, eps=1e-5):
    # one-pass variance: E[x^2] - E[x]^2
    mu = jnp.mean(v, axis=-1, keepdims=True)
    ms = jnp.mean(v * v, axis=-1, keepdims=True)
    var = ms - mu * mu
    return (v - mu) * jax.lax.rsqrt(var + eps) * gamma + beta


def transformer_block_kernel(
    x_ref,
    wqkv_ref, bqkv_ref, wo_ref, bo_ref,
    g1_ref, be1_ref,
    w1_ref, b1_ref, w2_ref, b2_ref,
    g2_ref, be2_ref,
    o_ref,
    ctx_scr,
    *, num_heads, head_dim,
):
    TB, L, D = x_ref.shape
    N = TB * L

    x = x_ref[...].astype(jnp.float32).reshape(N, D)      # (N, D) f32
    x_bf = x.astype(jnp.bfloat16)

    # --- fused QKV projection (scale pre-folded into the Q weight/bias) -------
    qkv = jnp.dot(x_bf, wqkv_ref[...],
                  preferred_element_type=jnp.float32) + bqkv_ref[...]
    qkv = qkv.astype(jnp.bfloat16)                         # single cast

    # --- multi-head attention --------------------------------------------------
    # Per-head batched (over TB) score/context einsums; each head's context is
    # written into one lane-dense (N, D) bf16 buffer so the output projection
    # is a single K=D matmul.
    for h in range(num_heads):                             # static unroll, H small
        lo = h * head_dim
        qh = qkv[:, lo:lo + head_dim].reshape(TB, L, head_dim)
        kh = qkv[:, D + lo:D + lo + head_dim].reshape(TB, L, head_dim)
        vh = qkv[:, 2 * D + lo:2 * D + lo + head_dim].reshape(TB, L, head_dim)

        s = jnp.einsum("bqd,bkd->bqk", qh, kh,
                       preferred_element_type=jnp.float32)  # (TB, L, L) f32
        m = jnp.max(s, axis=-1, keepdims=True)
        p = jnp.exp(s - m)                                   # f32 (v5e EUP: no bf16)
        denom = jnp.sum(p, axis=-1, keepdims=True)
        attn = p * pl.reciprocal(denom, approx=True)         # EUP slot

        ctx = jnp.einsum("bqk,bkd->bqd", attn.astype(jnp.bfloat16), vh,
                         preferred_element_type=jnp.float32)  # (TB, L, hd)
        ctx_scr[:, lo:lo + head_dim] = ctx.reshape(N, head_dim).astype(jnp.bfloat16)

    # single (N, D) @ (D, D) output projection
    attn_out = jnp.dot(ctx_scr[...], wo_ref[...],
                       preferred_element_type=jnp.float32) + bo_ref[...]

    # --- residual + LN1 (f32 elementwise) -------------------------------------
    x1 = _layernorm(x + attn_out, g1_ref[...], be1_ref[...])

    # --- MLP (Linear -> ReLU -> Linear); dropout = identity --------------------
    h1 = jnp.dot(x1.astype(jnp.bfloat16), w1_ref[...],
                 preferred_element_type=jnp.float32) + b1_ref[...]
    h1 = jnp.maximum(h1, 0.0)
    mlp_out = jnp.dot(h1.astype(jnp.bfloat16), w2_ref[...],
                      preferred_element_type=jnp.float32) + b2_ref[...]

    # --- residual + LN2 ---------------------------------------------------------
    x2 = _layernorm(x1 + mlp_out, g2_ref[...], be2_ref[...])
    o_ref[...] = x2.reshape(TB, L, D)


# ------------------------------ wrapper helpers ------------------------------
def _vmem_budget_bytes():
    try:
        info = pltpu.get_tpu_info()
        phys = int(getattr(info, "vmem_capacity_bytes", 64 * 1024 * 1024))
    except Exception:
        phys = 64 * 1024 * 1024
    # ~54 MiB on 64-MiB/TC parts (v7x); clamp ~100 MiB on 128-MiB parts (v5e/v6e)
    return int(min(phys * 0.85, 100 * 1024 * 1024))


def _act_bytes(tb, L, D, Hm, H):
    N = tb * L
    return int(
        N * 3 * D * 6                   # fused qkv (f32 acc + bf16 copy)
        + N * D * 4 * 6                 # x, ctx, residuals, LN temps
        + tb * H * L * L * 4 * 2.5      # scores / probs (f32) + bf16 attn
        + N * Hm * 4 * 1.5              # MLP hidden
        + N * D * 4 * 4                 # in/out blocks (double-buffered)
    )


def _pick_batch_block(B, L, D, Hm, H, act_budget):
    divisors = [t for t in range(1, B + 1) if B % t == 0]
    fits = [t for t in divisors if _act_bytes(t, L, D, Hm, H) <= act_budget] or [1]
    # Prefer >= 2 "parallel" grid steps (v7x: both TensorCores busy) once the
    # per-step slab is already MXU-friendly; otherwise maximize slab size so the
    # ~0.35us/step pipeline overhead on single-TC v5e/v6e is amortized.
    multi = [t for t in fits if B // t >= 2 and t * L >= 256]
    return max(multi) if multi else max(fits)


def transformer_block(x, params, *, num_heads, batch_block=None):
    """x: (B, L, D) float32. params: f32 weights; Linear weights are (in, out)
    so the kernel computes y = x @ W + b (matches torch y = x W^T + b)."""
    B, L, D = x.shape
    assert D % num_heads == 0, "embed_dim must be divisible by num_heads"
    head_dim = D // num_heads
    Hm = params["w1"].shape[1]

    bf, f32 = jnp.bfloat16, jnp.float32
    scale = 1.0 / math.sqrt(head_dim)
    # Fuse Q|K|V weights (scale folded into Q) and cast weights to bf16.
    wqkv = jnp.concatenate(
        [params["wq"] * scale, params["wk"], params["wv"]], axis=1).astype(bf)
    bqkv = jnp.concatenate(
        [params["bq"] * scale, params["bk"], params["bv"]], axis=1).astype(f32)
    wo, bo = params["wo"].astype(bf), params["bo"].astype(f32)
    w1, b1 = params["w1"].astype(bf), params["b1"].astype(f32)
    w2, b2 = params["w2"].astype(bf), params["b2"].astype(f32)
    g1, be1 = params["g1"].astype(f32), params["be1"].astype(f32)
    g2, be2 = params["g2"].astype(f32), params["be2"].astype(f32)

    weight_bytes = 2 * (wqkv.size + wo.size + w1.size + w2.size) + 4 * (
        bqkv.size + bo.size + b1.size + b2.size
        + g1.size + be1.size + g2.size + be2.size)

    vmem_limit = _vmem_budget_bytes()
    act_budget = max(vmem_limit - 2 * int(weight_bytes), 1 * 1024 * 1024)

    if batch_block is None:
        batch_block = _pick_batch_block(B, L, D, Hm, num_heads, act_budget)
    batch_block = min(max(int(batch_block), 1), B)
    while B % batch_block:
        batch_block -= 1
    TB = batch_block
    grid = (B // TB,)

    kernel = functools.partial(transformer_block_kernel,
                               num_heads=num_heads, head_dim=head_dim)

    def build(single_buffer_weights):
        def const(shp):
            if single_buffer_weights:
                return pl.BlockSpec(shp, lambda b: (0, 0),
                                    pipeline_mode=pl.Buffered(1))
            return pl.BlockSpec(shp, lambda b: (0, 0))

        in_specs = [
            pl.BlockSpec((TB, L, D), lambda b: (b, 0, 0)),   # x
            const((D, 3 * D)), const((1, 3 * D)),            # wqkv, bqkv
            const((D, D)), const((1, D)),                    # wo, bo
            const((1, D)), const((1, D)),                    # ln1 gamma, beta
            const((D, Hm)), const((1, Hm)),                  # mlp w1, b1
            const((Hm, D)), const((1, D)),                   # mlp w2, b2
            const((1, D)), const((1, D)),                    # ln2 gamma, beta
        ]
        return pl.pallas_call(
            kernel,
            out_shape=jax.ShapeDtypeStruct((B, L, D), jnp.float32),
            grid_spec=pltpu.PrefetchScalarGridSpec(
                num_scalar_prefetch=0,
                grid=grid,
                in_specs=in_specs,
                out_specs=pl.BlockSpec((TB, L, D), lambda b: (b, 0, 0)),
                scratch_shapes=[pltpu.VMEM((TB * L, D), jnp.bfloat16)],  # ctx buf
            ),
            compiler_params=pltpu.CompilerParams(
                dimension_semantics=("parallel",),
                vmem_limit_bytes=vmem_limit,
            ),
        )

    args = (x, wqkv, bqkv, wo, bo, g1, be1, w1, b1, w2, b2, g2, be2)
    try:
        out = build(single_buffer_weights=True)(*args)
        return jax.block_until_ready(out)
    except Exception:
        # Single-buffered resident weights (v7x VMEM win) are optional; fall
        # back to default double-buffering if this jax version rejects it.
        out = build(single_buffer_weights=False)(*args)
        return jax.block_until_ready(out)


# ---------------------------- pure-JAX reference ----------------------------
def transformer_block_ref(x, p, *, num_heads):
    B, L, D = x.shape
    hd = D // num_heads

    def ln(v, g, b, eps=1e-5):
        mu = jnp.mean(v, axis=-1, keepdims=True)
        var = jnp.mean((v - mu) ** 2, axis=-1, keepdims=True)
        return (v - mu) / jnp.sqrt(var + eps) * g + b

    q = x @ p["wq"] + p["bq"]
    k = x @ p["wk"] + p["bk"]
    v = x @ p["wv"] + p["bv"]
    q = q.reshape(B, L, num_heads, hd).transpose(0, 2, 1, 3)
    k = k.reshape(B, L, num_heads, hd).transpose(0, 2, 1, 3)
    v = v.reshape(B, L, num_heads, hd).transpose(0, 2, 1, 3)
    s = jnp.einsum("bhqd,bhkd->bhqk", q, k) / math.sqrt(hd)
    a = jax.nn.softmax(s, axis=-1)
    ctx = jnp.einsum("bhqk,bhkd->bhqd", a, v).transpose(0, 2, 1, 3).reshape(B, L, D)
    attn_out = ctx @ p["wo"] + p["bo"]
    x1 = ln(x + attn_out, p["g1"][0], p["be1"][0])
    h = jax.nn.relu(x1 @ p["w1"] + p["b1"])
    mlp_out = h @ p["w2"] + p["b2"]
    return ln(x1 + mlp_out, p["g2"][0], p["be2"][0])


if __name__ == "__main__":
    # Small but lane-dense shapes: D = 128 (one full lane width), head_dim = 32.
    B, L, D = 4, 16, 128
    num_heads = 4
    mlp_ratio = 4.0
    Hm = int(mlp_ratio * D)

    key = jax.random.PRNGKey(0)
    keys = jax.random.split(key, 13)

    def w(kk, shape, scale=0.05):
        return (scale * jax.random.normal(kk, shape)).astype(jnp.float32)

    params = {
        "wq": w(keys[0], (D, D)), "bq": w(keys[1], (1, D)),
        "wk": w(keys[2], (D, D)), "bk": w(keys[3], (1, D)),
        "wv": w(keys[4], (D, D)), "bv": w(keys[5], (1, D)),
        "wo": w(keys[6], (D, D)), "bo": w(keys[7], (1, D)),
        "g1": jnp.ones((1, D), jnp.float32), "be1": jnp.zeros((1, D), jnp.float32),
        "w1": w(keys[8], (D, Hm)), "b1": w(keys[9], (1, Hm)),
        "w2": w(keys[10], (Hm, D)), "b2": w(keys[11], (1, D)),
        "g2": jnp.ones((1, D), jnp.float32), "be2": jnp.zeros((1, D), jnp.float32),
    }

    x = jax.random.normal(keys[12], (B, L, D), dtype=jnp.float32)

    out = transformer_block(x, params, num_heads=num_heads)
    out = jax.block_until_ready(out)

    ref = transformer_block_ref(x, params, num_heads=num_heads)
    assert out.shape == (B, L, D)
    # bf16 matmul operands + approx reciprocal + one-pass variance -> compare
    # against the f32 reference with a correspondingly relaxed tolerance.
    err = float(jnp.max(jnp.abs(out - ref)))
    assert jnp.allclose(out, ref, atol=5e-2, rtol=5e-2), f"max abs err {err}"
    print("KERNEL_OK")
</pallas_src>

<mosaic_0001>
module attributes {stable_mosaic.version = 11 : i64} {
  func.func @transformer_block_kernel(%arg0: i32, %arg1: memref<4x16x128xf32, #tpu.memory_space<vmem>>, %arg2: memref<128x384xbf16, #tpu.memory_space<vmem>>, %arg3: memref<1x384xf32, #tpu.memory_space<vmem>>, %arg4: memref<128x128xbf16, #tpu.memory_space<vmem>>, %arg5: memref<1x128xf32, #tpu.memory_space<vmem>>, %arg6: memref<1x128xf32, #tpu.memory_space<vmem>>, %arg7: memref<1x128xf32, #tpu.memory_space<vmem>>, %arg8: memref<128x512xbf16, #tpu.memory_space<vmem>>, %arg9: memref<1x512xf32, #tpu.memory_space<vmem>>, %arg10: memref<512x128xbf16, #tpu.memory_space<vmem>>, %arg11: memref<1x128xf32, #tpu.memory_space<vmem>>, %arg12: memref<1x128xf32, #tpu.memory_space<vmem>>, %arg13: memref<1x128xf32, #tpu.memory_space<vmem>>, %arg14: memref<4x16x128xf32, #tpu.memory_space<vmem>>, %arg15: memref<64x128xbf16, #tpu.memory_space<vmem>>) attributes {dimension_semantics = [#tpu.dimension_semantics<parallel>], iteration_bounds = array<i64: 1>, scalar_prefetch = 0 : i64, scratch_operands = 1 : i64, tpu.core_type = #tpu.core_type<tc>, window_params = [{transform_indices = @transform_0, window_bounds = array<i64: 4, 16, 128>}, {pipeline_mode = #tpu.pipeline_mode<synchronous>, transform_indices = @transform_1, window_bounds = array<i64: 128, 384>}, {pipeline_mode = #tpu.pipeline_mode<synchronous>, transform_indices = @transform_2, window_bounds = array<i64: 1, 384>}, {pipeline_mode = #tpu.pipeline_mode<synchronous>, transform_indices = @transform_3, window_bounds = array<i64: 128, 128>}, {pipeline_mode = #tpu.pipeline_mode<synchronous>, transform_indices = @transform_4, window_bounds = array<i64: 1, 128>}, {pipeline_mode = #tpu.pipeline_mode<synchronous>, transform_indices = @transform_5, window_bounds = array<i64: 1, 128>}, {pipeline_mode = #tpu.pipeline_mode<synchronous>, transform_indices = @transform_6, window_bounds = array<i64: 1, 128>}, {pipeline_mode = #tpu.pipeline_mode<synchronous>, transform_indices = @transform_7, window_bounds = array<i64: 128, 512>}, {pipeline_mode = #tpu.pipeline_mode<synchronous>, transform_indices = @transform_8, window_bounds = array<i64: 1, 512>}, {pipeline_mode = #tpu.pipeline_mode<synchronous>, transform_indices = @transform_9, window_bounds = array<i64: 512, 128>}, {pipeline_mode = #tpu.pipeline_mode<synchronous>, transform_indices = @transform_10, window_bounds = array<i64: 1, 128>}, {pipeline_mode = #tpu.pipeline_mode<synchronous>, transform_indices = @transform_11, window_bounds = array<i64: 1, 128>}, {pipeline_mode = #tpu.pipeline_mode<synchronous>, transform_indices = @transform_12, window_bounds = array<i64: 1, 128>}, {transform_indices = @transform_13, window_bounds = array<i64: 4, 16, 128>}]} {
    %c0 = arith.constant 0 : index
    %c0_0 = arith.constant 0 : index
    %c0_1 = arith.constant 0 : index
    %0 = vector.load %arg1[%c0, %c0_0, %c0_1] : memref<4x16x128xf32, #tpu.memory_space<vmem>>, vector<4x16x128xf32>
    %1 = vector.shape_cast %0 : vector<4x16x128xf32> to vector<64x128xf32>
    %2 = arith.truncf %1 : vector<64x128xf32> to vector<64x128xbf16>
    %c0_2 = arith.constant 0 : index
    %c0_3 = arith.constant 0 : index
    %3 = vector.load %arg2[%c0_2, %c0_3] : memref<128x384xbf16, #tpu.memory_space<vmem>>, vector<128x384xbf16>
    %cst = arith.constant dense<0.000000e+00> : vector<64x384xf32>
    %4 = tpu.matmul %2, %3, %cst {dimension_numbers = #tpu.dot_dimension_numbers<[1], [0], [0], [1], [0, 0, 1, 1], [], []>} : vector<64x128xbf16>, vector<128x384xbf16>, vector<64x384xf32> -> vector<64x384xf32>
    %c0_4 = arith.constant 0 : index
    %c0_5 = arith.constant 0 : index
    %5 = vector.load %arg3[%c0_4, %c0_5] : memref<1x384xf32, #tpu.memory_space<vmem>>, vector<1x384xf32>
    %6 = vector.broadcast %5 : vector<1x384xf32> to vector<64x384xf32>
    %7 = arith.addf %4, %6 : vector<64x384xf32>
    %8 = arith.truncf %7 : vector<64x384xf32> to vector<64x384xbf16>
    %9 = vector.extract_strided_slice %8 {offsets = [0, 0], sizes = [64, 32], strides = [1, 1]} : vector<64x384xbf16> to vector<64x32xbf16>
    %10 = vector.shape_cast %9 : vector<64x32xbf16> to vector<4x16x32xbf16>
    %11 = vector.extract_strided_slice %8 {offsets = [0, 128], sizes = [64, 32], strides = [1, 1]} : vector<64x384xbf16> to vector<64x32xbf16>
    %12 = vector.shape_cast %11 : vector<64x32xbf16> to vector<4x16x32xbf16>
    %13 = vector.extract_strided_slice %8 {offsets = [0, 256], sizes = [64, 32], strides = [1, 1]} : vector<64x384xbf16> to vector<64x32xbf16>
    %14 = vector.shape_cast %13 : vector<64x32xbf16> to vector<4x16x32xbf16>
    "tpu.trace_start"() <{level = 10 : i32, message = "bqd,bkd->bqk"}> : () -> ()
    %cst_6 = arith.constant dense<0.000000e+00> : vector<4x16x16xf32>
    %15 = tpu.matmul %10, %12, %cst_6 {dimension_numbers = #tpu.dot_dimension_numbers<[2], [2], [1], [1], [0, 0, 0, 1, 1, 1], [0], [0]>} : vector<4x16x32xbf16>, vector<4x16x32xbf16>, vector<4x16x16xf32> -> vector<4x16x16xf32>
    "tpu.trace_stop"() : () -> ()
    %cst_7 = arith.constant dense<0xFF800000> : vector<4x16xf32>
    %16 = vector.multi_reduction <maximumf>, %15, %cst_7 [2] : vector<4x16x16xf32> to vector<4x16xf32>
    %17 = vector.shape_cast %16 : vector<4x16xf32> to vector<4x16x1xf32>
    %18 = vector.broadcast %17 : vector<4x16x1xf32> to vector<4x16x16xf32>
    %19 = arith.subf %15, %18 : vector<4x16x16xf32>
    %20 = math.exp %19 : vector<4x16x16xf32>
    %cst_8 = arith.constant dense<0.000000e+00> : vector<4x16xf32>
    %21 = vector.multi_reduction <add>, %20, %cst_8 [2] : vector<4x16x16xf32> to vector<4x16xf32>
    %22 = vector.shape_cast %21 : vector<4x16xf32> to vector<4x16x1xf32>
    %23 = tpu.reciprocal %22 {approx = true} : vector<4x16x1xf32> -> vector<4x16x1xf32>
    %24 = vector.broadcast %23 : vector<4x16x1xf32> to vector<4x16x16xf32>
    %25 = arith.mulf %20, %24 : vector<4x16x16xf32>
    %26 = arith.truncf %25 : vector<4x16x16xf32> to vector<4x16x16xbf16>
    "tpu.trace_start"() <{level = 10 : i32, message = "bqk,bkd->bqd"}> : () -> ()
    %cst_9 = arith.constant dense<0.000000e+00> : vector<4x16x32xf32>
    %27 = tpu.matmul %26, %14, %cst_9 {dimension_numbers = #tpu.dot_dimension_numbers<[2], [1], [1], [2], [0, 0, 0, 1, 1, 2], [0], [0]>} : vector<4x16x16xbf16>, vector<4x16x32xbf16>, vector<4x16x32xf32> -> vector<4x16x32xf32>
    "tpu.trace_stop"() : () -> ()
    %28 = vector.shape_cast %27 : vector<4x16x32xf32> to vector<64x32xf32>
    %29 = arith.truncf %28 : vector<64x32xf32> to vector<64x32xbf16>
    %c0_10 = arith.constant 0 : index
    %c0_11 = arith.constant 0 : index
    %30 = vector.load %arg15[%c0_10, %c0_11] : memref<64x128xbf16, #tpu.memory_space<vmem>>, vector<64x32xbf16>
    tpu.vector_store %arg15[%c0_10, %c0_11], %29 {strides = array<i32>} : memref<64x128xbf16, #tpu.memory_space<vmem>>, vector<64x32xbf16>,
    %31 = vector.extract_strided_slice %8 {offsets = [0, 32], sizes = [64, 32], strides = [1, 1]} : vector<64x384xbf16> to vector<64x32xbf16>
    %32 = vector.shape_cast %31 : vector<64x32xbf16> to vector<4x16x32xbf16>
    %33 = vector.extract_strided_slice %8 {offsets = [0, 160], sizes = [64, 32], strides = [1, 1]} : vector<64x384xbf16> to vector<64x32xbf16>
    %34 = vector.shape_cast %33 : vector<64x32xbf16> to vector<4x16x32xbf16>
    %35 = vector.extract_strided_slice %8 {offsets = [0, 288], sizes = [64, 32], strides = [1, 1]} : vector<64x384xbf16> to vector<64x32xbf16>
    %36 = vector.shape_cast %35 : vector<64x32xbf16> to vector<4x16x32xbf16>
    "tpu.trace_start"() <{level = 10 : i32, message = "bqd,bkd->bqk"}> : () -> ()
    %cst_12 = arith.constant dense<0.000000e+00> : vector<4x16x16xf32>
    %37 = tpu.matmul %32, %34, %cst_12 {dimension_numbers = #tpu.dot_dimension_numbers<[2], [2], [1], [1], [0, 0, 0, 1, 1, 1], [0], [0]>} : vector<4x16x32xbf16>, vector<4x16x32xbf16>, vector<4x16x16xf32> -> vector<4x16x16xf32>
    "tpu.trace_stop"() : () -> ()
    %cst_13 = arith.constant dense<0xFF800000> : vector<4x16xf32>
    %38 = vector.multi_reduction <maximumf>, %37, %cst_13 [2] : vector<4x16x16xf32> to vector<4x16xf32>
    %39 = vector.shape_cast %38 : vector<4x16xf32> to vector<4x16x1xf32>
    %40 = vector.broadcast %39 : vector<4x16x1xf32> to vector<4x16x16xf32>
    %41 = arith.subf %37, %40 : vector<4x16x16xf32>
    %42 = math.exp %41 : vector<4x16x16xf32>
    %cst_14 = arith.constant dense<0.000000e+00> : vector<4x16xf32>
    %43 = vector.multi_reduction <add>, %42, %cst_14 [2] : vector<4x16x16xf32> to vector<4x16xf32>
    %44 = vector.shape_cast %43 : vector<4x16xf32> to vector<4x16x1xf32>
    %45 = tpu.reciprocal %44 {approx = true} : vector<4x16x1xf32> -> vector<4x16x1xf32>
    %46 = vector.broadcast %45 : vector<4x16x1xf32> to vector<4x16x16xf32>
    %47 = arith.mulf %42, %46 : vector<4x16x16xf32>
    %48 = arith.truncf %47 : vector<4x16x16xf32> to vector<4x16x16xbf16>
    "tpu.trace_start"() <{level = 10 : i32, message = "bqk,bkd->bqd"}> : () -> ()
    %cst_15 = arith.constant dense<0.000000e+00> : vector<4x16x32xf32>
    %49 = tpu.matmul %48, %36, %cst_15 {dimension_numbers = #tpu.dot_dimension_numbers<[2], [1], [1], [2], [0, 0, 0, 1, 1, 2], [0], [0]>} : vector<4x16x16xbf16>, vector<4x16x32xbf16>, vector<4x16x32xf32> -> vector<4x16x32xf32>
    "tpu.trace_stop"() : () -> ()
    %50 = vector.shape_cast %49 : vector<4x16x32xf32> to vector<64x32xf32>
    %51 = arith.truncf %50 : vector<64x32xf32> to vector<64x32xbf16>
    %c0_16 = arith.constant 0 : index
    %c32 = arith.constant 32 : index
    %52 = vector.load %arg15[%c0_16, %c32] : memref<64x128xbf16, #tpu.memory_space<vmem>>, vector<64x32xbf16>
    tpu.vector_store %arg15[%c0_16, %c32], %51 {strides = array<i32>} : memref<64x128xbf16, #tpu.memory_space<vmem>>, vector<64x32xbf16>,
    %53 = vector.extract_strided_slice %8 {offsets = [0, 64], sizes = [64, 32], strides = [1, 1]} : vector<64x384xbf16> to vector<64x32xbf16>
    %54 = vector.shape_cast %53 : vector<64x32xbf16> to vector<4x16x32xbf16>
    %55 = vector.extract_strided_slice %8 {offsets = [0, 192], sizes = [64, 32], strides = [1, 1]} : vector<64x384xbf16> to vector<64x32xbf16>
    %56 = vector.shape_cast %55 : vector<64x32xbf16> to vector<4x16x32xbf16>
    %57 = vector.extract_strided_slice %8 {offsets = [0, 320], sizes = [64, 32], strides = [1, 1]} : vector<64x384xbf16> to vector<64x32xbf16>
    %58 = vector.shape_cast %57 : vector<64x32xbf16> to vector<4x16x32xbf16>
    "tpu.trace_start"() <{level = 10 : i32, message = "bqd,bkd->bqk"}> : () -> ()
    %cst_17 = arith.constant dense<0.000000e+00> : vector<4x16x16xf32>
    %59 = tpu.matmul %54, %56, %cst_17 {dimension_numbers = #tpu.dot_dimension_numbers<[2], [2], [1], [1], [0, 0, 0, 1, 1, 1], [0], [0]>} : vector<4x16x32xbf16>, vector<4x16x32xbf16>, vector<4x16x16xf32> -> vector<4x16x16xf32>
    "tpu.trace_stop"() : () -> ()
    %cst_18 = arith.constant dense<0xFF800000> : vector<4x16xf32>
    %60 = vector.multi_reduction <maximumf>, %59, %cst_18 [2] : vector<4x16x16xf32> to vector<4x16xf32>
    %61 = vector.shape_cast %60 : vector<4x16xf32> to vector<4x16x1xf32>
    %62 = vector.broadcast %61 : vector<4x16x1xf32> to vector<4x16x16xf32>
    %63 = arith.subf %59, %62 : vector<4x16x16xf32>
    %64 = math.exp %63 : vector<4x16x16xf32>
    %cst_19 = arith.constant dense<0.000000e+00> : vector<4x16xf32>
    %65 = vector.multi_reduction <add>, %64, %cst_19 [2] : vector<4x16x16xf32> to vector<4x16xf32>
    %66 = vector.shape_cast %65 : vector<4x16xf32> to vector<4x16x1xf32>
    %67 = tpu.reciprocal %66 {approx = true} : vector<4x16x1xf32> -> vector<4x16x1xf32>
    %68 = vector.broadcast %67 : vector<4x16x1xf32> to vector<4x16x16xf32>
    %69 = arith.mulf %64, %68 : vector<4x16x16xf32>
    %70 = arith.truncf %69 : vector<4x16x16xf32> to vector<4x16x16xbf16>
    "tpu.trace_start"() <{level = 10 : i32, message = "bqk,bkd->bqd"}> : () -> ()
    %cst_20 = arith.constant dense<0.000000e+00> : vector<4x16x32xf32>
    %71 = tpu.matmul %70, %58, %cst_20 {dimension_numbers = #tpu.dot_dimension_numbers<[2], [1], [1], [2], [0, 0, 0, 1, 1, 2], [0], [0]>} : vector<4x16x16xbf16>, vector<4x16x32xbf16>, vector<4x16x32xf32> -> vector<4x16x32xf32>
    "tpu.trace_stop"() : () -> ()
    %72 = vector.shape_cast %71 : vector<4x16x32xf32> to vector<64x32xf32>
    %73 = arith.truncf %72 : vector<64x32xf32> to vector<64x32xbf16>
    %c0_21 = arith.constant 0 : index
    %c64 = arith.constant 64 : index
    %74 = vector.load %arg15[%c0_21, %c64] : memref<64x128xbf16, #tpu.memory_space<vmem>>, vector<64x32xbf16>
    tpu.vector_store %arg15[%c0_21, %c64], %73 {strides = array<i32>} : memref<64x128xbf16, #tpu.memory_space<vmem>>, vector<64x32xbf16>,
    %75 = vector.extract_strided_slice %8 {offsets = [0, 96], sizes = [64, 32], strides = [1, 1]} : vector<64x384xbf16> to vector<64x32xbf16>
    %76 = vector.shape_cast %75 : vector<64x32xbf16> to vector<4x16x32xbf16>
    %77 = vector.extract_strided_slice %8 {offsets = [0, 224], sizes = [64, 32], strides = [1, 1]} : vector<64x384xbf16> to vector<64x32xbf16>
    %78 = vector.shape_cast %77 : vector<64x32xbf16> to vector<4x16x32xbf16>
    %79 = vector.extract_strided_slice %8 {offsets = [0, 352], sizes = [64, 32], strides = [1, 1]} : vector<64x384xbf16> to vector<64x32xbf16>
    %80 = vector.shape_cast %79 : vector<64x32xbf16> to vector<4x16x32xbf16>
    "tpu.trace_start"() <{level = 10 : i32, message = "bqd,bkd->bqk"}> : () -> ()
    %cst_22 = arith.constant dense<0.000000e+00> : vector<4x16x16xf32>
    %81 = tpu.matmul %76, %78, %cst_22 {dimension_numbers = #tpu.dot_dimension_numbers<[2], [2], [1], [1], [0, 0, 0, 1, 1, 1], [0], [0]>} : vector<4x16x32xbf16>, vector<4x16x32xbf16>, vector<4x16x16xf32> -> vector<4x16x16xf32>
    "tpu.trace_stop"() : () -> ()
    %cst_23 = arith.constant dense<0xFF800000> : vector<4x16xf32>
    %82 = vector.multi_reduction <maximumf>, %81, %cst_23 [2] : vector<4x16x16xf32> to vector<4x16xf32>
    %83 = vector.shape_cast %82 : vector<4x16xf32> to vector<4x16x1xf32>
    %84 = vector.broadcast %83 : vector<4x16x1xf32> to vector<4x16x16xf32>
    %85 = arith.subf %81, %84 : vector<4x16x16xf32>
    %86 = math.exp %85 : vector<4x16x16xf32>
    %cst_24 = arith.constant dense<0.000000e+00> : vector<4x16xf32>
    %87 = vector.multi_reduction <add>, %86, %cst_24 [2] : vector<4x16x16xf32> to vector<4x16xf32>
    %88 = vector.shape_cast %87 : vector<4x16xf32> to vector<4x16x1xf32>
    %89 = tpu.reciprocal %88 {approx = true} : vector<4x16x1xf32> -> vector<4x16x1xf32>
    %90 = vector.broadcast %89 : vector<4x16x1xf32> to vector<4x16x16xf32>
    %91 = arith.mulf %86, %90 : vector<4x16x16xf32>
    %92 = arith.truncf %91 : vector<4x16x16xf32> to vector<4x16x16xbf16>
    "tpu.trace_start"() <{level = 10 : i32, message = "bqk,bkd->bqd"}> : () -> ()
    %cst_25 = arith.constant dense<0.000000e+00> : vector<4x16x32xf32>
    %93 = tpu.matmul %92, %80, %cst_25 {dimension_numbers = #tpu.dot_dimension_numbers<[2], [1], [1], [2], [0, 0, 0, 1, 1, 2], [0], [0]>} : vector<4x16x16xbf16>, vector<4x16x32xbf16>, vector<4x16x32xf32> -> vector<4x16x32xf32>
    "tpu.trace_stop"() : () -> ()
    %94 = vector.shape_cast %93 : vector<4x16x32xf32> to vector<64x32xf32>
    %95 = arith.truncf %94 : vector<64x32xf32> to vector<64x32xbf16>
    %c0_26 = arith.constant 0 : index
    %c96 = arith.constant 96 : index
    %96 = vector.load %arg15[%c0_26, %c96] : memref<64x128xbf16, #tpu.memory_space<vmem>>, vector<64x32xbf16>
    tpu.vector_store %arg15[%c0_26, %c96], %95 {strides = array<i32>} : memref<64x128xbf16, #tpu.memory_space<vmem>>, vector<64x32xbf16>,
    %c0_27 = arith.constant 0 : index
    %c0_28 = arith.constant 0 : index
    %97 = vector.load %arg15[%c0_27, %c0_28] : memref<64x128xbf16, #tpu.memory_space<vmem>>, vector<64x128xbf16>
    %c0_29 = arith.constant 0 : index
    %c0_30 = arith.constant 0 : index
    %98 = vector.load %arg4[%c0_29, %c0_30] : memref<128x128xbf16, #tpu.memory_space<vmem>>, vector<128x128xbf16>
    %cst_31 = arith.constant dense<0.000000e+00> : vector<64x128xf32>
    %99 = tpu.matmul %97, %98, %cst_31 {dimension_numbers = #tpu.dot_dimension_numbers<[1], [0], [0], [1], [0, 0, 1, 1], [], []>} : vector<64x128xbf16>, vector<128x128xbf16>, vector<64x128xf32> -> vector<64x128xf32>
    %c0_32 = arith.constant 0 : index
    %c0_33 = arith.constant 0 : index
    %100 = vector.load %arg5[%c0_32, %c0_33] : memref<1x128xf32, #tpu.memory_space<vmem>>, vector<1x128xf32>
    %101 = vector.broadcast %100 : vector<1x128xf32> to vector<64x128xf32>
    %102 = arith.addf %99, %101 : vector<64x128xf32>
    %103 = arith.addf %1, %102 : vector<64x128xf32>
    %c0_34 = arith.constant 0 : index
    %c0_35 = arith.constant 0 : index
    %104 = vector.load %arg6[%c0_34, %c0_35] : memref<1x128xf32, #tpu.memory_space<vmem>>, vector<1x128xf32>
    %c0_36 = arith.constant 0 : index
    %c0_37 = arith.constant 0 : index
    %105 = vector.load %arg7[%c0_36, %c0_37] : memref<1x128xf32, #tpu.memory_space<vmem>>, vector<1x128xf32>
    %cst_38 = arith.constant dense<0.000000e+00> : vector<64xf32>
    %106 = vector.multi_reduction <add>, %103, %cst_38 [1] : vector<64x128xf32> to vector<64xf32>
    %107 = vector.shape_cast %106 : vector<64xf32> to vector<64x1xf32>
    %cst_39 = arith.constant 1.280000e+02 : f32
    %108 = vector.broadcast %cst_39 : f32 to vector<64x1xf32>
    %109 = arith.divf %107, %108 : vector<64x1xf32>
    %110 = arith.mulf %103, %103 : vector<64x128xf32>
    %cst_40 = arith.constant dense<0.000000e+00> : vector<64xf32>
    %111 = vector.multi_reduction <add>, %110, %cst_40 [1] : vector<64x128xf32> to vector<64xf32>
    %112 = vector.shape_cast %111 : vector<64xf32> to vector<64x1xf32>
    %cst_41 = arith.constant 1.280000e+02 : f32
    %113 = vector.broadcast %cst_41 : f32 to vector<64x1xf32>
    %114 = arith.divf %112, %113 : vector<64x1xf32>
    %115 = arith.mulf %109, %109 : vector<64x1xf32>
    %116 = arith.subf %114, %115 : vector<64x1xf32>
    %117 = vector.broadcast %109 : vector<64x1xf32> to vector<64x128xf32>
    %118 = arith.subf %103, %117 : vector<64x128xf32>
    %cst_42 = arith.constant 9.99999974E-6 : f32
    %119 = vector.broadcast %cst_42 : f32 to vector<64x1xf32>
    %120 = arith.addf %116, %119 : vector<64x1xf32>
    %121 = math.rsqrt %120 : vector<64x1xf32>
    %122 = vector.broadcast %121 : vector<64x1xf32> to vector<64x128xf32>
    %123 = arith.mulf %118, %122 : vector<64x128xf32>
    %124 = vector.broadcast %104 : vector<1x128xf32> to vector<64x128xf32>
    %125 = arith.mulf %123, %124 : vector<64x128xf32>
    %126 = vector.broadcast %105 : vector<1x128xf32> to vector<64x128xf32>
    %127 = arith.addf %125, %126 : vector<64x128xf32>
    %128 = arith.truncf %127 : vector<64x128xf32> to vector<64x128xbf16>
    %c0_43 = arith.constant 0 : index
    %c0_44 = arith.constant 0 : index
    %129 = vector.load %arg8[%c0_43, %c0_44] : memref<128x512xbf16, #tpu.memory_space<vmem>>, vector<128x512xbf16>
    %cst_45 = arith.constant dense<0.000000e+00> : vector<64x512xf32>
    %130 = tpu.matmul %128, %129, %cst_45 {dimension_numbers = #tpu.dot_dimension_numbers<[1], [0], [0], [1], [0, 0, 1, 1], [], []>} : vector<64x128xbf16>, vector<128x512xbf16>, vector<64x512xf32> -> vector<64x512xf32>
    %c0_46 = arith.constant 0 : index
    %c0_47 = arith.constant 0 : index
    %131 = vector.load %arg9[%c0_46, %c0_47] : memref<1x512xf32, #tpu.memory_space<vmem>>, vector<1x512xf32>
    %132 = vector.broadcast %131 : vector<1x512xf32> to vector<64x512xf32>
    %133 = arith.addf %130, %132 : vector<64x512xf32>
    %cst_48 = arith.constant 0.000000e+00 : f32
    %134 = vector.broadcast %cst_48 : f32 to vector<64x512xf32>
    %135 = arith.maximumf %133, %134 : vector<64x512xf32>
    %136 = arith.truncf %135 : vector<64x512xf32> to vector<64x512xbf16>
    %c0_49 = arith.constant 0 : index
    %c0_50 = arith.constant 0 : index
    %137 = vector.load %arg10[%c0_49, %c0_50] : memref<512x128xbf16, #tpu.memory_space<vmem>>, vector<512x128xbf16>
    %cst_51 = arith.constant dense<0.000000e+00> : vector<64x128xf32>
    %138 = tpu.matmul %136, %137, %cst_51 {dimension_numbers = #tpu.dot_dimension_numbers<[1], [0], [0], [1], [0, 0, 1, 1], [], []>} : vector<64x512xbf16>, vector<512x128xbf16>, vector<64x128xf32> -> vector<64x128xf32>
    %c0_52 = arith.constant 0 : index
    %c0_53 = arith.constant 0 : index
    %139 = vector.load %arg11[%c0_52, %c0_53] : memref<1x128xf32, #tpu.memory_space<vmem>>, vector<1x128xf32>
    %140 = vector.broadcast %139 : vector<1x128xf32> to vector<64x128xf32>
    %141 = arith.addf %138, %140 : vector<64x128xf32>
    %142 = arith.addf %127, %141 : vector<64x128xf32>
    %c0_54 = arith.constant 0 : index
    %c0_55 = arith.constant 0 : index
    %143 = vector.load %arg12[%c0_54, %c0_55] : memref<1x128xf32, #tpu.memory_space<vmem>>, vector<1x128xf32>
    %c0_56 = arith.constant 0 : index
    %c0_57 = arith.constant 0 : index
    %144 = vector.load %arg13[%c0_56, %c0_57] : memref<1x128xf32, #tpu.memory_space<vmem>>, vector<1x128xf32>
    %cst_58 = arith.constant dense<0.000000e+00> : vector<64xf32>
    %145 = vector.multi_reduction <add>, %142, %cst_58 [1] : vector<64x128xf32> to vector<64xf32>
    %146 = vector.shape_cast %145 : vector<64xf32> to vector<64x1xf32>
    %cst_59 = arith.constant 1.280000e+02 : f32
    %147 = vector.broadcast %cst_59 : f32 to vector<64x1xf32>
    %148 = arith.divf %146, %147 : vector<64x1xf32>
    %149 = arith.mulf %142, %142 : vector<64x128xf32>
    %cst_60 = arith.constant dense<0.000000e+00> : vector<64xf32>
    %150 = vector.multi_reduction <add>, %149, %cst_60 [1] : vector<64x128xf32> to vector<64xf32>
    %151 = vector.shape_cast %150 : vector<64xf32> to vector<64x1xf32>
    %cst_61 = arith.constant 1.280000e+02 : f32
    %152 = vector.broadcast %cst_61 : f32 to vector<64x1xf32>
    %153 = arith.divf %151, %152 : vector<64x1xf32>
    %154 = arith.mulf %148, %148 : vector<64x1xf32>
    %155 = arith.subf %153, %154 : vector<64x1xf32>
    %156 = vector.broadcast %148 : vector<64x1xf32> to vector<64x128xf32>
    %157 = arith.subf %142, %156 : vector<64x128xf32>
    %cst_62 = arith.constant 9.99999974E-6 : f32
    %158 = vector.broadcast %cst_62 : f32 to vector<64x1xf32>
    %159 = arith.addf %155, %158 : vector<64x1xf32>
    %160 = math.rsqrt %159 : vector<64x1xf32>
    %161 = vector.broadcast %160 : vector<64x1xf32> to vector<64x128xf32>
    %162 = arith.mulf %157, %161 : vector<64x128xf32>
    %163 = vector.broadcast %143 : vector<1x128xf32> to vector<64x128xf32>
    %164 = arith.mulf %162, %163 : vector<64x128xf32>
    %165 = vector.broadcast %144 : vector<1x128xf32> to vector<64x128xf32>
    %166 = arith.addf %164, %165 : vector<64x128xf32>
    %167 = vector.shape_cast %166 : vector<64x128xf32> to vector<4x16x128xf32>
    %c0_63 = arith.constant 0 : index
    %c0_64 = arith.constant 0 : index
    %c0_65 = arith.constant 0 : index
    %168 = vector.load %arg14[%c0_63, %c0_64, %c0_65] : memref<4x16x128xf32, #tpu.memory_space<vmem>>, vector<4x16x128xf32>
    tpu.vector_store %arg14[%c0_63, %c0_64, %c0_65], %167 {strides = array<i32>} : memref<4x16x128xf32, #tpu.memory_space<vmem>>, vector<4x16x128xf32>,
    return
  }
  func.func @transform_0(%arg0: i32) -> (i32, i32, i32) {
    %c0_i32 = arith.constant 0 : i32
    %c0_i32_0 = arith.constant 0 : i32
    %c0_i32_1 = arith.constant 0 : i32
    return %arg0, %c0_i32, %c0_i32_0 : i32, i32, i32
  }
  func.func @transform_1(%arg0: i32) -> (i32, i32) {
    %c0_i32 = arith.constant 0 : i32
    %c0_i32_0 = arith.constant 0 : i32
    %c0_i32_1 = arith.constant 0 : i32
    return %c0_i32, %c0_i32_0 : i32, i32
  }
  func.func @transform_2(%arg0: i32) -> (i32, i32) {
    %c0_i32 = arith.constant 0 : i32
    %c0_i32_0 = arith.constant 0 : i32
    %c0_i32_1 = arith.constant 0 : i32
    return %c0_i32, %c0_i32_0 : i32, i32
  }
  func.func @transform_3(%arg0: i32) -> (i32, i32) {
    %c0_i32 = arith.constant 0 : i32
    %c0_i32_0 = arith.constant 0 : i32
    %c0_i32_1 = arith.constant 0 : i32
    return %c0_i32, %c0_i32_0 : i32, i32
  }
  func.func @transform_4(%arg0: i32) -> (i32, i32) {
    %c0_i32 = arith.constant 0 : i32
    %c0_i32_0 = arith.constant 0 : i32
    %c0_i32_1 = arith.constant 0 : i32
    return %c0_i32, %c0_i32_0 : i32, i32
  }
  func.func @transform_5(%arg0: i32) -> (i32, i32) {
    %c0_i32 = arith.constant 0 : i32
    %c0_i32_0 = arith.constant 0 : i32
    %c0_i32_1 = arith.constant 0 : i32
    return %c0_i32, %c0_i32_0 : i32, i32
  }
  func.func @transform_6(%arg0: i32) -> (i32, i32) {
    %c0_i32 = arith.constant 0 : i32
    %c0_i32_0 = arith.constant 0 : i32
    %c0_i32_1 = arith.constant 0 : i32
    return %c0_i32, %c0_i32_0 : i32, i32
  }
  func.func @transform_7(%arg0: i32) -> (i32, i32) {
    %c0_i32 = arith.constant 0 : i32
    %c0_i32_0 = arith.constant 0 : i32
    %c0_i32_1 = arith.constant 0 : i32
    return %c0_i32, %c0_i32_0 : i32, i32
  }
  func.func @transform_8(%arg0: i32) -> (i32, i32) {
    %c0_i32 = arith.constant 0 : i32
    %c0_i32_0 = arith.constant 0 : i32
    %c0_i32_1 = arith.constant 0 : i32
    return %c0_i32, %c0_i32_0 : i32, i32
  }
  func.func @transform_9(%arg0: i32) -> (i32, i32) {
    %c0_i32 = arith.constant 0 : i32
    %c0_i32_0 = arith.constant 0 : i32
    %c0_i32_1 = arith.constant 0 : i32
    return %c0_i32, %c0_i32_0 : i32, i32
  }
  func.func @transform_10(%arg0: i32) -> (i32, i32) {
    %c0_i32 = arith.constant 0 : i32
    %c0_i32_0 = arith.constant 0 : i32
    %c0_i32_1 = arith.constant 0 : i32
    return %c0_i32, %c0_i32_0 : i32, i32
  }
  func.func @transform_11(%arg0: i32) -> (i32, i32) {
    %c0_i32 = arith.constant 0 : i32
    %c0_i32_0 = arith.constant 0 : i32
    %c0_i32_1 = arith.constant 0 : i32
    return %c0_i32, %c0_i32_0 : i32, i32
  }
  func.func @transform_12(%arg0: i32) -> (i32, i32) {
    %c0_i32 = arith.constant 0 : i32
    %c0_i32_0 = arith.constant 0 : i32
    %c0_i32_1 = arith.constant 0 : i32
    return %c0_i32, %c0_i32_0 : i32, i32
  }
  func.func @transform_13(%arg0: i32) -> (i32, i32, i32) {
    %c0_i32 = arith.constant 0 : i32
    %c0_i32_0 = arith.constant 0 : i32
    %c0_i32_1 = arith.constant 0 : i32
    return %arg0, %c0_i32, %c0_i32_0 : i32, i32, i32
  }
}

module attributes {stable_mosaic.version = 11 : i64} {
  func.func @transformer_block_kernel(%arg0: i32, %arg1: memref<4x16x128xf32, #tpu.memory_space<vmem>>, %arg2: memref<128x384xbf16, #tpu.memory_space<vmem>>, %arg3: memref<1x384xf32, #tpu.memory_space<vmem>>, %arg4: memref<128x128xbf16, #tpu.memory_space<vmem>>, %arg5: memref<1x128xf32, #tpu.memory_space<vmem>>, %arg6: memref<1x128xf32, #tpu.memory_space<vmem>>, %arg7: memref<1x128xf32, #tpu.memory_space<vmem>>, %arg8: memref<128x512xbf16, #tpu.memory_space<vmem>>, %arg9: memref<1x512xf32, #tpu.memory_space<vmem>>, %arg10: memref<512x128xbf16, #tpu.memory_space<vmem>>, %arg11: memref<1x128xf32, #tpu.memory_space<vmem>>, %arg12: memref<1x128xf32, #tpu.memory_space<vmem>>, %arg13: memref<1x128xf32, #tpu.memory_space<vmem>>, %arg14: memref<4x16x128xf32, #tpu.memory_space<vmem>>, %arg15: memref<64x128xbf16, #tpu.memory_space<vmem>>) attributes {dimension_semantics = [#tpu.dimension_semantics<parallel>], iteration_bounds = array<i64: 1>, scalar_prefetch = 0 : i64, scratch_operands = 1 : i64, tpu.core_type = #tpu.core_type<tc>, window_params = [{transform_indices = @transform_0, window_bounds = array<i64: 4, 16, 128>}, {pipeline_mode = #tpu.pipeline_mode<synchronous>, transform_indices = @transform_1, window_bounds = array<i64: 128, 384>}, {pipeline_mode = #tpu.pipeline_mode<synchronous>, transform_indices = @transform_2, window_bounds = array<i64: 1, 384>}, {pipeline_mode = #tpu.pipeline_mode<synchronous>, transform_indices = @transform_3, window_bounds = array<i64: 128, 128>}, {pipeline_mode = #tpu.pipeline_mode<synchronous>, transform_indices = @transform_4, window_bounds = array<i64: 1, 128>}, {pipeline_mode = #tpu.pipeline_mode<synchronous>, transform_indices = @transform_5, window_bounds = array<i64: 1, 128>}, {pipeline_mode = #tpu.pipeline_mode<synchronous>, transform_indices = @transform_6, window_bounds = array<i64: 1, 128>}, {pipeline_mode = #tpu.pipeline_mode<synchronous>, transform_indices = @transform_7, window_bounds = array<i64: 128, 512>}, {pipeline_mode = #tpu.pipeline_mode<synchronous>, transform_indices = @transform_8, window_bounds = array<i64: 1, 512>}, {pipeline_mode = #tpu.pipeline_mode<synchronous>, transform_indices = @transform_9, window_bounds = array<i64: 512, 128>}, {pipeline_mode = #tpu.pipeline_mode<synchronous>, transform_indices = @transform_10, window_bounds = array<i64: 1, 128>}, {pipeline_mode = #tpu.pipeline_mode<synchronous>, transform_indices = @transform_11, window_bounds = array<i64: 1, 128>}, {pipeline_mode = #tpu.pipeline_mode<synchronous>, transform_indices = @transform_12, window_bounds = array<i64: 1, 128>}, {transform_indices = @transform_13, window_bounds = array<i64: 4, 16, 128>}]} {
    %c0 = arith.constant 0 : index
    %c0_0 = arith.constant 0 : index
    %c0_1 = arith.constant 0 : index
    %0 = vector.load %arg1[%c0, %c0_0, %c0_1] : memref<4x16x128xf32, #tpu.memory_space<vmem>>, vector<4x16x128xf32>
    %1 = vector.shape_cast %0 : vector<4x16x128xf32> to vector<64x128xf32>
    %2 = arith.truncf %1 : vector<64x128xf32> to vector<64x128xbf16>
    %c0_2 = arith.constant 0 : index
    %c0_3 = arith.constant 0 : index
    %3 = vector.load %arg2[%c0_2, %c0_3] : memref<128x384xbf16, #tpu.memory_space<vmem>>, vector<128x384xbf16>
    %cst = arith.constant dense<0.000000e+00> : vector<64x384xf32>
    %4 = tpu.matmul %2, %3, %cst {dimension_numbers = #tpu.dot_dimension_numbers<[1], [0], [0], [1], [0, 0, 1, 1], [], []>} : vector<64x128xbf16>, vector<128x384xbf16>, vector<64x384xf32> -> vector<64x384xf32>
    %c0_4 = arith.constant 0 : index
    %c0_5 = arith.constant 0 : index
    %5 = vector.load %arg3[%c0_4, %c0_5] : memref<1x384xf32, #tpu.memory_space<vmem>>, vector<1x384xf32>
    %6 = vector.broadcast %5 : vector<1x384xf32> to vector<64x384xf32>
    %7 = arith.addf %4, %6 : vector<64x384xf32>
    %8 = arith.truncf %7 : vector<64x384xf32> to vector<64x384xbf16>
    %9 = vector.extract_strided_slice %8 {offsets = [0, 0], sizes = [64, 32], strides = [1, 1]} : vector<64x384xbf16> to vector<64x32xbf16>
    %10 = vector.shape_cast %9 : vector<64x32xbf16> to vector<4x16x32xbf16>
    %11 = vector.extract_strided_slice %8 {offsets = [0, 128], sizes = [64, 32], strides = [1, 1]} : vector<64x384xbf16> to vector<64x32xbf16>
    %12 = vector.shape_cast %11 : vector<64x32xbf16> to vector<4x16x32xbf16>
    %13 = vector.extract_strided_slice %8 {offsets = [0, 256], sizes = [64, 32], strides = [1, 1]} : vector<64x384xbf16> to vector<64x32xbf16>
    %14 = vector.shape_cast %13 : vector<64x32xbf16> to vector<4x16x32xbf16>
    "tpu.trace_start"() <{level = 10 : i32, message = "bqd,bkd->bqk"}> : () -> ()
    %cst_6 = arith.constant dense<0.000000e+00> : vector<4x16x16xf32>
    %15 = tpu.matmul %10, %12, %cst_6 {dimension_numbers = #tpu.dot_dimension_numbers<[2], [2], [1], [1], [0, 0, 0, 1, 1, 1], [0], [0]>} : vector<4x16x32xbf16>, vector<4x16x32xbf16>, vector<4x16x16xf32> -> vector<4x16x16xf32>
    "tpu.trace_stop"() : () -> ()
    %cst_7 = arith.constant dense<0xFF800000> : vector<4x16xf32>
    %16 = vector.multi_reduction <maximumf>, %15, %cst_7 [2] : vector<4x16x16xf32> to vector<4x16xf32>
    %17 = vector.shape_cast %16 : vector<4x16xf32> to vector<4x16x1xf32>
    %18 = vector.broadcast %17 : vector<4x16x1xf32> to vector<4x16x16xf32>
    %19 = arith.subf %15, %18 : vector<4x16x16xf32>
    %20 = math.exp %19 : vector<4x16x16xf32>
    %cst_8 = arith.constant dense<0.000000e+00> : vector<4x16xf32>
    %21 = vector.multi_reduction <add>, %20, %cst_8 [2] : vector<4x16x16xf32> to vector<4x16xf32>
    %22 = vector.shape_cast %21 : vector<4x16xf32> to vector<4x16x1xf32>
    %23 = tpu.reciprocal %22 {approx = true} : vector<4x16x1xf32> -> vector<4x16x1xf32>
    %24 = vector.broadcast %23 : vector<4x16x1xf32> to vector<4x16x16xf32>
    %25 = arith.mulf %20, %24 : vector<4x16x16xf32>
    %26 = arith.truncf %25 : vector<4x16x16xf32> to vector<4x16x16xbf16>
    "tpu.trace_start"() <{level = 10 : i32, message = "bqk,bkd->bqd"}> : () -> ()
    %cst_9 = arith.constant dense<0.000000e+00> : vector<4x16x32xf32>
    %27 = tpu.matmul %26, %14, %cst_9 {dimension_numbers = #tpu.dot_dimension_numbers<[2], [1], [1], [2], [0, 0, 0, 1, 1, 2], [0], [0]>} : vector<4x16x16xbf16>, vector<4x16x32xbf16>, vector<4x16x32xf32> -> vector<4x16x32xf32>
    "tpu.trace_stop"() : () -> ()
    %28 = vector.shape_cast %27 : vector<4x16x32xf32> to vector<64x32xf32>
    %29 = arith.truncf %28 : vector<64x32xf32> to vector<64x32xbf16>
    %c0_10 = arith.constant 0 : index
    %c0_11 = arith.constant 0 : index
    %30 = vector.load %arg15[%c0_10, %c0_11] : memref<64x128xbf16, #tpu.memory_space<vmem>>, vector<64x32xbf16>
    tpu.vector_store %arg15[%c0_10, %c0_11], %29 {strides = array<i32>} : memref<64x128xbf16, #tpu.memory_space<vmem>>, vector<64x32xbf16>,
    %31 = vector.extract_strided_slice %8 {offsets = [0, 32], sizes = [64, 32], strides = [1, 1]} : vector<64x384xbf16> to vector<64x32xbf16>
    %32 = vector.shape_cast %31 : vector<64x32xbf16> to vector<4x16x32xbf16>
    %33 = vector.extract_strided_slice %8 {offsets = [0, 160], sizes = [64, 32], strides = [1, 1]} : vector<64x384xbf16> to vector<64x32xbf16>
    %34 = vector.shape_cast %33 : vector<64x32xbf16> to vector<4x16x32xbf16>
    %35 = vector.extract_strided_slice %8 {offsets = [0, 288], sizes = [64, 32], strides = [1, 1]} : vector<64x384xbf16> to vector<64x32xbf16>
    %36 = vector.shape_cast %35 : vector<64x32xbf16> to vector<4x16x32xbf16>
    "tpu.trace_start"() <{level = 10 : i32, message = "bqd,bkd->bqk"}> : () -> ()
    %cst_12 = arith.constant dense<0.000000e+00> : vector<4x16x16xf32>
    %37 = tpu.matmul %32, %34, %cst_12 {dimension_numbers = #tpu.dot_dimension_numbers<[2], [2], [1], [1], [0, 0, 0, 1, 1, 1], [0], [0]>} : vector<4x16x32xbf16>, vector<4x16x32xbf16>, vector<4x16x16xf32> -> vector<4x16x16xf32>
    "tpu.trace_stop"() : () -> ()
    %cst_13 = arith.constant dense<0xFF800000> : vector<4x16xf32>
    %38 = vector.multi_reduction <maximumf>, %37, %cst_13 [2] : vector<4x16x16xf32> to vector<4x16xf32>
    %39 = vector.shape_cast %38 : vector<4x16xf32> to vector<4x16x1xf32>
    %40 = vector.broadcast %39 : vector<4x16x1xf32> to vector<4x16x16xf32>
    %41 = arith.subf %37, %40 : vector<4x16x16xf32>
    %42 = math.exp %41 : vector<4x16x16xf32>
    %cst_14 = arith.constant dense<0.000000e+00> : vector<4x16xf32>
    %43 = vector.multi_reduction <add>, %42, %cst_14 [2] : vector<4x16x16xf32> to vector<4x16xf32>
    %44 = vector.shape_cast %43 : vector<4x16xf32> to vector<4x16x1xf32>
    %45 = tpu.reciprocal %44 {approx = true} : vector<4x16x1xf32> -> vector<4x16x1xf32>
    %46 = vector.broadcast %45 : vector<4x16x1xf32> to vector<4x16x16xf32>
    %47 = arith.mulf %42, %46 : vector<4x16x16xf32>
    %48 = arith.truncf %47 : vector<4x16x16xf32> to vector<4x16x16xbf16>
    "tpu.trace_start"() <{level = 10 : i32, message = "bqk,bkd->bqd"}> : () -> ()
    %cst_15 = arith.constant dense<0.000000e+00> : vector<4x16x32xf32>
    %49 = tpu.matmul %48, %36, %cst_15 {dimension_numbers = #tpu.dot_dimension_numbers<[2], [1], [1], [2], [0, 0, 0, 1, 1, 2], [0], [0]>} : vector<4x16x16xbf16>, vector<4x16x32xbf16>, vector<4x16x32xf32> -> vector<4x16x32xf32>
    "tpu.trace_stop"() : () -> ()
    %50 = vector.shape_cast %49 : vector<4x16x32xf32> to vector<64x32xf32>
    %51 = arith.truncf %50 : vector<64x32xf32> to vector<64x32xbf16>
    %c0_16 = arith.constant 0 : index
    %c32 = arith.constant 32 : index
    %52 = vector.load %arg15[%c0_16, %c32] : memref<64x128xbf16, #tpu.memory_space<vmem>>, vector<64x32xbf16>
    tpu.vector_store %arg15[%c0_16, %c32], %51 {strides = array<i32>} : memref<64x128xbf16, #tpu.memory_space<vmem>>, vector<64x32xbf16>,
    %53 = vector.extract_strided_slice %8 {offsets = [0, 64], sizes = [64, 32], strides = [1, 1]} : vector<64x384xbf16> to vector<64x32xbf16>
    %54 = vector.shape_cast %53 : vector<64x32xbf16> to vector<4x16x32xbf16>
    %55 = vector.extract_strided_slice %8 {offsets = [0, 192], sizes = [64, 32], strides = [1, 1]} : vector<64x384xbf16> to vector<64x32xbf16>
    %56 = vector.shape_cast %55 : vector<64x32xbf16> to vector<4x16x32xbf16>
    %57 = vector.extract_strided_slice %8 {offsets = [0, 320], sizes = [64, 32], strides = [1, 1]} : vector<64x384xbf16> to vector<64x32xbf16>
    %58 = vector.shape_cast %57 : vector<64x32xbf16> to vector<4x16x32xbf16>
    "tpu.trace_start"() <{level = 10 : i32, message = "bqd,bkd->bqk"}> : () -> ()
    %cst_17 = arith.constant dense<0.000000e+00> : vector<4x16x16xf32>
    %59 = tpu.matmul %54, %56, %cst_17 {dimension_numbers = #tpu.dot_dimension_numbers<[2], [2], [1], [1], [0, 0, 0, 1, 1, 1], [0], [0]>} : vector<4x16x32xbf16>, vector<4x16x32xbf16>, vector<4x16x16xf32> -> vector<4x16x16xf32>
    "tpu.trace_stop"() : () -> ()
    %cst_18 = arith.constant dense<0xFF800000> : vector<4x16xf32>
    %60 = vector.multi_reduction <maximumf>, %59, %cst_18 [2] : vector<4x16x16xf32> to vector<4x16xf32>
    %61 = vector.shape_cast %60 : vector<4x16xf32> to vector<4x16x1xf32>
    %62 = vector.broadcast %61 : vector<4x16x1xf32> to vector<4x16x16xf32>
    %63 = arith.subf %59, %62 : vector<4x16x16xf32>
    %64 = math.exp %63 : vector<4x16x16xf32>
    %cst_19 = arith.constant dense<0.000000e+00> : vector<4x16xf32>
    %65 = vector.multi_reduction <add>, %64, %cst_19 [2] : vector<4x16x16xf32> to vector<4x16xf32>
    %66 = vector.shape_cast %65 : vector<4x16xf32> to vector<4x16x1xf32>
    %67 = tpu.reciprocal %66 {approx = true} : vector<4x16x1xf32> -> vector<4x16x1xf32>
    %68 = vector.broadcast %67 : vector<4x16x1xf32> to vector<4x16x16xf32>
    %69 = arith.mulf %64, %68 : vector<4x16x16xf32>
    %70 = arith.truncf %69 : vector<4x16x16xf32> to vector<4x16x16xbf16>
    "tpu.trace_start"() <{level = 10 : i32, message = "bqk,bkd->bqd"}> : () -> ()
    %cst_20 = arith.constant dense<0.000000e+00> : vector<4x16x32xf32>
    %71 = tpu.matmul %70, %58, %cst_20 {dimension_numbers = #tpu.dot_dimension_numbers<[2], [1], [1], [2], [0, 0, 0, 1, 1, 2], [0], [0]>} : vector<4x16x16xbf16>, vector<4x16x32xbf16>, vector<4x16x32xf32> -> vector<4x16x32xf32>
    "tpu.trace_stop"() : () -> ()
    %72 = vector.shape_cast %71 : vector<4x16x32xf32> to vector<64x32xf32>
    %73 = arith.truncf %72 : vector<64x32xf32> to vector<64x32xbf16>
    %c0_21 = arith.constant 0 : index
    %c64 = arith.constant 64 : index
    %74 = vector.load %arg15[%c0_21, %c64] : memref<64x128xbf16, #tpu.memory_space<vmem>>, vector<64x32xbf16>
    tpu.vector_store %arg15[%c0_21, %c64], %73 {strides = array<i32>} : memref<64x128xbf16, #tpu.memory_space<vmem>>, vector<64x32xbf16>,
    %75 = vector.extract_strided_slice %8 {offsets = [0, 96], sizes = [64, 32], strides = [1, 1]} : vector<64x384xbf16> to vector<64x32xbf16>
    %76 = vector.shape_cast %75 : vector<64x32xbf16> to vector<4x16x32xbf16>
    %77 = vector.extract_strided_slice %8 {offsets = [0, 224], sizes = [64, 32], strides = [1, 1]} : vector<64x384xbf16> to vector<64x32xbf16>
    %78 = vector.shape_cast %77 : vector<64x32xbf16> to vector<4x16x32xbf16>
    %79 = vector.extract_strided_slice %8 {offsets = [0, 352], sizes = [64, 32], strides = [1, 1]} : vector<64x384xbf16> to vector<64x32xbf16>
    %80 = vector.shape_cast %79 : vector<64x32xbf16> to vector<4x16x32xbf16>
    "tpu.trace_start"() <{level = 10 : i32, message = "bqd,bkd->bqk"}> : () -> ()
    %cst_22 = arith.constant dense<0.000000e+00> : vector<4x16x16xf32>
    %81 = tpu.matmul %76, %78, %cst_22 {dimension_numbers = #tpu.dot_dimension_numbers<[2], [2], [1], [1], [0, 0, 0, 1, 1, 1], [0], [0]>} : vector<4x16x32xbf16>, vector<4x16x32xbf16>, vector<4x16x16xf32> -> vector<4x16x16xf32>
    "tpu.trace_stop"() : () -> ()
    %cst_23 = arith.constant dense<0xFF800000> : vector<4x16xf32>
    %82 = vector.multi_reduction <maximumf>, %81, %cst_23 [2] : vector<4x16x16xf32> to vector<4x16xf32>
    %83 = vector.shape_cast %82 : vector<4x16xf32> to vector<4x16x1xf32>
    %84 = vector.broadcast %83 : vector<4x16x1xf32> to vector<4x16x16xf32>
    %85 = arith.subf %81, %84 : vector<4x16x16xf32>
    %86 = math.exp %85 : vector<4x16x16xf32>
    %cst_24 = arith.constant dense<0.000000e+00> : vector<4x16xf32>
    %87 = vector.multi_reduction <add>, %86, %cst_24 [2] : vector<4x16x16xf32> to vector<4x16xf32>
    %88 = vector.shape_cast %87 : vector<4x16xf32> to vector<4x16x1xf32>
    %89 = tpu.reciprocal %88 {approx = true} : vector<4x16x1xf32> -> vector<4x16x1xf32>
    %90 = vector.broadcast %89 : vector<4x16x1xf32> to vector<4x16x16xf32>
    %91 = arith.mulf %86, %90 : vector<4x16x16xf32>
    %92 = arith.truncf %91 : vector<4x16x16xf32> to vector<4x16x16xbf16>
    "tpu.trace_start"() <{level = 10 : i32, message = "bqk,bkd->bqd"}> : () -> ()
    %cst_25 = arith.constant dense<0.000000e+00> : vector<4x16x32xf32>
    %93 = tpu.matmul %92, %80, %cst_25 {dimension_numbers = #tpu.dot_dimension_numbers<[2], [1], [1], [2], [0, 0, 0, 1, 1, 2], [0], [0]>} : vector<4x16x16xbf16>, vector<4x16x32xbf16>, vector<4x16x32xf32> -> vector<4x16x32xf32>
    "tpu.trace_stop"() : () -> ()
    %94 = vector.shape_cast %93 : vector<4x16x32xf32> to vector<64x32xf32>
    %95 = arith.truncf %94 : vector<64x32xf32> to vector<64x32xbf16>
    %c0_26 = arith.constant 0 : index
    %c96 = arith.constant 96 : index
    %96 = vector.load %arg15[%c0_26, %c96] : memref<64x128xbf16, #tpu.memory_space<vmem>>, vector<64x32xbf16>
    tpu.vector_store %arg15[%c0_26, %c96], %95 {strides = array<i32>} : memref<64x128xbf16, #tpu.memory_space<vmem>>, vector<64x32xbf16>,
    %c0_27 = arith.constant 0 : index
    %c0_28 = arith.constant 0 : index
    %97 = vector.load %arg15[%c0_27, %c0_28] : memref<64x128xbf16, #tpu.memory_space<vmem>>, vector<64x128xbf16>
    %c0_29 = arith.constant 0 : index
    %c0_30 = arith.constant 0 : index
    %98 = vector.load %arg4[%c0_29, %c0_30] : memref<128x128xbf16, #tpu.memory_space<vmem>>, vector<128x128xbf16>
    %cst_31 = arith.constant dense<0.000000e+00> : vector<64x128xf32>
    %99 = tpu.matmul %97, %98, %cst_31 {dimension_numbers = #tpu.dot_dimension_numbers<[1], [0], [0], [1], [0, 0, 1, 1], [], []>} : vector<64x128xbf16>, vector<128x128xbf16>, vector<64x128xf32> -> vector<64x128xf32>
    %c0_32 = arith.constant 0 : index
    %c0_33 = arith.constant 0 : index
    %100 = vector.load %arg5[%c0_32, %c0_33] : memref<1x128xf32, #tpu.memory_space<vmem>>, vector<1x128xf32>
    %101 = vector.broadcast %100 : vector<1x128xf32> to vector<64x128xf32>
    %102 = arith.addf %99, %101 : vector<64x128xf32>
    %103 = arith.addf %1, %102 : vector<64x128xf32>
    %c0_34 = arith.constant 0 : index
    %c0_35 = arith.constant 0 : index
    %104 = vector.load %arg6[%c0_34, %c0_35] : memref<1x128xf32, #tpu.memory_space<vmem>>, vector<1x128xf32>
    %c0_36 = arith.constant 0 : index
    %c0_37 = arith.constant 0 : index
    %105 = vector.load %arg7[%c0_36, %c0_37] : memref<1x128xf32, #tpu.memory_space<vmem>>, vector<1x128xf32>
    %cst_38 = arith.constant dense<0.000000e+00> : vector<64xf32>
    %106 = vector.multi_reduction <add>, %103, %cst_38 [1] : vector<64x128xf32> to vector<64xf32>
    %107 = vector.shape_cast %106 : vector<64xf32> to vector<64x1xf32>
    %cst_39 = arith.constant 1.280000e+02 : f32
    %108 = vector.broadcast %cst_39 : f32 to vector<64x1xf32>
    %109 = arith.divf %107, %108 : vector<64x1xf32>
    %110 = arith.mulf %103, %103 : vector<64x128xf32>
    %cst_40 = arith.constant dense<0.000000e+00> : vector<64xf32>
    %111 = vector.multi_reduction <add>, %110, %cst_40 [1] : vector<64x128xf32> to vector<64xf32>
    %112 = vector.shape_cast %111 : vector<64xf32> to vector<64x1xf32>
    %cst_41 = arith.constant 1.280000e+02 : f32
    %113 = vector.broadcast %cst_41 : f32 to vector<64x1xf32>
    %114 = arith.divf %112, %113 : vector<64x1xf32>
    %115 = arith.mulf %109, %109 : vector<64x1xf32>
    %116 = arith.subf %114, %115 : vector<64x1xf32>
    %117 = vector.broadcast %109 : vector<64x1xf32> to vector<64x128xf32>
    %118 = arith.subf %103, %117 : vector<64x128xf32>
    %cst_42 = arith.constant 9.99999974E-6 : f32
    %119 = vector.broadcast %cst_42 : f32 to vector<64x1xf32>
    %120 = arith.addf %116, %119 : vector<64x1xf32>
    %121 = math.rsqrt %120 : vector<64x1xf32>
    %122 = vector.broadcast %121 : vector<64x1xf32> to vector<64x128xf32>
    %123 = arith.mulf %118, %122 : vector<64x128xf32>
    %124 = vector.broadcast %104 : vector<1x128xf32> to vector<64x128xf32>
    %125 = arith.mulf %123, %124 : vector<64x128xf32>
    %126 = vector.broadcast %105 : vector<1x128xf32> to vector<64x128xf32>
    %127 = arith.addf %125, %126 : vector<64x128xf32>
    %128 = arith.truncf %127 : vector<64x128xf32> to vector<64x128xbf16>
    %c0_43 = arith.constant 0 : index
    %c0_44 = arith.constant 0 : index
    %129 = vector.load %arg8[%c0_43, %c0_44] : memref<128x512xbf16, #tpu.memory_space<vmem>>, vector<128x512xbf16>
    %cst_45 = arith.constant dense<0.000000e+00> : vector<64x512xf32>
    %130 = tpu.matmul %128, %129, %cst_45 {dimension_numbers = #tpu.dot_dimension_numbers<[1], [0], [0], [1], [0, 0, 1, 1], [], []>} : vector<64x128xbf16>, vector<128x512xbf16>, vector<64x512xf32> -> vector<64x512xf32>
    %c0_46 = arith.constant 0 : index
    %c0_47 = arith.constant 0 : index
    %131 = vector.load %arg9[%c0_46, %c0_47] : memref<1x512xf32, #tpu.memory_space<vmem>>, vector<1x512xf32>
    %132 = vector.broadcast %131 : vector<1x512xf32> to vector<64x512xf32>
    %133 = arith.addf %130, %132 : vector<64x512xf32>
    %cst_48 = arith.constant 0.000000e+00 : f32
    %134 = vector.broadcast %cst_48 : f32 to vector<64x512xf32>
    %135 = arith.maximumf %133, %134 : vector<64x512xf32>
    %136 = arith.truncf %135 : vector<64x512xf32> to vector<64x512xbf16>
    %c0_49 = arith.constant 0 : index
    %c0_50 = arith.constant 0 : index
    %137 = vector.load %arg10[%c0_49, %c0_50] : memref<512x128xbf16, #tpu.memory_space<vmem>>, vector<512x128xbf16>
    %cst_51 = arith.constant dense<0.000000e+00> : vector<64x128xf32>
    %138 = tpu.matmul %136, %137, %cst_51 {dimension_numbers = #tpu.dot_dimension_numbers<[1], [0], [0], [1], [0, 0, 1, 1], [], []>} : vector<64x512xbf16>, vector<512x128xbf16>, vector<64x128xf32> -> vector<64x128xf32>
    %c0_52 = arith.constant 0 : index
    %c0_53 = arith.constant 0 : index
    %139 = vector.load %arg11[%c0_52, %c0_53] : memref<1x128xf32, #tpu.memory_space<vmem>>, vector<1x128xf32>
    %140 = vector.broadcast %139 : vector<1x128xf32> to vector<64x128xf32>
    %141 = arith.addf %138, %140 : vector<64x128xf32>
    %142 = arith.addf %127, %141 : vector<64x128xf32>
    %c0_54 = arith.constant 0 : index
    %c0_55 = arith.constant 0 : index
    %143 = vector.load %arg12[%c0_54, %c0_55] : memref<1x128xf32, #tpu.memory_space<vmem>>, vector<1x128xf32>
    %c0_56 = arith.constant 0 : index
    %c0_57 = arith.constant 0 : index
    %144 = vector.load %arg13[%c0_56, %c0_57] : memref<1x128xf32, #tpu.memory_space<vmem>>, vector<1x128xf32>
    %cst_58 = arith.constant dense<0.000000e+00> : vector<64xf32>
    %145 = vector.multi_reduction <add>, %142, %cst_58 [1] : vector<64x128xf32> to vector<64xf32>
    %146 = vector.shape_cast %145 : vector<64xf32> to vector<64x1xf32>
    %cst_59 = arith.constant 1.280000e+02 : f32
    %147 = vector.broadcast %cst_59 : f32 to vector<64x1xf32>
    %148 = arith.divf %146, %147 : vector<64x1xf32>
    %149 = arith.mulf %142, %142 : vector<64x128xf32>
    %cst_60 = arith.constant dense<0.000000e+00> : vector<64xf32>
    %150 = vector.multi_reduction <add>, %149, %cst_60 [1] : vector<64x128xf32> to vector<64xf32>
    %151 = vector.shape_cast %150 : vector<64xf32> to vector<64x1xf32>
    %cst_61 = arith.constant 1.280000e+02 : f32
    %152 = vector.broadcast %cst_61 : f32 to vector<64x1xf32>
    %153 = arith.divf %151, %152 : vector<64x1xf32>
    %154 = arith.mulf %148, %148 : vector<64x1xf32>
    %155 = arith.subf %153, %154 : vector<64x1xf32>
    %156 = vector.broadcast %148 : vector<64x1xf32> to vector<64x128xf32>
    %157 = arith.subf %142, %156 : vector<64x128xf32>
    %cst_62 = arith.constant 9.99999974E-6 : f32
    %158 = vector.broadcast %cst_62 : f32 to vector<64x1xf32>
    %159 = arith.addf %155, %158 : vector<64x1xf32>
    %160 = math.rsqrt %159 : vector<64x1xf32>
    %161 = vector.broadcast %160 : vector<64x1xf32> to vector<64x128xf32>
    %162 = arith.mulf %157, %161 : vector<64x128xf32>
    %163 = vector.broadcast %143 : vector<1x128xf32> to vector<64x128xf32>
    %164 = arith.mulf %162, %163 : vector<64x128xf32>
    %165 = vector.broadcast %144 : vector<1x128xf32> to vector<64x128xf32>
    %166 = arith.addf %164, %165 : vector<64x128xf32>
    %167 = vector.shape_cast %166 : vector<64x128xf32> to vector<4x16x128xf32>
    %c0_63 = arith.constant 0 : index
    %c0_64 = arith.constant 0 : index
    %c0_65 = arith.constant 0 : index
    %168 = vector.load %arg14[%c0_63, %c0_64, %c0_65] : memref<4x16x128xf32, #tpu.memory_space<vmem>>, vector<4x16x128xf32>
    tpu.vector_store %arg14[%c0_63, %c0_64, %c0_65], %167 {strides = array<i32>} : memref<4x16x128xf32, #tpu.memory_space<vmem>>, vector<4x16x128xf32>,
    return
  }
  func.func @transform_0(%arg0: i32) -> (i32, i32, i32) {
    %c0_i32 = arith.constant 0 : i32
    %c0_i32_0 = arith.constant 0 : i32
    %c0_i32_1 = arith.constant 0 : i32
    return %arg0, %c0_i32, %c0_i32_0 : i32, i32, i32
  }
  func.func @transform_1(%arg0: i32) -> (i32, i32) {
    %c0_i32 = arith.constant 0 : i32
    %c0_i32_0 = arith.constant 0 : i32
    %c0_i32_1 = arith.constant 0 : i32
    return %c0_i32, %c0_i32_0 : i32, i32
  }
  func.func @transform_2(%arg0: i32) -> (i32, i32) {
    %c0_i32 = arith.constant 0 : i32
    %c0_i32_0 = arith.constant 0 : i32
    %c0_i32_1 = arith.constant 0 : i32
    return %c0_i32, %c0_i32_0 : i32, i32
  }
  func.func @transform_3(%arg0: i32) -> (i32, i32) {
    %c0_i32 = arith.constant 0 : i32
    %c0_i32_0 = arith.constant 0 : i32
    %c0_i32_1 = arith.constant 0 : i32
    return %c0_i32, %c0_i32_0 : i32, i32
  }
  func.func @transform_4(%arg0: i32) -> (i32, i32) {
    %c0_i32 = arith.constant 0 : i32
    %c0_i32_0 = arith.constant 0 : i32
    %c0_i32_1 = arith.constant 0 : i32
    return %c0_i32, %c0_i32_0 : i32, i32
  }
  func.func @transform_5(%arg0: i32) -> (i32, i32) {
    %c0_i32 = arith.constant 0 : i32
    %c0_i32_0 = arith.constant 0 : i32
    %c0_i32_1 = arith.constant 0 : i32
    return %c0_i32, %c0_i32_0 : i32, i32
  }
  func.func @transform_6(%arg0: i32) -> (i32, i32) {
    %c0_i32 = arith.constant 0 : i32
    %c0_i32_0 = arith.constant 0 : i32
    %c0_i32_1 = arith.constant 0 : i32
    return %c0_i32, %c0_i32_0 : i32, i32
  }
  func.func @transform_7(%arg0: i32) -> (i32, i32) {
    %c0_i32 = arith.constant 0 : i32
    %c0_i32_0 = arith.constant 0 : i32
    %c0_i32_1 = arith.constant 0 : i32
    return %c0_i32, %c0_i32_0 : i32, i32
  }
  func.func @transform_8(%arg0: i32) -> (i32, i32) {
    %c0_i32 = arith.constant 0 : i32
    %c0_i32_0 = arith.constant 0 : i32
    %c0_i32_1 = arith.constant 0 : i32
    return %c0_i32, %c0_i32_0 : i32, i32
  }
  func.func @transform_9(%arg0: i32) -> (i32, i32) {
    %c0_i32 = arith.constant 0 : i32
    %c0_i32_0 = arith.constant 0 : i32
    %c0_i32_1 = arith.constant 0 : i32
    return %c0_i32, %c0_i32_0 : i32, i32
  }
  func.func @transform_10(%arg0: i32) -> (i32, i32) {
    %c0_i32 = arith.constant 0 : i32
    %c0_i32_0 = arith.constant 0 : i32
    %c0_i32_1 = arith.constant 0 : i32
    return %c0_i32, %c0_i32_0 : i32, i32
  }
  func.func @transform_11(%arg0: i32) -> (i32, i32) {
    %c0_i32 = arith.constant 0 : i32
    %c0_i32_0 = arith.constant 0 : i32
    %c0_i32_1 = arith.constant 0 : i32
    return %c0_i32, %c0_i32_0 : i32, i32
  }
  func.func @transform_12(%arg0: i32) -> (i32, i32) {
    %c0_i32 = arith.constant 0 : i32
    %c0_i32_0 = arith.constant 0 : i32
    %c0_i32_1 = arith.constant 0 : i32
    return %c0_i32, %c0_i32_0 : i32, i32
  }
  func.func @transform_13(%arg0: i32) -> (i32, i32, i32) {
    %c0_i32 = arith.constant 0 : i32
    %c0_i32_0 = arith.constant 0 : i32
    %c0_i32_1 = arith.constant 0 : i32
    return %arg0, %c0_i32, %c0_i32_0 : i32, i32, i32
  }
}

</mosaic_0001>

<llo_original>
// kernel: tpu_custom_call.1
$region0: #{tpu_custom_call.1}
  #allocation0 [shape = 'u32[]', space=smem, size = 0x4, offset = 0x4, fixed_abs, tag = 'smem constant byte address 0x4 - core index']
  #allocation1 [shape = 'u32[72,128]{1,0:T(1,128)}', space=vmem, size = 0x9000, scoped, tag = 'internal scratch']
  #allocation2 [shape = 'bf16[64,128]{1,0:T(8,128)(2,1)}', space=vmem, size = 0x4000, scoped, tag = 'scratch operand']
  %s0 = inlined_call_operand.hbm [shape: f32[4,16,128], index: 0, kind: input, shape index: {}]
  %s1 = inlined_call_operand.hbm [shape: bf16[128,384], index: 1, kind: input, shape index: {}]
  %s2 = inlined_call_operand.hbm [shape: f32[1,384], index: 2, kind: input, shape index: {}]
  %s3 = inlined_call_operand.hbm [shape: bf16[128,128], index: 3, kind: input, shape index: {}]
  %s4 = inlined_call_operand.vmem [shape: f32[1,128], index: 4, kind: input, shape index: {}]
  %s5 = inlined_call_operand.vmem [shape: f32[1,128], index: 5, kind: input, shape index: {}]
  %s6 = inlined_call_operand.vmem [shape: f32[1,128], index: 6, kind: input, shape index: {}]
  %s7 = inlined_call_operand.hbm [shape: bf16[128,512], index: 7, kind: input, shape index: {}]
  %s8 = inlined_call_operand.vmem [shape: f32[1,512], index: 8, kind: input, shape index: {}]
  %s9 = inlined_call_operand.hbm [shape: bf16[512,128], index: 9, kind: input, shape index: {}]
  %s10 = inlined_call_operand.vmem [shape: f32[1,128], index: 10, kind: input, shape index: {}]
  %s11 = inlined_call_operand.vmem [shape: f32[1,128], index: 11, kind: input, shape index: {}]
  %s12 = inlined_call_operand.vmem [shape: f32[1,128], index: 12, kind: input, shape index: {}]
  %s13 = inlined_call_operand.hbm [shape: f32[4,16,128], index: 13, kind: output, shape index: {}]
  %s14 = sld [smem:[#allocation0]]
  $region86: #{tpu_custom_call.1} parent=0
    _
  %s16 = ssub.s32 1, %s14
  %s17 = scalar_select 0, %s16, %s14
  $region1: #{tpu_custom_call.1} parent=0
    #allocation3 [shape = 'u8[32768]{0}', space=vmem, size = 0x8000, scoped, tag = 'input window, operand 0, single buffered']
    #allocation4 [shape = 's32[1]{0}', space=sflag, size = 0x4, scoped, tag = 'scoped memory for tpu_custom_call.1']
    #allocation5 [shape = 's32[1]{0}', space=sflag, size = 0x4, scoped, tag = 'scoped memory for tpu_custom_call.1']
    #allocation6 [shape = 'u8[98304]{0}', space=vmem, size = 0x18000, scoped, tag = 'input window, operand 1, single buffered']
    #allocation7 [shape = 's32[1]{0}', space=sflag, size = 0x4, scoped, tag = 'scoped memory for tpu_custom_call.1']
    #allocation8 [shape = 'u8[1536]{0}', space=vmem, size = 0x800, scoped, tag = 'input window, operand 2, single buffered']
    #allocation9 [shape = 'u8[32768]{0}', space=vmem, size = 0x8000, scoped, tag = 'input window, operand 3, single buffered']
    #allocation10 [shape = 's32[1]{0}', space=sflag, size = 0x4, scoped, tag = 'scoped memory for tpu_custom_call.1']
    #allocation11 [shape = 'u8[131072]{0}', space=vmem, size = 0x20000, scoped, tag = 'input window, operand 7, single buffered']
    #allocation12 [shape = 'u8[131072]{0}', space=vmem, size = 0x20000, scoped, tag = 'input window, operand 9, single buffered']
    #allocation13 [shape = 's32[1]{0}', space=sflag, size = 0x4, scoped, tag = 'scoped memory for tpu_custom_call.1']
    #allocation14 [shape = 'u8[32768]{0}', space=vmem, size = 0x8000, scoped, tag = 'output window, operand 0, single buffered']
    %18 = vsyncpa [#allocation4], 0
    %19 = vsyncpa [#allocation7], 0
    %20 = vsyncpa [#allocation10], 0
    %21 = vsyncpa [#allocation13], 0
    %22 = vsyncpa [#allocation5], 0
    // Predicated region
    $region2: #{tpu_custom_call.1} parent=1 // pred_check
      _
    $region3: #{tpu_custom_call.1} parent=1 // pred_check_branch
      %24 = sbr.rel (0) target = $region5
    $region4: #{tpu_custom_call.1} parent=1 // pred_region
      %26 = vsyncadd [#allocation4], 0
      %s27 = sshll.u32 %s0, 4
      %s28 = int_to_ptr.hbm [resolvable:$true] %s27
      %s29 = sshll.u32 [#allocation3], 4
      %s30 = int_to_ptr.vmem [resolvable:$true] %s29
      %35 = dma.hbm_to_vmem [thread:$0]  %s28, 1024, %s30, [#allocation4], 128, 128, 8
    $region5: #{tpu_custom_call.1} parent=1 // pred_fallthru
      _
    // Predicated region
    $region6: #{tpu_custom_call.1} parent=1 // pred_check
      _
    $region7: #{tpu_custom_call.1} parent=1 // pred_check_branch
      %37 = sbr.rel (0) target = $region9
    $region8: #{tpu_custom_call.1} parent=1 // pred_region
      %39 = vsyncadd [#allocation7], 0
      %s40 = sshll.u32 %s1, 4
      %s41 = int_to_ptr.hbm [resolvable:$true] %s40
      %s42 = sshll.u32 [#allocation6], 4
      %s43 = int_to_ptr.vmem [resolvable:$true] %s42
      %48 = dma.hbm_to_vmem [thread:$0]  %s41, 3072, %s43, [#allocation7], 192, 192, 12
    $region9: #{tpu_custom_call.1} parent=1 // pred_fallthru
      _
    // Predicated region
    $region10: #{tpu_custom_call.1} parent=1 // pred_check
      _
    $region11: #{tpu_custom_call.1} parent=1 // pred_check_branch
      %50 = sbr.rel (0) target = $region13
    $region12: #{tpu_custom_call.1} parent=1 // pred_region
      %52 = vsyncadd [#allocation7], 0
      %s54 = sshll.u32 %s2, 4
      %s55 = int_to_ptr.hbm [resolvable:$true] %s54
      %s56 = sshll.u32 [#allocation8], 4
      %s57 = int_to_ptr.vmem [resolvable:$true] %s56
      %59 = dma.hbm_to_vmem [thread:$0]  %s55, 48, %s57, [#allocation7]
    $region13: #{tpu_custom_call.1} parent=1 // pred_fallthru
      _
    // Predicated region
    $region14: #{tpu_custom_call.1} parent=1 // pred_check
      _
    $region15: #{tpu_custom_call.1} parent=1 // pred_check_branch
      %61 = sbr.rel (0) target = $region17
    $region16: #{tpu_custom_call.1} parent=1 // pred_region
      %63 = vsyncadd [#allocation10], 0
      %s64 = sshll.u32 %s3, 4
      %s65 = int_to_ptr.hbm [resolvable:$true] %s64
      %s66 = sshll.u32 [#allocation9], 4
      %s67 = int_to_ptr.vmem [resolvable:$true] %s66
      %72 = dma.hbm_to_vmem [thread:$0]  %s65, 1024, %s67, [#allocation10], 64, 64, 4
    $region17: #{tpu_custom_call.1} parent=1 // pred_fallthru
      _
    // Predicated region
    $region18: #{tpu_custom_call.1} parent=1 // pred_check
      _
    $region19: #{tpu_custom_call.1} parent=1 // pred_check_branch
      %74 = sbr.rel (0) target = $region21
    $region20: #{tpu_custom_call.1} parent=1 // pred_region
      _
    $region21: #{tpu_custom_call.1} parent=1 // pred_fallthru
      _
    // Predicated region
    $region22: #{tpu_custom_call.1} parent=1 // pred_check
      _
    $region23: #{tpu_custom_call.1} parent=1 // pred_check_branch
      %76 = sbr.rel (0) target = $region25
    $region24: #{tpu_custom_call.1} parent=1 // pred_region
      _
    $region25: #{tpu_custom_call.1} parent=1 // pred_fallthru
      _
    // Predicated region
    $region26: #{tpu_custom_call.1} parent=1 // pred_check
      _
    $region27: #{tpu_custom_call.1} parent=1 // pred_check_branch
      %78 = sbr.rel (0) target = $region29
    $region28: #{tpu_custom_call.1} parent=1 // pred_region
      _
    $region29: #{tpu_custom_call.1} parent=1 // pred_fallthru
      _
    // Predicated region
    $region30: #{tpu_custom_call.1} parent=1 // pred_check
      _
    $region31: #{tpu_custom_call.1} parent=1 // pred_check_branch
      %80 = sbr.rel (0) target = $region33
    $region32: #{tpu_custom_call.1} parent=1 // pred_region
      %82 = vsyncadd [#allocation10], 0
      %s83 = sshll.u32 %s7, 4
      %s84 = int_to_ptr.hbm [resolvable:$true] %s83
      %s85 = sshll.u32 [#allocation11], 4
      %s86 = int_to_ptr.vmem [resolvable:$true] %s85
      %91 = dma.hbm_to_vmem [thread:$0]  %s84, 4096, %s86, [#allocation10], 256, 256, 16
    $region33: #{tpu_custom_call.1} parent=1 // pred_fallthru
      _
    // Predicated region
    $region34: #{tpu_custom_call.1} parent=1 // pred_check
      _
    $region35: #{tpu_custom_call.1} parent=1 // pred_check_branch
      %93 = sbr.rel (0) target = $region37
    $region36: #{tpu_custom_call.1} parent=1 // pred_region
      _
    $region37: #{tpu_custom_call.1} parent=1 // pred_fallthru
      _
    // Predicated region
    $region38: #{tpu_custom_call.1} parent=1 // pred_check
      _
    $region39: #{tpu_custom_call.1} parent=1 // pred_check_branch
      %95 = sbr.rel (0) target = $region41
    $region40: #{tpu_custom_call.1} parent=1 // pred_region
      %97 = vsyncadd [#allocation13], 0
      %s98 = sshll.u32 %s9, 4
      %s99 = int_to_ptr.hbm [resolvable:$true] %s98
      %s100 = sshll.u32 [#allocation12], 4
      %s101 = int_to_ptr.vmem [resolvable:$true] %s100
      %106 = dma.hbm_to_vmem [thread:$0]  %s99, 4096, %s101, [#allocation13], 64, 64, 4
    $region41: #{tpu_custom_call.1} parent=1 // pred_fallthru
      _
    // Predicated region
    $region42: #{tpu_custom_call.1} parent=1 // pred_check
      _
    $region43: #{tpu_custom_call.1} parent=1 // pred_check_branch
      %108 = sbr.rel (0) target = $region45
    $region44: #{tpu_custom_call.1} parent=1 // pred_region
      _
    $region45: #{tpu_custom_call.1} parent=1 // pred_fallthru
      _
    // Predicated region
    $region46: #{tpu_custom_call.1} parent=1 // pred_check
      _
    $region47: #{tpu_custom_call.1} parent=1 // pred_check_branch
      %110 = sbr.rel (0) target = $region49
    $region48: #{tpu_custom_call.1} parent=1 // pred_region
      _
    $region49: #{tpu_custom_call.1} parent=1 // pred_fallthru
      _
    // Predicated region
    $region50: #{tpu_custom_call.1} parent=1 // pred_check
      _
    $region51: #{tpu_custom_call.1} parent=1 // pred_check_branch
      %112 = sbr.rel (0) target = $region53
    $region52: #{tpu_custom_call.1} parent=1 // pred_region
      _
    $region53: #{tpu_custom_call.1} parent=1 // pred_fallthru
      _
    // Predicated region
    $region54: #{tpu_custom_call.1} parent=1 // pred_check
      _
    $region55: #{tpu_custom_call.1} parent=1 // pred_check_branch
      %114 = sbr.rel (0) target = $region57
    $region56: #{tpu_custom_call.1} parent=1 // pred_region
      %116 = dma.done [#allocation4], 1024
    $region57: #{tpu_custom_call.1} parent=1 // pred_fallthru
      _
    // Predicated region
    $region58: #{tpu_custom_call.1} parent=1 // pred_check
      _
    $region59: #{tpu_custom_call.1} parent=1 // pred_check_branch
      %118 = sbr.rel (0) target = $region61
    $region60: #{tpu_custom_call.1} parent=1 // pred_region
      %120 = dma.done [#allocation7], 3072
    $region61: #{tpu_custom_call.1} parent=1 // pred_fallthru
      _
    // Predicated region
    $region62: #{tpu_custom_call.1} parent=1 // pred_check
      _
    $region63: #{tpu_custom_call.1} parent=1 // pred_check_branch
      %122 = sbr.rel (0) target = $region65
    $region64: #{tpu_custom_call.1} parent=1 // pred_region
      %124 = dma.done [#allocation7], 48
    $region65: #{tpu_custom_call.1} parent=1 // pred_fallthru
      _
    // Predicated region
    $region66: #{tpu_custom_call.1} parent=1 // pred_check
      _
    $region67: #{tpu_custom_call.1} parent=1 // pred_check_branch
      %126 = sbr.rel (0) target = $region69
    $region68: #{tpu_custom_call.1} parent=1 // pred_region
      %128 = dma.done [#allocation10], 1024
    $region69: #{tpu_custom_call.1} parent=1 // pred_fallthru
      _
    // Predicated region
    $region70: #{tpu_custom_call.1} parent=1 // pred_check
      _
    $region71: #{tpu_custom_call.1} parent=1 // pred_check_branch
      %130 = sbr.rel (0) target = $region73
    $region72: #{tpu_custom_call.1} parent=1 // pred_region
      %132 = dma.done [#allocation10], 4096
    $region73: #{tpu_custom_call.1} parent=1 // pred_fallthru
      _
    // Predicated region
    $region74: #{tpu_custom_call.1} parent=1 // pred_check
      _
    $region75: #{tpu_custom_call.1} parent=1 // pred_check_branch
      %134 = sbr.rel (0) target = $region77
    $region76: #{tpu_custom_call.1} parent=1 // pred_region
      %136 = dma.done [#allocation13], 4096
    $region77: #{tpu_custom_call.1} parent=1 // pred_fallthru
      _
    %v138 = vld [vmem:[#allocation3] sm:$0xff]
    %v139 = vld [vmem:[#allocation3 + $0x8] sm:$0xff]
    %v140 = vld [vmem:[#allocation3 + $0x10] sm:$0xff]
    %v141 = vld [vmem:[#allocation3 + $0x18] sm:$0xff]
    %v142 = vld [vmem:[#allocation3 + $0x20] sm:$0xff]
    %v143 = vld [vmem:[#allocation3 + $0x28] sm:$0xff]
    %v144 = vld [vmem:[#allocation3 + $0x30] sm:$0xff]
    %v145 = vld [vmem:[#allocation3 + $0x38] sm:$0xff]
    %v146 = vpack.c.bf16 %v139, %v138
    %v147 = vpack.c.bf16 %v141, %v140
    %v148 = vpack.c.bf16 %v143, %v142
    %v149 = vpack.c.bf16 %v145, %v144
    %v150 = vld [vmem:[#allocation6] sm:$0xff]
    %v151 = vld [vmem:[#allocation6 + $0x8] sm:$0xf]
    %v152 = vld [vmem:[#allocation6 + $0xc] sm:$0xff]
    %v153 = vld [vmem:[#allocation6 + $0x14] sm:$0xf]
    %v154 = vld [vmem:[#allocation6 + $0x18] sm:$0xff]
    %v155 = vld [vmem:[#allocation6 + $0x20] sm:$0xf]
    %v156 = vld [vmem:[#allocation6 + $0x24] sm:$0xff]
    %v157 = vld [vmem:[#allocation6 + $0x2c] sm:$0xf]
    %v158 = vld [vmem:[#allocation6 + $0x30] sm:$0xff]
    %v159 = vld [vmem:[#allocation6 + $0x38] sm:$0xf]
    %v160 = vld [vmem:[#allocation6 + $0x3c] sm:$0xff]
    %v161 = vld [vmem:[#allocation6 + $0x44] sm:$0xf]
    %v162 = vld [vmem:[#allocation6 + $0x48] sm:$0xff]
    %v163 = vld [vmem:[#allocation6 + $0x50] sm:$0xf]
    %v164 = vld [vmem:[#allocation6 + $0x54] sm:$0xff]
    %v165 = vld [vmem:[#allocation6 + $0x5c] sm:$0xf]
    %v166 = vld [vmem:[#allocation6 + $0x60] sm:$0xff]
    %v167 = vld [vmem:[#allocation6 + $0x68] sm:$0xf]
    %v168 = vld [vmem:[#allocation6 + $0x6c] sm:$0xff]
    %v169 = vld [vmem:[#allocation6 + $0x74] sm:$0xf]
    %v170 = vld [vmem:[#allocation6 + $0x78] sm:$0xff]
    %v171 = vld [vmem:[#allocation6 + $0x80] sm:$0xf]
    %v172 = vld [vmem:[#allocation6 + $0x84] sm:$0xff]
    %v173 = vld [vmem:[#allocation6 + $0x8c] sm:$0xf]
    %v174 = vld [vmem:[#allocation6 + $0x90] sm:$0xff]
    %v175 = vld [vmem:[#allocation6 + $0x98] sm:$0xf]
    %v176 = vld [vmem:[#allocation6 + $0x9c] sm:$0xff]
    %v177 = vld [vmem:[#allocation6 + $0xa4] sm:$0xf]
    %v178 = vld [vmem:[#allocation6 + $0xa8] sm:$0xff]
    %v179 = vld [vmem:[#allocation6 + $0xb0] sm:$0xf]
    %v180 = vld [vmem:[#allocation6 + $0xb4] sm:$0xff]
    %v181 = vld [vmem:[#allocation6 + $0xbc] sm:$0xf]
    %v182 = vld [vmem:[#allocation8] sm:$0x7]
    %v184 = vperm.slane %v182, 0
    %v185 = vperm.slane %v182, 1
    %v186 = vperm.slane %v182, 2
    %v222 = vunpack.c.l.b16 %v150
    %v223 = vunpack.c.h.b16 %v150
    %v224 = vunpack.c.l.b16 %v151
    %v225 = vunpack.c.l.b16 %v152
    %v226 = vunpack.c.h.b16 %v152
    %v227 = vunpack.c.l.b16 %v153
    %v228 = vunpack.c.l.b16 %v154
    %v229 = vunpack.c.h.b16 %v154
    %v230 = vunpack.c.l.b16 %v155
    %v231 = vunpack.c.l.b16 %v156
    %v232 = vunpack.c.h.b16 %v156
    %v233 = vunpack.c.l.b16 %v157
    %v234 = vunpack.c.l.b16 %v158
    %v235 = vunpack.c.h.b16 %v158
    %v236 = vunpack.c.l.b16 %v159
    %v237 = vunpack.c.l.b16 %v160
    %v238 = vunpack.c.h.b16 %v160
    %v239 = vunpack.c.l.b16 %v161
    %v240 = vunpack.c.l.b16 %v162
    %v241 = vunpack.c.h.b16 %v162
    %v242 = vunpack.c.l.b16 %v163
    %v243 = vunpack.c.l.b16 %v164
    %v244 = vunpack.c.h.b16 %v164
    %v245 = vunpack.c.l.b16 %v165
    %v246 = vunpack.c.l.b16 %v166
    %v247 = vunpack.c.h.b16 %v166
    %v248 = vunpack.c.l.b16 %v167
    %v249 = vunpack.c.l.b16 %v168
    %v250 = vunpack.c.h.b16 %v168
    %v251 = vunpack.c.l.b16 %v169
    %v252 = vunpack.c.l.b16 %v170
    %v253 = vunpack.c.h.b16 %v170
    %v254 = vunpack.c.l.b16 %v171
    %v255 = vunpack.c.l.b16 %v172
    %v256 = vunpack.c.h.b16 %v172
    %v257 = vunpack.c.l.b16 %v173
    %v258 = vunpack.c.l.b16 %v174
    %v259 = vunpack.c.h.b16 %v174
    %v260 = vunpack.c.l.b16 %v175
    %v261 = vunpack.c.l.b16 %v176
    %v262 = vunpack.c.h.b16 %v176
    %v263 = vunpack.c.l.b16 %v177
    %v264 = vunpack.c.l.b16 %v178
    %v265 = vunpack.c.h.b16 %v178
    %v266 = vunpack.c.l.b16 %v179
    %v267 = vunpack.c.l.b16 %v180
    %v268 = vunpack.c.h.b16 %v180
    %v269 = vunpack.c.l.b16 %v181
    %v270 = vpack.c.b16 %v225, %v222
    %v271 = vpack.c.b16 %v226, %v223
    %v272 = vpack.c.b16 %v227, %v224
    %v273 = vpack.c.b16 %v231, %v228
    %v274 = vpack.c.b16 %v232, %v229
    %v275 = vpack.c.b16 %v233, %v230
    %v276 = vpack.c.b16 %v237, %v234
    %v277 = vpack.c.b16 %v238, %v235
    %v278 = vpack.c.b16 %v239, %v236
    %v279 = vpack.c.b16 %v243, %v240
    %v280 = vpack.c.b16 %v244, %v241
    %v281 = vpack.c.b16 %v245, %v242
    %v282 = vpack.c.b16 %v249, %v246
    %v283 = vpack.c.b16 %v250, %v247
    %v284 = vpack.c.b16 %v251, %v248
    %v285 = vpack.c.b16 %v255, %v252
    %v286 = vpack.c.b16 %v256, %v253
    %v287 = vpack.c.b16 %v257, %v254
    %v288 = vpack.c.b16 %v261, %v258
    %v289 = vpack.c.b16 %v262, %v259
    %v290 = vpack.c.b16 %v263, %v260
    %v291 = vpack.c.b16 %v267, %v264
    %v292 = vpack.c.b16 %v268, %v265
    %v293 = vpack.c.b16 %v269, %v266
    %318 = vmatpush.bf16.msra.mxu0 %v291
    %319 = vmatpush.bf16.msra.mxu0 %v288
    %320 = vmatpush.bf16.msra.mxu0 %v285
    %321 = vmatpush.bf16.msra.mxu0 %v282
    %322 = vmatpush.bf16.msra.mxu0 %v279
    %323 = vmatpush.bf16.msra.mxu0 %v276
    %324 = vmatpush.bf16.msra.mxu0 %v273
    %325 = vmatpush.bf16.msra.mxu0 %v270
    %326 = vmatmul.bf16.gmra.mxu0 %v146
    %v327 = vpop.f32.mrf.mxu0
    %v328 = vadd.f32 %v184, %v327
    %v329 = vpop.f32.mrf.mxu0
    %v330 = vadd.f32 %v184, %v329
    %331 = vmatmul.bf16.gmra.mxu0 %v147
    %v332 = vpop.f32.mrf.mxu0
    %v333 = vadd.f32 %v184, %v332
    %v334 = vpop.f32.mrf.mxu0
    %v335 = vadd.f32 %v184, %v334
    %336 = vmatmul.bf16.gmra.mxu0 %v148
    %v337 = vpop.f32.mrf.mxu0
    %v338 = vadd.f32 %v184, %v337
    %v339 = vpop.f32.mrf.mxu0
    %v340 = vadd.f32 %v184, %v339
    %341 = vmatmul.bf16.gmra.mxu0 %v149
    %v342 = vpop.f32.mrf.mxu0
    %v343 = vadd.f32 %v184, %v342
    %v344 = vpop.f32.mrf.mxu0
    %v345 = vadd.f32 %v184, %v344
    %346 = vdwg.mxu0
    %347 = vmatpush.bf16.msra.mxu0 %v292
    %348 = vmatpush.bf16.msra.mxu0 %v289
    %349 = vmatpush.bf16.msra.mxu0 %v286
    %350 = vmatpush.bf16.msra.mxu0 %v283
    %351 = vmatpush.bf16.msra.mxu0 %v280
    %352 = vmatpush.bf16.msra.mxu0 %v277
    %353 = vmatpush.bf16.msra.mxu0 %v274
    %354 = vmatpush.bf16.msra.mxu0 %v271
    %355 = vmatmul.bf16.gmra.mxu0 %v146
    %v356 = vpop.f32.mrf.mxu0
    %v357 = vadd.f32 %v185, %v356
    %v358 = vpop.f32.mrf.mxu0
    %v359 = vadd.f32 %v185, %v358
    %360 = vmatmul.bf16.gmra.mxu0 %v147
    %v361 = vpop.f32.mrf.mxu0
    %v362 = vadd.f32 %v185, %v361
    %v363 = vpop.f32.mrf.mxu0
    %v364 = vadd.f32 %v185, %v363
    %365 = vmatmul.bf16.gmra.mxu0 %v148
    %v366 = vpop.f32.mrf.mxu0
    %v367 = vadd.f32 %v185, %v366
    %v368 = vpop.f32.mrf.mxu0
    %v369 = vadd.f32 %v185, %v368
    %370 = vmatmul.bf16.gmra.mxu0 %v149
    %v371 = vpop.f32.mrf.mxu0
    %v372 = vadd.f32 %v185, %v371
    %v373 = vpop.f32.mrf.mxu0
    %v374 = vadd.f32 %v185, %v373
    %375 = vdwg.mxu0
    %376 = vmatpush.bf16.msra.mxu0 %v293
    %377 = vmatpush.bf16.msra.mxu0 %v290
    %378 = vmatpush.bf16.msra.mxu0 %v287
    %379 = vmatpush.bf16.msra.mxu0 %v284
    %380 = vmatpush.bf16.msra.mxu0 %v281
    %381 = vmatpush.bf16.msra.mxu0 %v278
    %382 = vmatpush.bf16.msra.mxu0 %v275
    %383 = vmatpush.bf16.msra.mxu0 %v272
    %384 = vmatmul.bf16.gmra.mxu0 %v146
    %v385 = vpop.f32.mrf.mxu0
    %v386 = vadd.f32 %v186, %v385
    %v387 = vpop.f32.mrf.mxu0
    %v388 = vadd.f32 %v186, %v387
    %389 = vmatmul.bf16.gmra.mxu0 %v147
    %v390 = vpop.f32.mrf.mxu0
    %v391 = vadd.f32 %v186, %v390
    %v392 = vpop.f32.mrf.mxu0
    %v393 = vadd.f32 %v186, %v392
    %394 = vmatmul.bf16.gmra.mxu0 %v148
    %v395 = vpop.f32.mrf.mxu0
    %v396 = vadd.f32 %v186, %v395
    %v397 = vpop.f32.mrf.mxu0
    %v398 = vadd.f32 %v186, %v397
    %399 = vmatmul.bf16.gmra.mxu0 %v149
    %v400 = vpop.f32.mrf.mxu0
    %v401 = vadd.f32 %v186, %v400
    %v402 = vpop.f32.mrf.mxu0
    %v403 = vadd.f32 %v186, %v402
    %404 = vdwg.mxu0
    %v405 = vpack.c.bf16 %v357, %v328
    %v406 = vpack.c.bf16 %v386, %v386
    %v407 = vpack.c.bf16 %v359, %v330
    %v408 = vpack.c.bf16 %v388, %v388
    %v409 = vpack.c.bf16 %v362, %v333
    %v410 = vpack.c.bf16 %v391, %v391
    %v411 = vpack.c.bf16 %v364, %v335
    %v412 = vpack.c.bf16 %v393, %v393
    %v413 = vpack.c.bf16 %v367, %v338
    %v414 = vpack.c.bf16 %v396, %v396
    %v415 = vpack.c.bf16 %v369, %v340
    %v416 = vpack.c.bf16 %v398, %v398
    %v417 = vpack.c.bf16 %v372, %v343
    %v418 = vpack.c.bf16 %v401, %v401
    %v419 = vpack.c.bf16 %v374, %v345
    %v420 = vpack.c.bf16 %v403, %v403
    %v429 = vrot.slane %v405, 4
    %v430 = vrot.slane %v407, 4
    %v431 = vrot.slane %v409, 4
    %v432 = vrot.slane %v411, 4
    %v433 = vrot.slane %v413, 4
    %v434 = vrot.slane %v415, 4
    %v435 = vrot.slane %v417, 4
    %v436 = vrot.slane %v419, 4
    %v437 = vunpack.c.l.b16 %v405
    %v438 = vunpack.c.l.b16 %v407
    %v439 = vpack.c.b16 %v438, %v437
    %v440 = vunpack.c.l.b16 %v429
    %v441 = vunpack.c.l.b16 %v430
    %v442 = vpack.c.b16 %v441, %v440
    %vm443 = vcmask 261120
    %v445 = vsel %vm443, %v439, 0
    %v448 = vsel %vm443, %v442, 0
    %450 = vmatpush.bf16.xpose.msra.mxu0 0
    %451 = vmatpush.bf16.xpose.msra.mxu0 0
    %452 = vmatpush.bf16.xpose.msra.mxu0 0
    %453 = vmatpush.bf16.xpose.msra.mxu0 0
    %454 = vmatpush.bf16.xpose.msra.mxu0 0
    %455 = vmatpush.bf16.xpose.msra.mxu0 0
    %456 = vmatpush.bf16.xpose.msra.mxu0 0
    %457 = vmatpush.bf16.xpose.msra.mxu0 %v448
    %458 = vmatmul.bf16.gmra.mxu0 %v445
    %v459 = vpop.f32.mrf.mxu0
    %v460 = vadd.f32 0.0, %v459
    %v461 = vpop.f32.mrf.mxu0
    %v462 = vadd.f32 0.0, %v461
    %463 = vdwg.mxu0
    %v464 = vunpack.c.l.b16 %v409
    %v465 = vunpack.c.l.b16 %v411
    %v466 = vpack.c.b16 %v465, %v464
    %v467 = vunpack.c.l.b16 %v431
    %v468 = vunpack.c.l.b16 %v432
    %v469 = vpack.c.b16 %v468, %v467
    %v471 = vsel %vm443, %v466, 0
    %v474 = vsel %vm443, %v469, 0
    %476 = vmatpush.bf16.xpose.msra.mxu0 0
    %477 = vmatpush.bf16.xpose.msra.mxu0 0
    %478 = vmatpush.bf16.xpose.msra.mxu0 0
    %479 = vmatpush.bf16.xpose.msra.mxu0 0
    %480 = vmatpush.bf16.xpose.msra.mxu0 0
    %481 = vmatpush.bf16.xpose.msra.mxu0 0
    %482 = vmatpush.bf16.xpose.msra.mxu0 0
    %483 = vmatpush.bf16.xpose.msra.mxu0 %v474
    %484 = vmatmul.bf16.gmra.mxu0 %v471
    %v485 = vpop.f32.mrf.mxu0
    %v486 = vadd.f32 0.0, %v485
    %v487 = vpop.f32.mrf.mxu0
    %v488 = vadd.f32 0.0, %v487
    %489 = vdwg.mxu0
    %v490 = vunpack.c.l.b16 %v413
    %v491 = vunpack.c.l.b16 %v415
    %v492 = vpack.c.b16 %v491, %v490
    %v493 = vunpack.c.l.b16 %v433
    %v494 = vunpack.c.l.b16 %v434
    %v495 = vpack.c.b16 %v494, %v493
    %v497 = vsel %vm443, %v492, 0
    %v500 = vsel %vm443, %v495, 0
    %502 = vmatpush.bf16.xpose.msra.mxu0 0
    %503 = vmatpush.bf16.xpose.msra.mxu0 0
    %504 = vmatpush.bf16.xpose.msra.mxu0 0
    %505 = vmatpush.bf16.xpose.msra.mxu0 0
    %506 = vmatpush.bf16.xpose.msra.mxu0 0
    %507 = vmatpush.bf16.xpose.msra.mxu0 0
    %508 = vmatpush.bf16.xpose.msra.mxu0 0
    %509 = vmatpush.bf16.xpose.msra.mxu0 %v500
    %510 = vmatmul.bf16.gmra.mxu0 %v497
    %v511 = vpop.f32.mrf.mxu0
    %v512 = vadd.f32 0.0, %v511
    %v513 = vpop.f32.mrf.mxu0
    %v514 = vadd.f32 0.0, %v513
    %515 = vdwg.mxu0
    %v516 = vunpack.c.l.b16 %v417
    %v517 = vunpack.c.l.b16 %v419
    %v518 = vpack.c.b16 %v517, %v516
    %v519 = vunpack.c.l.b16 %v435
    %v520 = vunpack.c.l.b16 %v436
    %v521 = vpack.c.b16 %v520, %v519
    %v523 = vsel %vm443, %v518, 0
    %v526 = vsel %vm443, %v521, 0
    %528 = vmatpush.bf16.xpose.msra.mxu0 0
    %529 = vmatpush.bf16.xpose.msra.mxu0 0
    %530 = vmatpush.bf16.xpose.msra.mxu0 0
    %531 = vmatpush.bf16.xpose.msra.mxu0 0
    %532 = vmatpush.bf16.xpose.msra.mxu0 0
    %533 = vmatpush.bf16.xpose.msra.mxu0 0
    %534 = vmatpush.bf16.xpose.msra.mxu0 0
    %535 = vmatpush.bf16.xpose.msra.mxu0 %v526
    %536 = vmatmul.bf16.gmra.mxu0 %v523
    %v537 = vpop.f32.mrf.mxu0
    %v538 = vadd.f32 0.0, %v537
    %v539 = vpop.f32.mrf.mxu0
    %v540 = vadd.f32 0.0, %v539
    %541 = vdwg.mxu0
    %vm542 = vcmask 130048
    %v543 = vsel %vm542, %v460, -inf
    %544 = vmax.xlane.f32.xlu0 %v543
    %v545 = vpop.xlane.xlu0 %544
    %v546 = vsel %vm542, %v462, -inf
    %547 = vmax.xlane.f32.xlu0 %v546
    %v548 = vpop.xlane.xlu0 %547
    %v549 = vsel %vm542, %v486, -inf
    %550 = vmax.xlane.f32.xlu0 %v549
    %v551 = vpop.xlane.xlu0 %550
    %v552 = vsel %vm542, %v488, -inf
    %553 = vmax.xlane.f32.xlu0 %v552
    %v554 = vpop.xlane.xlu0 %553
    %v555 = vsel %vm542, %v512, -inf
    %556 = vmax.xlane.f32.xlu0 %v555
    %v557 = vpop.xlane.xlu0 %556
    %v558 = vsel %vm542, %v514, -inf
    %559 = vmax.xlane.f32.xlu0 %v558
    %v560 = vpop.xlane.xlu0 %559
    %v561 = vsel %vm542, %v538, -inf
    %562 = vmax.xlane.f32.xlu0 %v561
    %v563 = vpop.xlane.xlu0 %562
    %v564 = vsel %vm542, %v540, -inf
    %565 = vmax.xlane.f32.xlu0 %v564
    %v566 = vpop.xlane.xlu0 %565
    %v567 = vsub.f32 %v460, %v545
    %v568 = vsub.f32 %v462, %v548
    %v569 = vsub.f32 %v486, %v551
    %v570 = vsub.f32 %v488, %v554
    %v571 = vsub.f32 %v512, %v557
    %v572 = vsub.f32 %v514, %v560
    %v573 = vsub.f32 %v538, %v563
    %v574 = vsub.f32 %v540, %v566
    %v575 = vmul.f32 %v567, 1.442695
    %v576 = vpow.pop %v575
    %v577 = vmul.f32 %v568, 1.442695
    %v578 = vpow.pop %v577
    %v579 = vmul.f32 %v569, 1.442695
    %v580 = vpow.pop %v579
    %v581 = vmul.f32 %v570, 1.442695
    %v582 = vpow.pop %v581
    %v583 = vmul.f32 %v571, 1.442695
    %v584 = vpow.pop %v583
    %v585 = vmul.f32 %v572, 1.442695
    %v586 = vpow.pop %v585
    %v587 = vmul.f32 %v573, 1.442695
    %v588 = vpow.pop %v587
    %v589 = vmul.f32 %v574, 1.442695
    %v590 = vpow.pop %v589
    %v591 = vsel %vm542, %v576, 0.0
    %592 = vadd.xlane.f32.xlu0 %v591
    %v593 = vpop.xlane.xlu0 %592
    %v594 = vsel %vm542, %v578, 0.0
    %595 = vadd.xlane.f32.xlu0 %v594
    %v596 = vpop.xlane.xlu0 %595
    %v597 = vsel %vm542, %v580, 0.0
    %598 = vadd.xlane.f32.xlu0 %v597
    %v599 = vpop.xlane.xlu0 %598
    %v600 = vsel %vm542, %v582, 0.0
    %601 = vadd.xlane.f32.xlu0 %v600
    %v602 = vpop.xlane.xlu0 %601
    %v603 = vsel %vm542, %v584, 0.0
    %604 = vadd.xlane.f32.xlu0 %v603
    %v605 = vpop.xlane.xlu0 %604
    %v606 = vsel %vm542, %v586, 0.0
    %607 = vadd.xlane.f32.xlu0 %v606
    %v608 = vpop.xlane.xlu0 %607
    %v609 = vsel %vm542, %v588, 0.0
    %610 = vadd.xlane.f32.xlu0 %v609
    %v611 = vpop.xlane.xlu0 %610
    %v612 = vsel %vm542, %v590, 0.0
    %613 = vadd.xlane.f32.xlu0 %v612
    %v614 = vpop.xlane.xlu0 %613
    %v615 = vrcp.pop %v593
    %v616 = vrcp.pop %v596
    %v617 = vrcp.pop %v599
    %v618 = vrcp.pop %v602
    %v619 = vrcp.pop %v605
    %v620 = vrcp.pop %v608
    %v621 = vrcp.pop %v611
    %v622 = vrcp.pop %v614
    %v623 = vmul.f32 %v576, %v615
    %v624 = vmul.f32 %v578, %v616
    %v625 = vmul.f32 %v580, %v617
    %v626 = vmul.f32 %v582, %v618
    %v627 = vmul.f32 %v584, %v619
    %v628 = vmul.f32 %v586, %v620
    %v629 = vmul.f32 %v588, %v621
    %v630 = vmul.f32 %v590, %v622
    %v631 = vpack.c.bf16 %v623, %v623
    %v632 = vpack.c.bf16 %v624, %v624
    %v633 = vpack.c.bf16 %v625, %v625
    %v634 = vpack.c.bf16 %v626, %v626
    %v635 = vpack.c.bf16 %v627, %v627
    %v636 = vpack.c.bf16 %v628, %v628
    %v637 = vpack.c.bf16 %v629, %v629
    %v638 = vpack.c.bf16 %v630, %v630
    %v641 = vunpack.c.l.b16 %v631
    %v642 = vunpack.c.l.b16 %v632
    %v643 = vpack.c.b16 %v642, %v641
    %v646 = vunpack.c.l.b16 %v406
    %v647 = vunpack.c.l.b16 %v408
    %v648 = vpack.c.b16 %v647, %v646
    %v651 = vsel %vm542, %v643, 0
    %653 = vmatpush.bf16.msra.mxu0 0
    %654 = vmatpush.bf16.msra.mxu0 0
    %655 = vmatpush.bf16.msra.mxu0 0
    %656 = vmatpush.bf16.msra.mxu0 0
    %657 = vmatpush.bf16.msra.mxu0 0
    %658 = vmatpush.bf16.msra.mxu0 0
    %659 = vmatpush.bf16.msra.mxu0 0
    %660 = vmatpush.bf16.msra.mxu0 %v648
    %661 = vmatmul.bf16.gmra.mxu0 %v651
    %v662 = vpop.f32.mrf.mxu0
    %v663 = vadd.f32 0.0, %v662
    %v664 = vpop.f32.mrf.mxu0
    %v665 = vadd.f32 0.0, %v664
    %666 = vdwg.mxu0
    %v669 = vunpack.c.l.b16 %v633
    %v670 = vunpack.c.l.b16 %v634
    %v671 = vpack.c.b16 %v670, %v669
    %v674 = vunpack.c.l.b16 %v410
    %v675 = vunpack.c.l.b16 %v412
    %v676 = vpack.c.b16 %v675, %v674
    %v679 = vsel %vm542, %v671, 0
    %681 = vmatpush.bf16.msra.mxu0 0
    %682 = vmatpush.bf16.msra.mxu0 0
    %683 = vmatpush.bf16.msra.mxu0 0
    %684 = vmatpush.bf16.msra.mxu0 0
    %685 = vmatpush.bf16.msra.mxu0 0
    %686 = vmatpush.bf16.msra.mxu0 0
    %687 = vmatpush.bf16.msra.mxu0 0
    %688 = vmatpush.bf16.msra.mxu0 %v676
    %689 = vmatmul.bf16.gmra.mxu0 %v679
    %v690 = vpop.f32.mrf.mxu0
    %v691 = vadd.f32 0.0, %v690
    %v692 = vpop.f32.mrf.mxu0
    %v693 = vadd.f32 0.0, %v692
    %694 = vdwg.mxu0
    %v697 = vunpack.c.l.b16 %v635
    %v698 = vunpack.c.l.b16 %v636
    %v699 = vpack.c.b16 %v698, %v697
    %v702 = vunpack.c.l.b16 %v414
    %v703 = vunpack.c.l.b16 %v416
    %v704 = vpack.c.b16 %v703, %v702
    %v707 = vsel %vm542, %v699, 0
    %709 = vmatpush.bf16.msra.mxu0 0
    %710 = vmatpush.bf16.msra.mxu0 0
    %711 = vmatpush.bf16.msra.mxu0 0
    %712 = vmatpush.bf16.msra.mxu0 0
    %713 = vmatpush.bf16.msra.mxu0 0
    %714 = vmatpush.bf16.msra.mxu0 0
    %715 = vmatpush.bf16.msra.mxu0 0
    %716 = vmatpush.bf16.msra.mxu0 %v704
    %717 = vmatmul.bf16.gmra.mxu0 %v707
    %v718 = vpop.f32.mrf.mxu0
    %v719 = vadd.f32 0.0, %v718
    %v720 = vpop.f32.mrf.mxu0
    %v721 = vadd.f32 0.0, %v720
    %722 = vdwg.mxu0
    %v725 = vunpack.c.l.b16 %v637
    %v726 = vunpack.c.l.b16 %v638
    %v727 = vpack.c.b16 %v726, %v725
    %v730 = vunpack.c.l.b16 %v418
    %v731 = vunpack.c.l.b16 %v420
    %v732 = vpack.c.b16 %v731, %v730
    %v735 = vsel %vm542, %v727, 0
    %737 = vmatpush.bf16.msra.mxu0 0
    %738 = vmatpush.bf16.msra.mxu0 0
    %739 = vmatpush.bf16.msra.mxu0 0
    %740 = vmatpush.bf16.msra.mxu0 0
    %741 = vmatpush.bf16.msra.mxu0 0
    %742 = vmatpush.bf16.msra.mxu0 0
    %743 = vmatpush.bf16.msra.mxu0 0
    %744 = vmatpush.bf16.msra.mxu0 %v732
    %745 = vmatmul.bf16.gmra.mxu0 %v735
    %v746 = vpop.f32.mrf.mxu0
    %v747 = vadd.f32 0.0, %v746
    %v748 = vpop.f32.mrf.mxu0
    %v749 = vadd.f32 0.0, %v748
    %750 = vdwg.mxu0
    %v751 = vpack.c.bf16 %v663, %v663
    %v752 = vpack.c.bf16 %v665, %v665
    %v753 = vpack.c.bf16 %v691, %v691
    %v754 = vpack.c.bf16 %v693, %v693
    %v755 = vpack.c.bf16 %v719, %v719
    %v756 = vpack.c.bf16 %v721, %v721
    %v757 = vpack.c.bf16 %v747, %v747
    %v758 = vpack.c.bf16 %v749, %v749
    %vm759 = vcmask 257024
    %760 = vst.msk [vmem:[#allocation2] sm:$0xf] %vm759, %v751
    %761 = vst.msk [vmem:[#allocation2 + $0x4] sm:$0xf] %vm759, %v752
    %762 = vst.msk [vmem:[#allocation2 + $0x8] sm:$0xf] %vm759, %v753
    %763 = vst.msk [vmem:[#allocation2 + $0xc] sm:$0xf] %vm759, %v754
    %764 = vst.msk [vmem:[#allocation2 + $0x10] sm:$0xf] %vm759, %v755
    %765 = vst.msk [vmem:[#allocation2 + $0x14] sm:$0xf] %vm759, %v756
    %766 = vst.msk [vmem:[#allocation2 + $0x18] sm:$0xf] %vm759, %v757
    %767 = vst.msk [vmem:[#allocation2 + $0x1c] sm:$0xf] %vm759, %v758
    %768 = vrot.lane.b32.xlu0 %v405, 96
    %v769 = vpop.permute.xlu0 %768
    %770 = vrot.lane.b32.xlu0 %v407, 96
    %v771 = vpop.permute.xlu0 %770
    %772 = vrot.lane.b32.xlu0 %v409, 96
    %v773 = vpop.permute.xlu0 %772
    %774 = vrot.lane.b32.xlu0 %v411, 96
    %v775 = vpop.permute.xlu0 %774
    %776 = vrot.lane.b32.xlu0 %v413, 96
    %v777 = vpop.permute.xlu0 %776
    %778 = vrot.lane.b32.xlu0 %v415, 96
    %v779 = vpop.permute.xlu0 %778
    %780 = vrot.lane.b32.xlu0 %v417, 96
    %v781 = vpop.permute.xlu0 %780
    %782 = vrot.lane.b32.xlu0 %v419, 96
    %v783 = vpop.permute.xlu0 %782
    %v784 = vrot.slane %v769, 4
    %v785 = vrot.slane %v771, 4
    %v786 = vrot.slane %v773, 4
    %v787 = vrot.slane %v775, 4
    %v788 = vrot.slane %v777, 4
    %v789 = vrot.slane %v779, 4
    %v790 = vrot.slane %v781, 4
    %v791 = vrot.slane %v783, 4
    %792 = vrot.lane.b32.xlu0 %v439, 96
    %v793 = vpop.permute.xlu0 %792
    %v794 = vunpack.c.l.b16 %v784
    %v795 = vunpack.c.l.b16 %v785
    %v796 = vpack.c.b16 %v795, %v794
    %v798 = vsel %vm443, %v793, 0
    %v801 = vsel %vm443, %v796, 0
    %803 = vmatpush.bf16.xpose.msra.mxu0 0
    %804 = vmatpush.bf16.xpose.msra.mxu0 0
    %805 = vmatpush.bf16.xpose.msra.mxu0 0
    %806 = vmatpush.bf16.xpose.msra.mxu0 0
    %807 = vmatpush.bf16.xpose.msra.mxu0 0
    %808 = vmatpush.bf16.xpose.msra.mxu0 0
    %809 = vmatpush.bf16.xpose.msra.mxu0 0
    %810 = vmatpush.bf16.xpose.msra.mxu0 %v801
    %811 = vmatmul.bf16.gmra.mxu0 %v798
    %v812 = vpop.f32.mrf.mxu0
    %v813 = vadd.f32 0.0, %v812
    %v814 = vpop.f32.mrf.mxu0
    %v815 = vadd.f32 0.0, %v814
    %816 = vdwg.mxu0
    %817 = vrot.lane.b32.xlu0 %v466, 96
    %v818 = vpop.permute.xlu0 %817
    %v819 = vunpack.c.l.b16 %v786
    %v820 = vunpack.c.l.b16 %v787
    %v821 = vpack.c.b16 %v820, %v819
    %v823 = vsel %vm443, %v818, 0
    %v826 = vsel %vm443, %v821, 0
    %828 = vmatpush.bf16.xpose.msra.mxu0 0
    %829 = vmatpush.bf16.xpose.msra.mxu0 0
    %830 = vmatpush.bf16.xpose.msra.mxu0 0
    %831 = vmatpush.bf16.xpose.msra.mxu0 0
    %832 = vmatpush.bf16.xpose.msra.mxu0 0
    %833 = vmatpush.bf16.xpose.msra.mxu0 0
    %834 = vmatpush.bf16.xpose.msra.mxu0 0
    %835 = vmatpush.bf16.xpose.msra.mxu0 %v826
    %836 = vmatmul.bf16.gmra.mxu0 %v823
    %v837 = vpop.f32.mrf.mxu0
    %v838 = vadd.f32 0.0, %v837
    %v839 = vpop.f32.mrf.mxu0
    %v840 = vadd.f32 0.0, %v839
    %841 = vdwg.mxu0
    %842 = vrot.lane.b32.xlu0 %v492, 96
    %v843 = vpop.permute.xlu0 %842
    %v844 = vunpack.c.l.b16 %v788
    %v845 = vunpack.c.l.b16 %v789
    %v846 = vpack.c.b16 %v845, %v844
    %v848 = vsel %vm443, %v843, 0
    %v851 = vsel %vm443, %v846, 0
    %853 = vmatpush.bf16.xpose.msra.mxu0 0
    %854 = vmatpush.bf16.xpose.msra.mxu0 0
    %855 = vmatpush.bf16.xpose.msra.mxu0 0
    %856 = vmatpush.bf16.xpose.msra.mxu0 0
    %857 = vmatpush.bf16.xpose.msra.mxu0 0
    %858 = vmatpush.bf16.xpose.msra.mxu0 0
    %859 = vmatpush.bf16.xpose.msra.mxu0 0
    %860 = vmatpush.bf16.xpose.msra.mxu0 %v851
    %861 = vmatmul.bf16.gmra.mxu0 %v848
    %v862 = vpop.f32.mrf.mxu0
    %v863 = vadd.f32 0.0, %v862
    %v864 = vpop.f32.mrf.mxu0
    %v865 = vadd.f32 0.0, %v864
    %866 = vdwg.mxu0
    %867 = vrot.lane.b32.xlu0 %v518, 96
    %v868 = vpop.permute.xlu0 %867
    %v869 = vunpack.c.l.b16 %v790
    %v870 = vunpack.c.l.b16 %v791
    %v871 = vpack.c.b16 %v870, %v869
    %v873 = vsel %vm443, %v868, 0
    %v876 = vsel %vm443, %v871, 0
    %878 = vmatpush.bf16.xpose.msra.mxu0 0
    %879 = vmatpush.bf16.xpose.msra.mxu0 0
    %880 = vmatpush.bf16.xpose.msra.mxu0 0
    %881 = vmatpush.bf16.xpose.msra.mxu0 0
    %882 = vmatpush.bf16.xpose.msra.mxu0 0
    %883 = vmatpush.bf16.xpose.msra.mxu0 0
    %884 = vmatpush.bf16.xpose.msra.mxu0 0
    %885 = vmatpush.bf16.xpose.msra.mxu0 %v876
    %886 = vmatmul.bf16.gmra.mxu0 %v873
    %v887 = vpop.f32.mrf.mxu0
    %v888 = vadd.f32 0.0, %v887
    %v889 = vpop.f32.mrf.mxu0
    %v890 = vadd.f32 0.0, %v889
    %891 = vdwg.mxu0
    %v892 = vsel %vm542, %v813, -inf
    %893 = vmax.xlane.f32.xlu0 %v892
    %v894 = vpop.xlane.xlu0 %893
    %v895 = vsel %vm542, %v815, -inf
    %896 = vmax.xlane.f32.xlu0 %v895
    %v897 = vpop.xlane.xlu0 %896
    %v898 = vsel %vm542, %v838, -inf
    %899 = vmax.xlane.f32.xlu0 %v898
    %v900 = vpop.xlane.xlu0 %899
    %v901 = vsel %vm542, %v840, -inf
    %902 = vmax.xlane.f32.xlu0 %v901
    %v903 = vpop.xlane.xlu0 %902
    %v904 = vsel %vm542, %v863, -inf
    %905 = vmax.xlane.f32.xlu0 %v904
    %v906 = vpop.xlane.xlu0 %905
    %v907 = vsel %vm542, %v865, -inf
    %908 = vmax.xlane.f32.xlu0 %v907
    %v909 = vpop.xlane.xlu0 %908
    %v910 = vsel %vm542, %v888, -inf
    %911 = vmax.xlane.f32.xlu0 %v910
    %v912 = vpop.xlane.xlu0 %911
    %v913 = vsel %vm542, %v890, -inf
    %914 = vmax.xlane.f32.xlu0 %v913
    %v915 = vpop.xlane.xlu0 %914
    %v916 = vsub.f32 %v813, %v894
    %v917 = vsub.f32 %v815, %v897
    %v918 = vsub.f32 %v838, %v900
    %v919 = vsub.f32 %v840, %v903
    %v920 = vsub.f32 %v863, %v906
    %v921 = vsub.f32 %v865, %v909
    %v922 = vsub.f32 %v888, %v912
    %v923 = vsub.f32 %v890, %v915
    %v924 = vmul.f32 %v916, 1.442695
    %v925 = vpow.pop %v924
    %v926 = vmul.f32 %v917, 1.442695
    %v927 = vpow.pop %v926
    %v928 = vmul.f32 %v918, 1.442695
    %v929 = vpow.pop %v928
    %v930 = vmul.f32 %v919, 1.442695
    %v931 = vpow.pop %v930
    %v932 = vmul.f32 %v920, 1.442695
    %v933 = vpow.pop %v932
    %v934 = vmul.f32 %v921, 1.442695
    %v935 = vpow.pop %v934
    %v936 = vmul.f32 %v922, 1.442695
    %v937 = vpow.pop %v936
    %v938 = vmul.f32 %v923, 1.442695
    %v939 = vpow.pop %v938
    %v940 = vsel %vm542, %v925, 0.0
    %941 = vadd.xlane.f32.xlu0 %v940
    %v942 = vpop.xlane.xlu0 %941
    %v943 = vsel %vm542, %v927, 0.0
    %944 = vadd.xlane.f32.xlu0 %v943
    %v945 = vpop.xlane.xlu0 %944
    %v946 = vsel %vm542, %v929, 0.0
    %947 = vadd.xlane.f32.xlu0 %v946
    %v948 = vpop.xlane.xlu0 %947
    %v949 = vsel %vm542, %v931, 0.0
    %950 = vadd.xlane.f32.xlu0 %v949
    %v951 = vpop.xlane.xlu0 %950
    %v952 = vsel %vm542, %v933, 0.0
    %953 = vadd.xlane.f32.xlu0 %v952
    %v954 = vpop.xlane.xlu0 %953
    %v955 = vsel %vm542, %v935, 0.0
    %956 = vadd.xlane.f32.xlu0 %v955
    %v957 = vpop.xlane.xlu0 %956
    %v958 = vsel %vm542, %v937, 0.0
    %959 = vadd.xlane.f32.xlu0 %v958
    %v960 = vpop.xlane.xlu0 %959
    %v961 = vsel %vm542, %v939, 0.0
    %962 = vadd.xlane.f32.xlu0 %v961
    %v963 = vpop.xlane.xlu0 %962
    %v964 = vrcp.pop %v942
    %v965 = vrcp.pop %v945
    %v966 = vrcp.pop %v948
    %v967 = vrcp.pop %v951
    %v968 = vrcp.pop %v954
    %v969 = vrcp.pop %v957
    %v970 = vrcp.pop %v960
    %v971 = vrcp.pop %v963
    %v972 = vmul.f32 %v925, %v964
    %v973 = vmul.f32 %v927, %v965
    %v974 = vmul.f32 %v929, %v966
    %v975 = vmul.f32 %v931, %v967
    %v976 = vmul.f32 %v933, %v968
    %v977 = vmul.f32 %v935, %v969
    %v978 = vmul.f32 %v937, %v970
    %v979 = vmul.f32 %v939, %v971
    %v980 = vpack.c.bf16 %v972, %v972
    %v981 = vpack.c.bf16 %v973, %v973
    %v982 = vpack.c.bf16 %v974, %v974
    %v983 = vpack.c.bf16 %v975, %v975
    %v984 = vpack.c.bf16 %v976, %v976
    %v985 = vpack.c.bf16 %v977, %v977
    %v986 = vpack.c.bf16 %v978, %v978
    %v987 = vpack.c.bf16 %v979, %v979
    %v990 = vunpack.c.l.b16 %v980
    %v991 = vunpack.c.l.b16 %v981
    %v992 = vpack.c.b16 %v991, %v990
    %993 = vrot.lane.b32.xlu0 %v648, 96
    %v994 = vpop.permute.xlu0 %993
    %v997 = vsel %vm542, %v992, 0
    %999 = vmatpush.bf16.msra.mxu0 0
    %1000 = vmatpush.bf16.msra.mxu0 0
    %1001 = vmatpush.bf16.msra.mxu0 0
    %1002 = vmatpush.bf16.msra.mxu0 0
    %1003 = vmatpush.bf16.msra.mxu0 0
    %1004 = vmatpush.bf16.msra.mxu0 0
    %1005 = vmatpush.bf16.msra.mxu0 0
    %1006 = vmatpush.bf16.msra.mxu0 %v994
    %1007 = vmatmul.bf16.gmra.mxu0 %v997
    %v1008 = vpop.f32.mrf.mxu0
    %v1009 = vadd.f32 0.0, %v1008
    %v1010 = vpop.f32.mrf.mxu0
    %v1011 = vadd.f32 0.0, %v1010
    %1012 = vdwg.mxu0
    %v1015 = vunpack.c.l.b16 %v982
    %v1016 = vunpack.c.l.b16 %v983
    %v1017 = vpack.c.b16 %v1016, %v1015
    %1018 = vrot.lane.b32.xlu0 %v676, 96
    %v1019 = vpop.permute.xlu0 %1018
    %v1022 = vsel %vm542, %v1017, 0
    %1024 = vmatpush.bf16.msra.mxu0 0
    %1025 = vmatpush.bf16.msra.mxu0 0
    %1026 = vmatpush.bf16.msra.mxu0 0
    %1027 = vmatpush.bf16.msra.mxu0 0
    %1028 = vmatpush.bf16.msra.mxu0 0
    %1029 = vmatpush.bf16.msra.mxu0 0
    %1030 = vmatpush.bf16.msra.mxu0 0
    %1031 = vmatpush.bf16.msra.mxu0 %v1019
    %1032 = vmatmul.bf16.gmra.mxu0 %v1022
    %v1033 = vpop.f32.mrf.mxu0
    %v1034 = vadd.f32 0.0, %v1033
    %v1035 = vpop.f32.mrf.mxu0
    %v1036 = vadd.f32 0.0, %v1035
    %1037 = vdwg.mxu0
    %v1040 = vunpack.c.l.b16 %v984
    %v1041 = vunpack.c.l.b16 %v985
    %v1042 = vpack.c.b16 %v1041, %v1040
    %1043 = vrot.lane.b32.xlu0 %v704, 96
    %v1044 = vpop.permute.xlu0 %1043
    %v1047 = vsel %vm542, %v1042, 0
    %1049 = vmatpush.bf16.msra.mxu0 0
    %1050 = vmatpush.bf16.msra.mxu0 0
    %1051 = vmatpush.bf16.msra.mxu0 0
    %1052 = vmatpush.bf16.msra.mxu0 0
    %1053 = vmatpush.bf16.msra.mxu0 0
    %1054 = vmatpush.bf16.msra.mxu0 0
    %1055 = vmatpush.bf16.msra.mxu0 0
    %1056 = vmatpush.bf16.msra.mxu0 %v1044
    %1057 = vmatmul.bf16.gmra.mxu0 %v1047
    %v1058 = vpop.f32.mrf.mxu0
    %v1059 = vadd.f32 0.0, %v1058
    %v1060 = vpop.f32.mrf.mxu0
    %v1061 = vadd.f32 0.0, %v1060
    %1062 = vdwg.mxu0
    %v1065 = vunpack.c.l.b16 %v986
    %v1066 = vunpack.c.l.b16 %v987
    %v1067 = vpack.c.b16 %v1066, %v1065
    %1068 = vrot.lane.b32.xlu0 %v732, 96
    %v1069 = vpop.permute.xlu0 %1068
    %v1072 = vsel %vm542, %v1067, 0
    %1074 = vmatpush.bf16.msra.mxu0 0
    %1075 = vmatpush.bf16.msra.mxu0 0
    %1076 = vmatpush.bf16.msra.mxu0 0
    %1077 = vmatpush.bf16.msra.mxu0 0
    %1078 = vmatpush.bf16.msra.mxu0 0
    %1079 = vmatpush.bf16.msra.mxu0 0
    %1080 = vmatpush.bf16.msra.mxu0 0
    %1081 = vmatpush.bf16.msra.mxu0 %v1069
    %1082 = vmatmul.bf16.gmra.mxu0 %v1072
    %v1083 = vpop.f32.mrf.mxu0
    %v1084 = vadd.f32 0.0, %v1083
    %v1085 = vpop.f32.mrf.mxu0
    %v1086 = vadd.f32 0.0, %v1085
    %1087 = vdwg.mxu0
    %v1088 = vpack.c.bf16 %v1009, %v1009
    %v1089 = vpack.c.bf16 %v1011, %v1011
    %v1090 = vpack.c.bf16 %v1034, %v1034
    %v1091 = vpack.c.bf16 %v1036, %v1036
    %v1092 = vpack.c.bf16 %v1059, %v1059
    %v1093 = vpack.c.bf16 %v1061, %v1061
    %v1094 = vpack.c.bf16 %v1084, %v1084
    %v1095 = vpack.c.bf16 %v1086, %v1086
    %1104 = vrot.lane.b32.xlu0 %v1088, 32
    %v1105 = vpop.permute.xlu0 %1104
    %1106 = vrot.lane.b32.xlu0 %v1089, 32
    %v1107 = vpop.permute.xlu0 %1106
    %1108 = vrot.lane.b32.xlu0 %v1090, 32
    %v1109 = vpop.permute.xlu0 %1108
    %1110 = vrot.lane.b32.xlu0 %v1091, 32
    %v1111 = vpop.permute.xlu0 %1110
    %1112 = vrot.lane.b32.xlu0 %v1092, 32
    %v1113 = vpop.permute.xlu0 %1112
    %1114 = vrot.lane.b32.xlu0 %v1093, 32
    %v1115 = vpop.permute.xlu0 %1114
    %1116 = vrot.lane.b32.xlu0 %v1094, 32
    %v1117 = vpop.permute.xlu0 %1116
    %1118 = vrot.lane.b32.xlu0 %v1095, 32
    %v1119 = vpop.permute.xlu0 %1118
    %vm1128 = vcmask 519424
    %1129 = vst.msk [vmem:[#allocation2] sm:$0xf] %vm1128, %v1105
    %1130 = vst.msk [vmem:[#allocation2 + $0x4] sm:$0xf] %vm1128, %v1107
    %1131 = vst.msk [vmem:[#allocation2 + $0x8] sm:$0xf] %vm1128, %v1109
    %1132 = vst.msk [vmem:[#allocation2 + $0xc] sm:$0xf] %vm1128, %v1111
    %1133 = vst.msk [vmem:[#allocation2 + $0x10] sm:$0xf] %vm1128, %v1113
    %1134 = vst.msk [vmem:[#allocation2 + $0x14] sm:$0xf] %vm1128, %v1115
    %1135 = vst.msk [vmem:[#allocation2 + $0x18] sm:$0xf] %vm1128, %v1117
    %1136 = vst.msk [vmem:[#allocation2 + $0x1c] sm:$0xf] %vm1128, %v1119
    %1137 = vrot.lane.b32.xlu0 %v405, 64
    %v1138 = vpop.permute.xlu0 %1137
    %1139 = vrot.lane.b32.xlu0 %v407, 64
    %v1140 = vpop.permute.xlu0 %1139
    %1141 = vrot.lane.b32.xlu0 %v409, 64
    %v1142 = vpop.permute.xlu0 %1141
    %1143 = vrot.lane.b32.xlu0 %v411, 64
    %v1144 = vpop.permute.xlu0 %1143
    %1145 = vrot.lane.b32.xlu0 %v413, 64
    %v1146 = vpop.permute.xlu0 %1145
    %1147 = vrot.lane.b32.xlu0 %v415, 64
    %v1148 = vpop.permute.xlu0 %1147
    %1149 = vrot.lane.b32.xlu0 %v417, 64
    %v1150 = vpop.permute.xlu0 %1149
    %1151 = vrot.lane.b32.xlu0 %v419, 64
    %v1152 = vpop.permute.xlu0 %1151
    %v1153 = vrot.slane %v1138, 4
    %v1154 = vrot.slane %v1140, 4
    %v1155 = vrot.slane %v1142, 4
    %v1156 = vrot.slane %v1144, 4
    %v1157 = vrot.slane %v1146, 4
    %v1158 = vrot.slane %v1148, 4
    %v1159 = vrot.slane %v1150, 4
    %v1160 = vrot.slane %v1152, 4
    %1161 = vrot.lane.b32.xlu0 %v439, 64
    %v1162 = vpop.permute.xlu0 %1161
    %v1163 = vunpack.c.l.b16 %v1153
    %v1164 = vunpack.c.l.b16 %v1154
    %v1165 = vpack.c.b16 %v1164, %v1163
    %v1167 = vsel %vm443, %v1162, 0
    %v1170 = vsel %vm443, %v1165, 0
    %1172 = vmatpush.bf16.xpose.msra.mxu0 0
    %1173 = vmatpush.bf16.xpose.msra.mxu0 0
    %1174 = vmatpush.bf16.xpose.msra.mxu0 0
    %1175 = vmatpush.bf16.xpose.msra.mxu0 0
    %1176 = vmatpush.bf16.xpose.msra.mxu0 0
    %1177 = vmatpush.bf16.xpose.msra.mxu0 0
    %1178 = vmatpush.bf16.xpose.msra.mxu0 0
    %1179 = vmatpush.bf16.xpose.msra.mxu0 %v1170
    %1180 = vmatmul.bf16.gmra.mxu0 %v1167
    %v1181 = vpop.f32.mrf.mxu0
    %v1182 = vadd.f32 0.0, %v1181
    %v1183 = vpop.f32.mrf.mxu0
    %v1184 = vadd.f32 0.0, %v1183
    %1185 = vdwg.mxu0
    %1186 = vrot.lane.b32.xlu0 %v466, 64
    %v1187 = vpop.permute.xlu0 %1186
    %v1188 = vunpack.c.l.b16 %v1155
    %v1189 = vunpack.c.l.b16 %v1156
    %v1190 = vpack.c.b16 %v1189, %v1188
    %v1192 = vsel %vm443, %v1187, 0
    %v1195 = vsel %vm443, %v1190, 0
    %1197 = vmatpush.bf16.xpose.msra.mxu0 0
    %1198 = vmatpush.bf16.xpose.msra.mxu0 0
    %1199 = vmatpush.bf16.xpose.msra.mxu0 0
    %1200 = vmatpush.bf16.xpose.msra.mxu0 0
    %1201 = vmatpush.bf16.xpose.msra.mxu0 0
    %1202 = vmatpush.bf16.xpose.msra.mxu0 0
    %1203 = vmatpush.bf16.xpose.msra.mxu0 0
    %1204 = vmatpush.bf16.xpose.msra.mxu0 %v1195
    %1205 = vmatmul.bf16.gmra.mxu0 %v1192
    %v1206 = vpop.f32.mrf.mxu0
    %v1207 = vadd.f32 0.0, %v1206
    %v1208 = vpop.f32.mrf.mxu0
    %v1209 = vadd.f32 0.0, %v1208
    %1210 = vdwg.mxu0
    %1211 = vrot.lane.b32.xlu0 %v492, 64
    %v1212 = vpop.permute.xlu0 %1211
    %v1213 = vunpack.c.l.b16 %v1157
    %v1214 = vunpack.c.l.b16 %v1158
    %v1215 = vpack.c.b16 %v1214, %v1213
    %v1217 = vsel %vm443, %v1212, 0
    %v1220 = vsel %vm443, %v1215, 0
    %1222 = vmatpush.bf16.xpose.msra.mxu0 0
    %1223 = vmatpush.bf16.xpose.msra.mxu0 0
    %1224 = vmatpush.bf16.xpose.msra.mxu0 0
    %1225 = vmatpush.bf16.xpose.msra.mxu0 0
    %1226 = vmatpush.bf16.xpose.msra.mxu0 0
    %1227 = vmatpush.bf16.xpose.msra.mxu0 0
    %1228 = vmatpush.bf16.xpose.msra.mxu0 0
    %1229 = vmatpush.bf16.xpose.msra.mxu0 %v1220
    %1230 = vmatmul.bf16.gmra.mxu0 %v1217
    %v1231 = vpop.f32.mrf.mxu0
    %v1232 = vadd.f32 0.0, %v1231
    %v1233 = vpop.f32.mrf.mxu0
    %v1234 = vadd.f32 0.0, %v1233
    %1235 = vdwg.mxu0
    %1236 = vrot.lane.b32.xlu0 %v518, 64
    %v1237 = vpop.permute.xlu0 %1236
    %v1238 = vunpack.c.l.b16 %v1159
    %v1239 = vunpack.c.l.b16 %v1160
    %v1240 = vpack.c.b16 %v1239, %v1238
    %v1242 = vsel %vm443, %v1237, 0
    %v1245 = vsel %vm443, %v1240, 0
    %1247 = vmatpush.bf16.xpose.msra.mxu0 0
    %1248 = vmatpush.bf16.xpose.msra.mxu0 0
    %1249 = vmatpush.bf16.xpose.msra.mxu0 0
    %1250 = vmatpush.bf16.xpose.msra.mxu0 0
    %1251 = vmatpush.bf16.xpose.msra.mxu0 0
    %1252 = vmatpush.bf16.xpose.msra.mxu0 0
    %1253 = vmatpush.bf16.xpose.msra.mxu0 0
    %1254 = vmatpush.bf16.xpose.msra.mxu0 %v1245
    %1255 = vmatmul.bf16.gmra.mxu0 %v1242
    %v1256 = vpop.f32.mrf.mxu0
    %v1257 = vadd.f32 0.0, %v1256
    %v1258 = vpop.f32.mrf.mxu0
    %v1259 = vadd.f32 0.0, %v1258
    %1260 = vdwg.mxu0
    %v1261 = vsel %vm542, %v1182, -inf
    %1262 = vmax.xlane.f32.xlu0 %v1261
    %v1263 = vpop.xlane.xlu0 %1262
    %v1264 = vsel %vm542, %v1184, -inf
    %1265 = vmax.xlane.f32.xlu0 %v1264
    %v1266 = vpop.xlane.xlu0 %1265
    %v1267 = vsel %vm542, %v1207, -inf
    %1268 = vmax.xlane.f32.xlu0 %v1267
    %v1269 = vpop.xlane.xlu0 %1268
    %v1270 = vsel %vm542, %v1209, -inf
    %1271 = vmax.xlane.f32.xlu0 %v1270
    %v1272 = vpop.xlane.xlu0 %1271
    %v1273 = vsel %vm542, %v1232, -inf
    %1274 = vmax.xlane.f32.xlu0 %v1273
    %v1275 = vpop.xlane.xlu0 %1274
    %v1276 = vsel %vm542, %v1234, -inf
    %1277 = vmax.xlane.f32.xlu0 %v1276
    %v1278 = vpop.xlane.xlu0 %1277
    %v1279 = vsel %vm542, %v1257, -inf
    %1280 = vmax.xlane.f32.xlu0 %v1279
    %v1281 = vpop.xlane.xlu0 %1280
    %v1282 = vsel %vm542, %v1259, -inf
    %1283 = vmax.xlane.f32.xlu0 %v1282
    %v1284 = vpop.xlane.xlu0 %1283
    %v1285 = vsub.f32 %v1182, %v1263
    %v1286 = vsub.f32 %v1184, %v1266
    %v1287 = vsub.f32 %v1207, %v1269
    %v1288 = vsub.f32 %v1209, %v1272
    %v1289 = vsub.f32 %v1232, %v1275
    %v1290 = vsub.f32 %v1234, %v1278
    %v1291 = vsub.f32 %v1257, %v1281
    %v1292 = vsub.f32 %v1259, %v1284
    %v1293 = vmul.f32 %v1285, 1.442695
    %v1294 = vpow.pop %v1293
    %v1295 = vmul.f32 %v1286, 1.442695
    %v1296 = vpow.pop %v1295
    %v1297 = vmul.f32 %v1287, 1.442695
    %v1298 = vpow.pop %v1297
    %v1299 = vmul.f32 %v1288, 1.442695
    %v1300 = vpow.pop %v1299
    %v1301 = vmul.f32 %v1289, 1.442695
    %v1302 = vpow.pop %v1301
    %v1303 = vmul.f32 %v1290, 1.442695
    %v1304 = vpow.pop %v1303
    %v1305 = vmul.f32 %v1291, 1.442695
    %v1306 = vpow.pop %v1305
    %v1307 = vmul.f32 %v1292, 1.442695
    %v1308 = vpow.pop %v1307
    %v1309 = vsel %vm542, %v1294, 0.0
    %1310 = vadd.xlane.f32.xlu0 %v1309
    %v1311 = vpop.xlane.xlu0 %1310
    %v1312 = vsel %vm542, %v1296, 0.0
    %1313 = vadd.xlane.f32.xlu0 %v1312
    %v1314 = vpop.xlane.xlu0 %1313
    %v1315 = vsel %vm542, %v1298, 0.0
    %1316 = vadd.xlane.f32.xlu0 %v1315
    %v1317 = vpop.xlane.xlu0 %1316
    %v1318 = vsel %vm542, %v1300, 0.0
    %1319 = vadd.xlane.f32.xlu0 %v1318
    %v1320 = vpop.xlane.xlu0 %1319
    %v1321 = vsel %vm542, %v1302, 0.0
    %1322 = vadd.xlane.f32.xlu0 %v1321
    %v1323 = vpop.xlane.xlu0 %1322
    %v1324 = vsel %vm542, %v1304, 0.0
    %1325 = vadd.xlane.f32.xlu0 %v1324
    %v1326 = vpop.xlane.xlu0 %1325
    %v1327 = vsel %vm542, %v1306, 0.0
    %1328 = vadd.xlane.f32.xlu0 %v1327
    %v1329 = vpop.xlane.xlu0 %1328
    %v1330 = vsel %vm542, %v1308, 0.0
    %1331 = vadd.xlane.f32.xlu0 %v1330
    %v1332 = vpop.xlane.xlu0 %1331
    %v1333 = vrcp.pop %v1311
    %v1334 = vrcp.pop %v1314
    %v1335 = vrcp.pop %v1317
    %v1336 = vrcp.pop %v1320
    %v1337 = vrcp.pop %v1323
    %v1338 = vrcp.pop %v1326
    %v1339 = vrcp.pop %v1329
    %v1340 = vrcp.pop %v1332
    %v1341 = vmul.f32 %v1294, %v1333
    %v1342 = vmul.f32 %v1296, %v1334
    %v1343 = vmul.f32 %v1298, %v1335
    %v1344 = vmul.f32 %v1300, %v1336
    %v1345 = vmul.f32 %v1302, %v1337
    %v1346 = vmul.f32 %v1304, %v1338
    %v1347 = vmul.f32 %v1306, %v1339
    %v1348 = vmul.f32 %v1308, %v1340
    %v1349 = vpack.c.bf16 %v1341, %v1341
    %v1350 = vpack.c.bf16 %v1342, %v1342
    %v1351 = vpack.c.bf16 %v1343, %v1343
    %v1352 = vpack.c.bf16 %v1344, %v1344
    %v1353 = vpack.c.bf16 %v1345, %v1345
    %v1354 = vpack.c.bf16 %v1346, %v1346
    %v1355 = vpack.c.bf16 %v1347, %v1347
    %v1356 = vpack.c.bf16 %v1348, %v1348
    %v1359 = vunpack.c.l.b16 %v1349
    %v1360 = vunpack.c.l.b16 %v1350
    %v1361 = vpack.c.b16 %v1360, %v1359
    %1362 = vrot.lane.b32.xlu0 %v648, 64
    %v1363 = vpop.permute.xlu0 %1362
    %v1366 = vsel %vm542, %v1361, 0
    %1368 = vmatpush.bf16.msra.mxu0 0
    %1369 = vmatpush.bf16.msra.mxu0 0
    %1370 = vmatpush.bf16.msra.mxu0 0
    %1371 = vmatpush.bf16.msra.mxu0 0
    %1372 = vmatpush.bf16.msra.mxu0 0
    %1373 = vmatpush.bf16.msra.mxu0 0
    %1374 = vmatpush.bf16.msra.mxu0 0
    %1375 = vmatpush.bf16.msra.mxu0 %v1363
    %1376 = vmatmul.bf16.gmra.mxu0 %v1366
    %v1377 = vpop.f32.mrf.mxu0
    %v1378 = vadd.f32 0.0, %v1377
    %v1379 = vpop.f32.mrf.mxu0
    %v1380 = vadd.f32 0.0, %v1379
    %1381 = vdwg.mxu0
    %v1384 = vunpack.c.l.b16 %v1351
    %v1385 = vunpack.c.l.b16 %v1352
    %v1386 = vpack.c.b16 %v1385, %v1384
    %1387 = vrot.lane.b32.xlu0 %v676, 64
    %v1388 = vpop.permute.xlu0 %1387
    %v1391 = vsel %vm542, %v1386, 0
    %1393 = vmatpush.bf16.msra.mxu0 0
    %1394 = vmatpush.bf16.msra.mxu0 0
    %1395 = vmatpush.bf16.msra.mxu0 0
    %1396 = vmatpush.bf16.msra.mxu0 0
    %1397 = vmatpush.bf16.msra.mxu0 0
    %1398 = vmatpush.bf16.msra.mxu0 0
    %1399 = vmatpush.bf16.msra.mxu0 0
    %1400 = vmatpush.bf16.msra.mxu0 %v1388
    %1401 = vmatmul.bf16.gmra.mxu0 %v1391
    %v1402 = vpop.f32.mrf.mxu0
    %v1403 = vadd.f32 0.0, %v1402
    %v1404 = vpop.f32.mrf.mxu0
    %v1405 = vadd.f32 0.0, %v1404
    %1406 = vdwg.mxu0
    %v1409 = vunpack.c.l.b16 %v1353
    %v1410 = vunpack.c.l.b16 %v1354
    %v1411 = vpack.c.b16 %v1410, %v1409
    %1412 = vrot.lane.b32.xlu0 %v704, 64
    %v1413 = vpop.permute.xlu0 %1412
    %v1416 = vsel %vm542, %v1411, 0
    %1418 = vmatpush.bf16.msra.mxu0 0
    %1419 = vmatpush.bf16.msra.mxu0 0
    %1420 = vmatpush.bf16.msra.mxu0 0
    %1421 = vmatpush.bf16.msra.mxu0 0
    %1422 = vmatpush.bf16.msra.mxu0 0
    %1423 = vmatpush.bf16.msra.mxu0 0
    %1424 = vmatpush.bf16.msra.mxu0 0
    %1425 = vmatpush.bf16.msra.mxu0 %v1413
    %1426 = vmatmul.bf16.gmra.mxu0 %v1416
    %v1427 = vpop.f32.mrf.mxu0
    %v1428 = vadd.f32 0.0, %v1427
    %v1429 = vpop.f32.mrf.mxu0
    %v1430 = vadd.f32 0.0, %v1429
    %1431 = vdwg.mxu0
    %v1434 = vunpack.c.l.b16 %v1355
    %v1435 = vunpack.c.l.b16 %v1356
    %v1436 = vpack.c.b16 %v1435, %v1434
    %1437 = vrot.lane.b32.xlu0 %v732, 64
    %v1438 = vpop.permute.xlu0 %1437
    %v1441 = vsel %vm542, %v1436, 0
    %1443 = vmatpush.bf16.msra.mxu0 0
    %1444 = vmatpush.bf16.msra.mxu0 0
    %1445 = vmatpush.bf16.msra.mxu0 0
    %1446 = vmatpush.bf16.msra.mxu0 0
    %1447 = vmatpush.bf16.msra.mxu0 0
    %1448 = vmatpush.bf16.msra.mxu0 0
    %1449 = vmatpush.bf16.msra.mxu0 0
    %1450 = vmatpush.bf16.msra.mxu0 %v1438
    %1451 = vmatmul.bf16.gmra.mxu0 %v1441
    %v1452 = vpop.f32.mrf.mxu0
    %v1453 = vadd.f32 0.0, %v1452
    %v1454 = vpop.f32.mrf.mxu0
    %v1455 = vadd.f32 0.0, %v1454
    %1456 = vdwg.mxu0
    %v1457 = vpack.c.bf16 %v1378, %v1378
    %v1458 = vpack.c.bf16 %v1380, %v1380
    %v1459 = vpack.c.bf16 %v1403, %v1403
    %v1460 = vpack.c.bf16 %v1405, %v1405
    %v1461 = vpack.c.bf16 %v1428, %v1428
    %v1462 = vpack.c.bf16 %v1430, %v1430
    %v1463 = vpack.c.bf16 %v1453, %v1453
    %v1464 = vpack.c.bf16 %v1455, %v1455
    %1473 = vrot.lane.b32.xlu0 %v1457, 64
    %v1474 = vpop.permute.xlu0 %1473
    %1475 = vrot.lane.b32.xlu0 %v1458, 64
    %v1476 = vpop.permute.xlu0 %1475
    %1477 = vrot.lane.b32.xlu0 %v1459, 64
    %v1478 = vpop.permute.xlu0 %1477
    %1479 = vrot.lane.b32.xlu0 %v1460, 64
    %v1480 = vpop.permute.xlu0 %1479
    %1481 = vrot.lane.b32.xlu0 %v1461, 64
    %v1482 = vpop.permute.xlu0 %1481
    %1483 = vrot.lane.b32.xlu0 %v1462, 64
    %v1484 = vpop.permute.xlu0 %1483
    %1485 = vrot.lane.b32.xlu0 %v1463, 64
    %v1486 = vpop.permute.xlu0 %1485
    %1487 = vrot.lane.b32.xlu0 %v1464, 64
    %v1488 = vpop.permute.xlu0 %1487
    %vm1497 = vcmask 781824
    %1498 = vst.msk [vmem:[#allocation2] sm:$0xf] %vm1497, %v1474
    %1499 = vst.msk [vmem:[#allocation2 + $0x4] sm:$0xf] %vm1497, %v1476
    %1500 = vst.msk [vmem:[#allocation2 + $0x8] sm:$0xf] %vm1497, %v1478
    %1501 = vst.msk [vmem:[#allocation2 + $0xc] sm:$0xf] %vm1497, %v1480
    %1502 = vst.msk [vmem:[#allocation2 + $0x10] sm:$0xf] %vm1497, %v1482
    %1503 = vst.msk [vmem:[#allocation2 + $0x14] sm:$0xf] %vm1497, %v1484
    %1504 = vst.msk [vmem:[#allocation2 + $0x18] sm:$0xf] %vm1497, %v1486
    %1505 = vst.msk [vmem:[#allocation2 + $0x1c] sm:$0xf] %vm1497, %v1488
    %1506 = vrot.lane.b32.xlu0 %v405, 32
    %v1507 = vpop.permute.xlu0 %1506
    %1508 = vrot.lane.b32.xlu0 %v407, 32
    %v1509 = vpop.permute.xlu0 %1508
    %1510 = vrot.lane.b32.xlu0 %v409, 32
    %v1511 = vpop.permute.xlu0 %1510
    %1512 = vrot.lane.b32.xlu0 %v411, 32
    %v1513 = vpop.permute.xlu0 %1512
    %1514 = vrot.lane.b32.xlu0 %v413, 32
    %v1515 = vpop.permute.xlu0 %1514
    %1516 = vrot.lane.b32.xlu0 %v415, 32
    %v1517 = vpop.permute.xlu0 %1516
    %1518 = vrot.lane.b32.xlu0 %v417, 32
    %v1519 = vpop.permute.xlu0 %1518
    %1520 = vrot.lane.b32.xlu0 %v419, 32
    %v1521 = vpop.permute.xlu0 %1520
    %v1522 = vrot.slane %v1507, 4
    %v1523 = vrot.slane %v1509, 4
    %v1524 = vrot.slane %v1511, 4
    %v1525 = vrot.slane %v1513, 4
    %v1526 = vrot.slane %v1515, 4
    %v1527 = vrot.slane %v1517, 4
    %v1528 = vrot.slane %v1519, 4
    %v1529 = vrot.slane %v1521, 4
    %1530 = vrot.lane.b32.xlu0 %v439, 32
    %v1531 = vpop.permute.xlu0 %1530
    %v1532 = vunpack.c.l.b16 %v1522
    %v1533 = vunpack.c.l.b16 %v1523
    %v1534 = vpack.c.b16 %v1533, %v1532
    %v1536 = vsel %vm443, %v1531, 0
    %v1539 = vsel %vm443, %v1534, 0
    %1541 = vmatpush.bf16.xpose.msra.mxu0 0
    %1542 = vmatpush.bf16.xpose.msra.mxu0 0
    %1543 = vmatpush.bf16.xpose.msra.mxu0 0
    %1544 = vmatpush.bf16.xpose.msra.mxu0 0
    %1545 = vmatpush.bf16.xpose.msra.mxu0 0
    %1546 = vmatpush.bf16.xpose.msra.mxu0 0
    %1547 = vmatpush.bf16.xpose.msra.mxu0 0
    %1548 = vmatpush.bf16.xpose.msra.mxu0 %v1539
    %1549 = vmatmul.bf16.gmra.mxu0 %v1536
    %v1550 = vpop.f32.mrf.mxu0
    %v1551 = vadd.f32 0.0, %v1550
    %v1552 = vpop.f32.mrf.mxu0
    %v1553 = vadd.f32 0.0, %v1552
    %1554 = vdwg.mxu0
    %1555 = vrot.lane.b32.xlu0 %v466, 32
    %v1556 = vpop.permute.xlu0 %1555
    %v1557 = vunpack.c.l.b16 %v1524
    %v1558 = vunpack.c.l.b16 %v1525
    %v1559 = vpack.c.b16 %v1558, %v1557
    %v1561 = vsel %vm443, %v1556, 0
    %v1564 = vsel %vm443, %v1559, 0
    %1566 = vmatpush.bf16.xpose.msra.mxu0 0
    %1567 = vmatpush.bf16.xpose.msra.mxu0 0
    %1568 = vmatpush.bf16.xpose.msra.mxu0 0
    %1569 = vmatpush.bf16.xpose.msra.mxu0 0
    %1570 = vmatpush.bf16.xpose.msra.mxu0 0
    %1571 = vmatpush.bf16.xpose.msra.mxu0 0
    %1572 = vmatpush.bf16.xpose.msra.mxu0 0
    %1573 = vmatpush.bf16.xpose.msra.mxu0 %v1564
    %1574 = vmatmul.bf16.gmra.mxu0 %v1561
    %v1575 = vpop.f32.mrf.mxu0
    %v1576 = vadd.f32 0.0, %v1575
    %v1577 = vpop.f32.mrf.mxu0
    %v1578 = vadd.f32 0.0, %v1577
    %1579 = vdwg.mxu0
    %1580 = vrot.lane.b32.xlu0 %v492, 32
    %v1581 = vpop.permute.xlu0 %1580
    %v1582 = vunpack.c.l.b16 %v1526
    %v1583 = vunpack.c.l.b16 %v1527
    %v1584 = vpack.c.b16 %v1583, %v1582
    %v1586 = vsel %vm443, %v1581, 0
    %v1589 = vsel %vm443, %v1584, 0
    %1591 = vmatpush.bf16.xpose.msra.mxu0 0
    %1592 = vmatpush.bf16.xpose.msra.mxu0 0
    %1593 = vmatpush.bf16.xpose.msra.mxu0 0
    %1594 = vmatpush.bf16.xpose.msra.mxu0 0
    %1595 = vmatpush.bf16.xpose.msra.mxu0 0
    %1596 = vmatpush.bf16.xpose.msra.mxu0 0
    %1597 = vmatpush.bf16.xpose.msra.mxu0 0
    %1598 = vmatpush.bf16.xpose.msra.mxu0 %v1589
    %1599 = vmatmul.bf16.gmra.mxu0 %v1586
    %v1600 = vpop.f32.mrf.mxu0
    %v1601 = vadd.f32 0.0, %v1600
    %v1602 = vpop.f32.mrf.mxu0
    %v1603 = vadd.f32 0.0, %v1602
    %1604 = vdwg.mxu0
    %1605 = vrot.lane.b32.xlu0 %v518, 32
    %v1606 = vpop.permute.xlu0 %1605
    %v1607 = vunpack.c.l.b16 %v1528
    %v1608 = vunpack.c.l.b16 %v1529
    %v1609 = vpack.c.b16 %v1608, %v1607
    %v1611 = vsel %vm443, %v1606, 0
    %v1614 = vsel %vm443, %v1609, 0
    %1616 = vmatpush.bf16.xpose.msra.mxu0 0
    %1617 = vmatpush.bf16.xpose.msra.mxu0 0
    %1618 = vmatpush.bf16.xpose.msra.mxu0 0
    %1619 = vmatpush.bf16.xpose.msra.mxu0 0
    %1620 = vmatpush.bf16.xpose.msra.mxu0 0
    %1621 = vmatpush.bf16.xpose.msra.mxu0 0
    %1622 = vmatpush.bf16.xpose.msra.mxu0 0
    %1623 = vmatpush.bf16.xpose.msra.mxu0 %v1614
    %1624 = vmatmul.bf16.gmra.mxu0 %v1611
    %v1625 = vpop.f32.mrf.mxu0
    %v1626 = vadd.f32 0.0, %v1625
    %v1627 = vpop.f32.mrf.mxu0
    %v1628 = vadd.f32 0.0, %v1627
    %1629 = vdwg.mxu0
    %v1630 = vsel %vm542, %v1551, -inf
    %1631 = vmax.xlane.f32.xlu0 %v1630
    %v1632 = vpop.xlane.xlu0 %1631
    %v1633 = vsel %vm542, %v1553, -inf
    %1634 = vmax.xlane.f32.xlu0 %v1633
    %v1635 = vpop.xlane.xlu0 %1634
    %v1636 = vsel %vm542, %v1576, -inf
    %1637 = vmax.xlane.f32.xlu0 %v1636
    %v1638 = vpop.xlane.xlu0 %1637
    %v1639 = vsel %vm542, %v1578, -inf
    %1640 = vmax.xlane.f32.xlu0 %v1639
    %v1641 = vpop.xlane.xlu0 %1640
    %v1642 = vsel %vm542, %v1601, -inf
    %1643 = vmax.xlane.f32.xlu0 %v1642
    %v1644 = vpop.xlane.xlu0 %1643
    %v1645 = vsel %vm542, %v1603, -inf
    %1646 = vmax.xlane.f32.xlu0 %v1645
    %v1647 = vpop.xlane.xlu0 %1646
    %v1648 = vsel %vm542, %v1626, -inf
    %1649 = vmax.xlane.f32.xlu0 %v1648
    %v1650 = vpop.xlane.xlu0 %1649
    %v1651 = vsel %vm542, %v1628, -inf
    %1652 = vmax.xlane.f32.xlu0 %v1651
    %v1653 = vpop.xlane.xlu0 %1652
    %v1654 = vsub.f32 %v1551, %v1632
    %v1655 = vsub.f32 %v1553, %v1635
    %v1656 = vsub.f32 %v1576, %v1638
    %v1657 = vsub.f32 %v1578, %v1641
    %v1658 = vsub.f32 %v1601, %v1644
    %v1659 = vsub.f32 %v1603, %v1647
    %v1660 = vsub.f32 %v1626, %v1650
    %v1661 = vsub.f32 %v1628, %v1653
    %v1662 = vmul.f32 %v1654, 1.442695
    %v1663 = vpow.pop %v1662
    %v1664 = vmul.f32 %v1655, 1.442695
    %v1665 = vpow.pop %v1664
    %v1666 = vmul.f32 %v1656, 1.442695
    %v1667 = vpow.pop %v1666
    %v1668 = vmul.f32 %v1657, 1.442695
    %v1669 = vpow.pop %v1668
    %v1670 = vmul.f32 %v1658, 1.442695
    %v1671 = vpow.pop %v1670
    %v1672 = vmul.f32 %v1659, 1.442695
    %v1673 = vpow.pop %v1672
    %v1674 = vmul.f32 %v1660, 1.442695
    %v1675 = vpow.pop %v1674
    %v1676 = vmul.f32 %v1661, 1.442695
    %v1677 = vpow.pop %v1676
    %v1678 = vsel %vm542, %v1663, 0.0
    %1679 = vadd.xlane.f32.xlu0 %v1678
    %v1680 = vpop.xlane.xlu0 %1679
    %v1681 = vsel %vm542, %v1665, 0.0
    %1682 = vadd.xlane.f32.xlu0 %v1681
    %v1683 = vpop.xlane.xlu0 %1682
    %v1684 = vsel %vm542, %v1667, 0.0
    %1685 = vadd.xlane.f32.xlu0 %v1684
    %v1686 = vpop.xlane.xlu0 %1685
    %v1687 = vsel %vm542, %v1669, 0.0
    %1688 = vadd.xlane.f32.xlu0 %v1687
    %v1689 = vpop.xlane.xlu0 %1688
    %v1690 = vsel %vm542, %v1671, 0.0
    %1691 = vadd.xlane.f32.xlu0 %v1690
    %v1692 = vpop.xlane.xlu0 %1691
    %v1693 = vsel %vm542, %v1673, 0.0
    %1694 = vadd.xlane.f32.xlu0 %v1693
    %v1695 = vpop.xlane.xlu0 %1694
    %v1696 = vsel %vm542, %v1675, 0.0
    %1697 = vadd.xlane.f32.xlu0 %v1696
    %v1698 = vpop.xlane.xlu0 %1697
    %v1699 = vsel %vm542, %v1677, 0.0
    %1700 = vadd.xlane.f32.xlu0 %v1699
    %v1701 = vpop.xlane.xlu0 %1700
    %v1702 = vrcp.pop %v1680
    %v1703 = vrcp.pop %v1683
    %v1704 = vrcp.pop %v1686
    %v1705 = vrcp.pop %v1689
    %v1706 = vrcp.pop %v1692
    %v1707 = vrcp.pop %v1695
    %v1708 = vrcp.pop %v1698
    %v1709 = vrcp.pop %v1701
    %v1710 = vmul.f32 %v1663, %v1702
    %v1711 = vmul.f32 %v1665, %v1703
    %v1712 = vmul.f32 %v1667, %v1704
    %v1713 = vmul.f32 %v1669, %v1705
    %v1714 = vmul.f32 %v1671, %v1706
    %v1715 = vmul.f32 %v1673, %v1707
    %v1716 = vmul.f32 %v1675, %v1708
    %v1717 = vmul.f32 %v1677, %v1709
    %v1718 = vpack.c.bf16 %v1710, %v1710
    %v1719 = vpack.c.bf16 %v1711, %v1711
    %v1720 = vpack.c.bf16 %v1712, %v1712
    %v1721 = vpack.c.bf16 %v1713, %v1713
    %v1722 = vpack.c.bf16 %v1714, %v1714
    %v1723 = vpack.c.bf16 %v1715, %v1715
    %v1724 = vpack.c.bf16 %v1716, %v1716
    %v1725 = vpack.c.bf16 %v1717, %v1717
    %v1728 = vunpack.c.l.b16 %v1718
    %v1729 = vunpack.c.l.b16 %v1719
    %v1730 = vpack.c.b16 %v1729, %v1728
    %1731 = vrot.lane.b32.xlu0 %v648, 32
    %v1732 = vpop.permute.xlu0 %1731
    %v1735 = vsel %vm542, %v1730, 0
    %1737 = vmatpush.bf16.msra.mxu0 0
    %1738 = vmatpush.bf16.msra.mxu0 0
    %1739 = vmatpush.bf16.msra.mxu0 0
    %1740 = vmatpush.bf16.msra.mxu0 0
    %1741 = vmatpush.bf16.msra.mxu0 0
    %1742 = vmatpush.bf16.msra.mxu0 0
    %1743 = vmatpush.bf16.msra.mxu0 0
    %1744 = vmatpush.bf16.msra.mxu0 %v1732
    %1745 = vmatmul.bf16.gmra.mxu0 %v1735
    %v1746 = vpop.f32.mrf.mxu0
    %v1747 = vadd.f32 0.0, %v1746
    %v1748 = vpop.f32.mrf.mxu0
    %v1749 = vadd.f32 0.0, %v1748
    %1750 = vdwg.mxu0
    %v1753 = vunpack.c.l.b16 %v1720
    %v1754 = vunpack.c.l.b16 %v1721
    %v1755 = vpack.c.b16 %v1754, %v1753
    %1756 = vrot.lane.b32.xlu0 %v676, 32
    %v1757 = vpop.permute.xlu0 %1756
    %v1760 = vsel %vm542, %v1755, 0
    %1762 = vmatpush.bf16.msra.mxu0 0
    %1763 = vmatpush.bf16.msra.mxu0 0
    %1764 = vmatpush.bf16.msra.mxu0 0
    %1765 = vmatpush.bf16.msra.mxu0 0
    %1766 = vmatpush.bf16.msra.mxu0 0
    %1767 = vmatpush.bf16.msra.mxu0 0
    %1768 = vmatpush.bf16.msra.mxu0 0
    %1769 = vmatpush.bf16.msra.mxu0 %v1757
    %1770 = vmatmul.bf16.gmra.mxu0 %v1760
    %v1771 = vpop.f32.mrf.mxu0
    %v1772 = vadd.f32 0.0, %v1771
    %v1773 = vpop.f32.mrf.mxu0
    %v1774 = vadd.f32 0.0, %v1773
    %1775 = vdwg.mxu0
    %v1778 = vunpack.c.l.b16 %v1722
    %v1779 = vunpack.c.l.b16 %v1723
    %v1780 = vpack.c.b16 %v1779, %v1778
    %1781 = vrot.lane.b32.xlu0 %v704, 32
    %v1782 = vpop.permute.xlu0 %1781
    %v1785 = vsel %vm542, %v1780, 0
    %1787 = vmatpush.bf16.msra.mxu0 0
    %1788 = vmatpush.bf16.msra.mxu0 0
    %1789 = vmatpush.bf16.msra.mxu0 0
    %1790 = vmatpush.bf16.msra.mxu0 0
    %1791 = vmatpush.bf16.msra.mxu0 0
    %1792 = vmatpush.bf16.msra.mxu0 0
    %1793 = vmatpush.bf16.msra.mxu0 0
    %1794 = vmatpush.bf16.msra.mxu0 %v1782
    %1795 = vmatmul.bf16.gmra.mxu0 %v1785
    %v1796 = vpop.f32.mrf.mxu0
    %v1797 = vadd.f32 0.0, %v1796
    %v1798 = vpop.f32.mrf.mxu0
    %v1799 = vadd.f32 0.0, %v1798
    %1800 = vdwg.mxu0
    %v1803 = vunpack.c.l.b16 %v1724
    %v1804 = vunpack.c.l.b16 %v1725
    %v1805 = vpack.c.b16 %v1804, %v1803
    %1806 = vrot.lane.b32.xlu0 %v732, 32
    %v1807 = vpop.permute.xlu0 %1806
    %v1810 = vsel %vm542, %v1805, 0
    %1812 = vmatpush.bf16.msra.mxu0 0
    %1813 = vmatpush.bf16.msra.mxu0 0
    %1814 = vmatpush.bf16.msra.mxu0 0
    %1815 = vmatpush.bf16.msra.mxu0 0
    %1816 = vmatpush.bf16.msra.mxu0 0
    %1817 = vmatpush.bf16.msra.mxu0 0
    %1818 = vmatpush.bf16.msra.mxu0 0
    %1819 = vmatpush.bf16.msra.mxu0 %v1807
    %1820 = vmatmul.bf16.gmra.mxu0 %v1810
    %v1821 = vpop.f32.mrf.mxu0
    %v1822 = vadd.f32 0.0, %v1821
    %v1823 = vpop.f32.mrf.mxu0
    %v1824 = vadd.f32 0.0, %v1823
    %1825 = vdwg.mxu0
    %v1826 = vpack.c.bf16 %v1747, %v1747
    %v1827 = vpack.c.bf16 %v1749, %v1749
    %v1828 = vpack.c.bf16 %v1772, %v1772
    %v1829 = vpack.c.bf16 %v1774, %v1774
    %v1830 = vpack.c.bf16 %v1797, %v1797
    %v1831 = vpack.c.bf16 %v1799, %v1799
    %v1832 = vpack.c.bf16 %v1822, %v1822
    %v1833 = vpack.c.bf16 %v1824, %v1824
    %1842 = vrot.lane.b32.xlu0 %v1826, 96
    %v1843 = vpop.permute.xlu0 %1842
    %1844 = vrot.lane.b32.xlu0 %v1827, 96
    %v1845 = vpop.permute.xlu0 %1844
    %1846 = vrot.lane.b32.xlu0 %v1828, 96
    %v1847 = vpop.permute.xlu0 %1846
    %1848 = vrot.lane.b32.xlu0 %v1829, 96
    %v1849 = vpop.permute.xlu0 %1848
    %1850 = vrot.lane.b32.xlu0 %v1830, 96
    %v1851 = vpop.permute.xlu0 %1850
    %1852 = vrot.lane.b32.xlu0 %v1831, 96
    %v1853 = vpop.permute.xlu0 %1852
    %1854 = vrot.lane.b32.xlu0 %v1832, 96
    %v1855 = vpop.permute.xlu0 %1854
    %1856 = vrot.lane.b32.xlu0 %v1833, 96
    %v1857 = vpop.permute.xlu0 %1856
    %vm1866 = vcmask 1044224
    %1867 = vst.msk [vmem:[#allocation2] sm:$0xf] %vm1866, %v1843
    %1868 = vst.msk [vmem:[#allocation2 + $0x4] sm:$0xf] %vm1866, %v1845
    %1869 = vst.msk [vmem:[#allocation2 + $0x8] sm:$0xf] %vm1866, %v1847
    %1870 = vst.msk [vmem:[#allocation2 + $0xc] sm:$0xf] %vm1866, %v1849
    %1871 = vst.msk [vmem:[#allocation2 + $0x10] sm:$0xf] %vm1866, %v1851
    %1872 = vst.msk [vmem:[#allocation2 + $0x14] sm:$0xf] %vm1866, %v1853
    %1873 = vst.msk [vmem:[#allocation2 + $0x18] sm:$0xf] %vm1866, %v1855
    %1874 = vst.msk [vmem:[#allocation2 + $0x1c] sm:$0xf] %vm1866, %v1857
    %v1875 = vld [vmem:[#allocation2] sm:$0xf]
    %v1876 = vld [vmem:[#allocation2 + $0x4] sm:$0xf]
    %v1877 = vld [vmem:[#allocation2 + $0x8] sm:$0xf]
    %v1878 = vld [vmem:[#allocation2 + $0xc] sm:$0xf]
    %v1879 = vld [vmem:[#allocation2 + $0x10] sm:$0xf]
    %v1880 = vld [vmem:[#allocation2 + $0x14] sm:$0xf]
    %v1881 = vld [vmem:[#allocation2 + $0x18] sm:$0xf]
    %v1882 = vld [vmem:[#allocation2 + $0x1c] sm:$0xf]
    %v1883 = vld [vmem:[#allocation9] sm:$0xf]
    %v1884 = vld [vmem:[#allocation9 + $0x4] sm:$0xf]
    %v1885 = vld [vmem:[#allocation9 + $0x8] sm:$0xf]
    %v1886 = vld [vmem:[#allocation9 + $0xc] sm:$0xf]
    %v1887 = vld [vmem:[#allocation9 + $0x10] sm:$0xf]
    %v1888 = vld [vmem:[#allocation9 + $0x14] sm:$0xf]
    %v1889 = vld [vmem:[#allocation9 + $0x18] sm:$0xf]
    %v1890 = vld [vmem:[#allocation9 + $0x1c] sm:$0xf]
    %v1891 = vld [vmem:[#allocation9 + $0x20] sm:$0xf]
    %v1892 = vld [vmem:[#allocation9 + $0x24] sm:$0xf]
    %v1893 = vld [vmem:[#allocation9 + $0x28] sm:$0xf]
    %v1894 = vld [vmem:[#allocation9 + $0x2c] sm:$0xf]
    %v1895 = vld [vmem:[#allocation9 + $0x30] sm:$0xf]
    %v1896 = vld [vmem:[#allocation9 + $0x34] sm:$0xf]
    %v1897 = vld [vmem:[#allocation9 + $0x38] sm:$0xf]
    %v1898 = vld [vmem:[#allocation9 + $0x3c] sm:$0xf]
    %v1899 = vld [vmem:[%s4] sm:$0x1]
    %v1901 = vperm.slane %v1899, 0
    %v1911 = vunpack.c.l.b16 %v1875
    %v1912 = vunpack.c.l.b16 %v1876
    %v1913 = vunpack.c.l.b16 %v1877
    %v1914 = vunpack.c.l.b16 %v1878
    %v1915 = vunpack.c.l.b16 %v1879
    %v1916 = vunpack.c.l.b16 %v1880
    %v1917 = vunpack.c.l.b16 %v1881
    %v1918 = vunpack.c.l.b16 %v1882
    %v1919 = vpack.c.b16 %v1912, %v1911
    %v1920 = vpack.c.b16 %v1914, %v1913
    %v1921 = vpack.c.b16 %v1916, %v1915
    %v1922 = vpack.c.b16 %v1918, %v1917
    %v1943 = vunpack.c.l.b16 %v1883
    %v1944 = vunpack.c.l.b16 %v1884
    %v1945 = vunpack.c.l.b16 %v1885
    %v1946 = vunpack.c.l.b16 %v1886
    %v1947 = vunpack.c.l.b16 %v1887
    %v1948 = vunpack.c.l.b16 %v1888
    %v1949 = vunpack.c.l.b16 %v1889
    %v1950 = vunpack.c.l.b16 %v1890
    %v1951 = vunpack.c.l.b16 %v1891
    %v1952 = vunpack.c.l.b16 %v1892
    %v1953 = vunpack.c.l.b16 %v1893
    %v1954 = vunpack.c.l.b16 %v1894
    %v1955 = vunpack.c.l.b16 %v1895
    %v1956 = vunpack.c.l.b16 %v1896
    %v1957 = vunpack.c.l.b16 %v1897
    %v1958 = vunpack.c.l.b16 %v1898
    %v1959 = vpack.c.b16 %v1944, %v1943
    %v1960 = vpack.c.b16 %v1946, %v1945
    %v1961 = vpack.c.b16 %v1948, %v1947
    %v1962 = vpack.c.b16 %v1950, %v1949
    %v1963 = vpack.c.b16 %v1952, %v1951
    %v1964 = vpack.c.b16 %v1954, %v1953
    %v1965 = vpack.c.b16 %v1956, %v1955
    %v1966 = vpack.c.b16 %v1958, %v1957
    %1975 = vmatpush.bf16.msra.mxu0 %v1966
    %1976 = vmatpush.bf16.msra.mxu0 %v1965
    %1977 = vmatpush.bf16.msra.mxu0 %v1964
    %1978 = vmatpush.bf16.msra.mxu0 %v1963
    %1979 = vmatpush.bf16.msra.mxu0 %v1962
    %1980 = vmatpush.bf16.msra.mxu0 %v1961
    %1981 = vmatpush.bf16.msra.mxu0 %v1960
    %1982 = vmatpush.bf16.msra.mxu0 %v1959
    %1983 = vmatmul.bf16.gmra.mxu0 %v1919
    %v1984 = vpop.f32.mrf.mxu0
    %v1985 = vadd.f32 %v1901, %v1984
    %v1986 = vpop.f32.mrf.mxu0
    %v1987 = vadd.f32 %v1901, %v1986
    %1988 = vmatmul.bf16.gmra.mxu0 %v1920
    %v1989 = vpop.f32.mrf.mxu0
    %v1990 = vadd.f32 %v1901, %v1989
    %v1991 = vpop.f32.mrf.mxu0
    %v1992 = vadd.f32 %v1901, %v1991
    %1993 = vmatmul.bf16.gmra.mxu0 %v1921
    %v1994 = vpop.f32.mrf.mxu0
    %v1995 = vadd.f32 %v1901, %v1994
    %v1996 = vpop.f32.mrf.mxu0
    %v1997 = vadd.f32 %v1901, %v1996
    %1998 = vmatmul.bf16.gmra.mxu0 %v1922
    %v1999 = vpop.f32.mrf.mxu0
    %v2000 = vadd.f32 %v1901, %v1999
    %v2001 = vpop.f32.mrf.mxu0
    %v2002 = vadd.f32 %v1901, %v2001
    %2003 = vdwg.mxu0
    %v2004 = vadd.f32 %v138, %v1985
    %v2005 = vadd.f32 %v139, %v1987
    %v2006 = vadd.f32 %v140, %v1990
    %v2007 = vadd.f32 %v141, %v1992
    %v2008 = vadd.f32 %v142, %v1995
    %v2009 = vadd.f32 %v143, %v1997
    %v2010 = vadd.f32 %v144, %v2000
    %v2011 = vadd.f32 %v145, %v2002
    %v2012 = vld [vmem:[%s5] sm:$0x1]
    %v2013 = vld [vmem:[%s6] sm:$0x1]
    %2014 = vadd.xlane.f32.xlu0 %v2004
    %v2015 = vpop.xlane.xlu0 %2014
    %2016 = vadd.xlane.f32.xlu0 %v2005
    %v2017 = vpop.xlane.xlu0 %2016
    %2018 = vadd.xlane.f32.xlu0 %v2006
    %v2019 = vpop.xlane.xlu0 %2018
    %2020 = vadd.xlane.f32.xlu0 %v2007
    %v2021 = vpop.xlane.xlu0 %2020
    %2022 = vadd.xlane.f32.xlu0 %v2008
    %v2023 = vpop.xlane.xlu0 %2022
    %2024 = vadd.xlane.f32.xlu0 %v2009
    %v2025 = vpop.xlane.xlu0 %2024
    %2026 = vadd.xlane.f32.xlu0 %v2010
    %v2027 = vpop.xlane.xlu0 %2026
    %2028 = vadd.xlane.f32.xlu0 %v2011
    %v2029 = vpop.xlane.xlu0 %2028
    %v2030 = vrcp.pop 128.0
    %v2031 = vmul.f32 128.0, %v2030
    %v2032 = vsub.f32 1.0, %v2031
    %v2033 = vmul.f32 %v2030, %v2032
    %v2034 = vadd.f32 %v2030, %v2033
    %vm2035 = vweird.f32 %v2030
    %v2036 = vsel %vm2035, %v2030, %v2034
    %v2037 = vmul.f32 %v2015, %v2036
    %v2038 = vmul.f32 %v2017, %v2036
    %v2039 = vmul.f32 %v2019, %v2036
    %v2040 = vmul.f32 %v2021, %v2036
    %v2041 = vmul.f32 %v2023, %v2036
    %v2042 = vmul.f32 %v2025, %v2036
    %v2043 = vmul.f32 %v2027, %v2036
    %v2044 = vmul.f32 %v2029, %v2036
    %v2045 = vmul.f32 %v2004, %v2004
    %v2046 = vmul.f32 %v2005, %v2005
    %v2047 = vmul.f32 %v2006, %v2006
    %v2048 = vmul.f32 %v2007, %v2007
    %v2049 = vmul.f32 %v2008, %v2008
    %v2050 = vmul.f32 %v2009, %v2009
    %v2051 = vmul.f32 %v2010, %v2010
    %v2052 = vmul.f32 %v2011, %v2011
    %2053 = vadd.xlane.f32.xlu0 %v2045
    %v2054 = vpop.xlane.xlu0 %2053
    %2055 = vadd.xlane.f32.xlu0 %v2046
    %v2056 = vpop.xlane.xlu0 %2055
    %2057 = vadd.xlane.f32.xlu0 %v2047
    %v2058 = vpop.xlane.xlu0 %2057
    %2059 = vadd.xlane.f32.xlu0 %v2048
    %v2060 = vpop.xlane.xlu0 %2059
    %2061 = vadd.xlane.f32.xlu0 %v2049
    %v2062 = vpop.xlane.xlu0 %2061
    %2063 = vadd.xlane.f32.xlu0 %v2050
    %v2064 = vpop.xlane.xlu0 %2063
    %2065 = vadd.xlane.f32.xlu0 %v2051
    %v2066 = vpop.xlane.xlu0 %2065
    %2067 = vadd.xlane.f32.xlu0 %v2052
    %v2068 = vpop.xlane.xlu0 %2067
    %v2069 = vmul.f32 %v2054, %v2036
    %v2070 = vmul.f32 %v2056, %v2036
    %v2071 = vmul.f32 %v2058, %v2036
    %v2072 = vmul.f32 %v2060, %v2036
    %v2073 = vmul.f32 %v2062, %v2036
    %v2074 = vmul.f32 %v2064, %v2036
    %v2075 = vmul.f32 %v2066, %v2036
    %v2076 = vmul.f32 %v2068, %v2036
    %v2077 = vmul.f32 %v2037, %v2037
    %v2078 = vmul.f32 %v2038, %v2038
    %v2079 = vmul.f32 %v2039, %v2039
    %v2080 = vmul.f32 %v2040, %v2040
    %v2081 = vmul.f32 %v2041, %v2041
    %v2082 = vmul.f32 %v2042, %v2042
    %v2083 = vmul.f32 %v2043, %v2043
    %v2084 = vmul.f32 %v2044, %v2044
    %v2085 = vsub.f32 %v2069, %v2077
    %v2086 = vsub.f32 %v2070, %v2078
    %v2087 = vsub.f32 %v2071, %v2079
    %v2088 = vsub.f32 %v2072, %v2080
    %v2089 = vsub.f32 %v2073, %v2081
    %v2090 = vsub.f32 %v2074, %v2082
    %v2091 = vsub.f32 %v2075, %v2083
    %v2092 = vsub.f32 %v2076, %v2084
    %v2093 = vsub.f32 %v2004, %v2037
    %v2094 = vsub.f32 %v2005, %v2038
    %v2095 = vsub.f32 %v2006, %v2039
    %v2096 = vsub.f32 %v2007, %v2040
    %v2097 = vsub.f32 %v2008, %v2041
    %v2098 = vsub.f32 %v2009, %v2042
    %v2099 = vsub.f32 %v2010, %v2043
    %v2100 = vsub.f32 %v2011, %v2044
    %v2101 = vadd.f32 %v2085, 1e-05
    %v2102 = vadd.f32 %v2086, 1e-05
    %v2103 = vadd.f32 %v2087, 1e-05
    %v2104 = vadd.f32 %v2088, 1e-05
    %v2105 = vadd.f32 %v2089, 1e-05
    %v2106 = vadd.f32 %v2090, 1e-05
    %v2107 = vadd.f32 %v2091, 1e-05
    %v2108 = vadd.f32 %v2092, 1e-05
    %v2109 = vrsqrt.pop %v2101
    %v2110 = vmul.f32 %v2109, %v2101
    %v2111 = vmul.f32 %v2110, %v2109
    %v2112 = vmul.f32 0.5, %v2111
    %v2113 = vsub.f32 1.5, %v2112
    %v2114 = vmul.f32 %v2109, %v2113
    %vm2115 = vweird.f32 %v2101
    %vm2116 = vweird.f32 %v2109
    %vm2117 = vmor %vm2115, %vm2116
    %v2118 = vsel %vm2117, %v2109, %v2114
    %v2119 = vrsqrt.pop %v2102
    %v2120 = vmul.f32 %v2119, %v2102
    %v2121 = vmul.f32 %v2120, %v2119
    %v2122 = vmul.f32 0.5, %v2121
    %v2123 = vsub.f32 1.5, %v2122
    %v2124 = vmul.f32 %v2119, %v2123
    %vm2125 = vweird.f32 %v2102
    %vm2126 = vweird.f32 %v2119
    %vm2127 = vmor %vm2125, %vm2126
    %v2128 = vsel %vm2127, %v2119, %v2124
    %v2129 = vrsqrt.pop %v2103
    %v2130 = vmul.f32 %v2129, %v2103
    %v2131 = vmul.f32 %v2130, %v2129
    %v2132 = vmul.f32 0.5, %v2131
    %v2133 = vsub.f32 1.5, %v2132
    %v2134 = vmul.f32 %v2129, %v2133
    %vm2135 = vweird.f32 %v2103
    %vm2136 = vweird.f32 %v2129
    %vm2137 = vmor %vm2135, %vm2136
    %v2138 = vsel %vm2137, %v2129, %v2134
    %v2139 = vrsqrt.pop %v2104
    %v2140 = vmul.f32 %v2139, %v2104
    %v2141 = vmul.f32 %v2140, %v2139
    %v2142 = vmul.f32 0.5, %v2141
    %v2143 = vsub.f32 1.5, %v2142
    %v2144 = vmul.f32 %v2139, %v2143
    %vm2145 = vweird.f32 %v2104
    %vm2146 = vweird.f32 %v2139
    %vm2147 = vmor %vm2145, %vm2146
    %v2148 = vsel %vm2147, %v2139, %v2144
    %v2149 = vrsqrt.pop %v2105
    %v2150 = vmul.f32 %v2149, %v2105
    %v2151 = vmul.f32 %v2150, %v2149
    %v2152 = vmul.f32 0.5, %v2151
    %v2153 = vsub.f32 1.5, %v2152
    %v2154 = vmul.f32 %v2149, %v2153
    %vm2155 = vweird.f32 %v2105
    %vm2156 = vweird.f32 %v2149
    %vm2157 = vmor %vm2155, %vm2156
    %v2158 = vsel %vm2157, %v2149, %v2154
    %v2159 = vrsqrt.pop %v2106
    %v2160 = vmul.f32 %v2159, %v2106
    %v2161 = vmul.f32 %v2160, %v2159
    %v2162 = vmul.f32 0.5, %v2161
    %v2163 = vsub.f32 1.5, %v2162
    %v2164 = vmul.f32 %v2159, %v2163
    %vm2165 = vweird.f32 %v2106
    %vm2166 = vweird.f32 %v2159
    %vm2167 = vmor %vm2165, %vm2166
    %v2168 = vsel %vm2167, %v2159, %v2164
    %v2169 = vrsqrt.pop %v2107
    %v2170 = vmul.f32 %v2169, %v2107
    %v2171 = vmul.f32 %v2170, %v2169
    %v2172 = vmul.f32 0.5, %v2171
    %v2173 = vsub.f32 1.5, %v2172
    %v2174 = vmul.f32 %v2169, %v2173
    %vm2175 = vweird.f32 %v2107
    %vm2176 = vweird.f32 %v2169
    %vm2177 = vmor %vm2175, %vm2176
    %v2178 = vsel %vm2177, %v2169, %v2174
    %v2179 = vrsqrt.pop %v2108
    %v2180 = vmul.f32 %v2179, %v2108
    %v2181 = vmul.f32 %v2180, %v2179
    %v2182 = vmul.f32 0.5, %v2181
    %v2183 = vsub.f32 1.5, %v2182
    %v2184 = vmul.f32 %v2179, %v2183
    %vm2185 = vweird.f32 %v2108
    %vm2186 = vweird.f32 %v2179
    %vm2187 = vmor %vm2185, %vm2186
    %v2188 = vsel %vm2187, %v2179, %v2184
    %v2189 = vmul.f32 %v2093, %v2118
    %v2190 = vmul.f32 %v2094, %v2128
    %v2191 = vmul.f32 %v2095, %v2138
    %v2192 = vmul.f32 %v2096, %v2148
    %v2193 = vmul.f32 %v2097, %v2158
    %v2194 = vmul.f32 %v2098, %v2168
    %v2195 = vmul.f32 %v2099, %v2178
    %v2196 = vmul.f32 %v2100, %v2188
    %v2198 = vperm.slane %v2012, 0
    %v2200 = vmul.f32 %v2189, %v2198
    %v2201 = vmul.f32 %v2190, %v2198
    %v2202 = vmul.f32 %v2191, %v2198
    %v2203 = vmul.f32 %v2192, %v2198
    %v2204 = vmul.f32 %v2193, %v2198
    %v2205 = vmul.f32 %v2194, %v2198
    %v2206 = vmul.f32 %v2195, %v2198
    %v2207 = vmul.f32 %v2196, %v2198
    %v2209 = vperm.slane %v2013, 0
    %v2211 = vadd.f32 %v2200, %v2209
    %v2212 = vadd.f32 %v2201, %v2209
    %v2213 = vadd.f32 %v2202, %v2209
    %v2214 = vadd.f32 %v2203, %v2209
    %v2215 = vadd.f32 %v2204, %v2209
    %v2216 = vadd.f32 %v2205, %v2209
    %v2217 = vadd.f32 %v2206, %v2209
    %v2218 = vadd.f32 %v2207, %v2209
    %v2219 = vpack.c.bf16 %v2212, %v2211
    %v2220 = vpack.c.bf16 %v2214, %v2213
    %v2221 = vpack.c.bf16 %v2216, %v2215
    %v2222 = vpack.c.bf16 %v2218, %v2217
    %v2223 = vld [vmem:[#allocation11] sm:$0xff]
    %v2224 = vld [vmem:[#allocation11 + $0x8] sm:$0xff]
    %v2225 = vld [vmem:[#allocation11 + $0x10] sm:$0xff]
    %v2226 = vld [vmem:[#allocation11 + $0x18] sm:$0xff]
    %v2227 = vld [vmem:[#allocation11 + $0x20] sm:$0xff]
    %v2228 = vld [vmem:[#allocation11 + $0x28] sm:$0xff]
    %v2229 = vld [vmem:[#allocation11 + $0x30] sm:$0xff]
    %v2230 = vld [vmem:[#allocation11 + $0x38] sm:$0xff]
    %v2231 = vld [vmem:[#allocation11 + $0x40] sm:$0xff]
    %v2232 = vld [vmem:[#allocation11 + $0x48] sm:$0xff]
    %v2233 = vld [vmem:[#allocation11 + $0x50] sm:$0xff]
    %v2234 = vld [vmem:[#allocation11 + $0x58] sm:$0xff]
    %v2235 = vld [vmem:[#allocation11 + $0x60] sm:$0xff]
    %v2236 = vld [vmem:[#allocation11 + $0x68] sm:$0xff]
    %v2237 = vld [vmem:[#allocation11 + $0x70] sm:$0xff]
    %v2238 = vld [vmem:[#allocation11 + $0x78] sm:$0xff]
    %v2239 = vld [vmem:[#allocation11 + $0x80] sm:$0xff]
    %v2240 = vld [vmem:[#allocation11 + $0x88] sm:$0xff]
    %v2241 = vld [vmem:[#allocation11 + $0x90] sm:$0xff]
    %v2242 = vld [vmem:[#allocation11 + $0x98] sm:$0xff]
    %v2243 = vld [vmem:[#allocation11 + $0xa0] sm:$0xff]
    %v2244 = vld [vmem:[#allocation11 + $0xa8] sm:$0xff]
    %v2245 = vld [vmem:[#allocation11 + $0xb0] sm:$0xff]
    %v2246 = vld [vmem:[#allocation11 + $0xb8] sm:$0xff]
    %v2247 = vld [vmem:[#allocation11 + $0xc0] sm:$0xff]
    %v2248 = vld [vmem:[#allocation11 + $0xc8] sm:$0xff]
    %v2249 = vld [vmem:[#allocation11 + $0xd0] sm:$0xff]
    %v2250 = vld [vmem:[#allocation11 + $0xd8] sm:$0xff]
    %v2251 = vld [vmem:[#allocation11 + $0xe0] sm:$0xff]
    %v2252 = vld [vmem:[#allocation11 + $0xe8] sm:$0xff]
    %v2253 = vld [vmem:[#allocation11 + $0xf0] sm:$0xff]
    %v2254 = vld [vmem:[#allocation11 + $0xf8] sm:$0xff]
    %v2255 = vld [vmem:[%s8] sm:$0xf]
    %v2257 = vperm.slane %v2255, 0
    %v2258 = vperm.slane %v2255, 1
    %v2259 = vperm.slane %v2255, 2
    %v2260 = vperm.slane %v2255, 3
    %v2297 = vunpack.c.l.b16 %v2223
    %v2298 = vunpack.c.h.b16 %v2223
    %v2299 = vunpack.c.l.b16 %v2224
    %v2300 = vunpack.c.h.b16 %v2224
    %v2301 = vunpack.c.l.b16 %v2225
    %v2302 = vunpack.c.h.b16 %v2225
    %v2303 = vunpack.c.l.b16 %v2226
    %v2304 = vunpack.c.h.b16 %v2226
    %v2305 = vunpack.c.l.b16 %v2227
    %v2306 = vunpack.c.h.b16 %v2227
    %v2307 = vunpack.c.l.b16 %v2228
    %v2308 = vunpack.c.h.b16 %v2228
    %v2309 = vunpack.c.l.b16 %v2229
    %v2310 = vunpack.c.h.b16 %v2229
    %v2311 = vunpack.c.l.b16 %v2230
    %v2312 = vunpack.c.h.b16 %v2230
    %v2313 = vunpack.c.l.b16 %v2231
    %v2314 = vunpack.c.h.b16 %v2231
    %v2315 = vunpack.c.l.b16 %v2232
    %v2316 = vunpack.c.h.b16 %v2232
    %v2317 = vunpack.c.l.b16 %v2233
    %v2318 = vunpack.c.h.b16 %v2233
    %v2319 = vunpack.c.l.b16 %v2234
    %v2320 = vunpack.c.h.b16 %v2234
    %v2321 = vunpack.c.l.b16 %v2235
    %v2322 = vunpack.c.h.b16 %v2235
    %v2323 = vunpack.c.l.b16 %v2236
    %v2324 = vunpack.c.h.b16 %v2236
    %v2325 = vunpack.c.l.b16 %v2237
    %v2326 = vunpack.c.h.b16 %v2237
    %v2327 = vunpack.c.l.b16 %v2238
    %v2328 = vunpack.c.h.b16 %v2238
    %v2329 = vunpack.c.l.b16 %v2239
    %v2330 = vunpack.c.h.b16 %v2239
    %v2331 = vunpack.c.l.b16 %v2240
    %v2332 = vunpack.c.h.b16 %v2240
    %v2333 = vunpack.c.l.b16 %v2241
    %v2334 = vunpack.c.h.b16 %v2241
    %v2335 = vunpack.c.l.b16 %v2242
    %v2336 = vunpack.c.h.b16 %v2242
    %v2337 = vunpack.c.l.b16 %v2243
    %v2338 = vunpack.c.h.b16 %v2243
    %v2339 = vunpack.c.l.b16 %v2244
    %v2340 = vunpack.c.h.b16 %v2244
    %v2341 = vunpack.c.l.b16 %v2245
    %v2342 = vunpack.c.h.b16 %v2245
    %v2343 = vunpack.c.l.b16 %v2246
    %v2344 = vunpack.c.h.b16 %v2246
    %v2345 = vunpack.c.l.b16 %v2247
    %v2346 = vunpack.c.h.b16 %v2247
    %v2347 = vunpack.c.l.b16 %v2248
    %v2348 = vunpack.c.h.b16 %v2248
    %v2349 = vunpack.c.l.b16 %v2249
    %v2350 = vunpack.c.h.b16 %v2249
    %v2351 = vunpack.c.l.b16 %v2250
    %v2352 = vunpack.c.h.b16 %v2250
    %v2353 = vunpack.c.l.b16 %v2251
    %v2354 = vunpack.c.h.b16 %v2251
    %v2355 = vunpack.c.l.b16 %v2252
    %v2356 = vunpack.c.h.b16 %v2252
    %v2357 = vunpack.c.l.b16 %v2253
    %v2358 = vunpack.c.h.b16 %v2253
    %v2359 = vunpack.c.l.b16 %v2254
    %v2360 = vunpack.c.h.b16 %v2254
    %v2361 = vpack.c.b16 %v2301, %v2297
    %v2362 = vpack.c.b16 %v2302, %v2298
    %v2363 = vpack.c.b16 %v2303, %v2299
    %v2364 = vpack.c.b16 %v2304, %v2300
    %v2365 = vpack.c.b16 %v2309, %v2305
    %v2366 = vpack.c.b16 %v2310, %v2306
    %v2367 = vpack.c.b16 %v2311, %v2307
    %v2368 = vpack.c.b16 %v2312, %v2308
    %v2369 = vpack.c.b16 %v2317, %v2313
    %v2370 = vpack.c.b16 %v2318, %v2314
    %v2371 = vpack.c.b16 %v2319, %v2315
    %v2372 = vpack.c.b16 %v2320, %v2316
    %v2373 = vpack.c.b16 %v2325, %v2321
    %v2374 = vpack.c.b16 %v2326, %v2322
    %v2375 = vpack.c.b16 %v2327, %v2323
    %v2376 = vpack.c.b16 %v2328, %v2324
    %v2377 = vpack.c.b16 %v2333, %v2329
    %v2378 = vpack.c.b16 %v2334, %v2330
    %v2379 = vpack.c.b16 %v2335, %v2331
    %v2380 = vpack.c.b16 %v2336, %v2332
    %v2381 = vpack.c.b16 %v2341, %v2337
    %v2382 = vpack.c.b16 %v2342, %v2338
    %v2383 = vpack.c.b16 %v2343, %v2339
    %v2384 = vpack.c.b16 %v2344, %v2340
    %v2385 = vpack.c.b16 %v2349, %v2345
    %v2386 = vpack.c.b16 %v2350, %v2346
    %v2387 = vpack.c.b16 %v2351, %v2347
    %v2388 = vpack.c.b16 %v2352, %v2348
    %v2389 = vpack.c.b16 %v2357, %v2353
    %v2390 = vpack.c.b16 %v2358, %v2354
    %v2391 = vpack.c.b16 %v2359, %v2355
    %v2392 = vpack.c.b16 %v2360, %v2356
    %2425 = vmatpush.bf16.msra.mxu0 %v2389
    %2426 = vmatpush.bf16.msra.mxu0 %v2385
    %2427 = vmatpush.bf16.msra.mxu0 %v2381
    %2428 = vmatpush.bf16.msra.mxu0 %v2377
    %2429 = vmatpush.bf16.msra.mxu0 %v2373
    %2430 = vmatpush.bf16.msra.mxu0 %v2369
    %2431 = vmatpush.bf16.msra.mxu0 %v2365
    %2432 = vmatpush.bf16.msra.mxu0 %v2361
    %2433 = vmatmul.bf16.gmra.mxu0 %v2219
    %v2434 = vpop.f32.mrf.mxu0
    %v2435 = vadd.f32 %v2257, %v2434
    %v2436 = vpop.f32.mrf.mxu0
    %v2437 = vadd.f32 %v2257, %v2436
    %2438 = vmatmul.bf16.gmra.mxu0 %v2220
    %v2439 = vpop.f32.mrf.mxu0
    %v2440 = vadd.f32 %v2257, %v2439
    %v2441 = vpop.f32.mrf.mxu0
    %v2442 = vadd.f32 %v2257, %v2441
    %2443 = vmatmul.bf16.gmra.mxu0 %v2221
    %v2444 = vpop.f32.mrf.mxu0
    %v2445 = vadd.f32 %v2257, %v2444
    %v2446 = vpop.f32.mrf.mxu0
    %v2447 = vadd.f32 %v2257, %v2446
    %2448 = vmatmul.bf16.gmra.mxu0 %v2222
    %v2449 = vpop.f32.mrf.mxu0
    %v2450 = vadd.f32 %v2257, %v2449
    %v2451 = vpop.f32.mrf.mxu0
    %v2452 = vadd.f32 %v2257, %v2451
    %2453 = vdwg.mxu0
    %2454 = vmatpush.bf16.msra.mxu0 %v2390
    %2455 = vmatpush.bf16.msra.mxu0 %v2386
    %2456 = vmatpush.bf16.msra.mxu0 %v2382
    %2457 = vmatpush.bf16.msra.mxu0 %v2378
    %2458 = vmatpush.bf16.msra.mxu0 %v2374
    %2459 = vmatpush.bf16.msra.mxu0 %v2370
    %2460 = vmatpush.bf16.msra.mxu0 %v2366
    %2461 = vmatpush.bf16.msra.mxu0 %v2362
    %2462 = vmatmul.bf16.gmra.mxu0 %v2219
    %v2463 = vpop.f32.mrf.mxu0
    %v2464 = vadd.f32 %v2258, %v2463
    %v2465 = vpop.f32.mrf.mxu0
    %v2466 = vadd.f32 %v2258, %v2465
    %2467 = vmatmul.bf16.gmra.mxu0 %v2220
    %v2468 = vpop.f32.mrf.mxu0
    %v2469 = vadd.f32 %v2258, %v2468
    %v2470 = vpop.f32.mrf.mxu0
    %v2471 = vadd.f32 %v2258, %v2470
    %2472 = vmatmul.bf16.gmra.mxu0 %v2221
    %v2473 = vpop.f32.mrf.mxu0
    %v2474 = vadd.f32 %v2258, %v2473
    %v2475 = vpop.f32.mrf.mxu0
    %v2476 = vadd.f32 %v2258, %v2475
    %2477 = vmatmul.bf16.gmra.mxu0 %v2222
    %v2478 = vpop.f32.mrf.mxu0
    %v2479 = vadd.f32 %v2258, %v2478
    %v2480 = vpop.f32.mrf.mxu0
    %v2481 = vadd.f32 %v2258, %v2480
    %2482 = vdwg.mxu0
    %2483 = vmatpush.bf16.msra.mxu0 %v2391
    %2484 = vmatpush.bf16.msra.mxu0 %v2387
    %2485 = vmatpush.bf16.msra.mxu0 %v2383
    %2486 = vmatpush.bf16.msra.mxu0 %v2379
    %2487 = vmatpush.bf16.msra.mxu0 %v2375
    %2488 = vmatpush.bf16.msra.mxu0 %v2371
    %2489 = vmatpush.bf16.msra.mxu0 %v2367
    %2490 = vmatpush.bf16.msra.mxu0 %v2363
    %2491 = vmatmul.bf16.gmra.mxu0 %v2219
    %v2492 = vpop.f32.mrf.mxu0
    %v2493 = vadd.f32 %v2259, %v2492
    %v2494 = vpop.f32.mrf.mxu0
    %v2495 = vadd.f32 %v2259, %v2494
    %2496 = vmatmul.bf16.gmra.mxu0 %v2220
    %v2497 = vpop.f32.mrf.mxu0
    %v2498 = vadd.f32 %v2259, %v2497
    %v2499 = vpop.f32.mrf.mxu0
    %v2500 = vadd.f32 %v2259, %v2499
    %2501 = vmatmul.bf16.gmra.mxu0 %v2221
    %v2502 = vpop.f32.mrf.mxu0
    %v2503 = vadd.f32 %v2259, %v2502
    %v2504 = vpop.f32.mrf.mxu0
    %v2505 = vadd.f32 %v2259, %v2504
    %2506 = vmatmul.bf16.gmra.mxu0 %v2222
    %v2507 = vpop.f32.mrf.mxu0
    %v2508 = vadd.f32 %v2259, %v2507
    %v2509 = vpop.f32.mrf.mxu0
    %v2510 = vadd.f32 %v2259, %v2509
    %2511 = vdwg.mxu0
    %2512 = vmatpush.bf16.msra.mxu0 %v2392
    %2513 = vmatpush.bf16.msra.mxu0 %v2388
    %2514 = vmatpush.bf16.msra.mxu0 %v2384
    %2515 = vmatpush.bf16.msra.mxu0 %v2380
    %2516 = vmatpush.bf16.msra.mxu0 %v2376
    %2517 = vmatpush.bf16.msra.mxu0 %v2372
    %2518 = vmatpush.bf16.msra.mxu0 %v2368
    %2519 = vmatpush.bf16.msra.mxu0 %v2364
    %2520 = vmatmul.bf16.gmra.mxu0 %v2219
    %v2521 = vpop.f32.mrf.mxu0
    %v2522 = vadd.f32 %v2260, %v2521
    %v2523 = vpop.f32.mrf.mxu0
    %v2524 = vadd.f32 %v2260, %v2523
    %2525 = vmatmul.bf16.gmra.mxu0 %v2220
    %v2526 = vpop.f32.mrf.mxu0
    %v2527 = vadd.f32 %v2260, %v2526
    %v2528 = vpop.f32.mrf.mxu0
    %v2529 = vadd.f32 %v2260, %v2528
    %2530 = vmatmul.bf16.gmra.mxu0 %v2221
    %v2531 = vpop.f32.mrf.mxu0
    %v2532 = vadd.f32 %v2260, %v2531
    %v2533 = vpop.f32.mrf.mxu0
    %v2534 = vadd.f32 %v2260, %v2533
    %2535 = vmatmul.bf16.gmra.mxu0 %v2222
    %v2536 = vpop.f32.mrf.mxu0
    %v2537 = vadd.f32 %v2260, %v2536
    %v2538 = vpop.f32.mrf.mxu0
    %v2539 = vadd.f32 %v2260, %v2538
    %2540 = vdwg.mxu0
    %v2541 = vmax.f32 %v2435, 0.0
    %v2542 = vmax.f32 %v2464, 0.0
    %v2543 = vmax.f32 %v2493, 0.0
    %v2544 = vmax.f32 %v2522, 0.0
    %v2545 = vmax.f32 %v2437, 0.0
    %v2546 = vmax.f32 %v2466, 0.0
    %v2547 = vmax.f32 %v2495, 0.0
    %v2548 = vmax.f32 %v2524, 0.0
    %v2549 = vmax.f32 %v2440, 0.0
    %v2550 = vmax.f32 %v2469, 0.0
    %v2551 = vmax.f32 %v2498, 0.0
    %v2552 = vmax.f32 %v2527, 0.0
    %v2553 = vmax.f32 %v2442, 0.0
    %v2554 = vmax.f32 %v2471, 0.0
    %v2555 = vmax.f32 %v2500, 0.0
    %v2556 = vmax.f32 %v2529, 0.0
    %v2557 = vmax.f32 %v2445, 0.0
    %v2558 = vmax.f32 %v2474, 0.0
    %v2559 = vmax.f32 %v2503, 0.0
    %v2560 = vmax.f32 %v2532, 0.0
    %v2561 = vmax.f32 %v2447, 0.0
    %v2562 = vmax.f32 %v2476, 0.0
    %v2563 = vmax.f32 %v2505, 0.0
    %v2564 = vmax.f32 %v2534, 0.0
    %v2565 = vmax.f32 %v2450, 0.0
    %v2566 = vmax.f32 %v2479, 0.0
    %v2567 = vmax.f32 %v2508, 0.0
    %v2568 = vmax.f32 %v2537, 0.0
    %v2569 = vmax.f32 %v2452, 0.0
    %v2570 = vmax.f32 %v2481, 0.0
    %v2571 = vmax.f32 %v2510, 0.0
    %v2572 = vmax.f32 %v2539, 0.0
    %v2573 = vpack.c.bf16 %v2545, %v2541
    %v2574 = vpack.c.bf16 %v2546, %v2542
    %v2575 = vpack.c.bf16 %v2547, %v2543
    %v2576 = vpack.c.bf16 %v2548, %v2544
    %v2577 = vpack.c.bf16 %v2553, %v2549
    %v2578 = vpack.c.bf16 %v2554, %v2550
    %v2579 = vpack.c.bf16 %v2555, %v2551
    %v2580 = vpack.c.bf16 %v2556, %v2552
    %v2581 = vpack.c.bf16 %v2561, %v2557
    %v2582 = vpack.c.bf16 %v2562, %v2558
    %v2583 = vpack.c.bf16 %v2563, %v2559
    %v2584 = vpack.c.bf16 %v2564, %v2560
    %v2585 = vpack.c.bf16 %v2569, %v2565
    %v2586 = vpack.c.bf16 %v2570, %v2566
    %v2587 = vpack.c.bf16 %v2571, %v2567
    %v2588 = vpack.c.bf16 %v2572, %v2568
    %v2589 = vld [vmem:[#allocation12] sm:$0xf]
    %v2590 = vld [vmem:[#allocation12 + $0x4] sm:$0xf]
    %v2591 = vld [vmem:[#allocation12 + $0x8] sm:$0xf]
    %v2592 = vld [vmem:[#allocation12 + $0xc] sm:$0xf]
    %v2593 = vld [vmem:[#allocation12 + $0x10] sm:$0xf]
    %v2594 = vld [vmem:[#allocation12 + $0x14] sm:$0xf]
    %v2595 = vld [vmem:[#allocation12 + $0x18] sm:$0xf]
    %v2596 = vld [vmem:[#allocation12 + $0x1c] sm:$0xf]
    %v2597 = vld [vmem:[#allocation12 + $0x20] sm:$0xf]
    %v2598 = vld [vmem:[#allocation12 + $0x24] sm:$0xf]
    %v2599 = vld [vmem:[#allocation12 + $0x28] sm:$0xf]
    %v2600 = vld [vmem:[#allocation12 + $0x2c] sm:$0xf]
    %v2601 = vld [vmem:[#allocation12 + $0x30] sm:$0xf]
    %v2602 = vld [vmem:[#allocation12 + $0x34] sm:$0xf]
    %v2603 = vld [vmem:[#allocation12 + $0x38] sm:$0xf]
    %v2604 = vld [vmem:[#allocation12 + $0x3c] sm:$0xf]
    %v2605 = vld [vmem:[#allocation12 + $0x40] sm:$0xf]
    %v2606 = vld [vmem:[#allocation12 + $0x44] sm:$0xf]
    %v2607 = vld [vmem:[#allocation12 + $0x48] sm:$0xf]
    %v2608 = vld [vmem:[#allocation12 + $0x4c] sm:$0xf]
    %v2609 = vld [vmem:[#allocation12 + $0x50] sm:$0xf]
    %v2610 = vld [vmem:[#allocation12 + $0x54] sm:$0xf]
    %v2611 = vld [vmem:[#allocation12 + $0x58] sm:$0xf]
    %v2612 = vld [vmem:[#allocation12 + $0x5c] sm:$0xf]
    %v2613 = vld [vmem:[#allocation12 + $0x60] sm:$0xf]
    %v2614 = vld [vmem:[#allocation12 + $0x64] sm:$0xf]
    %v2615 = vld [vmem:[#allocation12 + $0x68] sm:$0xf]
    %v2616 = vld [vmem:[#allocation12 + $0x6c] sm:$0xf]
    %v2617 = vld [vmem:[#allocation12 + $0x70] sm:$0xf]
    %v2618 = vld [vmem:[#allocation12 + $0x74] sm:$0xf]
    %v2619 = vld [vmem:[#allocation12 + $0x78] sm:$0xf]
    %v2620 = vld [vmem:[#allocation12 + $0x7c] sm:$0xf]
    %v2621 = vld [vmem:[#allocation12 + $0x80] sm:$0xf]
    %v2622 = vld [vmem:[#allocation12 + $0x84] sm:$0xf]
    %v2623 = vld [vmem:[#allocation12 + $0x88] sm:$0xf]
    %v2624 = vld [vmem:[#allocation12 + $0x8c] sm:$0xf]
    %v2625 = vld [vmem:[#allocation12 + $0x90] sm:$0xf]
    %v2626 = vld [vmem:[#allocation12 + $0x94] sm:$0xf]
    %v2627 = vld [vmem:[#allocation12 + $0x98] sm:$0xf]
    %v2628 = vld [vmem:[#allocation12 + $0x9c] sm:$0xf]
    %v2629 = vld [vmem:[#allocation12 + $0xa0] sm:$0xf]
    %v2630 = vld [vmem:[#allocation12 + $0xa4] sm:$0xf]
    %v2631 = vld [vmem:[#allocation12 + $0xa8] sm:$0xf]
    %v2632 = vld [vmem:[#allocation12 + $0xac] sm:$0xf]
    %v2633 = vld [vmem:[#allocation12 + $0xb0] sm:$0xf]
    %v2634 = vld [vmem:[#allocation12 + $0xb4] sm:$0xf]
    %v2635 = vld [vmem:[#allocation12 + $0xb8] sm:$0xf]
    %v2636 = vld [vmem:[#allocation12 + $0xbc] sm:$0xf]
    %v2637 = vld [vmem:[#allocation12 + $0xc0] sm:$0xf]
    %v2638 = vld [vmem:[#allocation12 + $0xc4] sm:$0xf]
    %v2639 = vld [vmem:[#allocation12 + $0xc8] sm:$0xf]
    %v2640 = vld [vmem:[#allocation12 + $0xcc] sm:$0xf]
    %v2641 = vld [vmem:[#allocation12 + $0xd0] sm:$0xf]
    %v2642 = vld [vmem:[#allocation12 + $0xd4] sm:$0xf]
    %v2643 = vld [vmem:[#allocation12 + $0xd8] sm:$0xf]
    %v2644 = vld [vmem:[#allocation12 + $0xdc] sm:$0xf]
    %v2645 = vld [vmem:[#allocation12 + $0xe0] sm:$0xf]
    %v2646 = vld [vmem:[#allocation12 + $0xe4] sm:$0xf]
    %v2647 = vld [vmem:[#allocation12 + $0xe8] sm:$0xf]
    %v2648 = vld [vmem:[#allocation12 + $0xec] sm:$0xf]
    %v2649 = vld [vmem:[#allocation12 + $0xf0] sm:$0xf]
    %v2650 = vld [vmem:[#allocation12 + $0xf4] sm:$0xf]
    %v2651 = vld [vmem:[#allocation12 + $0xf8] sm:$0xf]
    %v2652 = vld [vmem:[#allocation12 + $0xfc] sm:$0xf]
    %v2653 = vld [vmem:[%s10] sm:$0x1]
    %v2655 = vperm.slane %v2653, 0
    %v2721 = vunpack.c.l.b16 %v2589
    %v2722 = vunpack.c.l.b16 %v2590
    %v2723 = vunpack.c.l.b16 %v2591
    %v2724 = vunpack.c.l.b16 %v2592
    %v2725 = vunpack.c.l.b16 %v2593
    %v2726 = vunpack.c.l.b16 %v2594
    %v2727 = vunpack.c.l.b16 %v2595
    %v2728 = vunpack.c.l.b16 %v2596
    %v2729 = vunpack.c.l.b16 %v2597
    %v2730 = vunpack.c.l.b16 %v2598
    %v2731 = vunpack.c.l.b16 %v2599
    %v2732 = vunpack.c.l.b16 %v2600
    %v2733 = vunpack.c.l.b16 %v2601
    %v2734 = vunpack.c.l.b16 %v2602
    %v2735 = vunpack.c.l.b16 %v2603
    %v2736 = vunpack.c.l.b16 %v2604
    %v2737 = vunpack.c.l.b16 %v2605
    %v2738 = vunpack.c.l.b16 %v2606
    %v2739 = vunpack.c.l.b16 %v2607
    %v2740 = vunpack.c.l.b16 %v2608
    %v2741 = vunpack.c.l.b16 %v2609
    %v2742 = vunpack.c.l.b16 %v2610
    %v2743 = vunpack.c.l.b16 %v2611
    %v2744 = vunpack.c.l.b16 %v2612
    %v2745 = vunpack.c.l.b16 %v2613
    %v2746 = vunpack.c.l.b16 %v2614
    %v2747 = vunpack.c.l.b16 %v2615
    %v2748 = vunpack.c.l.b16 %v2616
    %v2749 = vunpack.c.l.b16 %v2617
    %v2750 = vunpack.c.l.b16 %v2618
    %v2751 = vunpack.c.l.b16 %v2619
    %v2752 = vunpack.c.l.b16 %v2620
    %v2753 = vunpack.c.l.b16 %v2621
    %v2754 = vunpack.c.l.b16 %v2622
    %v2755 = vunpack.c.l.b16 %v2623
    %v2756 = vunpack.c.l.b16 %v2624
    %v2757 = vunpack.c.l.b16 %v2625
    %v2758 = vunpack.c.l.b16 %v2626
    %v2759 = vunpack.c.l.b16 %v2627
    %v2760 = vunpack.c.l.b16 %v2628
    %v2761 = vunpack.c.l.b16 %v2629
    %v2762 = vunpack.c.l.b16 %v2630
    %v2763 = vunpack.c.l.b16 %v2631
    %v2764 = vunpack.c.l.b16 %v2632
    %v2765 = vunpack.c.l.b16 %v2633
    %v2766 = vunpack.c.l.b16 %v2634
    %v2767 = vunpack.c.l.b16 %v2635
    %v2768 = vunpack.c.l.b16 %v2636
    %v2769 = vunpack.c.l.b16 %v2637
    %v2770 = vunpack.c.l.b16 %v2638
    %v2771 = vunpack.c.l.b16 %v2639
    %v2772 = vunpack.c.l.b16 %v2640
    %v2773 = vunpack.c.l.b16 %v2641
    %v2774 = vunpack.c.l.b16 %v2642
    %v2775 = vunpack.c.l.b16 %v2643
    %v2776 = vunpack.c.l.b16 %v2644
    %v2777 = vunpack.c.l.b16 %v2645
    %v2778 = vunpack.c.l.b16 %v2646
    %v2779 = vunpack.c.l.b16 %v2647
    %v2780 = vunpack.c.l.b16 %v2648
    %v2781 = vunpack.c.l.b16 %v2649
    %v2782 = vunpack.c.l.b16 %v2650
    %v2783 = vunpack.c.l.b16 %v2651
    %v2784 = vunpack.c.l.b16 %v2652
    %v2785 = vpack.c.b16 %v2722, %v2721
    %v2786 = vpack.c.b16 %v2724, %v2723
    %v2787 = vpack.c.b16 %v2726, %v2725
    %v2788 = vpack.c.b16 %v2728, %v2727
    %v2789 = vpack.c.b16 %v2730, %v2729
    %v2790 = vpack.c.b16 %v2732, %v2731
    %v2791 = vpack.c.b16 %v2734, %v2733
    %v2792 = vpack.c.b16 %v2736, %v2735
    %v2793 = vpack.c.b16 %v2738, %v2737
    %v2794 = vpack.c.b16 %v2740, %v2739
    %v2795 = vpack.c.b16 %v2742, %v2741
    %v2796 = vpack.c.b16 %v2744, %v2743
    %v2797 = vpack.c.b16 %v2746, %v2745
    %v2798 = vpack.c.b16 %v2748, %v2747
    %v2799 = vpack.c.b16 %v2750, %v2749
    %v2800 = vpack.c.b16 %v2752, %v2751
    %v2801 = vpack.c.b16 %v2754, %v2753
    %v2802 = vpack.c.b16 %v2756, %v2755
    %v2803 = vpack.c.b16 %v2758, %v2757
    %v2804 = vpack.c.b16 %v2760, %v2759
    %v2805 = vpack.c.b16 %v2762, %v2761
    %v2806 = vpack.c.b16 %v2764, %v2763
    %v2807 = vpack.c.b16 %v2766, %v2765
    %v2808 = vpack.c.b16 %v2768, %v2767
    %v2809 = vpack.c.b16 %v2770, %v2769
    %v2810 = vpack.c.b16 %v2772, %v2771
    %v2811 = vpack.c.b16 %v2774, %v2773
    %v2812 = vpack.c.b16 %v2776, %v2775
    %v2813 = vpack.c.b16 %v2778, %v2777
    %v2814 = vpack.c.b16 %v2780, %v2779
    %v2815 = vpack.c.b16 %v2782, %v2781
    %v2816 = vpack.c.b16 %v2784, %v2783
    %2849 = vmatpush.bf16.msra.mxu0 %v2792
    %2850 = vmatpush.bf16.msra.mxu0 %v2791
    %2851 = vmatpush.bf16.msra.mxu0 %v2790
    %2852 = vmatpush.bf16.msra.mxu0 %v2789
    %2853 = vmatpush.bf16.msra.mxu0 %v2788
    %2854 = vmatpush.bf16.msra.mxu0 %v2787
    %2855 = vmatpush.bf16.msra.mxu0 %v2786
    %2856 = vmatpush.bf16.msra.mxu0 %v2785
    %2857 = vmatmul.bf16.gmra.mxu0 %v2573
    %v2858 = vpop.f32.mrf.mxu0
    %v2859 = vadd.f32 %v2655, %v2858
    %v2860 = vpop.f32.mrf.mxu0
    %v2861 = vadd.f32 %v2655, %v2860
    %2862 = vmatmul.bf16.gmra.mxu0 %v2577
    %v2863 = vpop.f32.mrf.mxu0
    %v2864 = vadd.f32 %v2655, %v2863
    %v2865 = vpop.f32.mrf.mxu0
    %v2866 = vadd.f32 %v2655, %v2865
    %2867 = vmatmul.bf16.gmra.mxu0 %v2581
    %v2868 = vpop.f32.mrf.mxu0
    %v2869 = vadd.f32 %v2655, %v2868
    %v2870 = vpop.f32.mrf.mxu0
    %v2871 = vadd.f32 %v2655, %v2870
    %2872 = vmatmul.bf16.gmra.mxu0 %v2585
    %v2873 = vpop.f32.mrf.mxu0
    %v2874 = vadd.f32 %v2655, %v2873
    %v2875 = vpop.f32.mrf.mxu0
    %v2876 = vadd.f32 %v2655, %v2875
    %2877 = vdwg.mxu0
    %2878 = vmatpush.bf16.msra.mxu0 %v2800
    %2879 = vmatpush.bf16.msra.mxu0 %v2799
    %2880 = vmatpush.bf16.msra.mxu0 %v2798
    %2881 = vmatpush.bf16.msra.mxu0 %v2797
    %2882 = vmatpush.bf16.msra.mxu0 %v2796
    %2883 = vmatpush.bf16.msra.mxu0 %v2795
    %2884 = vmatpush.bf16.msra.mxu0 %v2794
    %2885 = vmatpush.bf16.msra.mxu0 %v2793
    %2886 = vmatmul.bf16.gmra.mxu0 %v2574
    %v2887 = vpop.f32.mrf.mxu0
    %v2888 = vadd.f32 %v2859, %v2887
    %v2889 = vpop.f32.mrf.mxu0
    %v2890 = vadd.f32 %v2861, %v2889
    %2891 = vmatmul.bf16.gmra.mxu0 %v2578
    %v2892 = vpop.f32.mrf.mxu0
    %v2893 = vadd.f32 %v2864, %v2892
    %v2894 = vpop.f32.mrf.mxu0
    %v2895 = vadd.f32 %v2866, %v2894
    %2896 = vmatmul.bf16.gmra.mxu0 %v2582
    %v2897 = vpop.f32.mrf.mxu0
    %v2898 = vadd.f32 %v2869, %v2897
    %v2899 = vpop.f32.mrf.mxu0
    %v2900 = vadd.f32 %v2871, %v2899
    %2901 = vmatmul.bf16.gmra.mxu0 %v2586
    %v2902 = vpop.f32.mrf.mxu0
    %v2903 = vadd.f32 %v2874, %v2902
    %v2904 = vpop.f32.mrf.mxu0
    %v2905 = vadd.f32 %v2876, %v2904
    %2906 = vdwg.mxu0
    %2907 = vmatpush.bf16.msra.mxu0 %v2808
    %2908 = vmatpush.bf16.msra.mxu0 %v2807
    %2909 = vmatpush.bf16.msra.mxu0 %v2806
    %2910 = vmatpush.bf16.msra.mxu0 %v2805
    %2911 = vmatpush.bf16.msra.mxu0 %v2804
    %2912 = vmatpush.bf16.msra.mxu0 %v2803
    %2913 = vmatpush.bf16.msra.mxu0 %v2802
    %2914 = vmatpush.bf16.msra.mxu0 %v2801
    %2915 = vmatmul.bf16.gmra.mxu0 %v2575
    %v2916 = vpop.f32.mrf.mxu0
    %v2917 = vadd.f32 %v2888, %v2916
    %v2918 = vpop.f32.mrf.mxu0
    %v2919 = vadd.f32 %v2890, %v2918
    %2920 = vmatmul.bf16.gmra.mxu0 %v2579
    %v2921 = vpop.f32.mrf.mxu0
    %v2922 = vadd.f32 %v2893, %v2921
    %v2923 = vpop.f32.mrf.mxu0
    %v2924 = vadd.f32 %v2895, %v2923
    %2925 = vmatmul.bf16.gmra.mxu0 %v2583
    %v2926 = vpop.f32.mrf.mxu0
    %v2927 = vadd.f32 %v2898, %v2926
    %v2928 = vpop.f32.mrf.mxu0
    %v2929 = vadd.f32 %v2900, %v2928
    %2930 = vmatmul.bf16.gmra.mxu0 %v2587
    %v2931 = vpop.f32.mrf.mxu0
    %v2932 = vadd.f32 %v2903, %v2931
    %v2933 = vpop.f32.mrf.mxu0
    %v2934 = vadd.f32 %v2905, %v2933
    %2935 = vdwg.mxu0
    %2936 = vmatpush.bf16.msra.mxu0 %v2816
    %2937 = vmatpush.bf16.msra.mxu0 %v2815
    %2938 = vmatpush.bf16.msra.mxu0 %v2814
    %2939 = vmatpush.bf16.msra.mxu0 %v2813
    %2940 = vmatpush.bf16.msra.mxu0 %v2812
    %2941 = vmatpush.bf16.msra.mxu0 %v2811
    %2942 = vmatpush.bf16.msra.mxu0 %v2810
    %2943 = vmatpush.bf16.msra.mxu0 %v2809
    %2944 = vmatmul.bf16.gmra.mxu0 %v2576
    %v2945 = vpop.f32.mrf.mxu0
    %v2946 = vadd.f32 %v2917, %v2945
    %v2947 = vpop.f32.mrf.mxu0
    %v2948 = vadd.f32 %v2919, %v2947
    %2949 = vmatmul.bf16.gmra.mxu0 %v2580
    %v2950 = vpop.f32.mrf.mxu0
    %v2951 = vadd.f32 %v2922, %v2950
    %v2952 = vpop.f32.mrf.mxu0
    %v2953 = vadd.f32 %v2924, %v2952
    %2954 = vmatmul.bf16.gmra.mxu0 %v2584
    %v2955 = vpop.f32.mrf.mxu0
    %v2956 = vadd.f32 %v2927, %v2955
    %v2957 = vpop.f32.mrf.mxu0
    %v2958 = vadd.f32 %v2929, %v2957
    %2959 = vmatmul.bf16.gmra.mxu0 %v2588
    %v2960 = vpop.f32.mrf.mxu0
    %v2961 = vadd.f32 %v2932, %v2960
    %v2962 = vpop.f32.mrf.mxu0
    %v2963 = vadd.f32 %v2934, %v2962
    %2964 = vdwg.mxu0
    %v2965 = vadd.f32 %v2211, %v2946
    %v2966 = vadd.f32 %v2212, %v2948
    %v2967 = vadd.f32 %v2213, %v2951
    %v2968 = vadd.f32 %v2214, %v2953
    %v2969 = vadd.f32 %v2215, %v2956
    %v2970 = vadd.f32 %v2216, %v2958
    %v2971 = vadd.f32 %v2217, %v2961
    %v2972 = vadd.f32 %v2218, %v2963
    %v2973 = vld [vmem:[%s11] sm:$0x1]
    %v2974 = vld [vmem:[%s12] sm:$0x1]
    %2975 = vadd.xlane.f32.xlu0 %v2965
    %v2976 = vpop.xlane.xlu0 %2975
    %2977 = vadd.xlane.f32.xlu0 %v2966
    %v2978 = vpop.xlane.xlu0 %2977
    %2979 = vadd.xlane.f32.xlu0 %v2967
    %v2980 = vpop.xlane.xlu0 %2979
    %2981 = vadd.xlane.f32.xlu0 %v2968
    %v2982 = vpop.xlane.xlu0 %2981
    %2983 = vadd.xlane.f32.xlu0 %v2969
    %v2984 = vpop.xlane.xlu0 %2983
    %2985 = vadd.xlane.f32.xlu0 %v2970
    %v2986 = vpop.xlane.xlu0 %2985
    %2987 = vadd.xlane.f32.xlu0 %v2971
    %v2988 = vpop.xlane.xlu0 %2987
    %2989 = vadd.xlane.f32.xlu0 %v2972
    %v2990 = vpop.xlane.xlu0 %2989
    %v2991 = vmul.f32 %v2976, %v2036
    %v2992 = vmul.f32 %v2978, %v2036
    %v2993 = vmul.f32 %v2980, %v2036
    %v2994 = vmul.f32 %v2982, %v2036
    %v2995 = vmul.f32 %v2984, %v2036
    %v2996 = vmul.f32 %v2986, %v2036
    %v2997 = vmul.f32 %v2988, %v2036
    %v2998 = vmul.f32 %v2990, %v2036
    %v2999 = vmul.f32 %v2965, %v2965
    %v3000 = vmul.f32 %v2966, %v2966
    %v3001 = vmul.f32 %v2967, %v2967
    %v3002 = vmul.f32 %v2968, %v2968
    %v3003 = vmul.f32 %v2969, %v2969
    %v3004 = vmul.f32 %v2970, %v2970
    %v3005 = vmul.f32 %v2971, %v2971
    %v3006 = vmul.f32 %v2972, %v2972
    %3007 = vadd.xlane.f32.xlu0 %v2999
    %v3008 = vpop.xlane.xlu0 %3007
    %3009 = vadd.xlane.f32.xlu0 %v3000
    %v3010 = vpop.xlane.xlu0 %3009
    %3011 = vadd.xlane.f32.xlu0 %v3001
    %v3012 = vpop.xlane.xlu0 %3011
    %3013 = vadd.xlane.f32.xlu0 %v3002
    %v3014 = vpop.xlane.xlu0 %3013
    %3015 = vadd.xlane.f32.xlu0 %v3003
    %v3016 = vpop.xlane.xlu0 %3015
    %3017 = vadd.xlane.f32.xlu0 %v3004
    %v3018 = vpop.xlane.xlu0 %3017
    %3019 = vadd.xlane.f32.xlu0 %v3005
    %v3020 = vpop.xlane.xlu0 %3019
    %3021 = vadd.xlane.f32.xlu0 %v3006
    %v3022 = vpop.xlane.xlu0 %3021
    %v3023 = vmul.f32 %v3008, %v2036
    %v3024 = vmul.f32 %v3010, %v2036
    %v3025 = vmul.f32 %v3012, %v2036
    %v3026 = vmul.f32 %v3014, %v2036
    %v3027 = vmul.f32 %v3016, %v2036
    %v3028 = vmul.f32 %v3018, %v2036
    %v3029 = vmul.f32 %v3020, %v2036
    %v3030 = vmul.f32 %v3022, %v2036
    %v3031 = vmul.f32 %v2991, %v2991
    %v3032 = vmul.f32 %v2992, %v2992
    %v3033 = vmul.f32 %v2993, %v2993
    %v3034 = vmul.f32 %v2994, %v2994
    %v3035 = vmul.f32 %v2995, %v2995
    %v3036 = vmul.f32 %v2996, %v2996
    %v3037 = vmul.f32 %v2997, %v2997
    %v3038 = vmul.f32 %v2998, %v2998
    %v3039 = vsub.f32 %v3023, %v3031
    %v3040 = vsub.f32 %v3024, %v3032
    %v3041 = vsub.f32 %v3025, %v3033
    %v3042 = vsub.f32 %v3026, %v3034
    %v3043 = vsub.f32 %v3027, %v3035
    %v3044 = vsub.f32 %v3028, %v3036
    %v3045 = vsub.f32 %v3029, %v3037
    %v3046 = vsub.f32 %v3030, %v3038
    %v3047 = vsub.f32 %v2965, %v2991
    %v3048 = vsub.f32 %v2966, %v2992
    %v3049 = vsub.f32 %v2967, %v2993
    %v3050 = vsub.f32 %v2968, %v2994
    %v3051 = vsub.f32 %v2969, %v2995
    %v3052 = vsub.f32 %v2970, %v2996
    %v3053 = vsub.f32 %v2971, %v2997
    %v3054 = vsub.f32 %v2972, %v2998
    %v3055 = vadd.f32 %v3039, 1e-05
    %v3056 = vadd.f32 %v3040, 1e-05
    %v3057 = vadd.f32 %v3041, 1e-05
    %v3058 = vadd.f32 %v3042, 1e-05
    %v3059 = vadd.f32 %v3043, 1e-05
    %v3060 = vadd.f32 %v3044, 1e-05
    %v3061 = vadd.f32 %v3045, 1e-05
    %v3062 = vadd.f32 %v3046, 1e-05
    %v3063 = vrsqrt.pop %v3055
    %v3064 = vmul.f32 %v3063, %v3055
    %v3065 = vmul.f32 %v3064, %v3063
    %v3066 = vmul.f32 0.5, %v3065
    %v3067 = vsub.f32 1.5, %v3066
    %v3068 = vmul.f32 %v3063, %v3067
    %vm3069 = vweird.f32 %v3055
    %vm3070 = vweird.f32 %v3063
    %vm3071 = vmor %vm3069, %vm3070
    %v3072 = vsel %vm3071, %v3063, %v3068
    %v3073 = vrsqrt.pop %v3056
    %v3074 = vmul.f32 %v3073, %v3056
    %v3075 = vmul.f32 %v3074, %v3073
    %v3076 = vmul.f32 0.5, %v3075
    %v3077 = vsub.f32 1.5, %v3076
    %v3078 = vmul.f32 %v3073, %v3077
    %vm3079 = vweird.f32 %v3056
    %vm3080 = vweird.f32 %v3073
    %vm3081 = vmor %vm3079, %vm3080
    %v3082 = vsel %vm3081, %v3073, %v3078
    %v3083 = vrsqrt.pop %v3057
    %v3084 = vmul.f32 %v3083, %v3057
    %v3085 = vmul.f32 %v3084, %v3083
    %v3086 = vmul.f32 0.5, %v3085
    %v3087 = vsub.f32 1.5, %v3086
    %v3088 = vmul.f32 %v3083, %v3087
    %vm3089 = vweird.f32 %v3057
    %vm3090 = vweird.f32 %v3083
    %vm3091 = vmor %vm3089, %vm3090
    %v3092 = vsel %vm3091, %v3083, %v3088
    %v3093 = vrsqrt.pop %v3058
    %v3094 = vmul.f32 %v3093, %v3058
    %v3095 = vmul.f32 %v3094, %v3093
    %v3096 = vmul.f32 0.5, %v3095
    %v3097 = vsub.f32 1.5, %v3096
    %v3098 = vmul.f32 %v3093, %v3097
    %vm3099 = vweird.f32 %v3058
    %vm3100 = vweird.f32 %v3093
    %vm3101 = vmor %vm3099, %vm3100
    %v3102 = vsel %vm3101, %v3093, %v3098
    %v3103 = vrsqrt.pop %v3059
    %v3104 = vmul.f32 %v3103, %v3059
    %v3105 = vmul.f32 %v3104, %v3103
    %v3106 = vmul.f32 0.5, %v3105
    %v3107 = vsub.f32 1.5, %v3106
    %v3108 = vmul.f32 %v3103, %v3107
    %vm3109 = vweird.f32 %v3059
    %vm3110 = vweird.f32 %v3103
    %vm3111 = vmor %vm3109, %vm3110
    %v3112 = vsel %vm3111, %v3103, %v3108
    %v3113 = vrsqrt.pop %v3060
    %v3114 = vmul.f32 %v3113, %v3060
    %v3115 = vmul.f32 %v3114, %v3113
    %v3116 = vmul.f32 0.5, %v3115
    %v3117 = vsub.f32 1.5, %v3116
    %v3118 = vmul.f32 %v3113, %v3117
    %vm3119 = vweird.f32 %v3060
    %vm3120 = vweird.f32 %v3113
    %vm3121 = vmor %vm3119, %vm3120
    %v3122 = vsel %vm3121, %v3113, %v3118
    %v3123 = vrsqrt.pop %v3061
    %v3124 = vmul.f32 %v3123, %v3061
    %v3125 = vmul.f32 %v3124, %v3123
    %v3126 = vmul.f32 0.5, %v3125
    %v3127 = vsub.f32 1.5, %v3126
    %v3128 = vmul.f32 %v3123, %v3127
    %vm3129 = vweird.f32 %v3061
    %vm3130 = vweird.f32 %v3123
    %vm3131 = vmor %vm3129, %vm3130
    %v3132 = vsel %vm3131, %v3123, %v3128
    %v3133 = vrsqrt.pop %v3062
    %v3134 = vmul.f32 %v3133, %v3062
    %v3135 = vmul.f32 %v3134, %v3133
    %v3136 = vmul.f32 0.5, %v3135
    %v3137 = vsub.f32 1.5, %v3136
    %v3138 = vmul.f32 %v3133, %v3137
    %vm3139 = vweird.f32 %v3062
    %vm3140 = vweird.f32 %v3133
    %vm3141 = vmor %vm3139, %vm3140
    %v3142 = vsel %vm3141, %v3133, %v3138
    %v3143 = vmul.f32 %v3047, %v3072
    %v3144 = vmul.f32 %v3048, %v3082
    %v3145 = vmul.f32 %v3049, %v3092
    %v3146 = vmul.f32 %v3050, %v3102
    %v3147 = vmul.f32 %v3051, %v3112
    %v3148 = vmul.f32 %v3052, %v3122
    %v3149 = vmul.f32 %v3053, %v3132
    %v3150 = vmul.f32 %v3054, %v3142
    %v3152 = vperm.slane %v2973, 0
    %v3154 = vmul.f32 %v3143, %v3152
    %v3155 = vmul.f32 %v3144, %v3152
    %v3156 = vmul.f32 %v3145, %v3152
    %v3157 = vmul.f32 %v3146, %v3152
    %v3158 = vmul.f32 %v3147, %v3152
    %v3159 = vmul.f32 %v3148, %v3152
    %v3160 = vmul.f32 %v3149, %v3152
    %v3161 = vmul.f32 %v3150, %v3152
    %v3163 = vperm.slane %v2974, 0
    %v3165 = vadd.f32 %v3154, %v3163
    %v3166 = vadd.f32 %v3155, %v3163
    %v3167 = vadd.f32 %v3156, %v3163
    %v3168 = vadd.f32 %v3157, %v3163
    %v3169 = vadd.f32 %v3158, %v3163
    %v3170 = vadd.f32 %v3159, %v3163
    %v3171 = vadd.f32 %v3160, %v3163
    %v3172 = vadd.f32 %v3161, %v3163
    %3173 = vst [vmem:[#allocation14] sm:$0xff] %v3165
    %3174 = vst [vmem:[#allocation14 + $0x8] sm:$0xff] %v3166
    %3175 = vst [vmem:[#allocation14 + $0x10] sm:$0xff] %v3167
    %3176 = vst [vmem:[#allocation14 + $0x18] sm:$0xff] %v3168
    %3177 = vst [vmem:[#allocation14 + $0x20] sm:$0xff] %v3169
    %3178 = vst [vmem:[#allocation14 + $0x28] sm:$0xff] %v3170
    %3179 = vst [vmem:[#allocation14 + $0x30] sm:$0xff] %v3171
    %3180 = vst [vmem:[#allocation14 + $0x38] sm:$0xff] %v3172
    // Predicated region
    $region78: #{tpu_custom_call.1} parent=1 // pred_check
      _
    $region79: #{tpu_custom_call.1} parent=1 // pred_check_branch
      %3182 = sbr.rel (0) target = $region81
    $region80: #{tpu_custom_call.1} parent=1 // pred_region
      %3184 = vsyncadd [#allocation5], 0
      %s3185 = sshll.u32 [#allocation14], 4
      %s3186 = int_to_ptr.vmem [resolvable:$true] %s3185
      %s3187 = sshll.u32 %s13, 4
      %s3188 = int_to_ptr.hbm [resolvable:$true] %s3187
      %3193 = dma.vmem_to_hbm [thread:$0]  %s3186, 1024, %s3188, [#allocation5], 128, 128, 8
    $region81: #{tpu_custom_call.1} parent=1 // pred_fallthru
      _
    // Predicated region
    $region82: #{tpu_custom_call.1} parent=1 // pred_check
      _
    $region83: #{tpu_custom_call.1} parent=1 // pred_check_branch
      %3195 = sbr.rel (0) target = $region85
    $region84: #{tpu_custom_call.1} parent=1 // pred_region
      %3197 = dma.done [#allocation5], 1024
    $region85: #{tpu_custom_call.1} parent=1 // pred_fallthru
      _
    %3198 = vsyncpa [#allocation4], 1
    %3199 = vsyncpa [#allocation7], 1
    %3200 = vsyncpa [#allocation10], 1
    %3201 = vsyncpa [#allocation13], 1
    %3202 = vsyncpa [#allocation5], 1

// kernel: tpu_custom_call.1
$region0: #{tpu_custom_call.1}
  #allocation0 [shape = 'u32[]', space=smem, size = 0x4, offset = 0x4, fixed_abs, tag = 'smem constant byte address 0x4 - core index']
  #allocation1 [shape = 'u32[72,128]{1,0:T(1,128)}', space=vmem, size = 0x9000, scoped, tag = 'internal scratch']
  #allocation2 [shape = 'bf16[64,128]{1,0:T(8,128)(2,1)}', space=vmem, size = 0x4000, scoped, tag = 'scratch operand']
  %s0 = inlined_call_operand.hbm [shape: f32[4,16,128], index: 0, kind: input, shape index: {}]
  %s1 = inlined_call_operand.hbm [shape: bf16[128,384], index: 1, kind: input, shape index: {}]
  %s2 = inlined_call_operand.hbm [shape: f32[1,384], index: 2, kind: input, shape index: {}]
  %s3 = inlined_call_operand.hbm [shape: bf16[128,128], index: 3, kind: input, shape index: {}]
  %s4 = inlined_call_operand.vmem [shape: f32[1,128], index: 4, kind: input, shape index: {}]
  %s5 = inlined_call_operand.vmem [shape: f32[1,128], index: 5, kind: input, shape index: {}]
  %s6 = inlined_call_operand.vmem [shape: f32[1,128], index: 6, kind: input, shape index: {}]
  %s7 = inlined_call_operand.hbm [shape: bf16[128,512], index: 7, kind: input, shape index: {}]
  %s8 = inlined_call_operand.vmem [shape: f32[1,512], index: 8, kind: input, shape index: {}]
  %s9 = inlined_call_operand.hbm [shape: bf16[512,128], index: 9, kind: input, shape index: {}]
  %s10 = inlined_call_operand.vmem [shape: f32[1,128], index: 10, kind: input, shape index: {}]
  %s11 = inlined_call_operand.vmem [shape: f32[1,128], index: 11, kind: input, shape index: {}]
  %s12 = inlined_call_operand.vmem [shape: f32[1,128], index: 12, kind: input, shape index: {}]
  %s13 = inlined_call_operand.hbm [shape: f32[4,16,128], index: 13, kind: output, shape index: {}]
  %s14 = sld [smem:[#allocation0]]
  $region86: #{tpu_custom_call.1} parent=0
    _
  %s16 = ssub.s32 1, %s14
  %s17 = scalar_select 0, %s16, %s14
  $region1: #{tpu_custom_call.1} parent=0
    #allocation3 [shape = 'u8[32768]{0}', space=vmem, size = 0x8000, scoped, tag = 'input window, operand 0, single buffered']
    #allocation4 [shape = 's32[1]{0}', space=sflag, size = 0x4, scoped, tag = 'scoped memory for tpu_custom_call.1']
    #allocation5 [shape = 's32[1]{0}', space=sflag, size = 0x4, scoped, tag = 'scoped memory for tpu_custom_call.1']
    #allocation6 [shape = 'u8[98304]{0}', space=vmem, size = 0x18000, scoped, tag = 'input window, operand 1, single buffered']
    #allocation7 [shape = 's32[1]{0}', space=sflag, size = 0x4, scoped, tag = 'scoped memory for tpu_custom_call.1']
    #allocation8 [shape = 'u8[1536]{0}', space=vmem, size = 0x800, scoped, tag = 'input window, operand 2, single buffered']
    #allocation9 [shape = 'u8[32768]{0}', space=vmem, size = 0x8000, scoped, tag = 'input window, operand 3, single buffered']
    #allocation10 [shape = 's32[1]{0}', space=sflag, size = 0x4, scoped, tag = 'scoped memory for tpu_custom_call.1']
    #allocation11 [shape = 'u8[131072]{0}', space=vmem, size = 0x20000, scoped, tag = 'input window, operand 7, single buffered']
    #allocation12 [shape = 'u8[131072]{0}', space=vmem, size = 0x20000, scoped, tag = 'input window, operand 9, single buffered']
    #allocation13 [shape = 's32[1]{0}', space=sflag, size = 0x4, scoped, tag = 'scoped memory for tpu_custom_call.1']
    #allocation14 [shape = 'u8[32768]{0}', space=vmem, size = 0x8000, scoped, tag = 'output window, operand 0, single buffered']
    %18 = vsyncpa [#allocation4], 0
    %19 = vsyncpa [#allocation7], 0
    %20 = vsyncpa [#allocation10], 0
    %21 = vsyncpa [#allocation13], 0
    %22 = vsyncpa [#allocation5], 0
    // Predicated region
    $region2: #{tpu_custom_call.1} parent=1 // pred_check
      _
    $region3: #{tpu_custom_call.1} parent=1 // pred_check_branch
      %24 = sbr.rel (0) target = $region5
    $region4: #{tpu_custom_call.1} parent=1 // pred_region
      %26 = vsyncadd [#allocation4], 0
      %s27 = sshll.u32 %s0, 4
      %s28 = int_to_ptr.hbm [resolvable:$true] %s27
      %s29 = sshll.u32 [#allocation3], 4
      %s30 = int_to_ptr.vmem [resolvable:$true] %s29
      %35 = dma.hbm_to_vmem [thread:$0]  %s28, 1024, %s30, [#allocation4], 128, 128, 8
    $region5: #{tpu_custom_call.1} parent=1 // pred_fallthru
      _
    // Predicated region
    $region6: #{tpu_custom_call.1} parent=1 // pred_check
      _
    $region7: #{tpu_custom_call.1} parent=1 // pred_check_branch
      %37 = sbr.rel (0) target = $region9
    $region8: #{tpu_custom_call.1} parent=1 // pred_region
      %39 = vsyncadd [#allocation7], 0
      %s40 = sshll.u32 %s1, 4
      %s41 = int_to_ptr.hbm [resolvable:$true] %s40
      %s42 = sshll.u32 [#allocation6], 4
      %s43 = int_to_ptr.vmem [resolvable:$true] %s42
      %48 = dma.hbm_to_vmem [thread:$0]  %s41, 3072, %s43, [#allocation7], 192, 192, 12
    $region9: #{tpu_custom_call.1} parent=1 // pred_fallthru
      _
    // Predicated region
    $region10: #{tpu_custom_call.1} parent=1 // pred_check
      _
    $region11: #{tpu_custom_call.1} parent=1 // pred_check_branch
      %50 = sbr.rel (0) target = $region13
    $region12: #{tpu_custom_call.1} parent=1 // pred_region
      %52 = vsyncadd [#allocation7], 0
      %s54 = sshll.u32 %s2, 4
      %s55 = int_to_ptr.hbm [resolvable:$true] %s54
      %s56 = sshll.u32 [#allocation8], 4
      %s57 = int_to_ptr.vmem [resolvable:$true] %s56
      %59 = dma.hbm_to_vmem [thread:$0]  %s55, 48, %s57, [#allocation7]
    $region13: #{tpu_custom_call.1} parent=1 // pred_fallthru
      _
    // Predicated region
    $region14: #{tpu_custom_call.1} parent=1 // pred_check
      _
    $region15: #{tpu_custom_call.1} parent=1 // pred_check_branch
      %61 = sbr.rel (0) target = $region17
    $region16: #{tpu_custom_call.1} parent=1 // pred_region
      %63 = vsyncadd [#allocation10], 0
      %s64 = sshll.u32 %s3, 4
      %s65 = int_to_ptr.hbm [resolvable:$true] %s64
      %s66 = sshll.u32 [#allocation9], 4
      %s67 = int_to_ptr.vmem [resolvable:$true] %s66
      %72 = dma.hbm_to_vmem [thread:$0]  %s65, 1024, %s67, [#allocation10], 64, 64, 4
    $region17: #{tpu_custom_call.1} parent=1 // pred_fallthru
      _
    // Predicated region
    $region18: #{tpu_custom_call.1} parent=1 // pred_check
      _
    $region19: #{tpu_custom_call.1} parent=1 // pred_check_branch
      %74 = sbr.rel (0) target = $region21
    $region20: #{tpu_custom_call.1} parent=1 // pred_region
      _
    $region21: #{tpu_custom_call.1} parent=1 // pred_fallthru
      _
    // Predicated region
    $region22: #{tpu_custom_call.1} parent=1 // pred_check
      _
    $region23: #{tpu_custom_call.1} parent=1 // pred_check_branch
      %76 = sbr.rel (0) target = $region25
    $region24: #{tpu_custom_call.1} parent=1 // pred_region
      _
    $region25: #{tpu_custom_call.1} parent=1 // pred_fallthru
      _
    // Predicated region
    $region26: #{tpu_custom_call.1} parent=1 // pred_check
      _
    $region27: #{tpu_custom_call.1} parent=1 // pred_check_branch
      %78 = sbr.rel (0) target = $region29
    $region28: #{tpu_custom_call.1} parent=1 // pred_region
      _
    $region29: #{tpu_custom_call.1} parent=1 // pred_fallthru
      _
    // Predicated region
    $region30: #{tpu_custom_call.1} parent=1 // pred_check
      _
    $region31: #{tpu_custom_call.1} parent=1 // pred_check_branch
      %80 = sbr.rel (0) target = $region33
    $region32: #{tpu_custom_call.1} parent=1 // pred_region
      %82 = vsyncadd [#allocation10], 0
      %s83 = sshll.u32 %s7, 4
      %s84 = int_to_ptr.hbm [resolvable:$true] %s83
      %s85 = sshll.u32 [#allocation11], 4
      %s86 = int_to_ptr.vmem [resolvable:$true] %s85
      %91 = dma.hbm_to_vmem [thread:$0]  %s84, 4096, %s86, [#allocation10], 256, 256, 16
    $region33: #{tpu_custom_call.1} parent=1 // pred_fallthru
      _
    // Predicated region
    $region34: #{tpu_custom_call.1} parent=1 // pred_check
      _
    $region35: #{tpu_custom_call.1} parent=1 // pred_check_branch
      %93 = sbr.rel (0) target = $region37
    $region36: #{tpu_custom_call.1} parent=1 // pred_region
      _
    $region37: #{tpu_custom_call.1} parent=1 // pred_fallthru
      _
    // Predicated region
    $region38: #{tpu_custom_call.1} parent=1 // pred_check
      _
    $region39: #{tpu_custom_call.1} parent=1 // pred_check_branch
      %95 = sbr.rel (0) target = $region41
    $region40: #{tpu_custom_call.1} parent=1 // pred_region
      %97 = vsyncadd [#allocation13], 0
      %s98 = sshll.u32 %s9, 4
      %s99 = int_to_ptr.hbm [resolvable:$true] %s98
      %s100 = sshll.u32 [#allocation12], 4
      %s101 = int_to_ptr.vmem [resolvable:$true] %s100
      %106 = dma.hbm_to_vmem [thread:$0]  %s99, 4096, %s101, [#allocation13], 64, 64, 4
    $region41: #{tpu_custom_call.1} parent=1 // pred_fallthru
      _
    // Predicated region
    $region42: #{tpu_custom_call.1} parent=1 // pred_check
      _
    $region43: #{tpu_custom_call.1} parent=1 // pred_check_branch
      %108 = sbr.rel (0) target = $region45
    $region44: #{tpu_custom_call.1} parent=1 // pred_region
      _
    $region45: #{tpu_custom_call.1} parent=1 // pred_fallthru
      _
    // Predicated region
    $region46: #{tpu_custom_call.1} parent=1 // pred_check
      _
    $region47: #{tpu_custom_call.1} parent=1 // pred_check_branch
      %110 = sbr.rel (0) target = $region49
    $region48: #{tpu_custom_call.1} parent=1 // pred_region
      _
    $region49: #{tpu_custom_call.1} parent=1 // pred_fallthru
      _
    // Predicated region
    $region50: #{tpu_custom_call.1} parent=1 // pred_check
      _
    $region51: #{tpu_custom_call.1} parent=1 // pred_check_branch
      %112 = sbr.rel (0) target = $region53
    $region52: #{tpu_custom_call.1} parent=1 // pred_region
      _
    $region53: #{tpu_custom_call.1} parent=1 // pred_fallthru
      _
    // Predicated region
    $region54: #{tpu_custom_call.1} parent=1 // pred_check
      _
    $region55: #{tpu_custom_call.1} parent=1 // pred_check_branch
      %114 = sbr.rel (0) target = $region57
    $region56: #{tpu_custom_call.1} parent=1 // pred_region
      %116 = dma.done [#allocation4], 1024
    $region57: #{tpu_custom_call.1} parent=1 // pred_fallthru
      _
    // Predicated region
    $region58: #{tpu_custom_call.1} parent=1 // pred_check
      _
    $region59: #{tpu_custom_call.1} parent=1 // pred_check_branch
      %118 = sbr.rel (0) target = $region61
    $region60: #{tpu_custom_call.1} parent=1 // pred_region
      %120 = dma.done [#allocation7], 3072
    $region61: #{tpu_custom_call.1} parent=1 // pred_fallthru
      _
    // Predicated region
    $region62: #{tpu_custom_call.1} parent=1 // pred_check
      _
    $region63: #{tpu_custom_call.1} parent=1 // pred_check_branch
      %122 = sbr.rel (0) target = $region65
    $region64: #{tpu_custom_call.1} parent=1 // pred_region
      %124 = dma.done [#allocation7], 48
    $region65: #{tpu_custom_call.1} parent=1 // pred_fallthru
      _
    // Predicated region
    $region66: #{tpu_custom_call.1} parent=1 // pred_check
      _
    $region67: #{tpu_custom_call.1} parent=1 // pred_check_branch
      %126 = sbr.rel (0) target = $region69
    $region68: #{tpu_custom_call.1} parent=1 // pred_region
      %128 = dma.done [#allocation10], 1024
    $region69: #{tpu_custom_call.1} parent=1 // pred_fallthru
      _
    // Predicated region
    $region70: #{tpu_custom_call.1} parent=1 // pred_check
      _
    $region71: #{tpu_custom_call.1} parent=1 // pred_check_branch
      %130 = sbr.rel (0) target = $region73
    $region72: #{tpu_custom_call.1} parent=1 // pred_region
      %132 = dma.done [#allocation10], 4096
    $region73: #{tpu_custom_call.1} parent=1 // pred_fallthru
      _
    // Predicated region
    $region74: #{tpu_custom_call.1} parent=1 // pred_check
      _
    $region75: #{tpu_custom_call.1} parent=1 // pred_check_branch
      %134 = sbr.rel (0) target = $region77
    $region76: #{tpu_custom_call.1} parent=1 // pred_region
      %136 = dma.done [#allocation13], 4096
    $region77: #{tpu_custom_call.1} parent=1 // pred_fallthru
      _
    %v138 = vld [vmem:[#allocation3] sm:$0xff]
    %v139 = vld [vmem:[#allocation3 + $0x8] sm:$0xff]
    %v140 = vld [vmem:[#allocation3 + $0x10] sm:$0xff]
    %v141 = vld [vmem:[#allocation3 + $0x18] sm:$0xff]
    %v142 = vld [vmem:[#allocation3 + $0x20] sm:$0xff]
    %v143 = vld [vmem:[#allocation3 + $0x28] sm:$0xff]
    %v144 = vld [vmem:[#allocation3 + $0x30] sm:$0xff]
    %v145 = vld [vmem:[#allocation3 + $0x38] sm:$0xff]
    %v146 = vpack.c.bf16 %v139, %v138
    %v147 = vpack.c.bf16 %v141, %v140
    %v148 = vpack.c.bf16 %v143, %v142
    %v149 = vpack.c.bf16 %v145, %v144
    %v150 = vld [vmem:[#allocation6] sm:$0xff]
    %v151 = vld [vmem:[#allocation6 + $0x8] sm:$0xf]
    %v152 = vld [vmem:[#allocation6 + $0xc] sm:$0xff]
    %v153 = vld [vmem:[#allocation6 + $0x14] sm:$0xf]
    %v154 = vld [vmem:[#allocation6 + $0x18] sm:$0xff]
    %v155 = vld [vmem:[#allocation6 + $0x20] sm:$0xf]
    %v156 = vld [vmem:[#allocation6 + $0x24] sm:$0xff]
    %v157 = vld [vmem:[#allocation6 + $0x2c] sm:$0xf]
    %v158 = vld [vmem:[#allocation6 + $0x30] sm:$0xff]
    %v159 = vld [vmem:[#allocation6 + $0x38] sm:$0xf]
    %v160 = vld [vmem:[#allocation6 + $0x3c] sm:$0xff]
    %v161 = vld [vmem:[#allocation6 + $0x44] sm:$0xf]
    %v162 = vld [vmem:[#allocation6 + $0x48] sm:$0xff]
    %v163 = vld [vmem:[#allocation6 + $0x50] sm:$0xf]
    %v164 = vld [vmem:[#allocation6 + $0x54] sm:$0xff]
    %v165 = vld [vmem:[#allocation6 + $0x5c] sm:$0xf]
    %v166 = vld [vmem:[#allocation6 + $0x60] sm:$0xff]
    %v167 = vld [vmem:[#allocation6 + $0x68] sm:$0xf]
    %v168 = vld [vmem:[#allocation6 + $0x6c] sm:$0xff]
    %v169 = vld [vmem:[#allocation6 + $0x74] sm:$0xf]
    %v170 = vld [vmem:[#allocation6 + $0x78] sm:$0xff]
    %v171 = vld [vmem:[#allocation6 + $0x80] sm:$0xf]
    %v172 = vld [vmem:[#allocation6 + $0x84] sm:$0xff]
    %v173 = vld [vmem:[#allocation6 + $0x8c] sm:$0xf]
    %v174 = vld [vmem:[#allocation6 + $0x90] sm:$0xff]
    %v175 = vld [vmem:[#allocation6 + $0x98] sm:$0xf]
    %v176 = vld [vmem:[#allocation6 + $0x9c] sm:$0xff]
    %v177 = vld [vmem:[#allocation6 + $0xa4] sm:$0xf]
    %v178 = vld [vmem:[#allocation6 + $0xa8] sm:$0xff]
    %v179 = vld [vmem:[#allocation6 + $0xb0] sm:$0xf]
    %v180 = vld [vmem:[#allocation6 + $0xb4] sm:$0xff]
    %v181 = vld [vmem:[#allocation6 + $0xbc] sm:$0xf]
    %v182 = vld [vmem:[#allocation8] sm:$0x7]
    %v184 = vperm.slane %v182, 0
    %v185 = vperm.slane %v182, 1
    %v186 = vperm.slane %v182, 2
    %v222 = vunpack.c.l.b16 %v150
    %v223 = vunpack.c.h.b16 %v150
    %v224 = vunpack.c.l.b16 %v151
    %v225 = vunpack.c.l.b16 %v152
    %v226 = vunpack.c.h.b16 %v152
    %v227 = vunpack.c.l.b16 %v153
    %v228 = vunpack.c.l.b16 %v154
    %v229 = vunpack.c.h.b16 %v154
    %v230 = vunpack.c.l.b16 %v155
    %v231 = vunpack.c.l.b16 %v156
    %v232 = vunpack.c.h.b16 %v156
    %v233 = vunpack.c.l.b16 %v157
    %v234 = vunpack.c.l.b16 %v158
    %v235 = vunpack.c.h.b16 %v158
    %v236 = vunpack.c.l.b16 %v159
    %v237 = vunpack.c.l.b16 %v160
    %v238 = vunpack.c.h.b16 %v160
    %v239 = vunpack.c.l.b16 %v161
    %v240 = vunpack.c.l.b16 %v162
    %v241 = vunpack.c.h.b16 %v162
    %v242 = vunpack.c.l.b16 %v163
    %v243 = vunpack.c.l.b16 %v164
    %v244 = vunpack.c.h.b16 %v164
    %v245 = vunpack.c.l.b16 %v165
    %v246 = vunpack.c.l.b16 %v166
    %v247 = vunpack.c.h.b16 %v166
    %v248 = vunpack.c.l.b16 %v167
    %v249 = vunpack.c.l.b16 %v168
    %v250 = vunpack.c.h.b16 %v168
    %v251 = vunpack.c.l.b16 %v169
    %v252 = vunpack.c.l.b16 %v170
    %v253 = vunpack.c.h.b16 %v170
    %v254 = vunpack.c.l.b16 %v171
    %v255 = vunpack.c.l.b16 %v172
    %v256 = vunpack.c.h.b16 %v172
    %v257 = vunpack.c.l.b16 %v173
    %v258 = vunpack.c.l.b16 %v174
    %v259 = vunpack.c.h.b16 %v174
    %v260 = vunpack.c.l.b16 %v175
    %v261 = vunpack.c.l.b16 %v176
    %v262 = vunpack.c.h.b16 %v176
    %v263 = vunpack.c.l.b16 %v177
    %v264 = vunpack.c.l.b16 %v178
    %v265 = vunpack.c.h.b16 %v178
    %v266 = vunpack.c.l.b16 %v179
    %v267 = vunpack.c.l.b16 %v180
    %v268 = vunpack.c.h.b16 %v180
    %v269 = vunpack.c.l.b16 %v181
    %v270 = vpack.c.b16 %v225, %v222
    %v271 = vpack.c.b16 %v226, %v223
    %v272 = vpack.c.b16 %v227, %v224
    %v273 = vpack.c.b16 %v231, %v228
    %v274 = vpack.c.b16 %v232, %v229
    %v275 = vpack.c.b16 %v233, %v230
    %v276 = vpack.c.b16 %v237, %v234
    %v277 = vpack.c.b16 %v238, %v235
    %v278 = vpack.c.b16 %v239, %v236
    %v279 = vpack.c.b16 %v243, %v240
    %v280 = vpack.c.b16 %v244, %v241
    %v281 = vpack.c.b16 %v245, %v242
    %v282 = vpack.c.b16 %v249, %v246
    %v283 = vpack.c.b16 %v250, %v247
    %v284 = vpack.c.b16 %v251, %v248
    %v285 = vpack.c.b16 %v255, %v252
    %v286 = vpack.c.b16 %v256, %v253
    %v287 = vpack.c.b16 %v257, %v254
    %v288 = vpack.c.b16 %v261, %v258
    %v289 = vpack.c.b16 %v262, %v259
    %v290 = vpack.c.b16 %v263, %v260
    %v291 = vpack.c.b16 %v267, %v264
    %v292 = vpack.c.b16 %v268, %v265
    %v293 = vpack.c.b16 %v269, %v266
    %318 = vmatpush.bf16.msra.mxu0 %v291
    %319 = vmatpush.bf16.msra.mxu0 %v288
    %320 = vmatpush.bf16.msra.mxu0 %v285
    %321 = vmatpush.bf16.msra.mxu0 %v282
    %322 = vmatpush.bf16.msra.mxu0 %v279
    %323 = vmatpush.bf16.msra.mxu0 %v276
    %324 = vmatpush.bf16.msra.mxu0 %v273
    %325 = vmatpush.bf16.msra.mxu0 %v270
    %326 = vmatmul.bf16.gmra.mxu0 %v146
    %v327 = vpop.f32.mrf.mxu0
    %v328 = vadd.f32 %v184, %v327
    %v329 = vpop.f32.mrf.mxu0
    %v330 = vadd.f32 %v184, %v329
    %331 = vmatmul.bf16.gmra.mxu0 %v147
    %v332 = vpop.f32.mrf.mxu0
    %v333 = vadd.f32 %v184, %v332
    %v334 = vpop.f32.mrf.mxu0
    %v335 = vadd.f32 %v184, %v334
    %336 = vmatmul.bf16.gmra.mxu0 %v148
    %v337 = vpop.f32.mrf.mxu0
    %v338 = vadd.f32 %v184, %v337
    %v339 = vpop.f32.mrf.mxu0
    %v340 = vadd.f32 %v184, %v339
    %341 = vmatmul.bf16.gmra.mxu0 %v149
    %v342 = vpop.f32.mrf.mxu0
    %v343 = vadd.f32 %v184, %v342
    %v344 = vpop.f32.mrf.mxu0
    %v345 = vadd.f32 %v184, %v344
    %346 = vdwg.mxu0
    %347 = vmatpush.bf16.msra.mxu0 %v292
    %348 = vmatpush.bf16.msra.mxu0 %v289
    %349 = vmatpush.bf16.msra.mxu0 %v286
    %350 = vmatpush.bf16.msra.mxu0 %v283
    %351 = vmatpush.bf16.msra.mxu0 %v280
    %352 = vmatpush.bf16.msra.mxu0 %v277
    %353 = vmatpush.bf16.msra.mxu0 %v274
    %354 = vmatpush.bf16.msra.mxu0 %v271
    %355 = vmatmul.bf16.gmra.mxu0 %v146
    %v356 = vpop.f32.mrf.mxu0
    %v357 = vadd.f32 %v185, %v356
    %v358 = vpop.f32.mrf.mxu0
    %v359 = vadd.f32 %v185, %v358
    %360 = vmatmul.bf16.gmra.mxu0 %v147
    %v361 = vpop.f32.mrf.mxu0
    %v362 = vadd.f32 %v185, %v361
    %v363 = vpop.f32.mrf.mxu0
    %v364 = vadd.f32 %v185, %v363
    %365 = vmatmul.bf16.gmra.mxu0 %v148
    %v366 = vpop.f32.mrf.mxu0
    %v367 = vadd.f32 %v185, %v366
    %v368 = vpop.f32.mrf.mxu0
    %v369 = vadd.f32 %v185, %v368
    %370 = vmatmul.bf16.gmra.mxu0 %v149
    %v371 = vpop.f32.mrf.mxu0
    %v372 = vadd.f32 %v185, %v371
    %v373 = vpop.f32.mrf.mxu0
    %v374 = vadd.f32 %v185, %v373
    %375 = vdwg.mxu0
    %376 = vmatpush.bf16.msra.mxu0 %v293
    %377 = vmatpush.bf16.msra.mxu0 %v290
    %378 = vmatpush.bf16.msra.mxu0 %v287
    %379 = vmatpush.bf16.msra.mxu0 %v284
    %380 = vmatpush.bf16.msra.mxu0 %v281
    %381 = vmatpush.bf16.msra.mxu0 %v278
    %382 = vmatpush.bf16.msra.mxu0 %v275
    %383 = vmatpush.bf16.msra.mxu0 %v272
    %384 = vmatmul.bf16.gmra.mxu0 %v146
    %v385 = vpop.f32.mrf.mxu0
    %v386 = vadd.f32 %v186, %v385
    %v387 = vpop.f32.mrf.mxu0
    %v388 = vadd.f32 %v186, %v387
    %389 = vmatmul.bf16.gmra.mxu0 %v147
    %v390 = vpop.f32.mrf.mxu0
    %v391 = vadd.f32 %v186, %v390
    %v392 = vpop.f32.mrf.mxu0
    %v393 = vadd.f32 %v186, %v392
    %394 = vmatmul.bf16.gmra.mxu0 %v148
    %v395 = vpop.f32.mrf.mxu0
    %v396 = vadd.f32 %v186, %v395
    %v397 = vpop.f32.mrf.mxu0
    %v398 = vadd.f32 %v186, %v397
    %399 = vmatmul.bf16.gmra.mxu0 %v149
    %v400 = vpop.f32.mrf.mxu0
    %v401 = vadd.f32 %v186, %v400
    %v402 = vpop.f32.mrf.mxu0
    %v403 = vadd.f32 %v186, %v402
    %404 = vdwg.mxu0
    %v405 = vpack.c.bf16 %v357, %v328
    %v406 = vpack.c.bf16 %v386, %v386
    %v407 = vpack.c.bf16 %v359, %v330
    %v408 = vpack.c.bf16 %v388, %v388
    %v409 = vpack.c.bf16 %v362, %v333
    %v410 = vpack.c.bf16 %v391, %v391
    %v411 = vpack.c.bf16 %v364, %v335
    %v412 = vpack.c.bf16 %v393, %v393
    %v413 = vpack.c.bf16 %v367, %v338
    %v414 = vpack.c.bf16 %v396, %v396
    %v415 = vpack.c.bf16 %v369, %v340
    %v416 = vpack.c.bf16 %v398, %v398
    %v417 = vpack.c.bf16 %v372, %v343
    %v418 = vpack.c.bf16 %v401, %v401
    %v419 = vpack.c.bf16 %v374, %v345
    %v420 = vpack.c.bf16 %v403, %v403
    %v429 = vrot.slane %v405, 4
    %v430 = vrot.slane %v407, 4
    %v431 = vrot.slane %v409, 4
    %v432 = vrot.slane %v411, 4
    %v433 = vrot.slane %v413, 4
    %v434 = vrot.slane %v415, 4
    %v435 = vrot.slane %v417, 4
    %v436 = vrot.slane %v419, 4
    %v437 = vunpack.c.l.b16 %v405
    %v438 = vunpack.c.l.b16 %v407
    %v439 = vpack.c.b16 %v438, %v437
    %v440 = vunpack.c.l.b16 %v429
    %v441 = vunpack.c.l.b16 %v430
    %v442 = vpack.c.b16 %v441, %v440
    %vm443 = vcmask 261120
    %v445 = vsel %vm443, %v439, 0
    %v448 = vsel %vm443, %v442, 0
    %450 = vmatpush.bf16.xpose.msra.mxu0 0
    %451 = vmatpush.bf16.xpose.msra.mxu0 0
    %452 = vmatpush.bf16.xpose.msra.mxu0 0
    %453 = vmatpush.bf16.xpose.msra.mxu0 0
    %454 = vmatpush.bf16.xpose.msra.mxu0 0
    %455 = vmatpush.bf16.xpose.msra.mxu0 0
    %456 = vmatpush.bf16.xpose.msra.mxu0 0
    %457 = vmatpush.bf16.xpose.msra.mxu0 %v448
    %458 = vmatmul.bf16.gmra.mxu0 %v445
    %v459 = vpop.f32.mrf.mxu0
    %v460 = vadd.f32 0.0, %v459
    %v461 = vpop.f32.mrf.mxu0
    %v462 = vadd.f32 0.0, %v461
    %463 = vdwg.mxu0
    %v464 = vunpack.c.l.b16 %v409
    %v465 = vunpack.c.l.b16 %v411
    %v466 = vpack.c.b16 %v465, %v464
    %v467 = vunpack.c.l.b16 %v431
    %v468 = vunpack.c.l.b16 %v432
    %v469 = vpack.c.b16 %v468, %v467
    %v471 = vsel %vm443, %v466, 0
    %v474 = vsel %vm443, %v469, 0
    %476 = vmatpush.bf16.xpose.msra.mxu0 0
    %477 = vmatpush.bf16.xpose.msra.mxu0 0
    %478 = vmatpush.bf16.xpose.msra.mxu0 0
    %479 = vmatpush.bf16.xpose.msra.mxu0 0
    %480 = vmatpush.bf16.xpose.msra.mxu0 0
    %481 = vmatpush.bf16.xpose.msra.mxu0 0
    %482 = vmatpush.bf16.xpose.msra.mxu0 0
    %483 = vmatpush.bf16.xpose.msra.mxu0 %v474
    %484 = vmatmul.bf16.gmra.mxu0 %v471
    %v485 = vpop.f32.mrf.mxu0
    %v486 = vadd.f32 0.0, %v485
    %v487 = vpop.f32.mrf.mxu0
    %v488 = vadd.f32 0.0, %v487
    %489 = vdwg.mxu0
    %v490 = vunpack.c.l.b16 %v413
    %v491 = vunpack.c.l.b16 %v415
    %v492 = vpack.c.b16 %v491, %v490
    %v493 = vunpack.c.l.b16 %v433
    %v494 = vunpack.c.l.b16 %v434
    %v495 = vpack.c.b16 %v494, %v493
    %v497 = vsel %vm443, %v492, 0
    %v500 = vsel %vm443, %v495, 0
    %502 = vmatpush.bf16.xpose.msra.mxu0 0
    %503 = vmatpush.bf16.xpose.msra.mxu0 0
    %504 = vmatpush.bf16.xpose.msra.mxu0 0
    %505 = vmatpush.bf16.xpose.msra.mxu0 0
    %506 = vmatpush.bf16.xpose.msra.mxu0 0
    %507 = vmatpush.bf16.xpose.msra.mxu0 0
    %508 = vmatpush.bf16.xpose.msra.mxu0 0
    %509 = vmatpush.bf16.xpose.msra.mxu0 %v500
    %510 = vmatmul.bf16.gmra.mxu0 %v497
    %v511 = vpop.f32.mrf.mxu0
    %v512 = vadd.f32 0.0, %v511
    %v513 = vpop.f32.mrf.mxu0
    %v514 = vadd.f32 0.0, %v513
    %515 = vdwg.mxu0
    %v516 = vunpack.c.l.b16 %v417
    %v517 = vunpack.c.l.b16 %v419
    %v518 = vpack.c.b16 %v517, %v516
    %v519 = vunpack.c.l.b16 %v435
    %v520 = vunpack.c.l.b16 %v436
    %v521 = vpack.c.b16 %v520, %v519
    %v523 = vsel %vm443, %v518, 0
    %v526 = vsel %vm443, %v521, 0
    %528 = vmatpush.bf16.xpose.msra.mxu0 0
    %529 = vmatpush.bf16.xpose.msra.mxu0 0
    %530 = vmatpush.bf16.xpose.msra.mxu0 0
    %531 = vmatpush.bf16.xpose.msra.mxu0 0
    %532 = vmatpush.bf16.xpose.msra.mxu0 0
    %533 = vmatpush.bf16.xpose.msra.mxu0 0
    %534 = vmatpush.bf16.xpose.msra.mxu0 0
    %535 = vmatpush.bf16.xpose.msra.mxu0 %v526
    %536 = vmatmul.bf16.gmra.mxu0 %v523
    %v537 = vpop.f32.mrf.mxu0
    %v538 = vadd.f32 0.0, %v537
    %v539 = vpop.f32.mrf.mxu0
    %v540 = vadd.f32 0.0, %v539
    %541 = vdwg.mxu0
    %vm542 = vcmask 130048
    %v543 = vsel %vm542, %v460, -inf
    %544 = vmax.xlane.f32.xlu0 %v543
    %v545 = vpop.xlane.xlu0 %544
    %v546 = vsel %vm542, %v462, -inf
    %547 = vmax.xlane.f32.xlu0 %v546
    %v548 = vpop.xlane.xlu0 %547
    %v549 = vsel %vm542, %v486, -inf
    %550 = vmax.xlane.f32.xlu0 %v549
    %v551 = vpop.xlane.xlu0 %550
    %v552 = vsel %vm542, %v488, -inf
    %553 = vmax.xlane.f32.xlu0 %v552
    %v554 = vpop.xlane.xlu0 %553
    %v555 = vsel %vm542, %v512, -inf
    %556 = vmax.xlane.f32.xlu0 %v555
    %v557 = vpop.xlane.xlu0 %556
    %v558 = vsel %vm542, %v514, -inf
    %559 = vmax.xlane.f32.xlu0 %v558
    %v560 = vpop.xlane.xlu0 %559
    %v561 = vsel %vm542, %v538, -inf
    %562 = vmax.xlane.f32.xlu0 %v561
    %v563 = vpop.xlane.xlu0 %562
    %v564 = vsel %vm542, %v540, -inf
    %565 = vmax.xlane.f32.xlu0 %v564
    %v566 = vpop.xlane.xlu0 %565
    %v567 = vsub.f32 %v460, %v545
    %v568 = vsub.f32 %v462, %v548
    %v569 = vsub.f32 %v486, %v551
    %v570 = vsub.f32 %v488, %v554
    %v571 = vsub.f32 %v512, %v557
    %v572 = vsub.f32 %v514, %v560
    %v573 = vsub.f32 %v538, %v563
    %v574 = vsub.f32 %v540, %v566
    %v575 = vmul.f32 %v567, 1.442695
    %v576 = vpow.pop %v575
    %v577 = vmul.f32 %v568, 1.442695
    %v578 = vpow.pop %v577
    %v579 = vmul.f32 %v569, 1.442695
    %v580 = vpow.pop %v579
    %v581 = vmul.f32 %v570, 1.442695
    %v582 = vpow.pop %v581
    %v583 = vmul.f32 %v571, 1.442695
    %v584 = vpow.pop %v583
    %v585 = vmul.f32 %v572, 1.442695
    %v586 = vpow.pop %v585
    %v587 = vmul.f32 %v573, 1.442695
    %v588 = vpow.pop %v587
    %v589 = vmul.f32 %v574, 1.442695
    %v590 = vpow.pop %v589
    %v591 = vsel %vm542, %v576, 0.0
    %592 = vadd.xlane.f32.xlu0 %v591
    %v593 = vpop.xlane.xlu0 %592
    %v594 = vsel %vm542, %v578, 0.0
    %595 = vadd.xlane.f32.xlu0 %v594
    %v596 = vpop.xlane.xlu0 %595
    %v597 = vsel %vm542, %v580, 0.0
    %598 = vadd.xlane.f32.xlu0 %v597
    %v599 = vpop.xlane.xlu0 %598
    %v600 = vsel %vm542, %v582, 0.0
    %601 = vadd.xlane.f32.xlu0 %v600
    %v602 = vpop.xlane.xlu0 %601
    %v603 = vsel %vm542, %v584, 0.0
    %604 = vadd.xlane.f32.xlu0 %v603
    %v605 = vpop.xlane.xlu0 %604
    %v606 = vsel %vm542, %v586, 0.0
    %607 = vadd.xlane.f32.xlu0 %v606
    %v608 = vpop.xlane.xlu0 %607
    %v609 = vsel %vm542, %v588, 0.0
    %610 = vadd.xlane.f32.xlu0 %v609
    %v611 = vpop.xlane.xlu0 %610
    %v612 = vsel %vm542, %v590, 0.0
    %613 = vadd.xlane.f32.xlu0 %v612
    %v614 = vpop.xlane.xlu0 %613
    %v615 = vrcp.pop %v593
    %v616 = vrcp.pop %v596
    %v617 = vrcp.pop %v599
    %v618 = vrcp.pop %v602
    %v619 = vrcp.pop %v605
    %v620 = vrcp.pop %v608
    %v621 = vrcp.pop %v611
    %v622 = vrcp.pop %v614
    %v623 = vmul.f32 %v576, %v615
    %v624 = vmul.f32 %v578, %v616
    %v625 = vmul.f32 %v580, %v617
    %v626 = vmul.f32 %v582, %v618
    %v627 = vmul.f32 %v584, %v619
    %v628 = vmul.f32 %v586, %v620
    %v629 = vmul.f32 %v588, %v621
    %v630 = vmul.f32 %v590, %v622
    %v631 = vpack.c.bf16 %v623, %v623
    %v632 = vpack.c.bf16 %v624, %v624
    %v633 = vpack.c.bf16 %v625, %v625
    %v634 = vpack.c.bf16 %v626, %v626
    %v635 = vpack.c.bf16 %v627, %v627
    %v636 = vpack.c.bf16 %v628, %v628
    %v637 = vpack.c.bf16 %v629, %v629
    %v638 = vpack.c.bf16 %v630, %v630
    %v641 = vunpack.c.l.b16 %v631
    %v642 = vunpack.c.l.b16 %v632
    %v643 = vpack.c.b16 %v642, %v641
    %v646 = vunpack.c.l.b16 %v406
    %v647 = vunpack.c.l.b16 %v408
    %v648 = vpack.c.b16 %v647, %v646
    %v651 = vsel %vm542, %v643, 0
    %653 = vmatpush.bf16.msra.mxu0 0
    %654 = vmatpush.bf16.msra.mxu0 0
    %655 = vmatpush.bf16.msra.mxu0 0
    %656 = vmatpush.bf16.msra.mxu0 0
    %657 = vmatpush.bf16.msra.mxu0 0
    %658 = vmatpush.bf16.msra.mxu0 0
    %659 = vmatpush.bf16.msra.mxu0 0
    %660 = vmatpush.bf16.msra.mxu0 %v648
    %661 = vmatmul.bf16.gmra.mxu0 %v651
    %v662 = vpop.f32.mrf.mxu0
    %v663 = vadd.f32 0.0, %v662
    %v664 = vpop.f32.mrf.mxu0
    %v665 = vadd.f32 0.0, %v664
    %666 = vdwg.mxu0
    %v669 = vunpack.c.l.b16 %v633
    %v670 = vunpack.c.l.b16 %v634
    %v671 = vpack.c.b16 %v670, %v669
    %v674 = vunpack.c.l.b16 %v410
    %v675 = vunpack.c.l.b16 %v412
    %v676 = vpack.c.b16 %v675, %v674
    %v679 = vsel %vm542, %v671, 0
    %681 = vmatpush.bf16.msra.mxu0 0
    %682 = vmatpush.bf16.msra.mxu0 0
    %683 = vmatpush.bf16.msra.mxu0 0
    %684 = vmatpush.bf16.msra.mxu0 0
    %685 = vmatpush.bf16.msra.mxu0 0
    %686 = vmatpush.bf16.msra.mxu0 0
    %687 = vmatpush.bf16.msra.mxu0 0
    %688 = vmatpush.bf16.msra.mxu0 %v676
    %689 = vmatmul.bf16.gmra.mxu0 %v679
    %v690 = vpop.f32.mrf.mxu0
    %v691 = vadd.f32 0.0, %v690
    %v692 = vpop.f32.mrf.mxu0
    %v693 = vadd.f32 0.0, %v692
    %694 = vdwg.mxu0
    %v697 = vunpack.c.l.b16 %v635
    %v698 = vunpack.c.l.b16 %v636
    %v699 = vpack.c.b16 %v698, %v697
    %v702 = vunpack.c.l.b16 %v414
    %v703 = vunpack.c.l.b16 %v416
    %v704 = vpack.c.b16 %v703, %v702
    %v707 = vsel %vm542, %v699, 0
    %709 = vmatpush.bf16.msra.mxu0 0
    %710 = vmatpush.bf16.msra.mxu0 0
    %711 = vmatpush.bf16.msra.mxu0 0
    %712 = vmatpush.bf16.msra.mxu0 0
    %713 = vmatpush.bf16.msra.mxu0 0
    %714 = vmatpush.bf16.msra.mxu0 0
    %715 = vmatpush.bf16.msra.mxu0 0
    %716 = vmatpush.bf16.msra.mxu0 %v704
    %717 = vmatmul.bf16.gmra.mxu0 %v707
    %v718 = vpop.f32.mrf.mxu0
    %v719 = vadd.f32 0.0, %v718
    %v720 = vpop.f32.mrf.mxu0
    %v721 = vadd.f32 0.0, %v720
    %722 = vdwg.mxu0
    %v725 = vunpack.c.l.b16 %v637
    %v726 = vunpack.c.l.b16 %v638
    %v727 = vpack.c.b16 %v726, %v725
    %v730 = vunpack.c.l.b16 %v418
    %v731 = vunpack.c.l.b16 %v420
    %v732 = vpack.c.b16 %v731, %v730
    %v735 = vsel %vm542, %v727, 0
    %737 = vmatpush.bf16.msra.mxu0 0
    %738 = vmatpush.bf16.msra.mxu0 0
    %739 = vmatpush.bf16.msra.mxu0 0
    %740 = vmatpush.bf16.msra.mxu0 0
    %741 = vmatpush.bf16.msra.mxu0 0
    %742 = vmatpush.bf16.msra.mxu0 0
    %743 = vmatpush.bf16.msra.mxu0 0
    %744 = vmatpush.bf16.msra.mxu0 %v732
    %745 = vmatmul.bf16.gmra.mxu0 %v735
    %v746 = vpop.f32.mrf.mxu0
    %v747 = vadd.f32 0.0, %v746
    %v748 = vpop.f32.mrf.mxu0
    %v749 = vadd.f32 0.0, %v748
    %750 = vdwg.mxu0
    %v751 = vpack.c.bf16 %v663, %v663
    %v752 = vpack.c.bf16 %v665, %v665
    %v753 = vpack.c.bf16 %v691, %v691
    %v754 = vpack.c.bf16 %v693, %v693
    %v755 = vpack.c.bf16 %v719, %v719
    %v756 = vpack.c.bf16 %v721, %v721
    %v757 = vpack.c.bf16 %v747, %v747
    %v758 = vpack.c.bf16 %v749, %v749
    %vm759 = vcmask 257024
    %760 = vst.msk [vmem:[#allocation2] sm:$0xf] %vm759, %v751
    %761 = vst.msk [vmem:[#allocation2 + $0x4] sm:$0xf] %vm759, %v752
    %762 = vst.msk [vmem:[#allocation2 + $0x8] sm:$0xf] %vm759, %v753
    %763 = vst.msk [vmem:[#allocation2 + $0xc] sm:$0xf] %vm759, %v754
    %764 = vst.msk [vmem:[#allocation2 + $0x10] sm:$0xf] %vm759, %v755
    %765 = vst.msk [vmem:[#allocation2 + $0x14] sm:$0xf] %vm759, %v756
    %766 = vst.msk [vmem:[#allocation2 + $0x18] sm:$0xf] %vm759, %v757
    %767 = vst.msk [vmem:[#allocation2 + $0x1c] sm:$0xf] %vm759, %v758
    %768 = vrot.lane.b32.xlu0 %v405, 96
    %v769 = vpop.permute.xlu0 %768
    %770 = vrot.lane.b32.xlu0 %v407, 96
    %v771 = vpop.permute.xlu0 %770
    %772 = vrot.lane.b32.xlu0 %v409, 96
    %v773 = vpop.permute.xlu0 %772
    %774 = vrot.lane.b32.xlu0 %v411, 96
    %v775 = vpop.permute.xlu0 %774
    %776 = vrot.lane.b32.xlu0 %v413, 96
    %v777 = vpop.permute.xlu0 %776
    %778 = vrot.lane.b32.xlu0 %v415, 96
    %v779 = vpop.permute.xlu0 %778
    %780 = vrot.lane.b32.xlu0 %v417, 96
    %v781 = vpop.permute.xlu0 %780
    %782 = vrot.lane.b32.xlu0 %v419, 96
    %v783 = vpop.permute.xlu0 %782
    %v784 = vrot.slane %v769, 4
    %v785 = vrot.slane %v771, 4
    %v786 = vrot.slane %v773, 4
    %v787 = vrot.slane %v775, 4
    %v788 = vrot.slane %v777, 4
    %v789 = vrot.slane %v779, 4
    %v790 = vrot.slane %v781, 4
    %v791 = vrot.slane %v783, 4
    %792 = vrot.lane.b32.xlu0 %v439, 96
    %v793 = vpop.permute.xlu0 %792
    %v794 = vunpack.c.l.b16 %v784
    %v795 = vunpack.c.l.b16 %v785
    %v796 = vpack.c.b16 %v795, %v794
    %v798 = vsel %vm443, %v793, 0
    %v801 = vsel %vm443, %v796, 0
    %803 = vmatpush.bf16.xpose.msra.mxu0 0
    %804 = vmatpush.bf16.xpose.msra.mxu0 0
    %805 = vmatpush.bf16.xpose.msra.mxu0 0
    %806 = vmatpush.bf16.xpose.msra.mxu0 0
    %807 = vmatpush.bf16.xpose.msra.mxu0 0
    %808 = vmatpush.bf16.xpose.msra.mxu0 0
    %809 = vmatpush.bf16.xpose.msra.mxu0 0
    %810 = vmatpush.bf16.xpose.msra.mxu0 %v801
    %811 = vmatmul.bf16.gmra.mxu0 %v798
    %v812 = vpop.f32.mrf.mxu0
    %v813 = vadd.f32 0.0, %v812
    %v814 = vpop.f32.mrf.mxu0
    %v815 = vadd.f32 0.0, %v814
    %816 = vdwg.mxu0
    %817 = vrot.lane.b32.xlu0 %v466, 96
    %v818 = vpop.permute.xlu0 %817
    %v819 = vunpack.c.l.b16 %v786
    %v820 = vunpack.c.l.b16 %v787
    %v821 = vpack.c.b16 %v820, %v819
    %v823 = vsel %vm443, %v818, 0
    %v826 = vsel %vm443, %v821, 0
    %828 = vmatpush.bf16.xpose.msra.mxu0 0
    %829 = vmatpush.bf16.xpose.msra.mxu0 0
    %830 = vmatpush.bf16.xpose.msra.mxu0 0
    %831 = vmatpush.bf16.xpose.msra.mxu0 0
    %832 = vmatpush.bf16.xpose.msra.mxu0 0
    %833 = vmatpush.bf16.xpose.msra.mxu0 0
    %834 = vmatpush.bf16.xpose.msra.mxu0 0
    %835 = vmatpush.bf16.xpose.msra.mxu0 %v826
    %836 = vmatmul.bf16.gmra.mxu0 %v823
    %v837 = vpop.f32.mrf.mxu0
    %v838 = vadd.f32 0.0, %v837
    %v839 = vpop.f32.mrf.mxu0
    %v840 = vadd.f32 0.0, %v839
    %841 = vdwg.mxu0
    %842 = vrot.lane.b32.xlu0 %v492, 96
    %v843 = vpop.permute.xlu0 %842
    %v844 = vunpack.c.l.b16 %v788
    %v845 = vunpack.c.l.b16 %v789
    %v846 = vpack.c.b16 %v845, %v844
    %v848 = vsel %vm443, %v843, 0
    %v851 = vsel %vm443, %v846, 0
    %853 = vmatpush.bf16.xpose.msra.mxu0 0
    %854 = vmatpush.bf16.xpose.msra.mxu0 0
    %855 = vmatpush.bf16.xpose.msra.mxu0 0
    %856 = vmatpush.bf16.xpose.msra.mxu0 0
    %857 = vmatpush.bf16.xpose.msra.mxu0 0
    %858 = vmatpush.bf16.xpose.msra.mxu0 0
    %859 = vmatpush.bf16.xpose.msra.mxu0 0
    %860 = vmatpush.bf16.xpose.msra.mxu0 %v851
    %861 = vmatmul.bf16.gmra.mxu0 %v848
    %v862 = vpop.f32.mrf.mxu0
    %v863 = vadd.f32 0.0, %v862
    %v864 = vpop.f32.mrf.mxu0
    %v865 = vadd.f32 0.0, %v864
    %866 = vdwg.mxu0
    %867 = vrot.lane.b32.xlu0 %v518, 96
    %v868 = vpop.permute.xlu0 %867
    %v869 = vunpack.c.l.b16 %v790
    %v870 = vunpack.c.l.b16 %v791
    %v871 = vpack.c.b16 %v870, %v869
    %v873 = vsel %vm443, %v868, 0
    %v876 = vsel %vm443, %v871, 0
    %878 = vmatpush.bf16.xpose.msra.mxu0 0
    %879 = vmatpush.bf16.xpose.msra.mxu0 0
    %880 = vmatpush.bf16.xpose.msra.mxu0 0
    %881 = vmatpush.bf16.xpose.msra.mxu0 0
    %882 = vmatpush.bf16.xpose.msra.mxu0 0
    %883 = vmatpush.bf16.xpose.msra.mxu0 0
    %884 = vmatpush.bf16.xpose.msra.mxu0 0
    %885 = vmatpush.bf16.xpose.msra.mxu0 %v876
    %886 = vmatmul.bf16.gmra.mxu0 %v873
    %v887 = vpop.f32.mrf.mxu0
    %v888 = vadd.f32 0.0, %v887
    %v889 = vpop.f32.mrf.mxu0
    %v890 = vadd.f32 0.0, %v889
    %891 = vdwg.mxu0
    %v892 = vsel %vm542, %v813, -inf
    %893 = vmax.xlane.f32.xlu0 %v892
    %v894 = vpop.xlane.xlu0 %893
    %v895 = vsel %vm542, %v815, -inf
    %896 = vmax.xlane.f32.xlu0 %v895
    %v897 = vpop.xlane.xlu0 %896
    %v898 = vsel %vm542, %v838, -inf
    %899 = vmax.xlane.f32.xlu0 %v898
    %v900 = vpop.xlane.xlu0 %899
    %v901 = vsel %vm542, %v840, -inf
    %902 = vmax.xlane.f32.xlu0 %v901
    %v903 = vpop.xlane.xlu0 %902
    %v904 = vsel %vm542, %v863, -inf
    %905 = vmax.xlane.f32.xlu0 %v904
    %v906 = vpop.xlane.xlu0 %905
    %v907 = vsel %vm542, %v865, -inf
    %908 = vmax.xlane.f32.xlu0 %v907
    %v909 = vpop.xlane.xlu0 %908
    %v910 = vsel %vm542, %v888, -inf
    %911 = vmax.xlane.f32.xlu0 %v910
    %v912 = vpop.xlane.xlu0 %911
    %v913 = vsel %vm542, %v890, -inf
    %914 = vmax.xlane.f32.xlu0 %v913
    %v915 = vpop.xlane.xlu0 %914
    %v916 = vsub.f32 %v813, %v894
    %v917 = vsub.f32 %v815, %v897
    %v918 = vsub.f32 %v838, %v900
    %v919 = vsub.f32 %v840, %v903
    %v920 = vsub.f32 %v863, %v906
    %v921 = vsub.f32 %v865, %v909
    %v922 = vsub.f32 %v888, %v912
    %v923 = vsub.f32 %v890, %v915
    %v924 = vmul.f32 %v916, 1.442695
    %v925 = vpow.pop %v924
    %v926 = vmul.f32 %v917, 1.442695
    %v927 = vpow.pop %v926
    %v928 = vmul.f32 %v918, 1.442695
    %v929 = vpow.pop %v928
    %v930 = vmul.f32 %v919, 1.442695
    %v931 = vpow.pop %v930
    %v932 = vmul.f32 %v920, 1.442695
    %v933 = vpow.pop %v932
    %v934 = vmul.f32 %v921, 1.442695
    %v935 = vpow.pop %v934
    %v936 = vmul.f32 %v922, 1.442695
    %v937 = vpow.pop %v936
    %v938 = vmul.f32 %v923, 1.442695
    %v939 = vpow.pop %v938
    %v940 = vsel %vm542, %v925, 0.0
    %941 = vadd.xlane.f32.xlu0 %v940
    %v942 = vpop.xlane.xlu0 %941
    %v943 = vsel %vm542, %v927, 0.0
    %944 = vadd.xlane.f32.xlu0 %v943
    %v945 = vpop.xlane.xlu0 %944
    %v946 = vsel %vm542, %v929, 0.0
    %947 = vadd.xlane.f32.xlu0 %v946
    %v948 = vpop.xlane.xlu0 %947
    %v949 = vsel %vm542, %v931, 0.0
    %950 = vadd.xlane.f32.xlu0 %v949
    %v951 = vpop.xlane.xlu0 %950
    %v952 = vsel %vm542, %v933, 0.0
    %953 = vadd.xlane.f32.xlu0 %v952
    %v954 = vpop.xlane.xlu0 %953
    %v955 = vsel %vm542, %v935, 0.0
    %956 = vadd.xlane.f32.xlu0 %v955
    %v957 = vpop.xlane.xlu0 %956
    %v958 = vsel %vm542, %v937, 0.0
    %959 = vadd.xlane.f32.xlu0 %v958
    %v960 = vpop.xlane.xlu0 %959
    %v961 = vsel %vm542, %v939, 0.0
    %962 = vadd.xlane.f32.xlu0 %v961
    %v963 = vpop.xlane.xlu0 %962
    %v964 = vrcp.pop %v942
    %v965 = vrcp.pop %v945
    %v966 = vrcp.pop %v948
    %v967 = vrcp.pop %v951
    %v968 = vrcp.pop %v954
    %v969 = vrcp.pop %v957
    %v970 = vrcp.pop %v960
    %v971 = vrcp.pop %v963
    %v972 = vmul.f32 %v925, %v964
    %v973 = vmul.f32 %v927, %v965
    %v974 = vmul.f32 %v929, %v966
    %v975 = vmul.f32 %v931, %v967
    %v976 = vmul.f32 %v933, %v968
    %v977 = vmul.f32 %v935, %v969
    %v978 = vmul.f32 %v937, %v970
    %v979 = vmul.f32 %v939, %v971
    %v980 = vpack.c.bf16 %v972, %v972
    %v981 = vpack.c.bf16 %v973, %v973
    %v982 = vpack.c.bf16 %v974, %v974
    %v983 = vpack.c.bf16 %v975, %v975
    %v984 = vpack.c.bf16 %v976, %v976
    %v985 = vpack.c.bf16 %v977, %v977
    %v986 = vpack.c.bf16 %v978, %v978
    %v987 = vpack.c.bf16 %v979, %v979
    %v990 = vunpack.c.l.b16 %v980
    %v991 = vunpack.c.l.b16 %v981
    %v992 = vpack.c.b16 %v991, %v990
    %993 = vrot.lane.b32.xlu0 %v648, 96
    %v994 = vpop.permute.xlu0 %993
    %v997 = vsel %vm542, %v992, 0
    %999 = vmatpush.bf16.msra.mxu0 0
    %1000 = vmatpush.bf16.msra.mxu0 0
    %1001 = vmatpush.bf16.msra.mxu0 0
    %1002 = vmatpush.bf16.msra.mxu0 0
    %1003 = vmatpush.bf16.msra.mxu0 0
    %1004 = vmatpush.bf16.msra.mxu0 0
    %1005 = vmatpush.bf16.msra.mxu0 0
    %1006 = vmatpush.bf16.msra.mxu0 %v994
    %1007 = vmatmul.bf16.gmra.mxu0 %v997
    %v1008 = vpop.f32.mrf.mxu0
    %v1009 = vadd.f32 0.0, %v1008
    %v1010 = vpop.f32.mrf.mxu0
    %v1011 = vadd.f32 0.0, %v1010
    %1012 = vdwg.mxu0
    %v1015 = vunpack.c.l.b16 %v982
    %v1016 = vunpack.c.l.b16 %v983
    %v1017 = vpack.c.b16 %v1016, %v1015
    %1018 = vrot.lane.b32.xlu0 %v676, 96
    %v1019 = vpop.permute.xlu0 %1018
    %v1022 = vsel %vm542, %v1017, 0
    %1024 = vmatpush.bf16.msra.mxu0 0
    %1025 = vmatpush.bf16.msra.mxu0 0
    %1026 = vmatpush.bf16.msra.mxu0 0
    %1027 = vmatpush.bf16.msra.mxu0 0
    %1028 = vmatpush.bf16.msra.mxu0 0
    %1029 = vmatpush.bf16.msra.mxu0 0
    %1030 = vmatpush.bf16.msra.mxu0 0
    %1031 = vmatpush.bf16.msra.mxu0 %v1019
    %1032 = vmatmul.bf16.gmra.mxu0 %v1022
    %v1033 = vpop.f32.mrf.mxu0
    %v1034 = vadd.f32 0.0, %v1033
    %v1035 = vpop.f32.mrf.mxu0
    %v1036 = vadd.f32 0.0, %v1035
    %1037 = vdwg.mxu0
    %v1040 = vunpack.c.l.b16 %v984
    %v1041 = vunpack.c.l.b16 %v985
    %v1042 = vpack.c.b16 %v1041, %v1040
    %1043 = vrot.lane.b32.xlu0 %v704, 96
    %v1044 = vpop.permute.xlu0 %1043
    %v1047 = vsel %vm542, %v1042, 0
    %1049 = vmatpush.bf16.msra.mxu0 0
    %1050 = vmatpush.bf16.msra.mxu0 0
    %1051 = vmatpush.bf16.msra.mxu0 0
    %1052 = vmatpush.bf16.msra.mxu0 0
    %1053 = vmatpush.bf16.msra.mxu0 0
    %1054 = vmatpush.bf16.msra.mxu0 0
    %1055 = vmatpush.bf16.msra.mxu0 0
    %1056 = vmatpush.bf16.msra.mxu0 %v1044
    %1057 = vmatmul.bf16.gmra.mxu0 %v1047
    %v1058 = vpop.f32.mrf.mxu0
    %v1059 = vadd.f32 0.0, %v1058
    %v1060 = vpop.f32.mrf.mxu0
    %v1061 = vadd.f32 0.0, %v1060
    %1062 = vdwg.mxu0
    %v1065 = vunpack.c.l.b16 %v986
    %v1066 = vunpack.c.l.b16 %v987
    %v1067 = vpack.c.b16 %v1066, %v1065
    %1068 = vrot.lane.b32.xlu0 %v732, 96
    %v1069 = vpop.permute.xlu0 %1068
    %v1072 = vsel %vm542, %v1067, 0
    %1074 = vmatpush.bf16.msra.mxu0 0
    %1075 = vmatpush.bf16.msra.mxu0 0
    %1076 = vmatpush.bf16.msra.mxu0 0
    %1077 = vmatpush.bf16.msra.mxu0 0
    %1078 = vmatpush.bf16.msra.mxu0 0
    %1079 = vmatpush.bf16.msra.mxu0 0
    %1080 = vmatpush.bf16.msra.mxu0 0
    %1081 = vmatpush.bf16.msra.mxu0 %v1069
    %1082 = vmatmul.bf16.gmra.mxu0 %v1072
    %v1083 = vpop.f32.mrf.mxu0
    %v1084 = vadd.f32 0.0, %v1083
    %v1085 = vpop.f32.mrf.mxu0
    %v1086 = vadd.f32 0.0, %v1085
    %1087 = vdwg.mxu0
    %v1088 = vpack.c.bf16 %v1009, %v1009
    %v1089 = vpack.c.bf16 %v1011, %v1011
    %v1090 = vpack.c.bf16 %v1034, %v1034
    %v1091 = vpack.c.bf16 %v1036, %v1036
    %v1092 = vpack.c.bf16 %v1059, %v1059
    %v1093 = vpack.c.bf16 %v1061, %v1061
    %v1094 = vpack.c.bf16 %v1084, %v1084
    %v1095 = vpack.c.bf16 %v1086, %v1086
    %1104 = vrot.lane.b32.xlu0 %v1088, 32
    %v1105 = vpop.permute.xlu0 %1104
    %1106 = vrot.lane.b32.xlu0 %v1089, 32
    %v1107 = vpop.permute.xlu0 %1106
    %1108 = vrot.lane.b32.xlu0 %v1090, 32
    %v1109 = vpop.permute.xlu0 %1108
    %1110 = vrot.lane.b32.xlu0 %v1091, 32
    %v1111 = vpop.permute.xlu0 %1110
    %1112 = vrot.lane.b32.xlu0 %v1092, 32
    %v1113 = vpop.permute.xlu0 %1112
    %1114 = vrot.lane.b32.xlu0 %v1093, 32
    %v1115 = vpop.permute.xlu0 %1114
    %1116 = vrot.lane.b32.xlu0 %v1094, 32
    %v1117 = vpop.permute.xlu0 %1116
    %1118 = vrot.lane.b32.xlu0 %v1095, 32
    %v1119 = vpop.permute.xlu0 %1118
    %vm1128 = vcmask 519424
    %1129 = vst.msk [vmem:[#allocation2] sm:$0xf] %vm1128, %v1105
    %1130 = vst.msk [vmem:[#allocation2 + $0x4] sm:$0xf] %vm1128, %v1107
    %1131 = vst.msk [vmem:[#allocation2 + $0x8] sm:$0xf] %vm1128, %v1109
    %1132 = vst.msk [vmem:[#allocation2 + $0xc] sm:$0xf] %vm1128, %v1111
    %1133 = vst.msk [vmem:[#allocation2 + $0x10] sm:$0xf] %vm1128, %v1113
    %1134 = vst.msk [vmem:[#allocation2 + $0x14] sm:$0xf] %vm1128, %v1115
    %1135 = vst.msk [vmem:[#allocation2 + $0x18] sm:$0xf] %vm1128, %v1117
    %1136 = vst.msk [vmem:[#allocation2 + $0x1c] sm:$0xf] %vm1128, %v1119
    %1137 = vrot.lane.b32.xlu0 %v405, 64
    %v1138 = vpop.permute.xlu0 %1137
    %1139 = vrot.lane.b32.xlu0 %v407, 64
    %v1140 = vpop.permute.xlu0 %1139
    %1141 = vrot.lane.b32.xlu0 %v409, 64
    %v1142 = vpop.permute.xlu0 %1141
    %1143 = vrot.lane.b32.xlu0 %v411, 64
    %v1144 = vpop.permute.xlu0 %1143
    %1145 = vrot.lane.b32.xlu0 %v413, 64
    %v1146 = vpop.permute.xlu0 %1145
    %1147 = vrot.lane.b32.xlu0 %v415, 64
    %v1148 = vpop.permute.xlu0 %1147
    %1149 = vrot.lane.b32.xlu0 %v417, 64
    %v1150 = vpop.permute.xlu0 %1149
    %1151 = vrot.lane.b32.xlu0 %v419, 64
    %v1152 = vpop.permute.xlu0 %1151
    %v1153 = vrot.slane %v1138, 4
    %v1154 = vrot.slane %v1140, 4
    %v1155 = vrot.slane %v1142, 4
    %v1156 = vrot.slane %v1144, 4
    %v1157 = vrot.slane %v1146, 4
    %v1158 = vrot.slane %v1148, 4
    %v1159 = vrot.slane %v1150, 4
    %v1160 = vrot.slane %v1152, 4
    %1161 = vrot.lane.b32.xlu0 %v439, 64
    %v1162 = vpop.permute.xlu0 %1161
    %v1163 = vunpack.c.l.b16 %v1153
    %v1164 = vunpack.c.l.b16 %v1154
    %v1165 = vpack.c.b16 %v1164, %v1163
    %v1167 = vsel %vm443, %v1162, 0
    %v1170 = vsel %vm443, %v1165, 0
    %1172 = vmatpush.bf16.xpose.msra.mxu0 0
    %1173 = vmatpush.bf16.xpose.msra.mxu0 0
    %1174 = vmatpush.bf16.xpose.msra.mxu0 0
    %1175 = vmatpush.bf16.xpose.msra.mxu0 0
    %1176 = vmatpush.bf16.xpose.msra.mxu0 0
    %1177 = vmatpush.bf16.xpose.msra.mxu0 0
    %1178 = vmatpush.bf16.xpose.msra.mxu0 0
    %1179 = vmatpush.bf16.xpose.msra.mxu0 %v1170
    %1180 = vmatmul.bf16.gmra.mxu0 %v1167
    %v1181 = vpop.f32.mrf.mxu0
    %v1182 = vadd.f32 0.0, %v1181
    %v1183 = vpop.f32.mrf.mxu0
    %v1184 = vadd.f32 0.0, %v1183
    %1185 = vdwg.mxu0
    %1186 = vrot.lane.b32.xlu0 %v466, 64
    %v1187 = vpop.permute.xlu0 %1186
    %v1188 = vunpack.c.l.b16 %v1155
    %v1189 = vunpack.c.l.b16 %v1156
    %v1190 = vpack.c.b16 %v1189, %v1188
    %v1192 = vsel %vm443, %v1187, 0
    %v1195 = vsel %vm443, %v1190, 0
    %1197 = vmatpush.bf16.xpose.msra.mxu0 0
    %1198 = vmatpush.bf16.xpose.msra.mxu0 0
    %1199 = vmatpush.bf16.xpose.msra.mxu0 0
    %1200 = vmatpush.bf16.xpose.msra.mxu0 0
    %1201 = vmatpush.bf16.xpose.msra.mxu0 0
    %1202 = vmatpush.bf16.xpose.msra.mxu0 0
    %1203 = vmatpush.bf16.xpose.msra.mxu0 0
    %1204 = vmatpush.bf16.xpose.msra.mxu0 %v1195
    %1205 = vmatmul.bf16.gmra.mxu0 %v1192
    %v1206 = vpop.f32.mrf.mxu0
    %v1207 = vadd.f32 0.0, %v1206
    %v1208 = vpop.f32.mrf.mxu0
    %v1209 = vadd.f32 0.0, %v1208
    %1210 = vdwg.mxu0
    %1211 = vrot.lane.b32.xlu0 %v492, 64
    %v1212 = vpop.permute.xlu0 %1211
    %v1213 = vunpack.c.l.b16 %v1157
    %v1214 = vunpack.c.l.b16 %v1158
    %v1215 = vpack.c.b16 %v1214, %v1213
    %v1217 = vsel %vm443, %v1212, 0
    %v1220 = vsel %vm443, %v1215, 0
    %1222 = vmatpush.bf16.xpose.msra.mxu0 0
    %1223 = vmatpush.bf16.xpose.msra.mxu0 0
    %1224 = vmatpush.bf16.xpose.msra.mxu0 0
    %1225 = vmatpush.bf16.xpose.msra.mxu0 0
    %1226 = vmatpush.bf16.xpose.msra.mxu0 0
    %1227 = vmatpush.bf16.xpose.msra.mxu0 0
    %1228 = vmatpush.bf16.xpose.msra.mxu0 0
    %1229 = vmatpush.bf16.xpose.msra.mxu0 %v1220
    %1230 = vmatmul.bf16.gmra.mxu0 %v1217
    %v1231 = vpop.f32.mrf.mxu0
    %v1232 = vadd.f32 0.0, %v1231
    %v1233 = vpop.f32.mrf.mxu0
    %v1234 = vadd.f32 0.0, %v1233
    %1235 = vdwg.mxu0
    %1236 = vrot.lane.b32.xlu0 %v518, 64
    %v1237 = vpop.permute.xlu0 %1236
    %v1238 = vunpack.c.l.b16 %v1159
    %v1239 = vunpack.c.l.b16 %v1160
    %v1240 = vpack.c.b16 %v1239, %v1238
    %v1242 = vsel %vm443, %v1237, 0
    %v1245 = vsel %vm443, %v1240, 0
    %1247 = vmatpush.bf16.xpose.msra.mxu0 0
    %1248 = vmatpush.bf16.xpose.msra.mxu0 0
    %1249 = vmatpush.bf16.xpose.msra.mxu0 0
    %1250 = vmatpush.bf16.xpose.msra.mxu0 0
    %1251 = vmatpush.bf16.xpose.msra.mxu0 0
    %1252 = vmatpush.bf16.xpose.msra.mxu0 0
    %1253 = vmatpush.bf16.xpose.msra.mxu0 0
    %1254 = vmatpush.bf16.xpose.msra.mxu0 %v1245
    %1255 = vmatmul.bf16.gmra.mxu0 %v1242
    %v1256 = vpop.f32.mrf.mxu0
    %v1257 = vadd.f32 0.0, %v1256
    %v1258 = vpop.f32.mrf.mxu0
    %v1259 = vadd.f32 0.0, %v1258
    %1260 = vdwg.mxu0
    %v1261 = vsel %vm542, %v1182, -inf
    %1262 = vmax.xlane.f32.xlu0 %v1261
    %v1263 = vpop.xlane.xlu0 %1262
    %v1264 = vsel %vm542, %v1184, -inf
    %1265 = vmax.xlane.f32.xlu0 %v1264
    %v1266 = vpop.xlane.xlu0 %1265
    %v1267 = vsel %vm542, %v1207, -inf
    %1268 = vmax.xlane.f32.xlu0 %v1267
    %v1269 = vpop.xlane.xlu0 %1268
    %v1270 = vsel %vm542, %v1209, -inf
    %1271 = vmax.xlane.f32.xlu0 %v1270
    %v1272 = vpop.xlane.xlu0 %1271
    %v1273 = vsel %vm542, %v1232, -inf
    %1274 = vmax.xlane.f32.xlu0 %v1273
    %v1275 = vpop.xlane.xlu0 %1274
    %v1276 = vsel %vm542, %v1234, -inf
    %1277 = vmax.xlane.f32.xlu0 %v1276
    %v1278 = vpop.xlane.xlu0 %1277
    %v1279 = vsel %vm542, %v1257, -inf
    %1280 = vmax.xlane.f32.xlu0 %v1279
    %v1281 = vpop.xlane.xlu0 %1280
    %v1282 = vsel %vm542, %v1259, -inf
    %1283 = vmax.xlane.f32.xlu0 %v1282
    %v1284 = vpop.xlane.xlu0 %1283
    %v1285 = vsub.f32 %v1182, %v1263
    %v1286 = vsub.f32 %v1184, %v1266
    %v1287 = vsub.f32 %v1207, %v1269
    %v1288 = vsub.f32 %v1209, %v1272
    %v1289 = vsub.f32 %v1232, %v1275
    %v1290 = vsub.f32 %v1234, %v1278
    %v1291 = vsub.f32 %v1257, %v1281
    %v1292 = vsub.f32 %v1259, %v1284
    %v1293 = vmul.f32 %v1285, 1.442695
    %v1294 = vpow.pop %v1293
    %v1295 = vmul.f32 %v1286, 1.442695
    %v1296 = vpow.pop %v1295
    %v1297 = vmul.f32 %v1287, 1.442695
    %v1298 = vpow.pop %v1297
    %v1299 = vmul.f32 %v1288, 1.442695
    %v1300 = vpow.pop %v1299
    %v1301 = vmul.f32 %v1289, 1.442695
    %v1302 = vpow.pop %v1301
    %v1303 = vmul.f32 %v1290, 1.442695
    %v1304 = vpow.pop %v1303
    %v1305 = vmul.f32 %v1291, 1.442695
    %v1306 = vpow.pop %v1305
    %v1307 = vmul.f32 %v1292, 1.442695
    %v1308 = vpow.pop %v1307
    %v1309 = vsel %vm542, %v1294, 0.0
    %1310 = vadd.xlane.f32.xlu0 %v1309
    %v1311 = vpop.xlane.xlu0 %1310
    %v1312 = vsel %vm542, %v1296, 0.0
    %1313 = vadd.xlane.f32.xlu0 %v1312
    %v1314 = vpop.xlane.xlu0 %1313
    %v1315 = vsel %vm542, %v1298, 0.0
    %1316 = vadd.xlane.f32.xlu0 %v1315
    %v1317 = vpop.xlane.xlu0 %1316
    %v1318 = vsel %vm542, %v1300, 0.0
    %1319 = vadd.xlane.f32.xlu0 %v1318
    %v1320 = vpop.xlane.xlu0 %1319
    %v1321 = vsel %vm542, %v1302, 0.0
    %1322 = vadd.xlane.f32.xlu0 %v1321
    %v1323 = vpop.xlane.xlu0 %1322
    %v1324 = vsel %vm542, %v1304, 0.0
    %1325 = vadd.xlane.f32.xlu0 %v1324
    %v1326 = vpop.xlane.xlu0 %1325
    %v1327 = vsel %vm542, %v1306, 0.0
    %1328 = vadd.xlane.f32.xlu0 %v1327
    %v1329 = vpop.xlane.xlu0 %1328
    %v1330 = vsel %vm542, %v1308, 0.0
    %1331 = vadd.xlane.f32.xlu0 %v1330
    %v1332 = vpop.xlane.xlu0 %1331
    %v1333 = vrcp.pop %v1311
    %v1334 = vrcp.pop %v1314
    %v1335 = vrcp.pop %v1317
    %v1336 = vrcp.pop %v1320
    %v1337 = vrcp.pop %v1323
    %v1338 = vrcp.pop %v1326
    %v1339 = vrcp.pop %v1329
    %v1340 = vrcp.pop %v1332
    %v1341 = vmul.f32 %v1294, %v1333
    %v1342 = vmul.f32 %v1296, %v1334
    %v1343 = vmul.f32 %v1298, %v1335
    %v1344 = vmul.f32 %v1300, %v1336
    %v1345 = vmul.f32 %v1302, %v1337
    %v1346 = vmul.f32 %v1304, %v1338
    %v1347 = vmul.f32 %v1306, %v1339
    %v1348 = vmul.f32 %v1308, %v1340
    %v1349 = vpack.c.bf16 %v1341, %v1341
    %v1350 = vpack.c.bf16 %v1342, %v1342
    %v1351 = vpack.c.bf16 %v1343, %v1343
    %v1352 = vpack.c.bf16 %v1344, %v1344
    %v1353 = vpack.c.bf16 %v1345, %v1345
    %v1354 = vpack.c.bf16 %v1346, %v1346
    %v1355 = vpack.c.bf16 %v1347, %v1347
    %v1356 = vpack.c.bf16 %v1348, %v1348
    %v1359 = vunpack.c.l.b16 %v1349
    %v1360 = vunpack.c.l.b16 %v1350
    %v1361 = vpack.c.b16 %v1360, %v1359
    %1362 = vrot.lane.b32.xlu0 %v648, 64
    %v1363 = vpop.permute.xlu0 %1362
    %v1366 = vsel %vm542, %v1361, 0
    %1368 = vmatpush.bf16.msra.mxu0 0
    %1369 = vmatpush.bf16.msra.mxu0 0
    %1370 = vmatpush.bf16.msra.mxu0 0
    %1371 = vmatpush.bf16.msra.mxu0 0
    %1372 = vmatpush.bf16.msra.mxu0 0
    %1373 = vmatpush.bf16.msra.mxu0 0
    %1374 = vmatpush.bf16.msra.mxu0 0
    %1375 = vmatpush.bf16.msra.mxu0 %v1363
    %1376 = vmatmul.bf16.gmra.mxu0 %v1366
    %v1377 = vpop.f32.mrf.mxu0
    %v1378 = vadd.f32 0.0, %v1377
    %v1379 = vpop.f32.mrf.mxu0
    %v1380 = vadd.f32 0.0, %v1379
    %1381 = vdwg.mxu0
    %v1384 = vunpack.c.l.b16 %v1351
    %v1385 = vunpack.c.l.b16 %v1352
    %v1386 = vpack.c.b16 %v1385, %v1384
    %1387 = vrot.lane.b32.xlu0 %v676, 64
    %v1388 = vpop.permute.xlu0 %1387
    %v1391 = vsel %vm542, %v1386, 0
    %1393 = vmatpush.bf16.msra.mxu0 0
    %1394 = vmatpush.bf16.msra.mxu0 0
    %1395 = vmatpush.bf16.msra.mxu0 0
    %1396 = vmatpush.bf16.msra.mxu0 0
    %1397 = vmatpush.bf16.msra.mxu0 0
    %1398 = vmatpush.bf16.msra.mxu0 0
    %1399 = vmatpush.bf16.msra.mxu0 0
    %1400 = vmatpush.bf16.msra.mxu0 %v1388
    %1401 = vmatmul.bf16.gmra.mxu0 %v1391
    %v1402 = vpop.f32.mrf.mxu0
    %v1403 = vadd.f32 0.0, %v1402
    %v1404 = vpop.f32.mrf.mxu0
    %v1405 = vadd.f32 0.0, %v1404
    %1406 = vdwg.mxu0
    %v1409 = vunpack.c.l.b16 %v1353
    %v1410 = vunpack.c.l.b16 %v1354
    %v1411 = vpack.c.b16 %v1410, %v1409
    %1412 = vrot.lane.b32.xlu0 %v704, 64
    %v1413 = vpop.permute.xlu0 %1412
    %v1416 = vsel %vm542, %v1411, 0
    %1418 = vmatpush.bf16.msra.mxu0 0
    %1419 = vmatpush.bf16.msra.mxu0 0
    %1420 = vmatpush.bf16.msra.mxu0 0
    %1421 = vmatpush.bf16.msra.mxu0 0
    %1422 = vmatpush.bf16.msra.mxu0 0
    %1423 = vmatpush.bf16.msra.mxu0 0
    %1424 = vmatpush.bf16.msra.mxu0 0
    %1425 = vmatpush.bf16.msra.mxu0 %v1413
    %1426 = vmatmul.bf16.gmra.mxu0 %v1416
    %v1427 = vpop.f32.mrf.mxu0
    %v1428 = vadd.f32 0.0, %v1427
    %v1429 = vpop.f32.mrf.mxu0
    %v1430 = vadd.f32 0.0, %v1429
    %1431 = vdwg.mxu0
    %v1434 = vunpack.c.l.b16 %v1355
    %v1435 = vunpack.c.l.b16 %v1356
    %v1436 = vpack.c.b16 %v1435, %v1434
    %1437 = vrot.lane.b32.xlu0 %v732, 64
    %v1438 = vpop.permute.xlu0 %1437
    %v1441 = vsel %vm542, %v1436, 0
    %1443 = vmatpush.bf16.msra.mxu0 0
    %1444 = vmatpush.bf16.msra.mxu0 0
    %1445 = vmatpush.bf16.msra.mxu0 0
    %1446 = vmatpush.bf16.msra.mxu0 0
    %1447 = vmatpush.bf16.msra.mxu0 0
    %1448 = vmatpush.bf16.msra.mxu0 0
    %1449 = vmatpush.bf16.msra.mxu0 0
    %1450 = vmatpush.bf16.msra.mxu0 %v1438
    %1451 = vmatmul.bf16.gmra.mxu0 %v1441
    %v1452 = vpop.f32.mrf.mxu0
    %v1453 = vadd.f32 0.0, %v1452
    %v1454 = vpop.f32.mrf.mxu0
    %v1455 = vadd.f32 0.0, %v1454
    %1456 = vdwg.mxu0
    %v1457 = vpack.c.bf16 %v1378, %v1378
    %v1458 = vpack.c.bf16 %v1380, %v1380
    %v1459 = vpack.c.bf16 %v1403, %v1403
    %v1460 = vpack.c.bf16 %v1405, %v1405
    %v1461 = vpack.c.bf16 %v1428, %v1428
    %v1462 = vpack.c.bf16 %v1430, %v1430
    %v1463 = vpack.c.bf16 %v1453, %v1453
    %v1464 = vpack.c.bf16 %v1455, %v1455
    %1473 = vrot.lane.b32.xlu0 %v1457, 64
    %v1474 = vpop.permute.xlu0 %1473
    %1475 = vrot.lane.b32.xlu0 %v1458, 64
    %v1476 = vpop.permute.xlu0 %1475
    %1477 = vrot.lane.b32.xlu0 %v1459, 64
    %v1478 = vpop.permute.xlu0 %1477
    %1479 = vrot.lane.b32.xlu0 %v1460, 64
    %v1480 = vpop.permute.xlu0 %1479
    %1481 = vrot.lane.b32.xlu0 %v1461, 64
    %v1482 = vpop.permute.xlu0 %1481
    %1483 = vrot.lane.b32.xlu0 %v1462, 64
    %v1484 = vpop.permute.xlu0 %1483
    %1485 = vrot.lane.b32.xlu0 %v1463, 64
    %v1486 = vpop.permute.xlu0 %1485
    %1487 = vrot.lane.b32.xlu0 %v1464, 64
    %v1488 = vpop.permute.xlu0 %1487
    %vm1497 = vcmask 781824
    %1498 = vst.msk [vmem:[#allocation2] sm:$0xf] %vm1497, %v1474
    %1499 = vst.msk [vmem:[#allocation2 + $0x4] sm:$0xf] %vm1497, %v1476
    %1500 = vst.msk [vmem:[#allocation2 + $0x8] sm:$0xf] %vm1497, %v1478
    %1501 = vst.msk [vmem:[#allocation2 + $0xc] sm:$0xf] %vm1497, %v1480
    %1502 = vst.msk [vmem:[#allocation2 + $0x10] sm:$0xf] %vm1497, %v1482
    %1503 = vst.msk [vmem:[#allocation2 + $0x14] sm:$0xf] %vm1497, %v1484
    %1504 = vst.msk [vmem:[#allocation2 + $0x18] sm:$0xf] %vm1497, %v1486
    %1505 = vst.msk [vmem:[#allocation2 + $0x1c] sm:$0xf] %vm1497, %v1488
    %1506 = vrot.lane.b32.xlu0 %v405, 32
    %v1507 = vpop.permute.xlu0 %1506
    %1508 = vrot.lane.b32.xlu0 %v407, 32
    %v1509 = vpop.permute.xlu0 %1508
    %1510 = vrot.lane.b32.xlu0 %v409, 32
    %v1511 = vpop.permute.xlu0 %1510
    %1512 = vrot.lane.b32.xlu0 %v411, 32
    %v1513 = vpop.permute.xlu0 %1512
    %1514 = vrot.lane.b32.xlu0 %v413, 32
    %v1515 = vpop.permute.xlu0 %1514
    %1516 = vrot.lane.b32.xlu0 %v415, 32
    %v1517 = vpop.permute.xlu0 %1516
    %1518 = vrot.lane.b32.xlu0 %v417, 32
    %v1519 = vpop.permute.xlu0 %1518
    %1520 = vrot.lane.b32.xlu0 %v419, 32
    %v1521 = vpop.permute.xlu0 %1520
    %v1522 = vrot.slane %v1507, 4
    %v1523 = vrot.slane %v1509, 4
    %v1524 = vrot.slane %v1511, 4
    %v1525 = vrot.slane %v1513, 4
    %v1526 = vrot.slane %v1515, 4
    %v1527 = vrot.slane %v1517, 4
    %v1528 = vrot.slane %v1519, 4
    %v1529 = vrot.slane %v1521, 4
    %1530 = vrot.lane.b32.xlu0 %v439, 32
    %v1531 = vpop.permute.xlu0 %1530
    %v1532 = vunpack.c.l.b16 %v1522
    %v1533 = vunpack.c.l.b16 %v1523
    %v1534 = vpack.c.b16 %v1533, %v1532
    %v1536 = vsel %vm443, %v1531, 0
    %v1539 = vsel %vm443, %v1534, 0
    %1541 = vmatpush.bf16.xpose.msra.mxu0 0
    %1542 = vmatpush.bf16.xpose.msra.mxu0 0
    %1543 = vmatpush.bf16.xpose.msra.mxu0 0
    %1544 = vmatpush.bf16.xpose.msra.mxu0 0
    %1545 = vmatpush.bf16.xpose.msra.mxu0 0
    %1546 = vmatpush.bf16.xpose.msra.mxu0 0
    %1547 = vmatpush.bf16.xpose.msra.mxu0 0
    %1548 = vmatpush.bf16.xpose.msra.mxu0 %v1539
    %1549 = vmatmul.bf16.gmra.mxu0 %v1536
    %v1550 = vpop.f32.mrf.mxu0
    %v1551 = vadd.f32 0.0, %v1550
    %v1552 = vpop.f32.mrf.mxu0
    %v1553 = vadd.f32 0.0, %v1552
    %1554 = vdwg.mxu0
    %1555 = vrot.lane.b32.xlu0 %v466, 32
    %v1556 = vpop.permute.xlu0 %1555
    %v1557 = vunpack.c.l.b16 %v1524
    %v1558 = vunpack.c.l.b16 %v1525
    %v1559 = vpack.c.b16 %v1558, %v1557
    %v1561 = vsel %vm443, %v1556, 0
    %v1564 = vsel %vm443, %v1559, 0
    %1566 = vmatpush.bf16.xpose.msra.mxu0 0
    %1567 = vmatpush.bf16.xpose.msra.mxu0 0
    %1568 = vmatpush.bf16.xpose.msra.mxu0 0
    %1569 = vmatpush.bf16.xpose.msra.mxu0 0
    %1570 = vmatpush.bf16.xpose.msra.mxu0 0
    %1571 = vmatpush.bf16.xpose.msra.mxu0 0
    %1572 = vmatpush.bf16.xpose.msra.mxu0 0
    %1573 = vmatpush.bf16.xpose.msra.mxu0 %v1564
    %1574 = vmatmul.bf16.gmra.mxu0 %v1561
    %v1575 = vpop.f32.mrf.mxu0
    %v1576 = vadd.f32 0.0, %v1575
    %v1577 = vpop.f32.mrf.mxu0
    %v1578 = vadd.f32 0.0, %v1577
    %1579 = vdwg.mxu0
    %1580 = vrot.lane.b32.xlu0 %v492, 32
    %v1581 = vpop.permute.xlu0 %1580
    %v1582 = vunpack.c.l.b16 %v1526
    %v1583 = vunpack.c.l.b16 %v1527
    %v1584 = vpack.c.b16 %v1583, %v1582
    %v1586 = vsel %vm443, %v1581, 0
    %v1589 = vsel %vm443, %v1584, 0
    %1591 = vmatpush.bf16.xpose.msra.mxu0 0
    %1592 = vmatpush.bf16.xpose.msra.mxu0 0
    %1593 = vmatpush.bf16.xpose.msra.mxu0 0
    %1594 = vmatpush.bf16.xpose.msra.mxu0 0
    %1595 = vmatpush.bf16.xpose.msra.mxu0 0
    %1596 = vmatpush.bf16.xpose.msra.mxu0 0
    %1597 = vmatpush.bf16.xpose.msra.mxu0 0
    %1598 = vmatpush.bf16.xpose.msra.mxu0 %v1589
    %1599 = vmatmul.bf16.gmra.mxu0 %v1586
    %v1600 = vpop.f32.mrf.mxu0
    %v1601 = vadd.f32 0.0, %v1600
    %v1602 = vpop.f32.mrf.mxu0
    %v1603 = vadd.f32 0.0, %v1602
    %1604 = vdwg.mxu0
    %1605 = vrot.lane.b32.xlu0 %v518, 32
    %v1606 = vpop.permute.xlu0 %1605
    %v1607 = vunpack.c.l.b16 %v1528
    %v1608 = vunpack.c.l.b16 %v1529
    %v1609 = vpack.c.b16 %v1608, %v1607
    %v1611 = vsel %vm443, %v1606, 0
    %v1614 = vsel %vm443, %v1609, 0
    %1616 = vmatpush.bf16.xpose.msra.mxu0 0
    %1617 = vmatpush.bf16.xpose.msra.mxu0 0
    %1618 = vmatpush.bf16.xpose.msra.mxu0 0
    %1619 = vmatpush.bf16.xpose.msra.mxu0 0
    %1620 = vmatpush.bf16.xpose.msra.mxu0 0
    %1621 = vmatpush.bf16.xpose.msra.mxu0 0
    %1622 = vmatpush.bf16.xpose.msra.mxu0 0
    %1623 = vmatpush.bf16.xpose.msra.mxu0 %v1614
    %1624 = vmatmul.bf16.gmra.mxu0 %v1611
    %v1625 = vpop.f32.mrf.mxu0
    %v1626 = vadd.f32 0.0, %v1625
    %v1627 = vpop.f32.mrf.mxu0
    %v1628 = vadd.f32 0.0, %v1627
    %1629 = vdwg.mxu0
    %v1630 = vsel %vm542, %v1551, -inf
    %1631 = vmax.xlane.f32.xlu0 %v1630
    %v1632 = vpop.xlane.xlu0 %1631
    %v1633 = vsel %vm542, %v1553, -inf
    %1634 = vmax.xlane.f32.xlu0 %v1633
    %v1635 = vpop.xlane.xlu0 %1634
    %v1636 = vsel %vm542, %v1576, -inf
    %1637 = vmax.xlane.f32.xlu0 %v1636
    %v1638 = vpop.xlane.xlu0 %1637
    %v1639 = vsel %vm542, %v1578, -inf
    %1640 = vmax.xlane.f32.xlu0 %v1639
    %v1641 = vpop.xlane.xlu0 %1640
    %v1642 = vsel %vm542, %v1601, -inf
    %1643 = vmax.xlane.f32.xlu0 %v1642
    %v1644 = vpop.xlane.xlu0 %1643
    %v1645 = vsel %vm542, %v1603, -inf
    %1646 = vmax.xlane.f32.xlu0 %v1645
    %v1647 = vpop.xlane.xlu0 %1646
    %v1648 = vsel %vm542, %v1626, -inf
    %1649 = vmax.xlane.f32.xlu0 %v1648
    %v1650 = vpop.xlane.xlu0 %1649
    %v1651 = vsel %vm542, %v1628, -inf
    %1652 = vmax.xlane.f32.xlu0 %v1651
    %v1653 = vpop.xlane.xlu0 %1652
    %v1654 = vsub.f32 %v1551, %v1632
    %v1655 = vsub.f32 %v1553, %v1635
    %v1656 = vsub.f32 %v1576, %v1638
    %v1657 = vsub.f32 %v1578, %v1641
    %v1658 = vsub.f32 %v1601, %v1644
    %v1659 = vsub.f32 %v1603, %v1647
    %v1660 = vsub.f32 %v1626, %v1650
    %v1661 = vsub.f32 %v1628, %v1653
    %v1662 = vmul.f32 %v1654, 1.442695
    %v1663 = vpow.pop %v1662
    %v1664 = vmul.f32 %v1655, 1.442695
    %v1665 = vpow.pop %v1664
    %v1666 = vmul.f32 %v1656, 1.442695
    %v1667 = vpow.pop %v1666
    %v1668 = vmul.f32 %v1657, 1.442695
    %v1669 = vpow.pop %v1668
    %v1670 = vmul.f32 %v1658, 1.442695
    %v1671 = vpow.pop %v1670
    %v1672 = vmul.f32 %v1659, 1.442695
    %v1673 = vpow.pop %v1672
    %v1674 = vmul.f32 %v1660, 1.442695
    %v1675 = vpow.pop %v1674
    %v1676 = vmul.f32 %v1661, 1.442695
    %v1677 = vpow.pop %v1676
    %v1678 = vsel %vm542, %v1663, 0.0
    %1679 = vadd.xlane.f32.xlu0 %v1678
    %v1680 = vpop.xlane.xlu0 %1679
    %v1681 = vsel %vm542, %v1665, 0.0
    %1682 = vadd.xlane.f32.xlu0 %v1681
    %v1683 = vpop.xlane.xlu0 %1682
    %v1684 = vsel %vm542, %v1667, 0.0
    %1685 = vadd.xlane.f32.xlu0 %v1684
    %v1686 = vpop.xlane.xlu0 %1685
    %v1687 = vsel %vm542, %v1669, 0.0
    %1688 = vadd.xlane.f32.xlu0 %v1687
    %v1689 = vpop.xlane.xlu0 %1688
    %v1690 = vsel %vm542, %v1671, 0.0
    %1691 = vadd.xlane.f32.xlu0 %v1690
    %v1692 = vpop.xlane.xlu0 %1691
    %v1693 = vsel %vm542, %v1673, 0.0
    %1694 = vadd.xlane.f32.xlu0 %v1693
    %v1695 = vpop.xlane.xlu0 %1694
    %v1696 = vsel %vm542, %v1675, 0.0
    %1697 = vadd.xlane.f32.xlu0 %v1696
    %v1698 = vpop.xlane.xlu0 %1697
    %v1699 = vsel %vm542, %v1677, 0.0
    %1700 = vadd.xlane.f32.xlu0 %v1699
    %v1701 = vpop.xlane.xlu0 %1700
    %v1702 = vrcp.pop %v1680
    %v1703 = vrcp.pop %v1683
    %v1704 = vrcp.pop %v1686
    %v1705 = vrcp.pop %v1689
    %v1706 = vrcp.pop %v1692
    %v1707 = vrcp.pop %v1695
    %v1708 = vrcp.pop %v1698
    %v1709 = vrcp.pop %v1701
    %v1710 = vmul.f32 %v1663, %v1702
    %v1711 = vmul.f32 %v1665, %v1703
    %v1712 = vmul.f32 %v1667, %v1704
    %v1713 = vmul.f32 %v1669, %v1705
    %v1714 = vmul.f32 %v1671, %v1706
    %v1715 = vmul.f32 %v1673, %v1707
    %v1716 = vmul.f32 %v1675, %v1708
    %v1717 = vmul.f32 %v1677, %v1709
    %v1718 = vpack.c.bf16 %v1710, %v1710
    %v1719 = vpack.c.bf16 %v1711, %v1711
    %v1720 = vpack.c.bf16 %v1712, %v1712
    %v1721 = vpack.c.bf16 %v1713, %v1713
    %v1722 = vpack.c.bf16 %v1714, %v1714
    %v1723 = vpack.c.bf16 %v1715, %v1715
    %v1724 = vpack.c.bf16 %v1716, %v1716
    %v1725 = vpack.c.bf16 %v1717, %v1717
    %v1728 = vunpack.c.l.b16 %v1718
    %v1729 = vunpack.c.l.b16 %v1719
    %v1730 = vpack.c.b16 %v1729, %v1728
    %1731 = vrot.lane.b32.xlu0 %v648, 32
    %v1732 = vpop.permute.xlu0 %1731
    %v1735 = vsel %vm542, %v1730, 0
    %1737 = vmatpush.bf16.msra.mxu0 0
    %1738 = vmatpush.bf16.msra.mxu0 0
    %1739 = vmatpush.bf16.msra.mxu0 0
    %1740 = vmatpush.bf16.msra.mxu0 0
    %1741 = vmatpush.bf16.msra.mxu0 0
    %1742 = vmatpush.bf16.msra.mxu0 0
    %1743 = vmatpush.bf16.msra.mxu0 0
    %1744 = vmatpush.bf16.msra.mxu0 %v1732
    %1745 = vmatmul.bf16.gmra.mxu0 %v1735
    %v1746 = vpop.f32.mrf.mxu0
    %v1747 = vadd.f32 0.0, %v1746
    %v1748 = vpop.f32.mrf.mxu0
    %v1749 = vadd.f32 0.0, %v1748
    %1750 = vdwg.mxu0
    %v1753 = vunpack.c.l.b16 %v1720
    %v1754 = vunpack.c.l.b16 %v1721
    %v1755 = vpack.c.b16 %v1754, %v1753
    %1756 = vrot.lane.b32.xlu0 %v676, 32
    %v1757 = vpop.permute.xlu0 %1756
    %v1760 = vsel %vm542, %v1755, 0
    %1762 = vmatpush.bf16.msra.mxu0 0
    %1763 = vmatpush.bf16.msra.mxu0 0
    %1764 = vmatpush.bf16.msra.mxu0 0
    %1765 = vmatpush.bf16.msra.mxu0 0
    %1766 = vmatpush.bf16.msra.mxu0 0
    %1767 = vmatpush.bf16.msra.mxu0 0
    %1768 = vmatpush.bf16.msra.mxu0 0
    %1769 = vmatpush.bf16.msra.mxu0 %v1757
    %1770 = vmatmul.bf16.gmra.mxu0 %v1760
    %v1771 = vpop.f32.mrf.mxu0
    %v1772 = vadd.f32 0.0, %v1771
    %v1773 = vpop.f32.mrf.mxu0
    %v1774 = vadd.f32 0.0, %v1773
    %1775 = vdwg.mxu0
    %v1778 = vunpack.c.l.b16 %v1722
    %v1779 = vunpack.c.l.b16 %v1723
    %v1780 = vpack.c.b16 %v1779, %v1778
    %1781 = vrot.lane.b32.xlu0 %v704, 32
    %v1782 = vpop.permute.xlu0 %1781
    %v1785 = vsel %vm542, %v1780, 0
    %1787 = vmatpush.bf16.msra.mxu0 0
    %1788 = vmatpush.bf16.msra.mxu0 0
    %1789 = vmatpush.bf16.msra.mxu0 0
    %1790 = vmatpush.bf16.msra.mxu0 0
    %1791 = vmatpush.bf16.msra.mxu0 0
    %1792 = vmatpush.bf16.msra.mxu0 0
    %1793 = vmatpush.bf16.msra.mxu0 0
    %1794 = vmatpush.bf16.msra.mxu0 %v1782
    %1795 = vmatmul.bf16.gmra.mxu0 %v1785
    %v1796 = vpop.f32.mrf.mxu0
    %v1797 = vadd.f32 0.0, %v1796
    %v1798 = vpop.f32.mrf.mxu0
    %v1799 = vadd.f32 0.0, %v1798
    %1800 = vdwg.mxu0
    %v1803 = vunpack.c.l.b16 %v1724
    %v1804 = vunpack.c.l.b16 %v1725
    %v1805 = vpack.c.b16 %v1804, %v1803
    %1806 = vrot.lane.b32.xlu0 %v732, 32
    %v1807 = vpop.permute.xlu0 %1806
    %v1810 = vsel %vm542, %v1805, 0
    %1812 = vmatpush.bf16.msra.mxu0 0
    %1813 = vmatpush.bf16.msra.mxu0 0
    %1814 = vmatpush.bf16.msra.mxu0 0
    %1815 = vmatpush.bf16.msra.mxu0 0
    %1816 = vmatpush.bf16.msra.mxu0 0
    %1817 = vmatpush.bf16.msra.mxu0 0
    %1818 = vmatpush.bf16.msra.mxu0 0
    %1819 = vmatpush.bf16.msra.mxu0 %v1807
    %1820 = vmatmul.bf16.gmra.mxu0 %v1810
    %v1821 = vpop.f32.mrf.mxu0
    %v1822 = vadd.f32 0.0, %v1821
    %v1823 = vpop.f32.mrf.mxu0
    %v1824 = vadd.f32 0.0, %v1823
    %1825 = vdwg.mxu0
    %v1826 = vpack.c.bf16 %v1747, %v1747
    %v1827 = vpack.c.bf16 %v1749, %v1749
    %v1828 = vpack.c.bf16 %v1772, %v1772
    %v1829 = vpack.c.bf16 %v1774, %v1774
    %v1830 = vpack.c.bf16 %v1797, %v1797
    %v1831 = vpack.c.bf16 %v1799, %v1799
    %v1832 = vpack.c.bf16 %v1822, %v1822
    %v1833 = vpack.c.bf16 %v1824, %v1824
    %1842 = vrot.lane.b32.xlu0 %v1826, 96
    %v1843 = vpop.permute.xlu0 %1842
    %1844 = vrot.lane.b32.xlu0 %v1827, 96
    %v1845 = vpop.permute.xlu0 %1844
    %1846 = vrot.lane.b32.xlu0 %v1828, 96
    %v1847 = vpop.permute.xlu0 %1846
    %1848 = vrot.lane.b32.xlu0 %v1829, 96
    %v1849 = vpop.permute.xlu0 %1848
    %1850 = vrot.lane.b32.xlu0 %v1830, 96
    %v1851 = vpop.permute.xlu0 %1850
    %1852 = vrot.lane.b32.xlu0 %v1831, 96
    %v1853 = vpop.permute.xlu0 %1852
    %1854 = vrot.lane.b32.xlu0 %v1832, 96
    %v1855 = vpop.permute.xlu0 %1854
    %1856 = vrot.lane.b32.xlu0 %v1833, 96
    %v1857 = vpop.permute.xlu0 %1856
    %vm1866 = vcmask 1044224
    %1867 = vst.msk [vmem:[#allocation2] sm:$0xf] %vm1866, %v1843
    %1868 = vst.msk [vmem:[#allocation2 + $0x4] sm:$0xf] %vm1866, %v1845
    %1869 = vst.msk [vmem:[#allocation2 + $0x8] sm:$0xf] %vm1866, %v1847
    %1870 = vst.msk [vmem:[#allocation2 + $0xc] sm:$0xf] %vm1866, %v1849
    %1871 = vst.msk [vmem:[#allocation2 + $0x10] sm:$0xf] %vm1866, %v1851
    %1872 = vst.msk [vmem:[#allocation2 + $0x14] sm:$0xf] %vm1866, %v1853
    %1873 = vst.msk [vmem:[#allocation2 + $0x18] sm:$0xf] %vm1866, %v1855
    %1874 = vst.msk [vmem:[#allocation2 + $0x1c] sm:$0xf] %vm1866, %v1857
    %v1875 = vld [vmem:[#allocation2] sm:$0xf]
    %v1876 = vld [vmem:[#allocation2 + $0x4] sm:$0xf]
    %v1877 = vld [vmem:[#allocation2 + $0x8] sm:$0xf]
    %v1878 = vld [vmem:[#allocation2 + $0xc] sm:$0xf]
    %v1879 = vld [vmem:[#allocation2 + $0x10] sm:$0xf]
    %v1880 = vld [vmem:[#allocation2 + $0x14] sm:$0xf]
    %v1881 = vld [vmem:[#allocation2 + $0x18] sm:$0xf]
    %v1882 = vld [vmem:[#allocation2 + $0x1c] sm:$0xf]
    %v1883 = vld [vmem:[#allocation9] sm:$0xf]
    %v1884 = vld [vmem:[#allocation9 + $0x4] sm:$0xf]
    %v1885 = vld [vmem:[#allocation9 + $0x8] sm:$0xf]
    %v1886 = vld [vmem:[#allocation9 + $0xc] sm:$0xf]
    %v1887 = vld [vmem:[#allocation9 + $0x10] sm:$0xf]
    %v1888 = vld [vmem:[#allocation9 + $0x14] sm:$0xf]
    %v1889 = vld [vmem:[#allocation9 + $0x18] sm:$0xf]
    %v1890 = vld [vmem:[#allocation9 + $0x1c] sm:$0xf]
    %v1891 = vld [vmem:[#allocation9 + $0x20] sm:$0xf]
    %v1892 = vld [vmem:[#allocation9 + $0x24] sm:$0xf]
    %v1893 = vld [vmem:[#allocation9 + $0x28] sm:$0xf]
    %v1894 = vld [vmem:[#allocation9 + $0x2c] sm:$0xf]
    %v1895 = vld [vmem:[#allocation9 + $0x30] sm:$0xf]
    %v1896 = vld [vmem:[#allocation9 + $0x34] sm:$0xf]
    %v1897 = vld [vmem:[#allocation9 + $0x38] sm:$0xf]
    %v1898 = vld [vmem:[#allocation9 + $0x3c] sm:$0xf]
    %v1899 = vld [vmem:[%s4] sm:$0x1]
    %v1901 = vperm.slane %v1899, 0
    %v1911 = vunpack.c.l.b16 %v1875
    %v1912 = vunpack.c.l.b16 %v1876
    %v1913 = vunpack.c.l.b16 %v1877
    %v1914 = vunpack.c.l.b16 %v1878
    %v1915 = vunpack.c.l.b16 %v1879
    %v1916 = vunpack.c.l.b16 %v1880
    %v1917 = vunpack.c.l.b16 %v1881
    %v1918 = vunpack.c.l.b16 %v1882
    %v1919 = vpack.c.b16 %v1912, %v1911
    %v1920 = vpack.c.b16 %v1914, %v1913
    %v1921 = vpack.c.b16 %v1916, %v1915
    %v1922 = vpack.c.b16 %v1918, %v1917
    %v1943 = vunpack.c.l.b16 %v1883
    %v1944 = vunpack.c.l.b16 %v1884
    %v1945 = vunpack.c.l.b16 %v1885
    %v1946 = vunpack.c.l.b16 %v1886
    %v1947 = vunpack.c.l.b16 %v1887
    %v1948 = vunpack.c.l.b16 %v1888
    %v1949 = vunpack.c.l.b16 %v1889
    %v1950 = vunpack.c.l.b16 %v1890
    %v1951 = vunpack.c.l.b16 %v1891
    %v1952 = vunpack.c.l.b16 %v1892
    %v1953 = vunpack.c.l.b16 %v1893
    %v1954 = vunpack.c.l.b16 %v1894
    %v1955 = vunpack.c.l.b16 %v1895
    %v1956 = vunpack.c.l.b16 %v1896
    %v1957 = vunpack.c.l.b16 %v1897
    %v1958 = vunpack.c.l.b16 %v1898
    %v1959 = vpack.c.b16 %v1944, %v1943
    %v1960 = vpack.c.b16 %v1946, %v1945
    %v1961 = vpack.c.b16 %v1948, %v1947
    %v1962 = vpack.c.b16 %v1950, %v1949
    %v1963 = vpack.c.b16 %v1952, %v1951
    %v1964 = vpack.c.b16 %v1954, %v1953
    %v1965 = vpack.c.b16 %v1956, %v1955
    %v1966 = vpack.c.b16 %v1958, %v1957
    %1975 = vmatpush.bf16.msra.mxu0 %v1966
    %1976 = vmatpush.bf16.msra.mxu0 %v1965
    %1977 = vmatpush.bf16.msra.mxu0 %v1964
    %1978 = vmatpush.bf16.msra.mxu0 %v1963
    %1979 = vmatpush.bf16.msra.mxu0 %v1962
    %1980 = vmatpush.bf16.msra.mxu0 %v1961
    %1981 = vmatpush.bf16.msra.mxu0 %v1960
    %1982 = vmatpush.bf16.msra.mxu0 %v1959
    %1983 = vmatmul.bf16.gmra.mxu0 %v1919
    %v1984 = vpop.f32.mrf.mxu0
    %v1985 = vadd.f32 %v1901, %v1984
    %v1986 = vpop.f32.mrf.mxu0
    %v1987 = vadd.f32 %v1901, %v1986
    %1988 = vmatmul.bf16.gmra.mxu0 %v1920
    %v1989 = vpop.f32.mrf.mxu0
    %v1990 = vadd.f32 %v1901, %v1989
    %v1991 = vpop.f32.mrf.mxu0
    %v1992 = vadd.f32 %v1901, %v1991
    %1993 = vmatmul.bf16.gmra.mxu0 %v1921
    %v1994 = vpop.f32.mrf.mxu0
    %v1995 = vadd.f32 %v1901, %v1994
    %v1996 = vpop.f32.mrf.mxu0
    %v1997 = vadd.f32 %v1901, %v1996
    %1998 = vmatmul.bf16.gmra.mxu0 %v1922
    %v1999 = vpop.f32.mrf.mxu0
    %v2000 = vadd.f32 %v1901, %v1999
    %v2001 = vpop.f32.mrf.mxu0
    %v2002 = vadd.f32 %v1901, %v2001
    %2003 = vdwg.mxu0
    %v2004 = vadd.f32 %v138, %v1985
    %v2005 = vadd.f32 %v139, %v1987
    %v2006 = vadd.f32 %v140, %v1990
    %v2007 = vadd.f32 %v141, %v1992
    %v2008 = vadd.f32 %v142, %v1995
    %v2009 = vadd.f32 %v143, %v1997
    %v2010 = vadd.f32 %v144, %v2000
    %v2011 = vadd.f32 %v145, %v2002
    %v2012 = vld [vmem:[%s5] sm:$0x1]
    %v2013 = vld [vmem:[%s6] sm:$0x1]
    %2014 = vadd.xlane.f32.xlu0 %v2004
    %v2015 = vpop.xlane.xlu0 %2014
    %2016 = vadd.xlane.f32.xlu0 %v2005
    %v2017 = vpop.xlane.xlu0 %2016
    %2018 = vadd.xlane.f32.xlu0 %v2006
    %v2019 = vpop.xlane.xlu0 %2018
    %2020 = vadd.xlane.f32.xlu0 %v2007
    %v2021 = vpop.xlane.xlu0 %2020
    %2022 = vadd.xlane.f32.xlu0 %v2008
    %v2023 = vpop.xlane.xlu0 %2022
    %2024 = vadd.xlane.f32.xlu0 %v2009
    %v2025 = vpop.xlane.xlu0 %2024
    %2026 = vadd.xlane.f32.xlu0 %v2010
    %v2027 = vpop.xlane.xlu0 %2026
    %2028 = vadd.xlane.f32.xlu0 %v2011
    %v2029 = vpop.xlane.xlu0 %2028
    %v2030 = vrcp.pop 128.0
    %v2031 = vmul.f32 128.0, %v2030
    %v2032 = vsub.f32 1.0, %v2031
    %v2033 = vmul.f32 %v2030, %v2032
    %v2034 = vadd.f32 %v2030, %v2033
    %vm2035 = vweird.f32 %v2030
    %v2036 = vsel %vm2035, %v2030, %v2034
    %v2037 = vmul.f32 %v2015, %v2036
    %v2038 = vmul.f32 %v2017, %v2036
    %v2039 = vmul.f32 %v2019, %v2036
    %v2040 = vmul.f32 %v2021, %v2036
    %v2041 = vmul.f32 %v2023, %v2036
    %v2042 = vmul.f32 %v2025, %v2036
    %v2043 = vmul.f32 %v2027, %v2036
    %v2044 = vmul.f32 %v2029, %v2036
    %v2045 = vmul.f32 %v2004, %v2004
    %v2046 = vmul.f32 %v2005, %v2005
    %v2047 = vmul.f32 %v2006, %v2006
    %v2048 = vmul.f32 %v2007, %v2007
    %v2049 = vmul.f32 %v2008, %v2008
    %v2050 = vmul.f32 %v2009, %v2009
    %v2051 = vmul.f32 %v2010, %v2010
    %v2052 = vmul.f32 %v2011, %v2011
    %2053 = vadd.xlane.f32.xlu0 %v2045
    %v2054 = vpop.xlane.xlu0 %2053
    %2055 = vadd.xlane.f32.xlu0 %v2046
    %v2056 = vpop.xlane.xlu0 %2055
    %2057 = vadd.xlane.f32.xlu0 %v2047
    %v2058 = vpop.xlane.xlu0 %2057
    %2059 = vadd.xlane.f32.xlu0 %v2048
    %v2060 = vpop.xlane.xlu0 %2059
    %2061 = vadd.xlane.f32.xlu0 %v2049
    %v2062 = vpop.xlane.xlu0 %2061
    %2063 = vadd.xlane.f32.xlu0 %v2050
    %v2064 = vpop.xlane.xlu0 %2063
    %2065 = vadd.xlane.f32.xlu0 %v2051
    %v2066 = vpop.xlane.xlu0 %2065
    %2067 = vadd.xlane.f32.xlu0 %v2052
    %v2068 = vpop.xlane.xlu0 %2067
    %v2069 = vmul.f32 %v2054, %v2036
    %v2070 = vmul.f32 %v2056, %v2036
    %v2071 = vmul.f32 %v2058, %v2036
    %v2072 = vmul.f32 %v2060, %v2036
    %v2073 = vmul.f32 %v2062, %v2036
    %v2074 = vmul.f32 %v2064, %v2036
    %v2075 = vmul.f32 %v2066, %v2036
    %v2076 = vmul.f32 %v2068, %v2036
    %v2077 = vmul.f32 %v2037, %v2037
    %v2078 = vmul.f32 %v2038, %v2038
    %v2079 = vmul.f32 %v2039, %v2039
    %v2080 = vmul.f32 %v2040, %v2040
    %v2081 = vmul.f32 %v2041, %v2041
    %v2082 = vmul.f32 %v2042, %v2042
    %v2083 = vmul.f32 %v2043, %v2043
    %v2084 = vmul.f32 %v2044, %v2044
    %v2085 = vsub.f32 %v2069, %v2077
    %v2086 = vsub.f32 %v2070, %v2078
    %v2087 = vsub.f32 %v2071, %v2079
    %v2088 = vsub.f32 %v2072, %v2080
    %v2089 = vsub.f32 %v2073, %v2081
    %v2090 = vsub.f32 %v2074, %v2082
    %v2091 = vsub.f32 %v2075, %v2083
    %v2092 = vsub.f32 %v2076, %v2084
    %v2093 = vsub.f32 %v2004, %v2037
    %v2094 = vsub.f32 %v2005, %v2038
    %v2095 = vsub.f32 %v2006, %v2039
    %v2096 = vsub.f32 %v2007, %v2040
    %v2097 = vsub.f32 %v2008, %v2041
    %v2098 = vsub.f32 %v2009, %v2042
    %v2099 = vsub.f32 %v2010, %v2043
    %v2100 = vsub.f32 %v2011, %v2044
    %v2101 = vadd.f32 %v2085, 1e-05
    %v2102 = vadd.f32 %v2086, 1e-05
    %v2103 = vadd.f32 %v2087, 1e-05
    %v2104 = vadd.f32 %v2088, 1e-05
    %v2105 = vadd.f32 %v2089, 1e-05
    %v2106 = vadd.f32 %v2090, 1e-05
    %v2107 = vadd.f32 %v2091, 1e-05
    %v2108 = vadd.f32 %v2092, 1e-05
    %v2109 = vrsqrt.pop %v2101
    %v2110 = vmul.f32 %v2109, %v2101
    %v2111 = vmul.f32 %v2110, %v2109
    %v2112 = vmul.f32 0.5, %v2111
    %v2113 = vsub.f32 1.5, %v2112
    %v2114 = vmul.f32 %v2109, %v2113
    %vm2115 = vweird.f32 %v2101
    %vm2116 = vweird.f32 %v2109
    %vm2117 = vmor %vm2115, %vm2116
    %v2118 = vsel %vm2117, %v2109, %v2114
    %v2119 = vrsqrt.pop %v2102
    %v2120 = vmul.f32 %v2119, %v2102
    %v2121 = vmul.f32 %v2120, %v2119
    %v2122 = vmul.f32 0.5, %v2121
    %v2123 = vsub.f32 1.5, %v2122
    %v2124 = vmul.f32 %v2119, %v2123
    %vm2125 = vweird.f32 %v2102
    %vm2126 = vweird.f32 %v2119
    %vm2127 = vmor %vm2125, %vm2126
    %v2128 = vsel %vm2127, %v2119, %v2124
    %v2129 = vrsqrt.pop %v2103
    %v2130 = vmul.f32 %v2129, %v2103
    %v2131 = vmul.f32 %v2130, %v2129
    %v2132 = vmul.f32 0.5, %v2131
    %v2133 = vsub.f32 1.5, %v2132
    %v2134 = vmul.f32 %v2129, %v2133
    %vm2135 = vweird.f32 %v2103
    %vm2136 = vweird.f32 %v2129
    %vm2137 = vmor %vm2135, %vm2136
    %v2138 = vsel %vm2137, %v2129, %v2134
    %v2139 = vrsqrt.pop %v2104
    %v2140 = vmul.f32 %v2139, %v2104
    %v2141 = vmul.f32 %v2140, %v2139
    %v2142 = vmul.f32 0.5, %v2141
    %v2143 = vsub.f32 1.5, %v2142
    %v2144 = vmul.f32 %v2139, %v2143
    %vm2145 = vweird.f32 %v2104
    %vm2146 = vweird.f32 %v2139
    %vm2147 = vmor %vm2145, %vm2146
    %v2148 = vsel %vm2147, %v2139, %v2144
    %v2149 = vrsqrt.pop %v2105
    %v2150 = vmul.f32 %v2149, %v2105
    %v2151 = vmul.f32 %v2150, %v2149
    %v2152 = vmul.f32 0.5, %v2151
    %v2153 = vsub.f32 1.5, %v2152
    %v2154 = vmul.f32 %v2149, %v2153
    %vm2155 = vweird.f32 %v2105
    %vm2156 = vweird.f32 %v2149
    %vm2157 = vmor %vm2155, %vm2156
    %v2158 = vsel %vm2157, %v2149, %v2154
    %v2159 = vrsqrt.pop %v2106
    %v2160 = vmul.f32 %v2159, %v2106
    %v2161 = vmul.f32 %v2160, %v2159
    %v2162 = vmul.f32 0.5, %v2161
    %v2163 = vsub.f32 1.5, %v2162
    %v2164 = vmul.f32 %v2159, %v2163
    %vm2165 = vweird.f32 %v2106
    %vm2166 = vweird.f32 %v2159
    %vm2167 = vmor %vm2165, %vm2166
    %v2168 = vsel %vm2167, %v2159, %v2164
    %v2169 = vrsqrt.pop %v2107
    %v2170 = vmul.f32 %v2169, %v2107
    %v2171 = vmul.f32 %v2170, %v2169
    %v2172 = vmul.f32 0.5, %v2171
    %v2173 = vsub.f32 1.5, %v2172
    %v2174 = vmul.f32 %v2169, %v2173
    %vm2175 = vweird.f32 %v2107
    %vm2176 = vweird.f32 %v2169
    %vm2177 = vmor %vm2175, %vm2176
    %v2178 = vsel %vm2177, %v2169, %v2174
    %v2179 = vrsqrt.pop %v2108
    %v2180 = vmul.f32 %v2179, %v2108
    %v2181 = vmul.f32 %v2180, %v2179
    %v2182 = vmul.f32 0.5, %v2181
    %v2183 = vsub.f32 1.5, %v2182
    %v2184 = vmul.f32 %v2179, %v2183
    %vm2185 = vweird.f32 %v2108
    %vm2186 = vweird.f32 %v2179
    %vm2187 = vmor %vm2185, %vm2186
    %v2188 = vsel %vm2187, %v2179, %v2184
    %v2189 = vmul.f32 %v2093, %v2118
    %v2190 = vmul.f32 %v2094, %v2128
    %v2191 = vmul.f32 %v2095, %v2138
    %v2192 = vmul.f32 %v2096, %v2148
    %v2193 = vmul.f32 %v2097, %v2158
    %v2194 = vmul.f32 %v2098, %v2168
    %v2195 = vmul.f32 %v2099, %v2178
    %v2196 = vmul.f32 %v2100, %v2188
    %v2198 = vperm.slane %v2012, 0
    %v2200 = vmul.f32 %v2189, %v2198
    %v2201 = vmul.f32 %v2190, %v2198
    %v2202 = vmul.f32 %v2191, %v2198
    %v2203 = vmul.f32 %v2192, %v2198
    %v2204 = vmul.f32 %v2193, %v2198
    %v2205 = vmul.f32 %v2194, %v2198
    %v2206 = vmul.f32 %v2195, %v2198
    %v2207 = vmul.f32 %v2196, %v2198
    %v2209 = vperm.slane %v2013, 0
    %v2211 = vadd.f32 %v2200, %v2209
    %v2212 = vadd.f32 %v2201, %v2209
    %v2213 = vadd.f32 %v2202, %v2209
    %v2214 = vadd.f32 %v2203, %v2209
    %v2215 = vadd.f32 %v2204, %v2209
    %v2216 = vadd.f32 %v2205, %v2209
    %v2217 = vadd.f32 %v2206, %v2209
    %v2218 = vadd.f32 %v2207, %v2209
    %v2219 = vpack.c.bf16 %v2212, %v2211
    %v2220 = vpack.c.bf16 %v2214, %v2213
    %v2221 = vpack.c.bf16 %v2216, %v2215
    %v2222 = vpack.c.bf16 %v2218, %v2217
    %v2223 = vld [vmem:[#allocation11] sm:$0xff]
    %v2224 = vld [vmem:[#allocation11 + $0x8] sm:$0xff]
    %v2225 = vld [vmem:[#allocation11 + $0x10] sm:$0xff]
    %v2226 = vld [vmem:[#allocation11 + $0x18] sm:$0xff]
    %v2227 = vld [vmem:[#allocation11 + $0x20] sm:$0xff]
    %v2228 = vld [vmem:[#allocation11 + $0x28] sm:$0xff]
    %v2229 = vld [vmem:[#allocation11 + $0x30] sm:$0xff]
    %v2230 = vld [vmem:[#allocation11 + $0x38] sm:$0xff]
    %v2231 = vld [vmem:[#allocation11 + $0x40] sm:$0xff]
    %v2232 = vld [vmem:[#allocation11 + $0x48] sm:$0xff]
    %v2233 = vld [vmem:[#allocation11 + $0x50] sm:$0xff]
    %v2234 = vld [vmem:[#allocation11 + $0x58] sm:$0xff]
    %v2235 = vld [vmem:[#allocation11 + $0x60] sm:$0xff]
    %v2236 = vld [vmem:[#allocation11 + $0x68] sm:$0xff]
    %v2237 = vld [vmem:[#allocation11 + $0x70] sm:$0xff]
    %v2238 = vld [vmem:[#allocation11 + $0x78] sm:$0xff]
    %v2239 = vld [vmem:[#allocation11 + $0x80] sm:$0xff]
    %v2240 = vld [vmem:[#allocation11 + $0x88] sm:$0xff]
    %v2241 = vld [vmem:[#allocation11 + $0x90] sm:$0xff]
    %v2242 = vld [vmem:[#allocation11 + $0x98] sm:$0xff]
    %v2243 = vld [vmem:[#allocation11 + $0xa0] sm:$0xff]
    %v2244 = vld [vmem:[#allocation11 + $0xa8] sm:$0xff]
    %v2245 = vld [vmem:[#allocation11 + $0xb0] sm:$0xff]
    %v2246 = vld [vmem:[#allocation11 + $0xb8] sm:$0xff]
    %v2247 = vld [vmem:[#allocation11 + $0xc0] sm:$0xff]
    %v2248 = vld [vmem:[#allocation11 + $0xc8] sm:$0xff]
    %v2249 = vld [vmem:[#allocation11 + $0xd0] sm:$0xff]
    %v2250 = vld [vmem:[#allocation11 + $0xd8] sm:$0xff]
    %v2251 = vld [vmem:[#allocation11 + $0xe0] sm:$0xff]
    %v2252 = vld [vmem:[#allocation11 + $0xe8] sm:$0xff]
    %v2253 = vld [vmem:[#allocation11 + $0xf0] sm:$0xff]
    %v2254 = vld [vmem:[#allocation11 + $0xf8] sm:$0xff]
    %v2255 = vld [vmem:[%s8] sm:$0xf]
    %v2257 = vperm.slane %v2255, 0
    %v2258 = vperm.slane %v2255, 1
    %v2259 = vperm.slane %v2255, 2
    %v2260 = vperm.slane %v2255, 3
    %v2297 = vunpack.c.l.b16 %v2223
    %v2298 = vunpack.c.h.b16 %v2223
    %v2299 = vunpack.c.l.b16 %v2224
    %v2300 = vunpack.c.h.b16 %v2224
    %v2301 = vunpack.c.l.b16 %v2225
    %v2302 = vunpack.c.h.b16 %v2225
    %v2303 = vunpack.c.l.b16 %v2226
    %v2304 = vunpack.c.h.b16 %v2226
    %v2305 = vunpack.c.l.b16 %v2227
    %v2306 = vunpack.c.h.b16 %v2227
    %v2307 = vunpack.c.l.b16 %v2228
    %v2308 = vunpack.c.h.b16 %v2228
    %v2309 = vunpack.c.l.b16 %v2229
    %v2310 = vunpack.c.h.b16 %v2229
    %v2311 = vunpack.c.l.b16 %v2230
    %v2312 = vunpack.c.h.b16 %v2230
    %v2313 = vunpack.c.l.b16 %v2231
    %v2314 = vunpack.c.h.b16 %v2231
    %v2315 = vunpack.c.l.b16 %v2232
    %v2316 = vunpack.c.h.b16 %v2232
    %v2317 = vunpack.c.l.b16 %v2233
    %v2318 = vunpack.c.h.b16 %v2233
    %v2319 = vunpack.c.l.b16 %v2234
    %v2320 = vunpack.c.h.b16 %v2234
    %v2321 = vunpack.c.l.b16 %v2235
    %v2322 = vunpack.c.h.b16 %v2235
    %v2323 = vunpack.c.l.b16 %v2236
    %v2324 = vunpack.c.h.b16 %v2236
    %v2325 = vunpack.c.l.b16 %v2237
    %v2326 = vunpack.c.h.b16 %v2237
    %v2327 = vunpack.c.l.b16 %v2238
    %v2328 = vunpack.c.h.b16 %v2238
    %v2329 = vunpack.c.l.b16 %v2239
    %v2330 = vunpack.c.h.b16 %v2239
    %v2331 = vunpack.c.l.b16 %v2240
    %v2332 = vunpack.c.h.b16 %v2240
    %v2333 = vunpack.c.l.b16 %v2241
    %v2334 = vunpack.c.h.b16 %v2241
    %v2335 = vunpack.c.l.b16 %v2242
    %v2336 = vunpack.c.h.b16 %v2242
    %v2337 = vunpack.c.l.b16 %v2243
    %v2338 = vunpack.c.h.b16 %v2243
    %v2339 = vunpack.c.l.b16 %v2244
    %v2340 = vunpack.c.h.b16 %v2244
    %v2341 = vunpack.c.l.b16 %v2245
    %v2342 = vunpack.c.h.b16 %v2245
    %v2343 = vunpack.c.l.b16 %v2246
    %v2344 = vunpack.c.h.b16 %v2246
    %v2345 = vunpack.c.l.b16 %v2247
    %v2346 = vunpack.c.h.b16 %v2247
    %v2347 = vunpack.c.l.b16 %v2248
    %v2348 = vunpack.c.h.b16 %v2248
    %v2349 = vunpack.c.l.b16 %v2249
    %v2350 = vunpack.c.h.b16 %v2249
    %v2351 = vunpack.c.l.b16 %v2250
    %v2352 = vunpack.c.h.b16 %v2250
    %v2353 = vunpack.c.l.b16 %v2251
    %v2354 = vunpack.c.h.b16 %v2251
    %v2355 = vunpack.c.l.b16 %v2252
    %v2356 = vunpack.c.h.b16 %v2252
    %v2357 = vunpack.c.l.b16 %v2253
    %v2358 = vunpack.c.h.b16 %v2253
    %v2359 = vunpack.c.l.b16 %v2254
    %v2360 = vunpack.c.h.b16 %v2254
    %v2361 = vpack.c.b16 %v2301, %v2297
    %v2362 = vpack.c.b16 %v2302, %v2298
    %v2363 = vpack.c.b16 %v2303, %v2299
    %v2364 = vpack.c.b16 %v2304, %v2300
    %v2365 = vpack.c.b16 %v2309, %v2305
    %v2366 = vpack.c.b16 %v2310, %v2306
    %v2367 = vpack.c.b16 %v2311, %v2307
    %v2368 = vpack.c.b16 %v2312, %v2308
    %v2369 = vpack.c.b16 %v2317, %v2313
    %v2370 = vpack.c.b16 %v2318, %v2314
    %v2371 = vpack.c.b16 %v2319, %v2315
    %v2372 = vpack.c.b16 %v2320, %v2316
    %v2373 = vpack.c.b16 %v2325, %v2321
    %v2374 = vpack.c.b16 %v2326, %v2322
    %v2375 = vpack.c.b16 %v2327, %v2323
    %v2376 = vpack.c.b16 %v2328, %v2324
    %v2377 = vpack.c.b16 %v2333, %v2329
    %v2378 = vpack.c.b16 %v2334, %v2330
    %v2379 = vpack.c.b16 %v2335, %v2331
    %v2380 = vpack.c.b16 %v2336, %v2332
    %v2381 = vpack.c.b16 %v2341, %v2337
    %v2382 = vpack.c.b16 %v2342, %v2338
    %v2383 = vpack.c.b16 %v2343, %v2339
    %v2384 = vpack.c.b16 %v2344, %v2340
    %v2385 = vpack.c.b16 %v2349, %v2345
    %v2386 = vpack.c.b16 %v2350, %v2346
    %v2387 = vpack.c.b16 %v2351, %v2347
    %v2388 = vpack.c.b16 %v2352, %v2348
    %v2389 = vpack.c.b16 %v2357, %v2353
    %v2390 = vpack.c.b16 %v2358, %v2354
    %v2391 = vpack.c.b16 %v2359, %v2355
    %v2392 = vpack.c.b16 %v2360, %v2356
    %2425 = vmatpush.bf16.msra.mxu0 %v2389
    %2426 = vmatpush.bf16.msra.mxu0 %v2385
    %2427 = vmatpush.bf16.msra.mxu0 %v2381
    %2428 = vmatpush.bf16.msra.mxu0 %v2377
    %2429 = vmatpush.bf16.msra.mxu0 %v2373
    %2430 = vmatpush.bf16.msra.mxu0 %v2369
    %2431 = vmatpush.bf16.msra.mxu0 %v2365
    %2432 = vmatpush.bf16.msra.mxu0 %v2361
    %2433 = vmatmul.bf16.gmra.mxu0 %v2219
    %v2434 = vpop.f32.mrf.mxu0
    %v2435 = vadd.f32 %v2257, %v2434
    %v2436 = vpop.f32.mrf.mxu0
    %v2437 = vadd.f32 %v2257, %v2436
    %2438 = vmatmul.bf16.gmra.mxu0 %v2220
    %v2439 = vpop.f32.mrf.mxu0
    %v2440 = vadd.f32 %v2257, %v2439
    %v2441 = vpop.f32.mrf.mxu0
    %v2442 = vadd.f32 %v2257, %v2441
    %2443 = vmatmul.bf16.gmra.mxu0 %v2221
    %v2444 = vpop.f32.mrf.mxu0
    %v2445 = vadd.f32 %v2257, %v2444
    %v2446 = vpop.f32.mrf.mxu0
    %v2447 = vadd.f32 %v2257, %v2446
    %2448 = vmatmul.bf16.gmra.mxu0 %v2222
    %v2449 = vpop.f32.mrf.mxu0
    %v2450 = vadd.f32 %v2257, %v2449
    %v2451 = vpop.f32.mrf.mxu0
    %v2452 = vadd.f32 %v2257, %v2451
    %2453 = vdwg.mxu0
    %2454 = vmatpush.bf16.msra.mxu0 %v2390
    %2455 = vmatpush.bf16.msra.mxu0 %v2386
    %2456 = vmatpush.bf16.msra.mxu0 %v2382
    %2457 = vmatpush.bf16.msra.mxu0 %v2378
    %2458 = vmatpush.bf16.msra.mxu0 %v2374
    %2459 = vmatpush.bf16.msra.mxu0 %v2370
    %2460 = vmatpush.bf16.msra.mxu0 %v2366
    %2461 = vmatpush.bf16.msra.mxu0 %v2362
    %2462 = vmatmul.bf16.gmra.mxu0 %v2219
    %v2463 = vpop.f32.mrf.mxu0
    %v2464 = vadd.f32 %v2258, %v2463
    %v2465 = vpop.f32.mrf.mxu0
    %v2466 = vadd.f32 %v2258, %v2465
    %2467 = vmatmul.bf16.gmra.mxu0 %v2220
    %v2468 = vpop.f32.mrf.mxu0
    %v2469 = vadd.f32 %v2258, %v2468
    %v2470 = vpop.f32.mrf.mxu0
    %v2471 = vadd.f32 %v2258, %v2470
    %2472 = vmatmul.bf16.gmra.mxu0 %v2221
    %v2473 = vpop.f32.mrf.mxu0
    %v2474 = vadd.f32 %v2258, %v2473
    %v2475 = vpop.f32.mrf.mxu0
    %v2476 = vadd.f32 %v2258, %v2475
    %2477 = vmatmul.bf16.gmra.mxu0 %v2222
    %v2478 = vpop.f32.mrf.mxu0
    %v2479 = vadd.f32 %v2258, %v2478
    %v2480 = vpop.f32.mrf.mxu0
    %v2481 = vadd.f32 %v2258, %v2480
    %2482 = vdwg.mxu0
    %2483 = vmatpush.bf16.msra.mxu0 %v2391
    %2484 = vmatpush.bf16.msra.mxu0 %v2387
    %2485 = vmatpush.bf16.msra.mxu0 %v2383
    %2486 = vmatpush.bf16.msra.mxu0 %v2379
    %2487 = vmatpush.bf16.msra.mxu0 %v2375
    %2488 = vmatpush.bf16.msra.mxu0 %v2371
    %2489 = vmatpush.bf16.msra.mxu0 %v2367
    %2490 = vmatpush.bf16.msra.mxu0 %v2363
    %2491 = vmatmul.bf16.gmra.mxu0 %v2219
    %v2492 = vpop.f32.mrf.mxu0
    %v2493 = vadd.f32 %v2259, %v2492
    %v2494 = vpop.f32.mrf.mxu0
    %v2495 = vadd.f32 %v2259, %v2494
    %2496 = vmatmul.bf16.gmra.mxu0 %v2220
    %v2497 = vpop.f32.mrf.mxu0
    %v2498 = vadd.f32 %v2259, %v2497
    %v2499 = vpop.f32.mrf.mxu0
    %v2500 = vadd.f32 %v2259, %v2499
    %2501 = vmatmul.bf16.gmra.mxu0 %v2221
    %v2502 = vpop.f32.mrf.mxu0
    %v2503 = vadd.f32 %v2259, %v2502
    %v2504 = vpop.f32.mrf.mxu0
    %v2505 = vadd.f32 %v2259, %v2504
    %2506 = vmatmul.bf16.gmra.mxu0 %v2222
    %v2507 = vpop.f32.mrf.mxu0
    %v2508 = vadd.f32 %v2259, %v2507
    %v2509 = vpop.f32.mrf.mxu0
    %v2510 = vadd.f32 %v2259, %v2509
    %2511 = vdwg.mxu0
    %2512 = vmatpush.bf16.msra.mxu0 %v2392
    %2513 = vmatpush.bf16.msra.mxu0 %v2388
    %2514 = vmatpush.bf16.msra.mxu0 %v2384
    %2515 = vmatpush.bf16.msra.mxu0 %v2380
    %2516 = vmatpush.bf16.msra.mxu0 %v2376
    %2517 = vmatpush.bf16.msra.mxu0 %v2372
    %2518 = vmatpush.bf16.msra.mxu0 %v2368
    %2519 = vmatpush.bf16.msra.mxu0 %v2364
    %2520 = vmatmul.bf16.gmra.mxu0 %v2219
    %v2521 = vpop.f32.mrf.mxu0
    %v2522 = vadd.f32 %v2260, %v2521
    %v2523 = vpop.f32.mrf.mxu0
    %v2524 = vadd.f32 %v2260, %v2523
    %2525 = vmatmul.bf16.gmra.mxu0 %v2220
    %v2526 = vpop.f32.mrf.mxu0
    %v2527 = vadd.f32 %v2260, %v2526
    %v2528 = vpop.f32.mrf.mxu0
    %v2529 = vadd.f32 %v2260, %v2528
    %2530 = vmatmul.bf16.gmra.mxu0 %v2221
    %v2531 = vpop.f32.mrf.mxu0
    %v2532 = vadd.f32 %v2260, %v2531
    %v2533 = vpop.f32.mrf.mxu0
    %v2534 = vadd.f32 %v2260, %v2533
    %2535 = vmatmul.bf16.gmra.mxu0 %v2222
    %v2536 = vpop.f32.mrf.mxu0
    %v2537 = vadd.f32 %v2260, %v2536
    %v2538 = vpop.f32.mrf.mxu0
    %v2539 = vadd.f32 %v2260, %v2538
    %2540 = vdwg.mxu0
    %v2541 = vmax.f32 %v2435, 0.0
    %v2542 = vmax.f32 %v2464, 0.0
    %v2543 = vmax.f32 %v2493, 0.0
    %v2544 = vmax.f32 %v2522, 0.0
    %v2545 = vmax.f32 %v2437, 0.0
    %v2546 = vmax.f32 %v2466, 0.0
    %v2547 = vmax.f32 %v2495, 0.0
    %v2548 = vmax.f32 %v2524, 0.0
    %v2549 = vmax.f32 %v2440, 0.0
    %v2550 = vmax.f32 %v2469, 0.0
    %v2551 = vmax.f32 %v2498, 0.0
    %v2552 = vmax.f32 %v2527, 0.0
    %v2553 = vmax.f32 %v2442, 0.0
    %v2554 = vmax.f32 %v2471, 0.0
    %v2555 = vmax.f32 %v2500, 0.0
    %v2556 = vmax.f32 %v2529, 0.0
    %v2557 = vmax.f32 %v2445, 0.0
    %v2558 = vmax.f32 %v2474, 0.0
    %v2559 = vmax.f32 %v2503, 0.0
    %v2560 = vmax.f32 %v2532, 0.0
    %v2561 = vmax.f32 %v2447, 0.0
    %v2562 = vmax.f32 %v2476, 0.0
    %v2563 = vmax.f32 %v2505, 0.0
    %v2564 = vmax.f32 %v2534, 0.0
    %v2565 = vmax.f32 %v2450, 0.0
    %v2566 = vmax.f32 %v2479, 0.0
    %v2567 = vmax.f32 %v2508, 0.0
    %v2568 = vmax.f32 %v2537, 0.0
    %v2569 = vmax.f32 %v2452, 0.0
    %v2570 = vmax.f32 %v2481, 0.0
    %v2571 = vmax.f32 %v2510, 0.0
    %v2572 = vmax.f32 %v2539, 0.0
    %v2573 = vpack.c.bf16 %v2545, %v2541
    %v2574 = vpack.c.bf16 %v2546, %v2542
    %v2575 = vpack.c.bf16 %v2547, %v2543
    %v2576 = vpack.c.bf16 %v2548, %v2544
    %v2577 = vpack.c.bf16 %v2553, %v2549
    %v2578 = vpack.c.bf16 %v2554, %v2550
    %v2579 = vpack.c.bf16 %v2555, %v2551
    %v2580 = vpack.c.bf16 %v2556, %v2552
    %v2581 = vpack.c.bf16 %v2561, %v2557
    %v2582 = vpack.c.bf16 %v2562, %v2558
    %v2583 = vpack.c.bf16 %v2563, %v2559
    %v2584 = vpack.c.bf16 %v2564, %v2560
    %v2585 = vpack.c.bf16 %v2569, %v2565
    %v2586 = vpack.c.bf16 %v2570, %v2566
    %v2587 = vpack.c.bf16 %v2571, %v2567
    %v2588 = vpack.c.bf16 %v2572, %v2568
    %v2589 = vld [vmem:[#allocation12] sm:$0xf]
    %v2590 = vld [vmem:[#allocation12 + $0x4] sm:$0xf]
    %v2591 = vld [vmem:[#allocation12 + $0x8] sm:$0xf]
    %v2592 = vld [vmem:[#allocation12 + $0xc] sm:$0xf]
    %v2593 = vld [vmem:[#allocation12 + $0x10] sm:$0xf]
    %v2594 = vld [vmem:[#allocation12 + $0x14] sm:$0xf]
    %v2595 = vld [vmem:[#allocation12 + $0x18] sm:$0xf]
    %v2596 = vld [vmem:[#allocation12 + $0x1c] sm:$0xf]
    %v2597 = vld [vmem:[#allocation12 + $0x20] sm:$0xf]
    %v2598 = vld [vmem:[#allocation12 + $0x24] sm:$0xf]
    %v2599 = vld [vmem:[#allocation12 + $0x28] sm:$0xf]
    %v2600 = vld [vmem:[#allocation12 + $0x2c] sm:$0xf]
    %v2601 = vld [vmem:[#allocation12 + $0x30] sm:$0xf]
    %v2602 = vld [vmem:[#allocation12 + $0x34] sm:$0xf]
    %v2603 = vld [vmem:[#allocation12 + $0x38] sm:$0xf]
    %v2604 = vld [vmem:[#allocation12 + $0x3c] sm:$0xf]
    %v2605 = vld [vmem:[#allocation12 + $0x40] sm:$0xf]
    %v2606 = vld [vmem:[#allocation12 + $0x44] sm:$0xf]
    %v2607 = vld [vmem:[#allocation12 + $0x48] sm:$0xf]
    %v2608 = vld [vmem:[#allocation12 + $0x4c] sm:$0xf]
    %v2609 = vld [vmem:[#allocation12 + $0x50] sm:$0xf]
    %v2610 = vld [vmem:[#allocation12 + $0x54] sm:$0xf]
    %v2611 = vld [vmem:[#allocation12 + $0x58] sm:$0xf]
    %v2612 = vld [vmem:[#allocation12 + $0x5c] sm:$0xf]
    %v2613 = vld [vmem:[#allocation12 + $0x60] sm:$0xf]
    %v2614 = vld [vmem:[#allocation12 + $0x64] sm:$0xf]
    %v2615 = vld [vmem:[#allocation12 + $0x68] sm:$0xf]
    %v2616 = vld [vmem:[#allocation12 + $0x6c] sm:$0xf]
    %v2617 = vld [vmem:[#allocation12 + $0x70] sm:$0xf]
    %v2618 = vld [vmem:[#allocation12 + $0x74] sm:$0xf]
    %v2619 = vld [vmem:[#allocation12 + $0x78] sm:$0xf]
    %v2620 = vld [vmem:[#allocation12 + $0x7c] sm:$0xf]
    %v2621 = vld [vmem:[#allocation12 + $0x80] sm:$0xf]
    %v2622 = vld [vmem:[#allocation12 + $0x84] sm:$0xf]
    %v2623 = vld [vmem:[#allocation12 + $0x88] sm:$0xf]
    %v2624 = vld [vmem:[#allocation12 + $0x8c] sm:$0xf]
    %v2625 = vld [vmem:[#allocation12 + $0x90] sm:$0xf]
    %v2626 = vld [vmem:[#allocation12 + $0x94] sm:$0xf]
    %v2627 = vld [vmem:[#allocation12 + $0x98] sm:$0xf]
    %v2628 = vld [vmem:[#allocation12 + $0x9c] sm:$0xf]
    %v2629 = vld [vmem:[#allocation12 + $0xa0] sm:$0xf]
    %v2630 = vld [vmem:[#allocation12 + $0xa4] sm:$0xf]
    %v2631 = vld [vmem:[#allocation12 + $0xa8] sm:$0xf]
    %v2632 = vld [vmem:[#allocation12 + $0xac] sm:$0xf]
    %v2633 = vld [vmem:[#allocation12 + $0xb0] sm:$0xf]
    %v2634 = vld [vmem:[#allocation12 + $0xb4] sm:$0xf]
    %v2635 = vld [vmem:[#allocation12 + $0xb8] sm:$0xf]
    %v2636 = vld [vmem:[#allocation12 + $0xbc] sm:$0xf]
    %v2637 = vld [vmem:[#allocation12 + $0xc0] sm:$0xf]
    %v2638 = vld [vmem:[#allocation12 + $0xc4] sm:$0xf]
    %v2639 = vld [vmem:[#allocation12 + $0xc8] sm:$0xf]
    %v2640 = vld [vmem:[#allocation12 + $0xcc] sm:$0xf]
    %v2641 = vld [vmem:[#allocation12 + $0xd0] sm:$0xf]
    %v2642 = vld [vmem:[#allocation12 + $0xd4] sm:$0xf]
    %v2643 = vld [vmem:[#allocation12 + $0xd8] sm:$0xf]
    %v2644 = vld [vmem:[#allocation12 + $0xdc] sm:$0xf]
    %v2645 = vld [vmem:[#allocation12 + $0xe0] sm:$0xf]
    %v2646 = vld [vmem:[#allocation12 + $0xe4] sm:$0xf]
    %v2647 = vld [vmem:[#allocation12 + $0xe8] sm:$0xf]
    %v2648 = vld [vmem:[#allocation12 + $0xec] sm:$0xf]
    %v2649 = vld [vmem:[#allocation12 + $0xf0] sm:$0xf]
    %v2650 = vld [vmem:[#allocation12 + $0xf4] sm:$0xf]
    %v2651 = vld [vmem:[#allocation12 + $0xf8] sm:$0xf]
    %v2652 = vld [vmem:[#allocation12 + $0xfc] sm:$0xf]
    %v2653 = vld [vmem:[%s10] sm:$0x1]
    %v2655 = vperm.slane %v2653, 0
    %v2721 = vunpack.c.l.b16 %v2589
    %v2722 = vunpack.c.l.b16 %v2590
    %v2723 = vunpack.c.l.b16 %v2591
    %v2724 = vunpack.c.l.b16 %v2592
    %v2725 = vunpack.c.l.b16 %v2593
    %v2726 = vunpack.c.l.b16 %v2594
    %v2727 = vunpack.c.l.b16 %v2595
    %v2728 = vunpack.c.l.b16 %v2596
    %v2729 = vunpack.c.l.b16 %v2597
    %v2730 = vunpack.c.l.b16 %v2598
    %v2731 = vunpack.c.l.b16 %v2599
    %v2732 = vunpack.c.l.b16 %v2600
    %v2733 = vunpack.c.l.b16 %v2601
    %v2734 = vunpack.c.l.b16 %v2602
    %v2735 = vunpack.c.l.b16 %v2603
    %v2736 = vunpack.c.l.b16 %v2604
    %v2737 = vunpack.c.l.b16 %v2605
    %v2738 = vunpack.c.l.b16 %v2606
    %v2739 = vunpack.c.l.b16 %v2607
    %v2740 = vunpack.c.l.b16 %v2608
    %v2741 = vunpack.c.l.b16 %v2609
    %v2742 = vunpack.c.l.b16 %v2610
    %v2743 = vunpack.c.l.b16 %v2611
    %v2744 = vunpack.c.l.b16 %v2612
    %v2745 = vunpack.c.l.b16 %v2613
    %v2746 = vunpack.c.l.b16 %v2614
    %v2747 = vunpack.c.l.b16 %v2615
    %v2748 = vunpack.c.l.b16 %v2616
    %v2749 = vunpack.c.l.b16 %v2617
    %v2750 = vunpack.c.l.b16 %v2618
    %v2751 = vunpack.c.l.b16 %v2619
    %v2752 = vunpack.c.l.b16 %v2620
    %v2753 = vunpack.c.l.b16 %v2621
    %v2754 = vunpack.c.l.b16 %v2622
    %v2755 = vunpack.c.l.b16 %v2623
    %v2756 = vunpack.c.l.b16 %v2624
    %v2757 = vunpack.c.l.b16 %v2625
    %v2758 = vunpack.c.l.b16 %v2626
    %v2759 = vunpack.c.l.b16 %v2627
    %v2760 = vunpack.c.l.b16 %v2628
    %v2761 = vunpack.c.l.b16 %v2629
    %v2762 = vunpack.c.l.b16 %v2630
    %v2763 = vunpack.c.l.b16 %v2631
    %v2764 = vunpack.c.l.b16 %v2632
    %v2765 = vunpack.c.l.b16 %v2633
    %v2766 = vunpack.c.l.b16 %v2634
    %v2767 = vunpack.c.l.b16 %v2635
    %v2768 = vunpack.c.l.b16 %v2636
    %v2769 = vunpack.c.l.b16 %v2637
    %v2770 = vunpack.c.l.b16 %v2638
    %v2771 = vunpack.c.l.b16 %v2639
    %v2772 = vunpack.c.l.b16 %v2640
    %v2773 = vunpack.c.l.b16 %v2641
    %v2774 = vunpack.c.l.b16 %v2642
    %v2775 = vunpack.c.l.b16 %v2643
    %v2776 = vunpack.c.l.b16 %v2644
    %v2777 = vunpack.c.l.b16 %v2645
    %v2778 = vunpack.c.l.b16 %v2646
    %v2779 = vunpack.c.l.b16 %v2647
    %v2780 = vunpack.c.l.b16 %v2648
    %v2781 = vunpack.c.l.b16 %v2649
    %v2782 = vunpack.c.l.b16 %v2650
    %v2783 = vunpack.c.l.b16 %v2651
    %v2784 = vunpack.c.l.b16 %v2652
    %v2785 = vpack.c.b16 %v2722, %v2721
    %v2786 = vpack.c.b16 %v2724, %v2723
    %v2787 = vpack.c.b16 %v2726, %v2725
    %v2788 = vpack.c.b16 %v2728, %v2727
    %v2789 = vpack.c.b16 %v2730, %v2729
    %v2790 = vpack.c.b16 %v2732, %v2731
    %v2791 = vpack.c.b16 %v2734, %v2733
    %v2792 = vpack.c.b16 %v2736, %v2735
    %v2793 = vpack.c.b16 %v2738, %v2737
    %v2794 = vpack.c.b16 %v2740, %v2739
    %v2795 = vpack.c.b16 %v2742, %v2741
    %v2796 = vpack.c.b16 %v2744, %v2743
    %v2797 = vpack.c.b16 %v2746, %v2745
    %v2798 = vpack.c.b16 %v2748, %v2747
    %v2799 = vpack.c.b16 %v2750, %v2749
    %v2800 = vpack.c.b16 %v2752, %v2751
    %v2801 = vpack.c.b16 %v2754, %v2753
    %v2802 = vpack.c.b16 %v2756, %v2755
    %v2803 = vpack.c.b16 %v2758, %v2757
    %v2804 = vpack.c.b16 %v2760, %v2759
    %v2805 = vpack.c.b16 %v2762, %v2761
    %v2806 = vpack.c.b16 %v2764, %v2763
    %v2807 = vpack.c.b16 %v2766, %v2765
    %v2808 = vpack.c.b16 %v2768, %v2767
    %v2809 = vpack.c.b16 %v2770, %v2769
    %v2810 = vpack.c.b16 %v2772, %v2771
    %v2811 = vpack.c.b16 %v2774, %v2773
    %v2812 = vpack.c.b16 %v2776, %v2775
    %v2813 = vpack.c.b16 %v2778, %v2777
    %v2814 = vpack.c.b16 %v2780, %v2779
    %v2815 = vpack.c.b16 %v2782, %v2781
    %v2816 = vpack.c.b16 %v2784, %v2783
    %2849 = vmatpush.bf16.msra.mxu0 %v2792
    %2850 = vmatpush.bf16.msra.mxu0 %v2791
    %2851 = vmatpush.bf16.msra.mxu0 %v2790
    %2852 = vmatpush.bf16.msra.mxu0 %v2789
    %2853 = vmatpush.bf16.msra.mxu0 %v2788
    %2854 = vmatpush.bf16.msra.mxu0 %v2787
    %2855 = vmatpush.bf16.msra.mxu0 %v2786
    %2856 = vmatpush.bf16.msra.mxu0 %v2785
    %2857 = vmatmul.bf16.gmra.mxu0 %v2573
    %v2858 = vpop.f32.mrf.mxu0
    %v2859 = vadd.f32 %v2655, %v2858
    %v2860 = vpop.f32.mrf.mxu0
    %v2861 = vadd.f32 %v2655, %v2860
    %2862 = vmatmul.bf16.gmra.mxu0 %v2577
    %v2863 = vpop.f32.mrf.mxu0
    %v2864 = vadd.f32 %v2655, %v2863
    %v2865 = vpop.f32.mrf.mxu0
    %v2866 = vadd.f32 %v2655, %v2865
    %2867 = vmatmul.bf16.gmra.mxu0 %v2581
    %v2868 = vpop.f32.mrf.mxu0
    %v2869 = vadd.f32 %v2655, %v2868
    %v2870 = vpop.f32.mrf.mxu0
    %v2871 = vadd.f32 %v2655, %v2870
    %2872 = vmatmul.bf16.gmra.mxu0 %v2585
    %v2873 = vpop.f32.mrf.mxu0
    %v2874 = vadd.f32 %v2655, %v2873
    %v2875 = vpop.f32.mrf.mxu0
    %v2876 = vadd.f32 %v2655, %v2875
    %2877 = vdwg.mxu0
    %2878 = vmatpush.bf16.msra.mxu0 %v2800
    %2879 = vmatpush.bf16.msra.mxu0 %v2799
    %2880 = vmatpush.bf16.msra.mxu0 %v2798
    %2881 = vmatpush.bf16.msra.mxu0 %v2797
    %2882 = vmatpush.bf16.msra.mxu0 %v2796
    %2883 = vmatpush.bf16.msra.mxu0 %v2795
    %2884 = vmatpush.bf16.msra.mxu0 %v2794
    %2885 = vmatpush.bf16.msra.mxu0 %v2793
    %2886 = vmatmul.bf16.gmra.mxu0 %v2574
    %v2887 = vpop.f32.mrf.mxu0
    %v2888 = vadd.f32 %v2859, %v2887
    %v2889 = vpop.f32.mrf.mxu0
    %v2890 = vadd.f32 %v2861, %v2889
    %2891 = vmatmul.bf16.gmra.mxu0 %v2578
    %v2892 = vpop.f32.mrf.mxu0
    %v2893 = vadd.f32 %v2864, %v2892
    %v2894 = vpop.f32.mrf.mxu0
    %v2895 = vadd.f32 %v2866, %v2894
    %2896 = vmatmul.bf16.gmra.mxu0 %v2582
    %v2897 = vpop.f32.mrf.mxu0
    %v2898 = vadd.f32 %v2869, %v2897
    %v2899 = vpop.f32.mrf.mxu0
    %v2900 = vadd.f32 %v2871, %v2899
    %2901 = vmatmul.bf16.gmra.mxu0 %v2586
    %v2902 = vpop.f32.mrf.mxu0
    %v2903 = vadd.f32 %v2874, %v2902
    %v2904 = vpop.f32.mrf.mxu0
    %v2905 = vadd.f32 %v2876, %v2904
    %2906 = vdwg.mxu0
    %2907 = vmatpush.bf16.msra.mxu0 %v2808
    %2908 = vmatpush.bf16.msra.mxu0 %v2807
    %2909 = vmatpush.bf16.msra.mxu0 %v2806
    %2910 = vmatpush.bf16.msra.mxu0 %v2805
    %2911 = vmatpush.bf16.msra.mxu0 %v2804
    %2912 = vmatpush.bf16.msra.mxu0 %v2803
    %2913 = vmatpush.bf16.msra.mxu0 %v2802
    %2914 = vmatpush.bf16.msra.mxu0 %v2801
    %2915 = vmatmul.bf16.gmra.mxu0 %v2575
    %v2916 = vpop.f32.mrf.mxu0
    %v2917 = vadd.f32 %v2888, %v2916
    %v2918 = vpop.f32.mrf.mxu0
    %v2919 = vadd.f32 %v2890, %v2918
    %2920 = vmatmul.bf16.gmra.mxu0 %v2579
    %v2921 = vpop.f32.mrf.mxu0
    %v2922 = vadd.f32 %v2893, %v2921
    %v2923 = vpop.f32.mrf.mxu0
    %v2924 = vadd.f32 %v2895, %v2923
    %2925 = vmatmul.bf16.gmra.mxu0 %v2583
    %v2926 = vpop.f32.mrf.mxu0
    %v2927 = vadd.f32 %v2898, %v2926
    %v2928 = vpop.f32.mrf.mxu0
    %v2929 = vadd.f32 %v2900, %v2928
    %2930 = vmatmul.bf16.gmra.mxu0 %v2587
    %v2931 = vpop.f32.mrf.mxu0
    %v2932 = vadd.f32 %v2903, %v2931
    %v2933 = vpop.f32.mrf.mxu0
    %v2934 = vadd.f32 %v2905, %v2933
    %2935 = vdwg.mxu0
    %2936 = vmatpush.bf16.msra.mxu0 %v2816
    %2937 = vmatpush.bf16.msra.mxu0 %v2815
    %2938 = vmatpush.bf16.msra.mxu0 %v2814
    %2939 = vmatpush.bf16.msra.mxu0 %v2813
    %2940 = vmatpush.bf16.msra.mxu0 %v2812
    %2941 = vmatpush.bf16.msra.mxu0 %v2811
    %2942 = vmatpush.bf16.msra.mxu0 %v2810
    %2943 = vmatpush.bf16.msra.mxu0 %v2809
    %2944 = vmatmul.bf16.gmra.mxu0 %v2576
    %v2945 = vpop.f32.mrf.mxu0
    %v2946 = vadd.f32 %v2917, %v2945
    %v2947 = vpop.f32.mrf.mxu0
    %v2948 = vadd.f32 %v2919, %v2947
    %2949 = vmatmul.bf16.gmra.mxu0 %v2580
    %v2950 = vpop.f32.mrf.mxu0
    %v2951 = vadd.f32 %v2922, %v2950
    %v2952 = vpop.f32.mrf.mxu0
    %v2953 = vadd.f32 %v2924, %v2952
    %2954 = vmatmul.bf16.gmra.mxu0 %v2584
    %v2955 = vpop.f32.mrf.mxu0
    %v2956 = vadd.f32 %v2927, %v2955
    %v2957 = vpop.f32.mrf.mxu0
    %v2958 = vadd.f32 %v2929, %v2957
    %2959 = vmatmul.bf16.gmra.mxu0 %v2588
    %v2960 = vpop.f32.mrf.mxu0
    %v2961 = vadd.f32 %v2932, %v2960
    %v2962 = vpop.f32.mrf.mxu0
    %v2963 = vadd.f32 %v2934, %v2962
    %2964 = vdwg.mxu0
    %v2965 = vadd.f32 %v2211, %v2946
    %v2966 = vadd.f32 %v2212, %v2948
    %v2967 = vadd.f32 %v2213, %v2951
    %v2968 = vadd.f32 %v2214, %v2953
    %v2969 = vadd.f32 %v2215, %v2956
    %v2970 = vadd.f32 %v2216, %v2958
    %v2971 = vadd.f32 %v2217, %v2961
    %v2972 = vadd.f32 %v2218, %v2963
    %v2973 = vld [vmem:[%s11] sm:$0x1]
    %v2974 = vld [vmem:[%s12] sm:$0x1]
    %2975 = vadd.xlane.f32.xlu0 %v2965
    %v2976 = vpop.xlane.xlu0 %2975
    %2977 = vadd.xlane.f32.xlu0 %v2966
    %v2978 = vpop.xlane.xlu0 %2977
    %2979 = vadd.xlane.f32.xlu0 %v2967
    %v2980 = vpop.xlane.xlu0 %2979
    %2981 = vadd.xlane.f32.xlu0 %v2968
    %v2982 = vpop.xlane.xlu0 %2981
    %2983 = vadd.xlane.f32.xlu0 %v2969
    %v2984 = vpop.xlane.xlu0 %2983
    %2985 = vadd.xlane.f32.xlu0 %v2970
    %v2986 = vpop.xlane.xlu0 %2985
    %2987 = vadd.xlane.f32.xlu0 %v2971
    %v2988 = vpop.xlane.xlu0 %2987
    %2989 = vadd.xlane.f32.xlu0 %v2972
    %v2990 = vpop.xlane.xlu0 %2989
    %v2991 = vmul.f32 %v2976, %v2036
    %v2992 = vmul.f32 %v2978, %v2036
    %v2993 = vmul.f32 %v2980, %v2036
    %v2994 = vmul.f32 %v2982, %v2036
    %v2995 = vmul.f32 %v2984, %v2036
    %v2996 = vmul.f32 %v2986, %v2036
    %v2997 = vmul.f32 %v2988, %v2036
    %v2998 = vmul.f32 %v2990, %v2036
    %v2999 = vmul.f32 %v2965, %v2965
    %v3000 = vmul.f32 %v2966, %v2966
    %v3001 = vmul.f32 %v2967, %v2967
    %v3002 = vmul.f32 %v2968, %v2968
    %v3003 = vmul.f32 %v2969, %v2969
    %v3004 = vmul.f32 %v2970, %v2970
    %v3005 = vmul.f32 %v2971, %v2971
    %v3006 = vmul.f32 %v2972, %v2972
    %3007 = vadd.xlane.f32.xlu0 %v2999
    %v3008 = vpop.xlane.xlu0 %3007
    %3009 = vadd.xlane.f32.xlu0 %v3000
    %v3010 = vpop.xlane.xlu0 %3009
    %3011 = vadd.xlane.f32.xlu0 %v3001
    %v3012 = vpop.xlane.xlu0 %3011
    %3013 = vadd.xlane.f32.xlu0 %v3002
    %v3014 = vpop.xlane.xlu0 %3013
    %3015 = vadd.xlane.f32.xlu0 %v3003
    %v3016 = vpop.xlane.xlu0 %3015
    %3017 = vadd.xlane.f32.xlu0 %v3004
    %v3018 = vpop.xlane.xlu0 %3017
    %3019 = vadd.xlane.f32.xlu0 %v3005
    %v3020 = vpop.xlane.xlu0 %3019
    %3021 = vadd.xlane.f32.xlu0 %v3006
    %v3022 = vpop.xlane.xlu0 %3021
    %v3023 = vmul.f32 %v3008, %v2036
    %v3024 = vmul.f32 %v3010, %v2036
    %v3025 = vmul.f32 %v3012, %v2036
    %v3026 = vmul.f32 %v3014, %v2036
    %v3027 = vmul.f32 %v3016, %v2036
    %v3028 = vmul.f32 %v3018, %v2036
    %v3029 = vmul.f32 %v3020, %v2036
    %v3030 = vmul.f32 %v3022, %v2036
    %v3031 = vmul.f32 %v2991, %v2991
    %v3032 = vmul.f32 %v2992, %v2992
    %v3033 = vmul.f32 %v2993, %v2993
    %v3034 = vmul.f32 %v2994, %v2994
    %v3035 = vmul.f32 %v2995, %v2995
    %v3036 = vmul.f32 %v2996, %v2996
    %v3037 = vmul.f32 %v2997, %v2997
    %v3038 = vmul.f32 %v2998, %v2998
    %v3039 = vsub.f32 %v3023, %v3031
    %v3040 = vsub.f32 %v3024, %v3032
    %v3041 = vsub.f32 %v3025, %v3033
    %v3042 = vsub.f32 %v3026, %v3034
    %v3043 = vsub.f32 %v3027, %v3035
    %v3044 = vsub.f32 %v3028, %v3036
    %v3045 = vsub.f32 %v3029, %v3037
    %v3046 = vsub.f32 %v3030, %v3038
    %v3047 = vsub.f32 %v2965, %v2991
    %v3048 = vsub.f32 %v2966, %v2992
    %v3049 = vsub.f32 %v2967, %v2993
    %v3050 = vsub.f32 %v2968, %v2994
    %v3051 = vsub.f32 %v2969, %v2995
    %v3052 = vsub.f32 %v2970, %v2996
    %v3053 = vsub.f32 %v2971, %v2997
    %v3054 = vsub.f32 %v2972, %v2998
    %v3055 = vadd.f32 %v3039, 1e-05
    %v3056 = vadd.f32 %v3040, 1e-05
    %v3057 = vadd.f32 %v3041, 1e-05
    %v3058 = vadd.f32 %v3042, 1e-05
    %v3059 = vadd.f32 %v3043, 1e-05
    %v3060 = vadd.f32 %v3044, 1e-05
    %v3061 = vadd.f32 %v3045, 1e-05
    %v3062 = vadd.f32 %v3046, 1e-05
    %v3063 = vrsqrt.pop %v3055
    %v3064 = vmul.f32 %v3063, %v3055
    %v3065 = vmul.f32 %v3064, %v3063
    %v3066 = vmul.f32 0.5, %v3065
    %v3067 = vsub.f32 1.5, %v3066
    %v3068 = vmul.f32 %v3063, %v3067
    %vm3069 = vweird.f32 %v3055
    %vm3070 = vweird.f32 %v3063
    %vm3071 = vmor %vm3069, %vm3070
    %v3072 = vsel %vm3071, %v3063, %v3068
    %v3073 = vrsqrt.pop %v3056
    %v3074 = vmul.f32 %v3073, %v3056
    %v3075 = vmul.f32 %v3074, %v3073
    %v3076 = vmul.f32 0.5, %v3075
    %v3077 = vsub.f32 1.5, %v3076
    %v3078 = vmul.f32 %v3073, %v3077
    %vm3079 = vweird.f32 %v3056
    %vm3080 = vweird.f32 %v3073
    %vm3081 = vmor %vm3079, %vm3080
    %v3082 = vsel %vm3081, %v3073, %v3078
    %v3083 = vrsqrt.pop %v3057
    %v3084 = vmul.f32 %v3083, %v3057
    %v3085 = vmul.f32 %v3084, %v3083
    %v3086 = vmul.f32 0.5, %v3085
    %v3087 = vsub.f32 1.5, %v3086
    %v3088 = vmul.f32 %v3083, %v3087
    %vm3089 = vweird.f32 %v3057
    %vm3090 = vweird.f32 %v3083
    %vm3091 = vmor %vm3089, %vm3090
    %v3092 = vsel %vm3091, %v3083, %v3088
    %v3093 = vrsqrt.pop %v3058
    %v3094 = vmul.f32 %v3093, %v3058
    %v3095 = vmul.f32 %v3094, %v3093
    %v3096 = vmul.f32 0.5, %v3095
    %v3097 = vsub.f32 1.5, %v3096
    %v3098 = vmul.f32 %v3093, %v3097
    %vm3099 = vweird.f32 %v3058
    %vm3100 = vweird.f32 %v3093
    %vm3101 = vmor %vm3099, %vm3100
    %v3102 = vsel %vm3101, %v3093, %v3098
    %v3103 = vrsqrt.pop %v3059
    %v3104 = vmul.f32 %v3103, %v3059
    %v3105 = vmul.f32 %v3104, %v3103
    %v3106 = vmul.f32 0.5, %v3105
    %v3107 = vsub.f32 1.5, %v3106
    %v3108 = vmul.f32 %v3103, %v3107
    %vm3109 = vweird.f32 %v3059
    %vm3110 = vweird.f32 %v3103
    %vm3111 = vmor %vm3109, %vm3110
    %v3112 = vsel %vm3111, %v3103, %v3108
    %v3113 = vrsqrt.pop %v3060
    %v3114 = vmul.f32 %v3113, %v3060
    %v3115 = vmul.f32 %v3114, %v3113
    %v3116 = vmul.f32 0.5, %v3115
    %v3117 = vsub.f32 1.5, %v3116
    %v3118 = vmul.f32 %v3113, %v3117
    %vm3119 = vweird.f32 %v3060
    %vm3120 = vweird.f32 %v3113
    %vm3121 = vmor %vm3119, %vm3120
    %v3122 = vsel %vm3121, %v3113, %v3118
    %v3123 = vrsqrt.pop %v3061
    %v3124 = vmul.f32 %v3123, %v3061
    %v3125 = vmul.f32 %v3124, %v3123
    %v3126 = vmul.f32 0.5, %v3125
    %v3127 = vsub.f32 1.5, %v3126
    %v3128 = vmul.f32 %v3123, %v3127
    %vm3129 = vweird.f32 %v3061
    %vm3130 = vweird.f32 %v3123
    %vm3131 = vmor %vm3129, %vm3130
    %v3132 = vsel %vm3131, %v3123, %v3128
    %v3133 = vrsqrt.pop %v3062
    %v3134 = vmul.f32 %v3133, %v3062
    %v3135 = vmul.f32 %v3134, %v3133
    %v3136 = vmul.f32 0.5, %v3135
    %v3137 = vsub.f32 1.5, %v3136
    %v3138 = vmul.f32 %v3133, %v3137
    %vm3139 = vweird.f32 %v3062
    %vm3140 = vweird.f32 %v3133
    %vm3141 = vmor %vm3139, %vm3140
    %v3142 = vsel %vm3141, %v3133, %v3138
    %v3143 = vmul.f32 %v3047, %v3072
    %v3144 = vmul.f32 %v3048, %v3082
    %v3145 = vmul.f32 %v3049, %v3092
    %v3146 = vmul.f32 %v3050, %v3102
    %v3147 = vmul.f32 %v3051, %v3112
    %v3148 = vmul.f32 %v3052, %v3122
    %v3149 = vmul.f32 %v3053, %v3132
    %v3150 = vmul.f32 %v3054, %v3142
    %v3152 = vperm.slane %v2973, 0
    %v3154 = vmul.f32 %v3143, %v3152
    %v3155 = vmul.f32 %v3144, %v3152
    %v3156 = vmul.f32 %v3145, %v3152
    %v3157 = vmul.f32 %v3146, %v3152
    %v3158 = vmul.f32 %v3147, %v3152
    %v3159 = vmul.f32 %v3148, %v3152
    %v3160 = vmul.f32 %v3149, %v3152
    %v3161 = vmul.f32 %v3150, %v3152
    %v3163 = vperm.slane %v2974, 0
    %v3165 = vadd.f32 %v3154, %v3163
    %v3166 = vadd.f32 %v3155, %v3163
    %v3167 = vadd.f32 %v3156, %v3163
    %v3168 = vadd.f32 %v3157, %v3163
    %v3169 = vadd.f32 %v3158, %v3163
    %v3170 = vadd.f32 %v3159, %v3163
    %v3171 = vadd.f32 %v3160, %v3163
    %v3172 = vadd.f32 %v3161, %v3163
    %3173 = vst [vmem:[#allocation14] sm:$0xff] %v3165
    %3174 = vst [vmem:[#allocation14 + $0x8] sm:$0xff] %v3166
    %3175 = vst [vmem:[#allocation14 + $0x10] sm:$0xff] %v3167
    %3176 = vst [vmem:[#allocation14 + $0x18] sm:$0xff] %v3168
    %3177 = vst [vmem:[#allocation14 + $0x20] sm:$0xff] %v3169
    %3178 = vst [vmem:[#allocation14 + $0x28] sm:$0xff] %v3170
    %3179 = vst [vmem:[#allocation14 + $0x30] sm:$0xff] %v3171
    %3180 = vst [vmem:[#allocation14 + $0x38] sm:$0xff] %v3172
    // Predicated region
    $region78: #{tpu_custom_call.1} parent=1 // pred_check
      _
    $region79: #{tpu_custom_call.1} parent=1 // pred_check_branch
      %3182 = sbr.rel (0) target = $region81
    $region80: #{tpu_custom_call.1} parent=1 // pred_region
      %3184 = vsyncadd [#allocation5], 0
      %s3185 = sshll.u32 [#allocation14], 4
      %s3186 = int_to_ptr.vmem [resolvable:$true] %s3185
      %s3187 = sshll.u32 %s13, 4
      %s3188 = int_to_ptr.hbm [resolvable:$true] %s3187
      %3193 = dma.vmem_to_hbm [thread:$0]  %s3186, 1024, %s3188, [#allocation5], 128, 128, 8
    $region81: #{tpu_custom_call.1} parent=1 // pred_fallthru
      _
    // Predicated region
    $region82: #{tpu_custom_call.1} parent=1 // pred_check
      _
    $region83: #{tpu_custom_call.1} parent=1 // pred_check_branch
      %3195 = sbr.rel (0) target = $region85
    $region84: #{tpu_custom_call.1} parent=1 // pred_region
      %3197 = dma.done [#allocation5], 1024
    $region85: #{tpu_custom_call.1} parent=1 // pred_fallthru
      _
    %3198 = vsyncpa [#allocation4], 1
    %3199 = vsyncpa [#allocation7], 1
    %3200 = vsyncpa [#allocation10], 1
    %3201 = vsyncpa [#allocation13], 1
    %3202 = vsyncpa [#allocation5], 1

</llo_original>
